<compile_context>
chip_gen: v6e
topology: v6e:2x2x1
jax: 0.10.0
libtpu: 0.0.40
codegen_flags: <defaults>
</compile_context>

<pallas_src>
import math

import jax
import jax.numpy as jnp
from jax.experimental import pallas as pl
from jax.experimental.pallas import tpu as pltpu

IMG_CHANNEL = 3
WIDTH = 16                  # NAFNet width (= fourier_dim)
TIME_DIM = WIDTH * 4        # 64
MIDDLE_BLK_NUM = 1
LN_EPS = 1e-5


def _round_up(x, m):
    return (x + m - 1) // m * m


def _vmem_limit_bytes():
    # v5e/v6e: 128 MiB physical -> ask ~96 MiB; v7x: 64 MiB physical -> ask ~48 MiB
    # so the pipeline's double buffers still fit.
    cap = 128 * 1024 * 1024
    try:
        cap = int(pltpu.get_tpu_info().vmem_capacity_bytes)
    except Exception:
        pass
    return min(96 * 1024 * 1024, (cap * 3) // 4)


def _pick_batch_tile(B, S_pad):
    # Lane-pack batch elements at small spatial sizes (target >= ~1024 lanes/step).
    # NOTE: on v7x (2 TensorCores) with a tiny batch one may prefer batch_tile=1 so
    # both cores get a grid step; packing is the bigger win on v5e/v6e.
    cap = max(1, 1024 // S_pad)
    bt = 1
    for d in range(1, min(B, cap) + 1):
        if B % d == 0:
            bt = d
    return bt


# ---------------------------------------------------------------------------
# Fused Pallas kernel: intro 3x3 -> [NAFBlock] * n -> ending 3x3
# One grid step = `bt` lane-packed batch elements; activations are (C, L).
# ---------------------------------------------------------------------------
def make_fused_kernel(H, W, S_true, S_pad, bt, n_blocks, c):
    L = bt * S_pad
    dw = 2 * c
    btp = max(bt, 8)                 # pad pool width so SCA matmuls never have N < 8
    inv_c = 1.0 / float(c)
    inv_s = 1.0 / float(S_true)
    has_pad = S_pad != S_true
    offs = [(ky - 1, kx - 1) for ky in range(3) for kx in range(3)]

    def kernel(*refs):
        x_ref, introw_ref, introb_ref = refs[:3]
        blk_refs = refs[3:3 + 5 * n_blocks]
        endw_ref, endb_ref, o_ref = refs[3 + 5 * n_blocks:]

        # ---- in-kernel lane geometry (iota + float decompose; no int div needed) ----
        p = jax.lax.broadcasted_iota(jnp.int32, (1, L), 1).astype(jnp.float32)
        e = jnp.floor((p + 0.5) * (1.0 / S_pad))          # packed-batch element id
        pos = p - e * S_pad                               # flat position inside image
        hh = jnp.floor((pos + 0.5) * (1.0 / W))
        ww = pos - hh * W                                 # column inside image row

        def tap_mask(oy, ox):
            # the row-range check folds the h-bound and the "is a real pixel" check
            lo = float(max(0, -oy * W))
            hi = float(min(S_true, S_true - oy * W))
            m = (pos >= lo) & (pos < hi)
            if ox == -1:
                m = m & (ww >= 1.0)
            elif ox == 1:
                m = m & (ww < float(W - 1))
            return m.astype(jnp.float32)                  # (1, L)

        def taps(x):
            # 9 edge-masked spatial taps via XLU lane rotation (no padded copies);
            # any lane that would wrap is always masked, so roll*mask == zero-pad conv.
            for t, (oy, ox) in enumerate(offs):
                s = oy * W + ox
                shifted = x if s == 0 else pltpu.roll(x, shift=(-s) % L, axis=1)
                yield t, shifted * tap_mask(oy, ox)

        def conv3x3_dense(x, w_ref, b_col):
            # 9 accumulating (Cout,Cin)@(Cin,L) matmuls; only one tap buffer live.
            acc = None
            for t, tp in taps(x):
                r = jnp.dot(w_ref[t], tp, preferred_element_type=jnp.float32)
                acc = r if acc is None else acc + r
            return acc + b_col

        def conv3x3_dwise(x, wdw, b_col):
            acc = None
            for t, tp in taps(x):
                r = tp * wdw[:, t:t + 1]
                acc = r if acc is None else acc + r
            return acc + b_col

        ones_row = jnp.ones((1, c), jnp.float32)

        def layernorm(x, g, b):
            # channel (sublane) statistics on the MXU: keeps the XLU/VPU slots free
            mean = jnp.dot(ones_row, x, preferred_element_type=jnp.float32) * inv_c
            xc = x - mean
            var = jnp.dot(ones_row, xc * xc, preferred_element_type=jnp.float32) * inv_c
            return xc * jax.lax.rsqrt(var + LN_EPS) * g + b

        valid = (pos < float(S_true)).astype(jnp.float32) if has_pad else None

        if bt > 1:
            # segment-indicator matrices: per-image lane pooling / broadcast on the MXU
            def seg(rows, cols, elem_axis):
                r = jax.lax.broadcasted_iota(jnp.int32, (rows, cols), 0).astype(jnp.float32)
                q = jax.lax.broadcasted_iota(jnp.int32, (rows, cols), 1).astype(jnp.float32)
                elem, lane = (r, q) if elem_axis == 0 else (q, r)
                return ((lane >= elem * S_pad) &
                        (lane < (elem + 1.0) * S_pad)).astype(jnp.float32)
            sel = seg(L, btp, 1)        # (L, btp)
            selT = seg(btp, L, 0)       # (btp, L)

        x = conv3x3_dense(x_ref[...], introw_ref, introb_ref[...])           # (c, L)

        # TODO(synk): lax.fori_loop over stacked params if n_blocks grows.
        for i in range(n_blocks):
            wcc, wdw, pc, p2c, mod = (r[...] for r in blk_refs[5 * i:5 * i + 5])
            w1, w4 = wcc[0:dw], wcc[dw:2 * dw]
            w3 = wcc[2 * dw:2 * dw + c]
            wsca = wcc[2 * dw + c:2 * dw + 2 * c]
            w5 = wcc[2 * dw + 2 * c:2 * dw + 3 * c]
            ln1_g, ln1_b = pc[:, 0:1], pc[:, 1:2]
            ln2_g, ln2_b = pc[:, 2:3], pc[:, 3:4]
            b3, b5, bsca = pc[:, 4:5], pc[:, 5:6], pc[:, 6:7]
            beta, gamma = pc[:, 7:8], pc[:, 8:9]
            b1, b2, b4 = p2c[:, 0:1], p2c[:, 1:2], p2c[:, 2:3]
            sh_att, sc_att = mod[:, 0:1], mod[:, 1:2]
            sh_ffn, sc_ffn = mod[:, 2:3], mod[:, 3:4]

            inp = x
            # --- attention-like branch ---
            h = layernorm(inp, ln1_g, ln1_b)
            h = h * (sc_att + 1.0) + sh_att
            h = jnp.dot(w1, h, preferred_element_type=jnp.float32) + b1      # (2c, L)
            h = conv3x3_dwise(h, wdw, b2)                                     # depthwise 3x3
            h = h[:c] * h[c:]                                                 # SimpleGate
            hm = h * valid if has_pad else h                                  # drop padded lanes
            if bt > 1:
                pooled = jnp.dot(hm, sel, preferred_element_type=jnp.float32) * inv_s
                sca = jnp.dot(wsca, pooled, preferred_element_type=jnp.float32) + bsca
                h = h * jnp.dot(sca, selT, preferred_element_type=jnp.float32)
            else:
                pooled = jnp.sum(hm, axis=1, keepdims=True) * inv_s           # (c, 1)
                # matvec as a narrow matmul on a lane-broadcast column (c <= 128 assumed)
                sca = jnp.dot(wsca, jnp.broadcast_to(pooled, (c, 128)),
                              preferred_element_type=jnp.float32)[:, 0:1] + bsca
                h = h * sca
            h = jnp.dot(w3, h, preferred_element_type=jnp.float32) + b3
            y = inp + h * beta
            # --- FFN branch ---
            h = layernorm(y, ln2_g, ln2_b)
            h = h * (sc_ffn + 1.0) + sh_ffn
            h = jnp.dot(w4, h, preferred_element_type=jnp.float32) + b4       # (2c, L)
            h = h[:c] * h[c:]
            h = jnp.dot(w5, h, preferred_element_type=jnp.float32) + b5
            x = y + h * gamma

        # lane-dense output slab (Cimg rows, L lanes)
        o_ref[...] = conv3x3_dense(x, endw_ref, endb_ref[...])

    return kernel


# ---------------------------------------------------------------------------
# Wrapper / glue
# ---------------------------------------------------------------------------
def _const_spec(a):
    return pl.BlockSpec(a.shape, lambda g, _nd=a.ndim: (0,) * _nd)


def time_embedding(t, tp):
    half = WIDTH // 2
    freqs = jnp.exp(jnp.arange(half, dtype=jnp.float32) *
                    (-math.log(10000.0) / (half - 1)))
    t = jnp.reshape(jnp.asarray(t, jnp.float32), (1,))
    emb = t[:, None] * freqs[None, :]
    emb = jnp.concatenate([jnp.sin(emb), jnp.cos(emb)], axis=-1)      # (1, WIDTH)
    h = emb @ tp['w_a'] + tp['b_a']                                    # (1, 2*TIME_DIM)
    h1, h2 = jnp.split(h, 2, axis=-1)
    return (h1 * h2) @ tp['w_b'] + tp['b_b']                           # (1, TIME_DIM)


def block_modulation(t_emb, p):
    h1, h2 = jnp.split(t_emb, 2, axis=-1)                              # SimpleGate on t
    e = (h1 * h2) @ p['mlp_w'] + p['mlp_b']                            # (1, 4c)
    return jnp.transpose(e.reshape(4, -1))                             # (c, 4): sh_a, sc_a, sh_f, sc_f


def conditional_nafnet_forward(inp, cond, time, params, batch_tile=None):
    B, Cimg, H, W = inp.shape
    S_true = H * W
    S_pad = _round_up(S_true, 128)
    cin = 2 * Cimg
    cin_pad = _round_up(cin, 8)
    bt = _pick_batch_tile(B, S_pad) if batch_tile is None else int(batch_tile)
    assert B % bt == 0, (B, bt)
    nb = B // bt
    L = bt * S_pad

    # (B, 2*Cimg, S) activations; pad channels to a sublane tile, spatial to a lane
    # tile, then lane-pack `bt` batch elements per grid step.
    x = jnp.concatenate([inp - cond, cond], axis=1).reshape(B, cin, S_true)
    x = jnp.pad(x, ((0, 0), (0, cin_pad - cin), (0, S_pad - S_true)))
    x = x.reshape(nb, bt, cin_pad, S_pad).transpose(0, 2, 1, 3).reshape(nb, cin_pad, L)

    t_emb = time_embedding(time, params['time_mlp'])
    kp = params['packed']

    args = [x, kp['intro_w'], kp['intro_b']]
    in_specs = [pl.BlockSpec((None, cin_pad, L), lambda g: (g, 0, 0)),
                _const_spec(kp['intro_w']), _const_spec(kp['intro_b'])]
    # NOTE: with the tap masks generated in-kernel the constant-index inputs below are
    # tiny (~16 KiB total), so default double-buffering of them is harmless.
    for bp, rp in zip(kp['blocks'], params['blocks']):
        mod = block_modulation(t_emb, rp)
        for a in (bp['wcc'], bp['wdw'], bp['pc'], bp['p2c'], mod):
            args.append(a)
            in_specs.append(_const_spec(a))
    args += [kp['end_w'], kp['end_b']]
    in_specs += [_const_spec(kp['end_w']), _const_spec(kp['end_b'])]

    kernel = make_fused_kernel(H, W, S_true, S_pad, bt, len(params['blocks']), WIDTH)
    out = pl.pallas_call(
        kernel,
        out_shape=jax.ShapeDtypeStruct((nb, Cimg, L), jnp.float32),
        grid=(nb,),
        in_specs=in_specs,
        out_specs=pl.BlockSpec((None, Cimg, L), lambda g: (g, 0, 0)),
        compiler_params=pltpu.CompilerParams(
            dimension_semantics=("parallel",),
            vmem_limit_bytes=_vmem_limit_bytes()),
    )(*args)

    # unpack lanes -> (B, Cimg, H, W); padder_size = 1 so check_image_size is a no-op.
    out = out.reshape(nb, Cimg, bt, S_pad)[..., :S_true]
    out = out.transpose(0, 2, 1, 3).reshape(B, Cimg, H, W)
    return out


# ---------------------------------------------------------------------------
# Parameter init (PyTorch-convention shapes) + packing into kernel layout
# ---------------------------------------------------------------------------
def _w(key, shape, scale=0.1):
    return jax.random.normal(key, shape, jnp.float32) * scale


def _pack_conv3x3(w, cin_pad):
    co, ci = w.shape[0], w.shape[1]
    if cin_pad > ci:
        w = jnp.concatenate([w, jnp.zeros((co, cin_pad - ci, 3, 3), w.dtype)], axis=1)
    # (Cout, Cin, ky, kx) -> (9, Cout, Cin_pad), tap index t = ky*3 + kx
    return jnp.transpose(w, (2, 3, 0, 1)).reshape(9, co, cin_pad)


def pack_params(params):
    cin_pad = _round_up(2 * IMG_CHANNEL, 8)
    packed = {
        'intro_w': _pack_conv3x3(params['intro_w'], cin_pad),
        'intro_b': params['intro_b'].reshape(-1, 1),
        'end_w': _pack_conv3x3(params['ending_w'], WIDTH),
        'end_b': params['ending_b'].reshape(-1, 1),
        'blocks': [],
    }
    for p in params['blocks']:
        packed['blocks'].append({
            'wcc': jnp.concatenate([p['w1'], p['w4'], p['w3'], p['wsca'], p['w5']], axis=0),
            'wdw': p['w2'].reshape(p['w2'].shape[0], 9),
            'pc': jnp.stack([p['ln1_g'], p['ln1_b'], p['ln2_g'], p['ln2_b'],
                             p['b3'], p['b5'], p['bsca'], p['beta'], p['gamma']], axis=1),
            'p2c': jnp.stack([p['b1'], p['b2'], p['b4']], axis=1),
        })
    return packed


def init_block_params(key, c):
    dw = 2 * c
    ks = jax.random.split(key, 16)
    return {
        'ln1_g': jnp.ones((c,), jnp.float32), 'ln1_b': jnp.zeros((c,), jnp.float32),
        'ln2_g': jnp.ones((c,), jnp.float32), 'ln2_b': jnp.zeros((c,), jnp.float32),
        'w1': _w(ks[0], (dw, c)),    'b1': _w(ks[1], (dw,), 0.01),
        'w2': _w(ks[2], (dw, 3, 3)), 'b2': _w(ks[3], (dw,), 0.01),
        'w3': _w(ks[4], (c, c)),     'b3': _w(ks[5], (c,), 0.01),
        'wsca': _w(ks[6], (c, c)),   'bsca': _w(ks[7], (c,), 0.01),
        'w4': _w(ks[8], (dw, c)),    'b4': _w(ks[9], (dw,), 0.01),
        'w5': _w(ks[10], (c, c)),    'b5': _w(ks[11], (c,), 0.01),
        # PyTorch inits beta/gamma to zero; nonzero here so the reference check
        # exercises the full residual path.
        'beta': _w(ks[12], (c,), 0.1), 'gamma': _w(ks[13], (c,), 0.1),
        'mlp_w': _w(ks[14], (TIME_DIM // 2, 4 * c)), 'mlp_b': _w(ks[15], (4 * c,), 0.01),
    }


def init_params(key):
    ks = jax.random.split(key, 8 + MIDDLE_BLK_NUM)
    params = {
        'time_mlp': {'w_a': _w(ks[0], (WIDTH, 2 * TIME_DIM)),
                     'b_a': _w(ks[1], (2 * TIME_DIM,), 0.01),
                     'w_b': _w(ks[2], (TIME_DIM, TIME_DIM)),
                     'b_b': _w(ks[3], (TIME_DIM,), 0.01)},
        'intro_w': _w(ks[4], (WIDTH, 2 * IMG_CHANNEL, 3, 3)),
        'intro_b': _w(ks[5], (WIDTH,), 0.01),
        'ending_w': _w(ks[6], (IMG_CHANNEL, WIDTH, 3, 3)),
        'ending_b': _w(ks[7], (IMG_CHANNEL,), 0.01),
        'blocks': [init_block_params(ks[8 + i], WIDTH) for i in range(MIDDLE_BLK_NUM)],
    }
    params['packed'] = pack_params(params)
    return params


# ---------------------------------------------------------------------------
# Pure-JAX reference (NCHW) for in-script correctness check
# ---------------------------------------------------------------------------
def _conv3x3_ref(x, w, b, groups=1):
    y = jax.lax.conv_general_dilated(
        x, w, window_strides=(1, 1), padding=((1, 1), (1, 1)),
        dimension_numbers=('NCHW', 'OIHW', 'NCHW'),
        feature_group_count=groups, precision=jax.lax.Precision.HIGHEST)
    return y + b.reshape(1, -1, 1, 1)


def _conv1x1_ref(x, w, b):
    y = jnp.einsum('oi,bihw->bohw', w, x, precision=jax.lax.Precision.HIGHEST)
    return y + b.reshape(1, -1, 1, 1)


def _layernorm_ref(x, g, b):
    mean = jnp.mean(x, axis=1, keepdims=True)
    var = jnp.mean(jnp.square(x - mean), axis=1, keepdims=True)
    return (x - mean) * jax.lax.rsqrt(var + LN_EPS) * g.reshape(1, -1, 1, 1) + b.reshape(1, -1, 1, 1)


def reference_forward(inp, cond, time, params):
    c = WIDTH
    x = jnp.concatenate([inp - cond, cond], axis=1)
    t_emb = time_embedding(time, params['time_mlp'])
    x = _conv3x3_ref(x, params['intro_w'], params['intro_b'])
    for p in params['blocks']:
        mod = block_modulation(t_emb, p)
        sh_att, sc_att, sh_ffn, sc_ffn = (mod[:, i].reshape(1, c, 1, 1) for i in range(4))
        inp_b = x
        h = _layernorm_ref(x, p['ln1_g'], p['ln1_b'])
        h = h * (sc_att + 1.0) + sh_att
        h = _conv1x1_ref(h, p['w1'], p['b1'])
        h = _conv3x3_ref(h, p['w2'][:, None, :, :], p['b2'], groups=2 * c)
        h = h[:, :c] * h[:, c:]
        pooled = jnp.mean(h, axis=(2, 3), keepdims=True)
        sca = jnp.einsum('oi,bijk->bojk', p['wsca'], pooled,
                         precision=jax.lax.Precision.HIGHEST) + p['bsca'].reshape(1, -1, 1, 1)
        h = h * sca
        h = _conv1x1_ref(h, p['w3'], p['b3'])
        y = inp_b + h * p['beta'].reshape(1, -1, 1, 1)
        h = _layernorm_ref(y, p['ln2_g'], p['ln2_b'])
        h = h * (sc_ffn + 1.0) + sh_ffn
        h = _conv1x1_ref(h, p['w4'], p['b4'])
        h = h[:, :c] * h[:, c:]
        h = _conv1x1_ref(h, p['w5'], p['b5'])
        x = y + h * p['gamma'].reshape(1, -1, 1, 1)
    return _conv3x3_ref(x, params['ending_w'], params['ending_b'])


if __name__ == "__main__":
    key = jax.random.PRNGKey(0)
    k_inp, k_cond, k_param = jax.random.split(key, 3)
    params = init_params(k_param)

    fwd = jax.jit(conditional_nafnet_forward, static_argnames=("batch_tile",))

    # --- config 1: lane-aligned spatial size, batch lane-packing (bt = 2) ---
    B, H, W = 2, 16, 16
    inp = jax.random.normal(k_inp, (B, IMG_CHANNEL, H, W), jnp.float32)
    cond = jax.random.normal(k_cond, (B, IMG_CHANNEL, H, W), jnp.float32)
    out = jax.block_until_ready(fwd(inp, cond, 0.5, params))
    assert out.shape == (B, IMG_CHANNEL, H, W), out.shape
    assert bool(jnp.all(jnp.isfinite(out)))
    ref = reference_forward(inp, cond, 0.5, params)
    err = float(jnp.max(jnp.abs(out - ref)))
    assert err < 1e-2, f"config1 mismatch vs reference: max abs err = {err}"

    # --- config 2: non-lane-aligned spatial size (S=144 -> padded to 256), bt = 1 ---
    H2, W2 = 12, 12
    inp2 = jax.random.normal(jax.random.PRNGKey(1), (B, IMG_CHANNEL, H2, W2), jnp.float32)
    cond2 = jax.random.normal(jax.random.PRNGKey(2), (B, IMG_CHANNEL, H2, W2), jnp.float32)
    out2 = jax.block_until_ready(fwd(inp2, cond2, 0.5, params, batch_tile=1))
    assert out2.shape == (B, IMG_CHANNEL, H2, W2), out2.shape
    assert bool(jnp.all(jnp.isfinite(out2)))
    ref2 = reference_forward(inp2, cond2, 0.5, params)
    err2 = float(jnp.max(jnp.abs(out2 - ref2)))
    assert err2 < 1e-2, f"config2 mismatch vs reference: max abs err = {err2}"

    print("KERNEL_OK")
</pallas_src>

<mosaic_0001>
module attributes {stable_mosaic.version = 11 : i64} {
  func.func @kernel(%arg0: i32, %arg1: memref<1x8x512xf32, #tpu.memory_space<vmem>>, %arg2: memref<9x16x8xf32, #tpu.memory_space<vmem>>, %arg3: memref<16x1xf32, #tpu.memory_space<vmem>>, %arg4: memref<112x16xf32, #tpu.memory_space<vmem>>, %arg5: memref<32x9xf32, #tpu.memory_space<vmem>>, %arg6: memref<16x9xf32, #tpu.memory_space<vmem>>, %arg7: memref<32x3xf32, #tpu.memory_space<vmem>>, %arg8: memref<16x4xf32, #tpu.memory_space<vmem>>, %arg9: memref<9x3x16xf32, #tpu.memory_space<vmem>>, %arg10: memref<3x1xf32, #tpu.memory_space<vmem>>, %arg11: memref<1x3x512xf32, #tpu.memory_space<vmem>>) attributes {dimension_semantics = [#tpu.dimension_semantics<parallel>], iteration_bounds = array<i64: 1>, scalar_prefetch = 0 : i64, scratch_operands = 0 : i64, tpu.core_type = #tpu.core_type<tc>, window_params = [{transform_indices = @transform_0, window_bounds = array<i64: 1, 8, 512>}, {pipeline_mode = #tpu.pipeline_mode<synchronous>, transform_indices = @transform_1, window_bounds = array<i64: 9, 16, 8>}, {pipeline_mode = #tpu.pipeline_mode<synchronous>, transform_indices = @transform_2, window_bounds = array<i64: 16, 1>}, {pipeline_mode = #tpu.pipeline_mode<synchronous>, transform_indices = @transform_3, window_bounds = array<i64: 112, 16>}, {pipeline_mode = #tpu.pipeline_mode<synchronous>, transform_indices = @transform_4, window_bounds = array<i64: 32, 9>}, {pipeline_mode = #tpu.pipeline_mode<synchronous>, transform_indices = @transform_5, window_bounds = array<i64: 16, 9>}, {pipeline_mode = #tpu.pipeline_mode<synchronous>, transform_indices = @transform_6, window_bounds = array<i64: 32, 3>}, {pipeline_mode = #tpu.pipeline_mode<synchronous>, transform_indices = @transform_7, window_bounds = array<i64: 16, 4>}, {pipeline_mode = #tpu.pipeline_mode<synchronous>, transform_indices = @transform_8, window_bounds = array<i64: 9, 3, 16>}, {pipeline_mode = #tpu.pipeline_mode<synchronous>, transform_indices = @transform_9, window_bounds = array<i64: 3, 1>}, {transform_indices = @transform_10, window_bounds = array<i64: 1, 3, 512>}]} {
    %0 = tpu.iota {dimensions = array<i32: 1>} : vector<1x512xi32>
    %1 = arith.sitofp %0 : vector<1x512xi32> to vector<1x512xf32>
    %cst = arith.constant 5.000000e-01 : f32
    %2 = vector.broadcast %cst : f32 to vector<1x512xf32>
    %3 = arith.addf %1, %2 : vector<1x512xf32>
    %cst_0 = arith.constant 3.906250e-03 : f32
    %4 = vector.broadcast %cst_0 : f32 to vector<1x512xf32>
    %5 = arith.mulf %3, %4 : vector<1x512xf32>
    %6 = math.floor %5 : vector<1x512xf32>
    %cst_1 = arith.constant 2.560000e+02 : f32
    %7 = vector.broadcast %cst_1 : f32 to vector<1x512xf32>
    %8 = arith.mulf %6, %7 : vector<1x512xf32>
    %9 = arith.subf %1, %8 : vector<1x512xf32>
    %cst_2 = arith.constant 5.000000e-01 : f32
    %10 = vector.broadcast %cst_2 : f32 to vector<1x512xf32>
    %11 = arith.addf %9, %10 : vector<1x512xf32>
    %cst_3 = arith.constant 6.250000e-02 : f32
    %12 = vector.broadcast %cst_3 : f32 to vector<1x512xf32>
    %13 = arith.mulf %11, %12 : vector<1x512xf32>
    %14 = math.floor %13 : vector<1x512xf32>
    %cst_4 = arith.constant 1.600000e+01 : f32
    %15 = vector.broadcast %cst_4 : f32 to vector<1x512xf32>
    %16 = arith.mulf %14, %15 : vector<1x512xf32>
    %17 = arith.subf %9, %16 : vector<1x512xf32>
    %cst_5 = arith.constant 1.000000e+00 : f32
    %18 = vector.broadcast %cst_5 : f32 to vector<1x16xf32>
    %19 = tpu.iota {dimensions = array<i32: 0>} : vector<512x8xi32>
    %20 = arith.sitofp %19 : vector<512x8xi32> to vector<512x8xf32>
    %21 = tpu.iota {dimensions = array<i32: 1>} : vector<512x8xi32>
    %22 = arith.sitofp %21 : vector<512x8xi32> to vector<512x8xf32>
    %cst_6 = arith.constant 2.560000e+02 : f32
    %23 = vector.broadcast %cst_6 : f32 to vector<512x8xf32>
    %24 = arith.mulf %22, %23 : vector<512x8xf32>
    %25 = arith.cmpf oge, %20, %24 : vector<512x8xf32>
    %cst_7 = arith.constant 1.000000e+00 : f32
    %26 = vector.broadcast %cst_7 : f32 to vector<512x8xf32>
    %27 = arith.addf %22, %26 : vector<512x8xf32>
    %cst_8 = arith.constant 2.560000e+02 : f32
    %28 = vector.broadcast %cst_8 : f32 to vector<512x8xf32>
    %29 = arith.mulf %27, %28 : vector<512x8xf32>
    %30 = arith.cmpf olt, %20, %29 : vector<512x8xf32>
    %31 = arith.andi %25, %30 : vector<512x8xi1>
    %32 = arith.extui %31 : vector<512x8xi1> to vector<512x8xi32>
    %33 = arith.sitofp %32 : vector<512x8xi32> to vector<512x8xf32>
    %34 = tpu.iota {dimensions = array<i32: 0>} : vector<8x512xi32>
    %35 = arith.sitofp %34 : vector<8x512xi32> to vector<8x512xf32>
    %36 = tpu.iota {dimensions = array<i32: 1>} : vector<8x512xi32>
    %37 = arith.sitofp %36 : vector<8x512xi32> to vector<8x512xf32>
    %cst_9 = arith.constant 2.560000e+02 : f32
    %38 = vector.broadcast %cst_9 : f32 to vector<8x512xf32>
    %39 = arith.mulf %35, %38 : vector<8x512xf32>
    %40 = arith.cmpf oge, %37, %39 : vector<8x512xf32>
    %cst_10 = arith.constant 1.000000e+00 : f32
    %41 = vector.broadcast %cst_10 : f32 to vector<8x512xf32>
    %42 = arith.addf %35, %41 : vector<8x512xf32>
    %cst_11 = arith.constant 2.560000e+02 : f32
    %43 = vector.broadcast %cst_11 : f32 to vector<8x512xf32>
    %44 = arith.mulf %42, %43 : vector<8x512xf32>
    %45 = arith.cmpf olt, %37, %44 : vector<8x512xf32>
    %46 = arith.andi %40, %45 : vector<8x512xi1>
    %47 = arith.extui %46 : vector<8x512xi1> to vector<8x512xi32>
    %48 = arith.sitofp %47 : vector<8x512xi32> to vector<8x512xf32>
    %c0 = arith.constant 0 : index
    %c0_12 = arith.constant 0 : index
    %c0_13 = arith.constant 0 : index
    %49 = vector.load %arg1[%c0, %c0_12, %c0_13] : memref<1x8x512xf32, #tpu.memory_space<vmem>>, vector<1x8x512xf32>
    %50 = vector.shape_cast %49 : vector<1x8x512xf32> to vector<8x512xf32>
    %c0_14 = arith.constant 0 : index
    %c0_15 = arith.constant 0 : index
    %51 = vector.load %arg3[%c0_14, %c0_15] : memref<16x1xf32, #tpu.memory_space<vmem>>, vector<16x1xf32>
    %c17_i32 = arith.constant 17 : i32
    %52 = tpu.dynamic_rotate %50 by %c17_i32 dim 1 : vector<8x512xf32>, i32 -> vector<8x512xf32>
    %cst_16 = arith.constant 1.600000e+01 : f32
    %53 = vector.broadcast %cst_16 : f32 to vector<1x512xf32>
    %54 = arith.cmpf oge, %9, %53 : vector<1x512xf32>
    %cst_17 = arith.constant 2.560000e+02 : f32
    %55 = vector.broadcast %cst_17 : f32 to vector<1x512xf32>
    %56 = arith.cmpf olt, %9, %55 : vector<1x512xf32>
    %57 = arith.andi %54, %56 : vector<1x512xi1>
    %cst_18 = arith.constant 1.000000e+00 : f32
    %58 = vector.broadcast %cst_18 : f32 to vector<1x512xf32>
    %59 = arith.cmpf oge, %17, %58 : vector<1x512xf32>
    %60 = arith.andi %57, %59 : vector<1x512xi1>
    %61 = arith.extui %60 : vector<1x512xi1> to vector<1x512xi32>
    %62 = arith.sitofp %61 : vector<1x512xi32> to vector<1x512xf32>
    %63 = vector.broadcast %62 : vector<1x512xf32> to vector<8x512xf32>
    %64 = arith.mulf %52, %63 : vector<8x512xf32>
    %c0_19 = arith.constant 0 : index
    %c0_20 = arith.constant 0 : index
    %c0_21 = arith.constant 0 : index
    %65 = vector.load %arg2[%c0_19, %c0_20, %c0_21] : memref<9x16x8xf32, #tpu.memory_space<vmem>>, vector<1x16x8xf32>
    %66 = vector.shape_cast %65 : vector<1x16x8xf32> to vector<16x8xf32>
    %cst_22 = arith.constant dense<0.000000e+00> : vector<16x512xf32>
    %67 = tpu.matmul %66, %64, %cst_22 {dimension_numbers = #tpu.dot_dimension_numbers<[1], [0], [0], [1], [0, 0, 1, 1], [], []>} : vector<16x8xf32>, vector<8x512xf32>, vector<16x512xf32> -> vector<16x512xf32>
    %c16_i32 = arith.constant 16 : i32
    %68 = tpu.dynamic_rotate %50 by %c16_i32 dim 1 : vector<8x512xf32>, i32 -> vector<8x512xf32>
    %cst_23 = arith.constant 1.600000e+01 : f32
    %69 = vector.broadcast %cst_23 : f32 to vector<1x512xf32>
    %70 = arith.cmpf oge, %9, %69 : vector<1x512xf32>
    %cst_24 = arith.constant 2.560000e+02 : f32
    %71 = vector.broadcast %cst_24 : f32 to vector<1x512xf32>
    %72 = arith.cmpf olt, %9, %71 : vector<1x512xf32>
    %73 = arith.andi %70, %72 : vector<1x512xi1>
    %74 = arith.extui %73 : vector<1x512xi1> to vector<1x512xi32>
    %75 = arith.sitofp %74 : vector<1x512xi32> to vector<1x512xf32>
    %76 = vector.broadcast %75 : vector<1x512xf32> to vector<8x512xf32>
    %77 = arith.mulf %68, %76 : vector<8x512xf32>
    %c1 = arith.constant 1 : index
    %c0_25 = arith.constant 0 : index
    %c0_26 = arith.constant 0 : index
    %78 = vector.load %arg2[%c1, %c0_25, %c0_26] : memref<9x16x8xf32, #tpu.memory_space<vmem>>, vector<1x16x8xf32>
    %79 = vector.shape_cast %78 : vector<1x16x8xf32> to vector<16x8xf32>
    %cst_27 = arith.constant dense<0.000000e+00> : vector<16x512xf32>
    %80 = tpu.matmul %79, %77, %cst_27 {dimension_numbers = #tpu.dot_dimension_numbers<[1], [0], [0], [1], [0, 0, 1, 1], [], []>} : vector<16x8xf32>, vector<8x512xf32>, vector<16x512xf32> -> vector<16x512xf32>
    %81 = arith.addf %67, %80 : vector<16x512xf32>
    %c15_i32 = arith.constant 15 : i32
    %82 = tpu.dynamic_rotate %50 by %c15_i32 dim 1 : vector<8x512xf32>, i32 -> vector<8x512xf32>
    %cst_28 = arith.constant 1.600000e+01 : f32
    %83 = vector.broadcast %cst_28 : f32 to vector<1x512xf32>
    %84 = arith.cmpf oge, %9, %83 : vector<1x512xf32>
    %cst_29 = arith.constant 2.560000e+02 : f32
    %85 = vector.broadcast %cst_29 : f32 to vector<1x512xf32>
    %86 = arith.cmpf olt, %9, %85 : vector<1x512xf32>
    %87 = arith.andi %84, %86 : vector<1x512xi1>
    %cst_30 = arith.constant 1.500000e+01 : f32
    %88 = vector.broadcast %cst_30 : f32 to vector<1x512xf32>
    %89 = arith.cmpf olt, %17, %88 : vector<1x512xf32>
    %90 = arith.andi %87, %89 : vector<1x512xi1>
    %91 = arith.extui %90 : vector<1x512xi1> to vector<1x512xi32>
    %92 = arith.sitofp %91 : vector<1x512xi32> to vector<1x512xf32>
    %93 = vector.broadcast %92 : vector<1x512xf32> to vector<8x512xf32>
    %94 = arith.mulf %82, %93 : vector<8x512xf32>
    %c2 = arith.constant 2 : index
    %c0_31 = arith.constant 0 : index
    %c0_32 = arith.constant 0 : index
    %95 = vector.load %arg2[%c2, %c0_31, %c0_32] : memref<9x16x8xf32, #tpu.memory_space<vmem>>, vector<1x16x8xf32>
    %96 = vector.shape_cast %95 : vector<1x16x8xf32> to vector<16x8xf32>
    %cst_33 = arith.constant dense<0.000000e+00> : vector<16x512xf32>
    %97 = tpu.matmul %96, %94, %cst_33 {dimension_numbers = #tpu.dot_dimension_numbers<[1], [0], [0], [1], [0, 0, 1, 1], [], []>} : vector<16x8xf32>, vector<8x512xf32>, vector<16x512xf32> -> vector<16x512xf32>
    %98 = arith.addf %81, %97 : vector<16x512xf32>
    %c1_i32 = arith.constant 1 : i32
    %99 = tpu.dynamic_rotate %50 by %c1_i32 dim 1 : vector<8x512xf32>, i32 -> vector<8x512xf32>
    %cst_34 = arith.constant 0.000000e+00 : f32
    %100 = vector.broadcast %cst_34 : f32 to vector<1x512xf32>
    %101 = arith.cmpf oge, %9, %100 : vector<1x512xf32>
    %cst_35 = arith.constant 2.560000e+02 : f32
    %102 = vector.broadcast %cst_35 : f32 to vector<1x512xf32>
    %103 = arith.cmpf olt, %9, %102 : vector<1x512xf32>
    %104 = arith.andi %101, %103 : vector<1x512xi1>
    %cst_36 = arith.constant 1.000000e+00 : f32
    %105 = vector.broadcast %cst_36 : f32 to vector<1x512xf32>
    %106 = arith.cmpf oge, %17, %105 : vector<1x512xf32>
    %107 = arith.andi %104, %106 : vector<1x512xi1>
    %108 = arith.extui %107 : vector<1x512xi1> to vector<1x512xi32>
    %109 = arith.sitofp %108 : vector<1x512xi32> to vector<1x512xf32>
    %110 = vector.broadcast %109 : vector<1x512xf32> to vector<8x512xf32>
    %111 = arith.mulf %99, %110 : vector<8x512xf32>
    %c3 = arith.constant 3 : index
    %c0_37 = arith.constant 0 : index
    %c0_38 = arith.constant 0 : index
    %112 = vector.load %arg2[%c3, %c0_37, %c0_38] : memref<9x16x8xf32, #tpu.memory_space<vmem>>, vector<1x16x8xf32>
    %113 = vector.shape_cast %112 : vector<1x16x8xf32> to vector<16x8xf32>
    %cst_39 = arith.constant dense<0.000000e+00> : vector<16x512xf32>
    %114 = tpu.matmul %113, %111, %cst_39 {dimension_numbers = #tpu.dot_dimension_numbers<[1], [0], [0], [1], [0, 0, 1, 1], [], []>} : vector<16x8xf32>, vector<8x512xf32>, vector<16x512xf32> -> vector<16x512xf32>
    %115 = arith.addf %98, %114 : vector<16x512xf32>
    %cst_40 = arith.constant 0.000000e+00 : f32
    %116 = vector.broadcast %cst_40 : f32 to vector<1x512xf32>
    %117 = arith.cmpf oge, %9, %116 : vector<1x512xf32>
    %cst_41 = arith.constant 2.560000e+02 : f32
    %118 = vector.broadcast %cst_41 : f32 to vector<1x512xf32>
    %119 = arith.cmpf olt, %9, %118 : vector<1x512xf32>
    %120 = arith.andi %117, %119 : vector<1x512xi1>
    %121 = arith.extui %120 : vector<1x512xi1> to vector<1x512xi32>
    %122 = arith.sitofp %121 : vector<1x512xi32> to vector<1x512xf32>
    %123 = vector.broadcast %122 : vector<1x512xf32> to vector<8x512xf32>
    %124 = arith.mulf %50, %123 : vector<8x512xf32>
    %c4 = arith.constant 4 : index
    %c0_42 = arith.constant 0 : index
    %c0_43 = arith.constant 0 : index
    %125 = vector.load %arg2[%c4, %c0_42, %c0_43] : memref<9x16x8xf32, #tpu.memory_space<vmem>>, vector<1x16x8xf32>
    %126 = vector.shape_cast %125 : vector<1x16x8xf32> to vector<16x8xf32>
    %cst_44 = arith.constant dense<0.000000e+00> : vector<16x512xf32>
    %127 = tpu.matmul %126, %124, %cst_44 {dimension_numbers = #tpu.dot_dimension_numbers<[1], [0], [0], [1], [0, 0, 1, 1], [], []>} : vector<16x8xf32>, vector<8x512xf32>, vector<16x512xf32> -> vector<16x512xf32>
    %128 = arith.addf %115, %127 : vector<16x512xf32>
    %c511_i32 = arith.constant 511 : i32
    %129 = tpu.dynamic_rotate %50 by %c511_i32 dim 1 : vector<8x512xf32>, i32 -> vector<8x512xf32>
    %cst_45 = arith.constant 0.000000e+00 : f32
    %130 = vector.broadcast %cst_45 : f32 to vector<1x512xf32>
    %131 = arith.cmpf oge, %9, %130 : vector<1x512xf32>
    %cst_46 = arith.constant 2.560000e+02 : f32
    %132 = vector.broadcast %cst_46 : f32 to vector<1x512xf32>
    %133 = arith.cmpf olt, %9, %132 : vector<1x512xf32>
    %134 = arith.andi %131, %133 : vector<1x512xi1>
    %cst_47 = arith.constant 1.500000e+01 : f32
    %135 = vector.broadcast %cst_47 : f32 to vector<1x512xf32>
    %136 = arith.cmpf olt, %17, %135 : vector<1x512xf32>
    %137 = arith.andi %134, %136 : vector<1x512xi1>
    %138 = arith.extui %137 : vector<1x512xi1> to vector<1x512xi32>
    %139 = arith.sitofp %138 : vector<1x512xi32> to vector<1x512xf32>
    %140 = vector.broadcast %139 : vector<1x512xf32> to vector<8x512xf32>
    %141 = arith.mulf %129, %140 : vector<8x512xf32>
    %c5 = arith.constant 5 : index
    %c0_48 = arith.constant 0 : index
    %c0_49 = arith.constant 0 : index
    %142 = vector.load %arg2[%c5, %c0_48, %c0_49] : memref<9x16x8xf32, #tpu.memory_space<vmem>>, vector<1x16x8xf32>
    %143 = vector.shape_cast %142 : vector<1x16x8xf32> to vector<16x8xf32>
    %cst_50 = arith.constant dense<0.000000e+00> : vector<16x512xf32>
    %144 = tpu.matmul %143, %141, %cst_50 {dimension_numbers = #tpu.dot_dimension_numbers<[1], [0], [0], [1], [0, 0, 1, 1], [], []>} : vector<16x8xf32>, vector<8x512xf32>, vector<16x512xf32> -> vector<16x512xf32>
    %145 = arith.addf %128, %144 : vector<16x512xf32>
    %c497_i32 = arith.constant 497 : i32
    %146 = tpu.dynamic_rotate %50 by %c497_i32 dim 1 : vector<8x512xf32>, i32 -> vector<8x512xf32>
    %cst_51 = arith.constant 0.000000e+00 : f32
    %147 = vector.broadcast %cst_51 : f32 to vector<1x512xf32>
    %148 = arith.cmpf oge, %9, %147 : vector<1x512xf32>
    %cst_52 = arith.constant 2.400000e+02 : f32
    %149 = vector.broadcast %cst_52 : f32 to vector<1x512xf32>
    %150 = arith.cmpf olt, %9, %149 : vector<1x512xf32>
    %151 = arith.andi %148, %150 : vector<1x512xi1>
    %cst_53 = arith.constant 1.000000e+00 : f32
    %152 = vector.broadcast %cst_53 : f32 to vector<1x512xf32>
    %153 = arith.cmpf oge, %17, %152 : vector<1x512xf32>
    %154 = arith.andi %151, %153 : vector<1x512xi1>
    %155 = arith.extui %154 : vector<1x512xi1> to vector<1x512xi32>
    %156 = arith.sitofp %155 : vector<1x512xi32> to vector<1x512xf32>
    %157 = vector.broadcast %156 : vector<1x512xf32> to vector<8x512xf32>
    %158 = arith.mulf %146, %157 : vector<8x512xf32>
    %c6 = arith.constant 6 : index
    %c0_54 = arith.constant 0 : index
    %c0_55 = arith.constant 0 : index
    %159 = vector.load %arg2[%c6, %c0_54, %c0_55] : memref<9x16x8xf32, #tpu.memory_space<vmem>>, vector<1x16x8xf32>
    %160 = vector.shape_cast %159 : vector<1x16x8xf32> to vector<16x8xf32>
    %cst_56 = arith.constant dense<0.000000e+00> : vector<16x512xf32>
    %161 = tpu.matmul %160, %158, %cst_56 {dimension_numbers = #tpu.dot_dimension_numbers<[1], [0], [0], [1], [0, 0, 1, 1], [], []>} : vector<16x8xf32>, vector<8x512xf32>, vector<16x512xf32> -> vector<16x512xf32>
    %162 = arith.addf %145, %161 : vector<16x512xf32>
    %c496_i32 = arith.constant 496 : i32
    %163 = tpu.dynamic_rotate %50 by %c496_i32 dim 1 : vector<8x512xf32>, i32 -> vector<8x512xf32>
    %cst_57 = arith.constant 0.000000e+00 : f32
    %164 = vector.broadcast %cst_57 : f32 to vector<1x512xf32>
    %165 = arith.cmpf oge, %9, %164 : vector<1x512xf32>
    %cst_58 = arith.constant 2.400000e+02 : f32
    %166 = vector.broadcast %cst_58 : f32 to vector<1x512xf32>
    %167 = arith.cmpf olt, %9, %166 : vector<1x512xf32>
    %168 = arith.andi %165, %167 : vector<1x512xi1>
    %169 = arith.extui %168 : vector<1x512xi1> to vector<1x512xi32>
    %170 = arith.sitofp %169 : vector<1x512xi32> to vector<1x512xf32>
    %171 = vector.broadcast %170 : vector<1x512xf32> to vector<8x512xf32>
    %172 = arith.mulf %163, %171 : vector<8x512xf32>
    %c7 = arith.constant 7 : index
    %c0_59 = arith.constant 0 : index
    %c0_60 = arith.constant 0 : index
    %173 = vector.load %arg2[%c7, %c0_59, %c0_60] : memref<9x16x8xf32, #tpu.memory_space<vmem>>, vector<1x16x8xf32>
    %174 = vector.shape_cast %173 : vector<1x16x8xf32> to vector<16x8xf32>
    %cst_61 = arith.constant dense<0.000000e+00> : vector<16x512xf32>
    %175 = tpu.matmul %174, %172, %cst_61 {dimension_numbers = #tpu.dot_dimension_numbers<[1], [0], [0], [1], [0, 0, 1, 1], [], []>} : vector<16x8xf32>, vector<8x512xf32>, vector<16x512xf32> -> vector<16x512xf32>
    %176 = arith.addf %162, %175 : vector<16x512xf32>
    %c495_i32 = arith.constant 495 : i32
    %177 = tpu.dynamic_rotate %50 by %c495_i32 dim 1 : vector<8x512xf32>, i32 -> vector<8x512xf32>
    %cst_62 = arith.constant 0.000000e+00 : f32
    %178 = vector.broadcast %cst_62 : f32 to vector<1x512xf32>
    %179 = arith.cmpf oge, %9, %178 : vector<1x512xf32>
    %cst_63 = arith.constant 2.400000e+02 : f32
    %180 = vector.broadcast %cst_63 : f32 to vector<1x512xf32>
    %181 = arith.cmpf olt, %9, %180 : vector<1x512xf32>
    %182 = arith.andi %179, %181 : vector<1x512xi1>
    %cst_64 = arith.constant 1.500000e+01 : f32
    %183 = vector.broadcast %cst_64 : f32 to vector<1x512xf32>
    %184 = arith.cmpf olt, %17, %183 : vector<1x512xf32>
    %185 = arith.andi %182, %184 : vector<1x512xi1>
    %186 = arith.extui %185 : vector<1x512xi1> to vector<1x512xi32>
    %187 = arith.sitofp %186 : vector<1x512xi32> to vector<1x512xf32>
    %188 = vector.broadcast %187 : vector<1x512xf32> to vector<8x512xf32>
    %189 = arith.mulf %177, %188 : vector<8x512xf32>
    %c8 = arith.constant 8 : index
    %c0_65 = arith.constant 0 : index
    %c0_66 = arith.constant 0 : index
    %190 = vector.load %arg2[%c8, %c0_65, %c0_66] : memref<9x16x8xf32, #tpu.memory_space<vmem>>, vector<1x16x8xf32>
    %191 = vector.shape_cast %190 : vector<1x16x8xf32> to vector<16x8xf32>
    %cst_67 = arith.constant dense<0.000000e+00> : vector<16x512xf32>
    %192 = tpu.matmul %191, %189, %cst_67 {dimension_numbers = #tpu.dot_dimension_numbers<[1], [0], [0], [1], [0, 0, 1, 1], [], []>} : vector<16x8xf32>, vector<8x512xf32>, vector<16x512xf32> -> vector<16x512xf32>
    %193 = arith.addf %176, %192 : vector<16x512xf32>
    %194 = vector.broadcast %51 : vector<16x1xf32> to vector<16x512xf32>
    %195 = arith.addf %193, %194 : vector<16x512xf32>
    %c0_68 = arith.constant 0 : index
    %c0_69 = arith.constant 0 : index
    %196 = vector.load %arg4[%c0_68, %c0_69] : memref<112x16xf32, #tpu.memory_space<vmem>>, vector<112x16xf32>
    %c0_70 = arith.constant 0 : index
    %c0_71 = arith.constant 0 : index
    %197 = vector.load %arg5[%c0_70, %c0_71] : memref<32x9xf32, #tpu.memory_space<vmem>>, vector<32x9xf32>
    %c0_72 = arith.constant 0 : index
    %c0_73 = arith.constant 0 : index
    %198 = vector.load %arg6[%c0_72, %c0_73] : memref<16x9xf32, #tpu.memory_space<vmem>>, vector<16x9xf32>
    %c0_74 = arith.constant 0 : index
    %c0_75 = arith.constant 0 : index
    %199 = vector.load %arg7[%c0_74, %c0_75] : memref<32x3xf32, #tpu.memory_space<vmem>>, vector<32x3xf32>
    %c0_76 = arith.constant 0 : index
    %c0_77 = arith.constant 0 : index
    %200 = vector.load %arg8[%c0_76, %c0_77] : memref<16x4xf32, #tpu.memory_space<vmem>>, vector<16x4xf32>
    %201 = vector.extract_strided_slice %196 {offsets = [0, 0], sizes = [32, 16], strides = [1, 1]} : vector<112x16xf32> to vector<32x16xf32>
    %202 = vector.extract_strided_slice %196 {offsets = [32, 0], sizes = [32, 16], strides = [1, 1]} : vector<112x16xf32> to vector<32x16xf32>
    %203 = vector.extract_strided_slice %196 {offsets = [64, 0], sizes = [16, 16], strides = [1, 1]} : vector<112x16xf32> to vector<16x16xf32>
    %204 = vector.extract_strided_slice %196 {offsets = [80, 0], sizes = [16, 16], strides = [1, 1]} : vector<112x16xf32> to vector<16x16xf32>
    %205 = vector.extract_strided_slice %196 {offsets = [96, 0], sizes = [16, 16], strides = [1, 1]} : vector<112x16xf32> to vector<16x16xf32>
    %206 = vector.extract_strided_slice %198 {offsets = [0, 0], sizes = [16, 1], strides = [1, 1]} : vector<16x9xf32> to vector<16x1xf32>
    %207 = vector.extract_strided_slice %198 {offsets = [0, 1], sizes = [16, 1], strides = [1, 1]} : vector<16x9xf32> to vector<16x1xf32>
    %208 = vector.extract_strided_slice %198 {offsets = [0, 2], sizes = [16, 1], strides = [1, 1]} : vector<16x9xf32> to vector<16x1xf32>
    %209 = vector.extract_strided_slice %198 {offsets = [0, 3], sizes = [16, 1], strides = [1, 1]} : vector<16x9xf32> to vector<16x1xf32>
    %210 = vector.extract_strided_slice %198 {offsets = [0, 4], sizes = [16, 1], strides = [1, 1]} : vector<16x9xf32> to vector<16x1xf32>
    %211 = vector.extract_strided_slice %198 {offsets = [0, 5], sizes = [16, 1], strides = [1, 1]} : vector<16x9xf32> to vector<16x1xf32>
    %212 = vector.extract_strided_slice %198 {offsets = [0, 6], sizes = [16, 1], strides = [1, 1]} : vector<16x9xf32> to vector<16x1xf32>
    %213 = vector.extract_strided_slice %198 {offsets = [0, 7], sizes = [16, 1], strides = [1, 1]} : vector<16x9xf32> to vector<16x1xf32>
    %214 = vector.extract_strided_slice %198 {offsets = [0, 8], sizes = [16, 1], strides = [1, 1]} : vector<16x9xf32> to vector<16x1xf32>
    %215 = vector.extract_strided_slice %199 {offsets = [0, 0], sizes = [32, 1], strides = [1, 1]} : vector<32x3xf32> to vector<32x1xf32>
    %216 = vector.extract_strided_slice %199 {offsets = [0, 1], sizes = [32, 1], strides = [1, 1]} : vector<32x3xf32> to vector<32x1xf32>
    %217 = vector.extract_strided_slice %199 {offsets = [0, 2], sizes = [32, 1], strides = [1, 1]} : vector<32x3xf32> to vector<32x1xf32>
    %218 = vector.extract_strided_slice %200 {offsets = [0, 0], sizes = [16, 1], strides = [1, 1]} : vector<16x4xf32> to vector<16x1xf32>
    %219 = vector.extract_strided_slice %200 {offsets = [0, 1], sizes = [16, 1], strides = [1, 1]} : vector<16x4xf32> to vector<16x1xf32>
    %220 = vector.extract_strided_slice %200 {offsets = [0, 2], sizes = [16, 1], strides = [1, 1]} : vector<16x4xf32> to vector<16x1xf32>
    %221 = vector.extract_strided_slice %200 {offsets = [0, 3], sizes = [16, 1], strides = [1, 1]} : vector<16x4xf32> to vector<16x1xf32>
    %cst_78 = arith.constant dense<0.000000e+00> : vector<1x512xf32>
    %222 = tpu.matmul %18, %195, %cst_78 {dimension_numbers = #tpu.dot_dimension_numbers<[1], [0], [0], [1], [0, 0, 1, 1], [], []>} : vector<1x16xf32>, vector<16x512xf32>, vector<1x512xf32> -> vector<1x512xf32>
    %cst_79 = arith.constant 6.250000e-02 : f32
    %223 = vector.broadcast %cst_79 : f32 to vector<1x512xf32>
    %224 = arith.mulf %222, %223 : vector<1x512xf32>
    %225 = vector.broadcast %224 : vector<1x512xf32> to vector<16x512xf32>
    %226 = arith.subf %195, %225 : vector<16x512xf32>
    %227 = arith.mulf %226, %226 : vector<16x512xf32>
    %cst_80 = arith.constant dense<0.000000e+00> : vector<1x512xf32>
    %228 = tpu.matmul %18, %227, %cst_80 {dimension_numbers = #tpu.dot_dimension_numbers<[1], [0], [0], [1], [0, 0, 1, 1], [], []>} : vector<1x16xf32>, vector<16x512xf32>, vector<1x512xf32> -> vector<1x512xf32>
    %cst_81 = arith.constant 6.250000e-02 : f32
    %229 = vector.broadcast %cst_81 : f32 to vector<1x512xf32>
    %230 = arith.mulf %228, %229 : vector<1x512xf32>
    %cst_82 = arith.constant 9.99999974E-6 : f32
    %231 = vector.broadcast %cst_82 : f32 to vector<1x512xf32>
    %232 = arith.addf %230, %231 : vector<1x512xf32>
    %233 = math.rsqrt %232 : vector<1x512xf32>
    %234 = vector.broadcast %233 : vector<1x512xf32> to vector<16x512xf32>
    %235 = arith.mulf %226, %234 : vector<16x512xf32>
    %236 = vector.broadcast %206 : vector<16x1xf32> to vector<16x512xf32>
    %237 = arith.mulf %235, %236 : vector<16x512xf32>
    %238 = vector.broadcast %207 : vector<16x1xf32> to vector<16x512xf32>
    %239 = arith.addf %237, %238 : vector<16x512xf32>
    %cst_83 = arith.constant 1.000000e+00 : f32
    %240 = vector.broadcast %cst_83 : f32 to vector<16x1xf32>
    %241 = arith.addf %219, %240 : vector<16x1xf32>
    %242 = vector.broadcast %241 : vector<16x1xf32> to vector<16x512xf32>
    %243 = arith.mulf %239, %242 : vector<16x512xf32>
    %244 = vector.broadcast %218 : vector<16x1xf32> to vector<16x512xf32>
    %245 = arith.addf %243, %244 : vector<16x512xf32>
    %cst_84 = arith.constant dense<0.000000e+00> : vector<32x512xf32>
    %246 = tpu.matmul %201, %245, %cst_84 {dimension_numbers = #tpu.dot_dimension_numbers<[1], [0], [0], [1], [0, 0, 1, 1], [], []>} : vector<32x16xf32>, vector<16x512xf32>, vector<32x512xf32> -> vector<32x512xf32>
    %247 = vector.broadcast %215 : vector<32x1xf32> to vector<32x512xf32>
    %248 = arith.addf %246, %247 : vector<32x512xf32>
    %c17_i32_85 = arith.constant 17 : i32
    %249 = tpu.dynamic_rotate %248 by %c17_i32_85 dim 1 : vector<32x512xf32>, i32 -> vector<32x512xf32>
    %cst_86 = arith.constant 1.600000e+01 : f32
    %250 = vector.broadcast %cst_86 : f32 to vector<1x512xf32>
    %251 = arith.cmpf oge, %9, %250 : vector<1x512xf32>
    %cst_87 = arith.constant 2.560000e+02 : f32
    %252 = vector.broadcast %cst_87 : f32 to vector<1x512xf32>
    %253 = arith.cmpf olt, %9, %252 : vector<1x512xf32>
    %254 = arith.andi %251, %253 : vector<1x512xi1>
    %cst_88 = arith.constant 1.000000e+00 : f32
    %255 = vector.broadcast %cst_88 : f32 to vector<1x512xf32>
    %256 = arith.cmpf oge, %17, %255 : vector<1x512xf32>
    %257 = arith.andi %254, %256 : vector<1x512xi1>
    %258 = arith.extui %257 : vector<1x512xi1> to vector<1x512xi32>
    %259 = arith.sitofp %258 : vector<1x512xi32> to vector<1x512xf32>
    %260 = vector.broadcast %259 : vector<1x512xf32> to vector<32x512xf32>
    %261 = arith.mulf %249, %260 : vector<32x512xf32>
    %262 = vector.extract_strided_slice %197 {offsets = [0, 0], sizes = [32, 1], strides = [1, 1]} : vector<32x9xf32> to vector<32x1xf32>
    %263 = vector.broadcast %262 : vector<32x1xf32> to vector<32x512xf32>
    %264 = arith.mulf %261, %263 : vector<32x512xf32>
    %c16_i32_89 = arith.constant 16 : i32
    %265 = tpu.dynamic_rotate %248 by %c16_i32_89 dim 1 : vector<32x512xf32>, i32 -> vector<32x512xf32>
    %cst_90 = arith.constant 1.600000e+01 : f32
    %266 = vector.broadcast %cst_90 : f32 to vector<1x512xf32>
    %267 = arith.cmpf oge, %9, %266 : vector<1x512xf32>
    %cst_91 = arith.constant 2.560000e+02 : f32
    %268 = vector.broadcast %cst_91 : f32 to vector<1x512xf32>
    %269 = arith.cmpf olt, %9, %268 : vector<1x512xf32>
    %270 = arith.andi %267, %269 : vector<1x512xi1>
    %271 = arith.extui %270 : vector<1x512xi1> to vector<1x512xi32>
    %272 = arith.sitofp %271 : vector<1x512xi32> to vector<1x512xf32>
    %273 = vector.broadcast %272 : vector<1x512xf32> to vector<32x512xf32>
    %274 = arith.mulf %265, %273 : vector<32x512xf32>
    %275 = vector.extract_strided_slice %197 {offsets = [0, 1], sizes = [32, 1], strides = [1, 1]} : vector<32x9xf32> to vector<32x1xf32>
    %276 = vector.broadcast %275 : vector<32x1xf32> to vector<32x512xf32>
    %277 = arith.mulf %274, %276 : vector<32x512xf32>
    %278 = arith.addf %264, %277 : vector<32x512xf32>
    %c15_i32_92 = arith.constant 15 : i32
    %279 = tpu.dynamic_rotate %248 by %c15_i32_92 dim 1 : vector<32x512xf32>, i32 -> vector<32x512xf32>
    %cst_93 = arith.constant 1.600000e+01 : f32
    %280 = vector.broadcast %cst_93 : f32 to vector<1x512xf32>
    %281 = arith.cmpf oge, %9, %280 : vector<1x512xf32>
    %cst_94 = arith.constant 2.560000e+02 : f32
    %282 = vector.broadcast %cst_94 : f32 to vector<1x512xf32>
    %283 = arith.cmpf olt, %9, %282 : vector<1x512xf32>
    %284 = arith.andi %281, %283 : vector<1x512xi1>
    %cst_95 = arith.constant 1.500000e+01 : f32
    %285 = vector.broadcast %cst_95 : f32 to vector<1x512xf32>
    %286 = arith.cmpf olt, %17, %285 : vector<1x512xf32>
    %287 = arith.andi %284, %286 : vector<1x512xi1>
    %288 = arith.extui %287 : vector<1x512xi1> to vector<1x512xi32>
    %289 = arith.sitofp %288 : vector<1x512xi32> to vector<1x512xf32>
    %290 = vector.broadcast %289 : vector<1x512xf32> to vector<32x512xf32>
    %291 = arith.mulf %279, %290 : vector<32x512xf32>
    %292 = vector.extract_strided_slice %197 {offsets = [0, 2], sizes = [32, 1], strides = [1, 1]} : vector<32x9xf32> to vector<32x1xf32>
    %293 = vector.broadcast %292 : vector<32x1xf32> to vector<32x512xf32>
    %294 = arith.mulf %291, %293 : vector<32x512xf32>
    %295 = arith.addf %278, %294 : vector<32x512xf32>
    %c1_i32_96 = arith.constant 1 : i32
    %296 = tpu.dynamic_rotate %248 by %c1_i32_96 dim 1 : vector<32x512xf32>, i32 -> vector<32x512xf32>
    %cst_97 = arith.constant 0.000000e+00 : f32
    %297 = vector.broadcast %cst_97 : f32 to vector<1x512xf32>
    %298 = arith.cmpf oge, %9, %297 : vector<1x512xf32>
    %cst_98 = arith.constant 2.560000e+02 : f32
    %299 = vector.broadcast %cst_98 : f32 to vector<1x512xf32>
    %300 = arith.cmpf olt, %9, %299 : vector<1x512xf32>
    %301 = arith.andi %298, %300 : vector<1x512xi1>
    %cst_99 = arith.constant 1.000000e+00 : f32
    %302 = vector.broadcast %cst_99 : f32 to vector<1x512xf32>
    %303 = arith.cmpf oge, %17, %302 : vector<1x512xf32>
    %304 = arith.andi %301, %303 : vector<1x512xi1>
    %305 = arith.extui %304 : vector<1x512xi1> to vector<1x512xi32>
    %306 = arith.sitofp %305 : vector<1x512xi32> to vector<1x512xf32>
    %307 = vector.broadcast %306 : vector<1x512xf32> to vector<32x512xf32>
    %308 = arith.mulf %296, %307 : vector<32x512xf32>
    %309 = vector.extract_strided_slice %197 {offsets = [0, 3], sizes = [32, 1], strides = [1, 1]} : vector<32x9xf32> to vector<32x1xf32>
    %310 = vector.broadcast %309 : vector<32x1xf32> to vector<32x512xf32>
    %311 = arith.mulf %308, %310 : vector<32x512xf32>
    %312 = arith.addf %295, %311 : vector<32x512xf32>
    %cst_100 = arith.constant 0.000000e+00 : f32
    %313 = vector.broadcast %cst_100 : f32 to vector<1x512xf32>
    %314 = arith.cmpf oge, %9, %313 : vector<1x512xf32>
    %cst_101 = arith.constant 2.560000e+02 : f32
    %315 = vector.broadcast %cst_101 : f32 to vector<1x512xf32>
    %316 = arith.cmpf olt, %9, %315 : vector<1x512xf32>
    %317 = arith.andi %314, %316 : vector<1x512xi1>
    %318 = arith.extui %317 : vector<1x512xi1> to vector<1x512xi32>
    %319 = arith.sitofp %318 : vector<1x512xi32> to vector<1x512xf32>
    %320 = vector.broadcast %319 : vector<1x512xf32> to vector<32x512xf32>
    %321 = arith.mulf %248, %320 : vector<32x512xf32>
    %322 = vector.extract_strided_slice %197 {offsets = [0, 4], sizes = [32, 1], strides = [1, 1]} : vector<32x9xf32> to vector<32x1xf32>
    %323 = vector.broadcast %322 : vector<32x1xf32> to vector<32x512xf32>
    %324 = arith.mulf %321, %323 : vector<32x512xf32>
    %325 = arith.addf %312, %324 : vector<32x512xf32>
    %c511_i32_102 = arith.constant 511 : i32
    %326 = tpu.dynamic_rotate %248 by %c511_i32_102 dim 1 : vector<32x512xf32>, i32 -> vector<32x512xf32>
    %cst_103 = arith.constant 0.000000e+00 : f32
    %327 = vector.broadcast %cst_103 : f32 to vector<1x512xf32>
    %328 = arith.cmpf oge, %9, %327 : vector<1x512xf32>
    %cst_104 = arith.constant 2.560000e+02 : f32
    %329 = vector.broadcast %cst_104 : f32 to vector<1x512xf32>
    %330 = arith.cmpf olt, %9, %329 : vector<1x512xf32>
    %331 = arith.andi %328, %330 : vector<1x512xi1>
    %cst_105 = arith.constant 1.500000e+01 : f32
    %332 = vector.broadcast %cst_105 : f32 to vector<1x512xf32>
    %333 = arith.cmpf olt, %17, %332 : vector<1x512xf32>
    %334 = arith.andi %331, %333 : vector<1x512xi1>
    %335 = arith.extui %334 : vector<1x512xi1> to vector<1x512xi32>
    %336 = arith.sitofp %335 : vector<1x512xi32> to vector<1x512xf32>
    %337 = vector.broadcast %336 : vector<1x512xf32> to vector<32x512xf32>
    %338 = arith.mulf %326, %337 : vector<32x512xf32>
    %339 = vector.extract_strided_slice %197 {offsets = [0, 5], sizes = [32, 1], strides = [1, 1]} : vector<32x9xf32> to vector<32x1xf32>
    %340 = vector.broadcast %339 : vector<32x1xf32> to vector<32x512xf32>
    %341 = arith.mulf %338, %340 : vector<32x512xf32>
    %342 = arith.addf %325, %341 : vector<32x512xf32>
    %c497_i32_106 = arith.constant 497 : i32
    %343 = tpu.dynamic_rotate %248 by %c497_i32_106 dim 1 : vector<32x512xf32>, i32 -> vector<32x512xf32>
    %cst_107 = arith.constant 0.000000e+00 : f32
    %344 = vector.broadcast %cst_107 : f32 to vector<1x512xf32>
    %345 = arith.cmpf oge, %9, %344 : vector<1x512xf32>
    %cst_108 = arith.constant 2.400000e+02 : f32
    %346 = vector.broadcast %cst_108 : f32 to vector<1x512xf32>
    %347 = arith.cmpf olt, %9, %346 : vector<1x512xf32>
    %348 = arith.andi %345, %347 : vector<1x512xi1>
    %cst_109 = arith.constant 1.000000e+00 : f32
    %349 = vector.broadcast %cst_109 : f32 to vector<1x512xf32>
    %350 = arith.cmpf oge, %17, %349 : vector<1x512xf32>
    %351 = arith.andi %348, %350 : vector<1x512xi1>
    %352 = arith.extui %351 : vector<1x512xi1> to vector<1x512xi32>
    %353 = arith.sitofp %352 : vector<1x512xi32> to vector<1x512xf32>
    %354 = vector.broadcast %353 : vector<1x512xf32> to vector<32x512xf32>
    %355 = arith.mulf %343, %354 : vector<32x512xf32>
    %356 = vector.extract_strided_slice %197 {offsets = [0, 6], sizes = [32, 1], strides = [1, 1]} : vector<32x9xf32> to vector<32x1xf32>
    %357 = vector.broadcast %356 : vector<32x1xf32> to vector<32x512xf32>
    %358 = arith.mulf %355, %357 : vector<32x512xf32>
    %359 = arith.addf %342, %358 : vector<32x512xf32>
    %c496_i32_110 = arith.constant 496 : i32
    %360 = tpu.dynamic_rotate %248 by %c496_i32_110 dim 1 : vector<32x512xf32>, i32 -> vector<32x512xf32>
    %cst_111 = arith.constant 0.000000e+00 : f32
    %361 = vector.broadcast %cst_111 : f32 to vector<1x512xf32>
    %362 = arith.cmpf oge, %9, %361 : vector<1x512xf32>
    %cst_112 = arith.constant 2.400000e+02 : f32
    %363 = vector.broadcast %cst_112 : f32 to vector<1x512xf32>
    %364 = arith.cmpf olt, %9, %363 : vector<1x512xf32>
    %365 = arith.andi %362, %364 : vector<1x512xi1>
    %366 = arith.extui %365 : vector<1x512xi1> to vector<1x512xi32>
    %367 = arith.sitofp %366 : vector<1x512xi32> to vector<1x512xf32>
    %368 = vector.broadcast %367 : vector<1x512xf32> to vector<32x512xf32>
    %369 = arith.mulf %360, %368 : vector<32x512xf32>
    %370 = vector.extract_strided_slice %197 {offsets = [0, 7], sizes = [32, 1], strides = [1, 1]} : vector<32x9xf32> to vector<32x1xf32>
    %371 = vector.broadcast %370 : vector<32x1xf32> to vector<32x512xf32>
    %372 = arith.mulf %369, %371 : vector<32x512xf32>
    %373 = arith.addf %359, %372 : vector<32x512xf32>
    %c495_i32_113 = arith.constant 495 : i32
    %374 = tpu.dynamic_rotate %248 by %c495_i32_113 dim 1 : vector<32x512xf32>, i32 -> vector<32x512xf32>
    %cst_114 = arith.constant 0.000000e+00 : f32
    %375 = vector.broadcast %cst_114 : f32 to vector<1x512xf32>
    %376 = arith.cmpf oge, %9, %375 : vector<1x512xf32>
    %cst_115 = arith.constant 2.400000e+02 : f32
    %377 = vector.broadcast %cst_115 : f32 to vector<1x512xf32>
    %378 = arith.cmpf olt, %9, %377 : vector<1x512xf32>
    %379 = arith.andi %376, %378 : vector<1x512xi1>
    %cst_116 = arith.constant 1.500000e+01 : f32
    %380 = vector.broadcast %cst_116 : f32 to vector<1x512xf32>
    %381 = arith.cmpf olt, %17, %380 : vector<1x512xf32>
    %382 = arith.andi %379, %381 : vector<1x512xi1>
    %383 = arith.extui %382 : vector<1x512xi1> to vector<1x512xi32>
    %384 = arith.sitofp %383 : vector<1x512xi32> to vector<1x512xf32>
    %385 = vector.broadcast %384 : vector<1x512xf32> to vector<32x512xf32>
    %386 = arith.mulf %374, %385 : vector<32x512xf32>
    %387 = vector.extract_strided_slice %197 {offsets = [0, 8], sizes = [32, 1], strides = [1, 1]} : vector<32x9xf32> to vector<32x1xf32>
    %388 = vector.broadcast %387 : vector<32x1xf32> to vector<32x512xf32>
    %389 = arith.mulf %386, %388 : vector<32x512xf32>
    %390 = arith.addf %373, %389 : vector<32x512xf32>
    %391 = vector.broadcast %216 : vector<32x1xf32> to vector<32x512xf32>
    %392 = arith.addf %390, %391 : vector<32x512xf32>
    %393 = vector.extract_strided_slice %392 {offsets = [0, 0], sizes = [16, 512], strides = [1, 1]} : vector<32x512xf32> to vector<16x512xf32>
    %394 = vector.extract_strided_slice %392 {offsets = [16, 0], sizes = [16, 512], strides = [1, 1]} : vector<32x512xf32> to vector<16x512xf32>
    %395 = arith.mulf %393, %394 : vector<16x512xf32>
    %cst_117 = arith.constant dense<0.000000e+00> : vector<16x8xf32>
    %396 = tpu.matmul %395, %33, %cst_117 {dimension_numbers = #tpu.dot_dimension_numbers<[1], [0], [0], [1], [0, 0, 1, 1], [], []>} : vector<16x512xf32>, vector<512x8xf32>, vector<16x8xf32> -> vector<16x8xf32>
    %cst_118 = arith.constant 3.906250e-03 : f32
    %397 = vector.broadcast %cst_118 : f32 to vector<16x8xf32>
    %398 = arith.mulf %396, %397 : vector<16x8xf32>
    %cst_119 = arith.constant dense<0.000000e+00> : vector<16x8xf32>
    %399 = tpu.matmul %204, %398, %cst_119 {dimension_numbers = #tpu.dot_dimension_numbers<[1], [0], [0], [1], [0, 0, 1, 1], [], []>} : vector<16x16xf32>, vector<16x8xf32>, vector<16x8xf32> -> vector<16x8xf32>
    %400 = vector.broadcast %212 : vector<16x1xf32> to vector<16x8xf32>
    %401 = arith.addf %399, %400 : vector<16x8xf32>
    %cst_120 = arith.constant dense<0.000000e+00> : vector<16x512xf32>
    %402 = tpu.matmul %401, %48, %cst_120 {dimension_numbers = #tpu.dot_dimension_numbers<[1], [0], [0], [1], [0, 0, 1, 1], [], []>} : vector<16x8xf32>, vector<8x512xf32>, vector<16x512xf32> -> vector<16x512xf32>
    %403 = arith.mulf %395, %402 : vector<16x512xf32>
    %cst_121 = arith.constant dense<0.000000e+00> : vector<16x512xf32>
    %404 = tpu.matmul %203, %403, %cst_121 {dimension_numbers = #tpu.dot_dimension_numbers<[1], [0], [0], [1], [0, 0, 1, 1], [], []>} : vector<16x16xf32>, vector<16x512xf32>, vector<16x512xf32> -> vector<16x512xf32>
    %405 = vector.broadcast %210 : vector<16x1xf32> to vector<16x512xf32>
    %406 = arith.addf %404, %405 : vector<16x512xf32>
    %407 = vector.broadcast %213 : vector<16x1xf32> to vector<16x512xf32>
    %408 = arith.mulf %406, %407 : vector<16x512xf32>
    %409 = arith.addf %195, %408 : vector<16x512xf32>
    %cst_122 = arith.constant dense<0.000000e+00> : vector<1x512xf32>
    %410 = tpu.matmul %18, %409, %cst_122 {dimension_numbers = #tpu.dot_dimension_numbers<[1], [0], [0], [1], [0, 0, 1, 1], [], []>} : vector<1x16xf32>, vector<16x512xf32>, vector<1x512xf32> -> vector<1x512xf32>
    %cst_123 = arith.constant 6.250000e-02 : f32
    %411 = vector.broadcast %cst_123 : f32 to vector<1x512xf32>
    %412 = arith.mulf %410, %411 : vector<1x512xf32>
    %413 = vector.broadcast %412 : vector<1x512xf32> to vector<16x512xf32>
    %414 = arith.subf %409, %413 : vector<16x512xf32>
    %415 = arith.mulf %414, %414 : vector<16x512xf32>
    %cst_124 = arith.constant dense<0.000000e+00> : vector<1x512xf32>
    %416 = tpu.matmul %18, %415, %cst_124 {dimension_numbers = #tpu.dot_dimension_numbers<[1], [0], [0], [1], [0, 0, 1, 1], [], []>} : vector<1x16xf32>, vector<16x512xf32>, vector<1x512xf32> -> vector<1x512xf32>
    %cst_125 = arith.constant 6.250000e-02 : f32
    %417 = vector.broadcast %cst_125 : f32 to vector<1x512xf32>
    %418 = arith.mulf %416, %417 : vector<1x512xf32>
    %cst_126 = arith.constant 9.99999974E-6 : f32
    %419 = vector.broadcast %cst_126 : f32 to vector<1x512xf32>
    %420 = arith.addf %418, %419 : vector<1x512xf32>
    %421 = math.rsqrt %420 : vector<1x512xf32>
    %422 = vector.broadcast %421 : vector<1x512xf32> to vector<16x512xf32>
    %423 = arith.mulf %414, %422 : vector<16x512xf32>
    %424 = vector.broadcast %208 : vector<16x1xf32> to vector<16x512xf32>
    %425 = arith.mulf %423, %424 : vector<16x512xf32>
    %426 = vector.broadcast %209 : vector<16x1xf32> to vector<16x512xf32>
    %427 = arith.addf %425, %426 : vector<16x512xf32>
    %cst_127 = arith.constant 1.000000e+00 : f32
    %428 = vector.broadcast %cst_127 : f32 to vector<16x1xf32>
    %429 = arith.addf %221, %428 : vector<16x1xf32>
    %430 = vector.broadcast %429 : vector<16x1xf32> to vector<16x512xf32>
    %431 = arith.mulf %427, %430 : vector<16x512xf32>
    %432 = vector.broadcast %220 : vector<16x1xf32> to vector<16x512xf32>
    %433 = arith.addf %431, %432 : vector<16x512xf32>
    %cst_128 = arith.constant dense<0.000000e+00> : vector<32x512xf32>
    %434 = tpu.matmul %202, %433, %cst_128 {dimension_numbers = #tpu.dot_dimension_numbers<[1], [0], [0], [1], [0, 0, 1, 1], [], []>} : vector<32x16xf32>, vector<16x512xf32>, vector<32x512xf32> -> vector<32x512xf32>
    %435 = vector.broadcast %217 : vector<32x1xf32> to vector<32x512xf32>
    %436 = arith.addf %434, %435 : vector<32x512xf32>
    %437 = vector.extract_strided_slice %436 {offsets = [0, 0], sizes = [16, 512], strides = [1, 1]} : vector<32x512xf32> to vector<16x512xf32>
    %438 = vector.extract_strided_slice %436 {offsets = [16, 0], sizes = [16, 512], strides = [1, 1]} : vector<32x512xf32> to vector<16x512xf32>
    %439 = arith.mulf %437, %438 : vector<16x512xf32>
    %cst_129 = arith.constant dense<0.000000e+00> : vector<16x512xf32>
    %440 = tpu.matmul %205, %439, %cst_129 {dimension_numbers = #tpu.dot_dimension_numbers<[1], [0], [0], [1], [0, 0, 1, 1], [], []>} : vector<16x16xf32>, vector<16x512xf32>, vector<16x512xf32> -> vector<16x512xf32>
    %441 = vector.broadcast %211 : vector<16x1xf32> to vector<16x512xf32>
    %442 = arith.addf %440, %441 : vector<16x512xf32>
    %443 = vector.broadcast %214 : vector<16x1xf32> to vector<16x512xf32>
    %444 = arith.mulf %442, %443 : vector<16x512xf32>
    %445 = arith.addf %409, %444 : vector<16x512xf32>
    %c0_130 = arith.constant 0 : index
    %c0_131 = arith.constant 0 : index
    %446 = vector.load %arg10[%c0_130, %c0_131] : memref<3x1xf32, #tpu.memory_space<vmem>>, vector<3x1xf32>
    %c17_i32_132 = arith.constant 17 : i32
    %447 = tpu.dynamic_rotate %445 by %c17_i32_132 dim 1 : vector<16x512xf32>, i32 -> vector<16x512xf32>
    %cst_133 = arith.constant 1.600000e+01 : f32
    %448 = vector.broadcast %cst_133 : f32 to vector<1x512xf32>
    %449 = arith.cmpf oge, %9, %448 : vector<1x512xf32>
    %cst_134 = arith.constant 2.560000e+02 : f32
    %450 = vector.broadcast %cst_134 : f32 to vector<1x512xf32>
    %451 = arith.cmpf olt, %9, %450 : vector<1x512xf32>
    %452 = arith.andi %449, %451 : vector<1x512xi1>
    %cst_135 = arith.constant 1.000000e+00 : f32
    %453 = vector.broadcast %cst_135 : f32 to vector<1x512xf32>
    %454 = arith.cmpf oge, %17, %453 : vector<1x512xf32>
    %455 = arith.andi %452, %454 : vector<1x512xi1>
    %456 = arith.extui %455 : vector<1x512xi1> to vector<1x512xi32>
    %457 = arith.sitofp %456 : vector<1x512xi32> to vector<1x512xf32>
    %458 = vector.broadcast %457 : vector<1x512xf32> to vector<16x512xf32>
    %459 = arith.mulf %447, %458 : vector<16x512xf32>
    %c0_136 = arith.constant 0 : index
    %c0_137 = arith.constant 0 : index
    %c0_138 = arith.constant 0 : index
    %460 = vector.load %arg9[%c0_136, %c0_137, %c0_138] : memref<9x3x16xf32, #tpu.memory_space<vmem>>, vector<1x3x16xf32>
    %461 = vector.shape_cast %460 : vector<1x3x16xf32> to vector<3x16xf32>
    %cst_139 = arith.constant dense<0.000000e+00> : vector<3x512xf32>
    %462 = tpu.matmul %461, %459, %cst_139 {dimension_numbers = #tpu.dot_dimension_numbers<[1], [0], [0], [1], [0, 0, 1, 1], [], []>} : vector<3x16xf32>, vector<16x512xf32>, vector<3x512xf32> -> vector<3x512xf32>
    %c16_i32_140 = arith.constant 16 : i32
    %463 = tpu.dynamic_rotate %445 by %c16_i32_140 dim 1 : vector<16x512xf32>, i32 -> vector<16x512xf32>
    %cst_141 = arith.constant 1.600000e+01 : f32
    %464 = vector.broadcast %cst_141 : f32 to vector<1x512xf32>
    %465 = arith.cmpf oge, %9, %464 : vector<1x512xf32>
    %cst_142 = arith.constant 2.560000e+02 : f32
    %466 = vector.broadcast %cst_142 : f32 to vector<1x512xf32>
    %467 = arith.cmpf olt, %9, %466 : vector<1x512xf32>
    %468 = arith.andi %465, %467 : vector<1x512xi1>
    %469 = arith.extui %468 : vector<1x512xi1> to vector<1x512xi32>
    %470 = arith.sitofp %469 : vector<1x512xi32> to vector<1x512xf32>
    %471 = vector.broadcast %470 : vector<1x512xf32> to vector<16x512xf32>
    %472 = arith.mulf %463, %471 : vector<16x512xf32>
    %c1_143 = arith.constant 1 : index
    %c0_144 = arith.constant 0 : index
    %c0_145 = arith.constant 0 : index
    %473 = vector.load %arg9[%c1_143, %c0_144, %c0_145] : memref<9x3x16xf32, #tpu.memory_space<vmem>>, vector<1x3x16xf32>
    %474 = vector.shape_cast %473 : vector<1x3x16xf32> to vector<3x16xf32>
    %cst_146 = arith.constant dense<0.000000e+00> : vector<3x512xf32>
    %475 = tpu.matmul %474, %472, %cst_146 {dimension_numbers = #tpu.dot_dimension_numbers<[1], [0], [0], [1], [0, 0, 1, 1], [], []>} : vector<3x16xf32>, vector<16x512xf32>, vector<3x512xf32> -> vector<3x512xf32>
    %476 = arith.addf %462, %475 : vector<3x512xf32>
    %c15_i32_147 = arith.constant 15 : i32
    %477 = tpu.dynamic_rotate %445 by %c15_i32_147 dim 1 : vector<16x512xf32>, i32 -> vector<16x512xf32>
    %cst_148 = arith.constant 1.600000e+01 : f32
    %478 = vector.broadcast %cst_148 : f32 to vector<1x512xf32>
    %479 = arith.cmpf oge, %9, %478 : vector<1x512xf32>
    %cst_149 = arith.constant 2.560000e+02 : f32
    %480 = vector.broadcast %cst_149 : f32 to vector<1x512xf32>
    %481 = arith.cmpf olt, %9, %480 : vector<1x512xf32>
    %482 = arith.andi %479, %481 : vector<1x512xi1>
    %cst_150 = arith.constant 1.500000e+01 : f32
    %483 = vector.broadcast %cst_150 : f32 to vector<1x512xf32>
    %484 = arith.cmpf olt, %17, %483 : vector<1x512xf32>
    %485 = arith.andi %482, %484 : vector<1x512xi1>
    %486 = arith.extui %485 : vector<1x512xi1> to vector<1x512xi32>
    %487 = arith.sitofp %486 : vector<1x512xi32> to vector<1x512xf32>
    %488 = vector.broadcast %487 : vector<1x512xf32> to vector<16x512xf32>
    %489 = arith.mulf %477, %488 : vector<16x512xf32>
    %c2_151 = arith.constant 2 : index
    %c0_152 = arith.constant 0 : index
    %c0_153 = arith.constant 0 : index
    %490 = vector.load %arg9[%c2_151, %c0_152, %c0_153] : memref<9x3x16xf32, #tpu.memory_space<vmem>>, vector<1x3x16xf32>
    %491 = vector.shape_cast %490 : vector<1x3x16xf32> to vector<3x16xf32>
    %cst_154 = arith.constant dense<0.000000e+00> : vector<3x512xf32>
    %492 = tpu.matmul %491, %489, %cst_154 {dimension_numbers = #tpu.dot_dimension_numbers<[1], [0], [0], [1], [0, 0, 1, 1], [], []>} : vector<3x16xf32>, vector<16x512xf32>, vector<3x512xf32> -> vector<3x512xf32>
    %493 = arith.addf %476, %492 : vector<3x512xf32>
    %c1_i32_155 = arith.constant 1 : i32
    %494 = tpu.dynamic_rotate %445 by %c1_i32_155 dim 1 : vector<16x512xf32>, i32 -> vector<16x512xf32>
    %cst_156 = arith.constant 0.000000e+00 : f32
    %495 = vector.broadcast %cst_156 : f32 to vector<1x512xf32>
    %496 = arith.cmpf oge, %9, %495 : vector<1x512xf32>
    %cst_157 = arith.constant 2.560000e+02 : f32
    %497 = vector.broadcast %cst_157 : f32 to vector<1x512xf32>
    %498 = arith.cmpf olt, %9, %497 : vector<1x512xf32>
    %499 = arith.andi %496, %498 : vector<1x512xi1>
    %cst_158 = arith.constant 1.000000e+00 : f32
    %500 = vector.broadcast %cst_158 : f32 to vector<1x512xf32>
    %501 = arith.cmpf oge, %17, %500 : vector<1x512xf32>
    %502 = arith.andi %499, %501 : vector<1x512xi1>
    %503 = arith.extui %502 : vector<1x512xi1> to vector<1x512xi32>
    %504 = arith.sitofp %503 : vector<1x512xi32> to vector<1x512xf32>
    %505 = vector.broadcast %504 : vector<1x512xf32> to vector<16x512xf32>
    %506 = arith.mulf %494, %505 : vector<16x512xf32>
    %c3_159 = arith.constant 3 : index
    %c0_160 = arith.constant 0 : index
    %c0_161 = arith.constant 0 : index
    %507 = vector.load %arg9[%c3_159, %c0_160, %c0_161] : memref<9x3x16xf32, #tpu.memory_space<vmem>>, vector<1x3x16xf32>
    %508 = vector.shape_cast %507 : vector<1x3x16xf32> to vector<3x16xf32>
    %cst_162 = arith.constant dense<0.000000e+00> : vector<3x512xf32>
    %509 = tpu.matmul %508, %506, %cst_162 {dimension_numbers = #tpu.dot_dimension_numbers<[1], [0], [0], [1], [0, 0, 1, 1], [], []>} : vector<3x16xf32>, vector<16x512xf32>, vector<3x512xf32> -> vector<3x512xf32>
    %510 = arith.addf %493, %509 : vector<3x512xf32>
    %cst_163 = arith.constant 0.000000e+00 : f32
    %511 = vector.broadcast %cst_163 : f32 to vector<1x512xf32>
    %512 = arith.cmpf oge, %9, %511 : vector<1x512xf32>
    %cst_164 = arith.constant 2.560000e+02 : f32
    %513 = vector.broadcast %cst_164 : f32 to vector<1x512xf32>
    %514 = arith.cmpf olt, %9, %513 : vector<1x512xf32>
    %515 = arith.andi %512, %514 : vector<1x512xi1>
    %516 = arith.extui %515 : vector<1x512xi1> to vector<1x512xi32>
    %517 = arith.sitofp %516 : vector<1x512xi32> to vector<1x512xf32>
    %518 = vector.broadcast %517 : vector<1x512xf32> to vector<16x512xf32>
    %519 = arith.mulf %445, %518 : vector<16x512xf32>
    %c4_165 = arith.constant 4 : index
    %c0_166 = arith.constant 0 : index
    %c0_167 = arith.constant 0 : index
    %520 = vector.load %arg9[%c4_165, %c0_166, %c0_167] : memref<9x3x16xf32, #tpu.memory_space<vmem>>, vector<1x3x16xf32>
    %521 = vector.shape_cast %520 : vector<1x3x16xf32> to vector<3x16xf32>
    %cst_168 = arith.constant dense<0.000000e+00> : vector<3x512xf32>
    %522 = tpu.matmul %521, %519, %cst_168 {dimension_numbers = #tpu.dot_dimension_numbers<[1], [0], [0], [1], [0, 0, 1, 1], [], []>} : vector<3x16xf32>, vector<16x512xf32>, vector<3x512xf32> -> vector<3x512xf32>
    %523 = arith.addf %510, %522 : vector<3x512xf32>
    %c511_i32_169 = arith.constant 511 : i32
    %524 = tpu.dynamic_rotate %445 by %c511_i32_169 dim 1 : vector<16x512xf32>, i32 -> vector<16x512xf32>
    %cst_170 = arith.constant 0.000000e+00 : f32
    %525 = vector.broadcast %cst_170 : f32 to vector<1x512xf32>
    %526 = arith.cmpf oge, %9, %525 : vector<1x512xf32>
    %cst_171 = arith.constant 2.560000e+02 : f32
    %527 = vector.broadcast %cst_171 : f32 to vector<1x512xf32>
    %528 = arith.cmpf olt, %9, %527 : vector<1x512xf32>
    %529 = arith.andi %526, %528 : vector<1x512xi1>
    %cst_172 = arith.constant 1.500000e+01 : f32
    %530 = vector.broadcast %cst_172 : f32 to vector<1x512xf32>
    %531 = arith.cmpf olt, %17, %530 : vector<1x512xf32>
    %532 = arith.andi %529, %531 : vector<1x512xi1>
    %533 = arith.extui %532 : vector<1x512xi1> to vector<1x512xi32>
    %534 = arith.sitofp %533 : vector<1x512xi32> to vector<1x512xf32>
    %535 = vector.broadcast %534 : vector<1x512xf32> to vector<16x512xf32>
    %536 = arith.mulf %524, %535 : vector<16x512xf32>
    %c5_173 = arith.constant 5 : index
    %c0_174 = arith.constant 0 : index
    %c0_175 = arith.constant 0 : index
    %537 = vector.load %arg9[%c5_173, %c0_174, %c0_175] : memref<9x3x16xf32, #tpu.memory_space<vmem>>, vector<1x3x16xf32>
    %538 = vector.shape_cast %537 : vector<1x3x16xf32> to vector<3x16xf32>
    %cst_176 = arith.constant dense<0.000000e+00> : vector<3x512xf32>
    %539 = tpu.matmul %538, %536, %cst_176 {dimension_numbers = #tpu.dot_dimension_numbers<[1], [0], [0], [1], [0, 0, 1, 1], [], []>} : vector<3x16xf32>, vector<16x512xf32>, vector<3x512xf32> -> vector<3x512xf32>
    %540 = arith.addf %523, %539 : vector<3x512xf32>
    %c497_i32_177 = arith.constant 497 : i32
    %541 = tpu.dynamic_rotate %445 by %c497_i32_177 dim 1 : vector<16x512xf32>, i32 -> vector<16x512xf32>
    %cst_178 = arith.constant 0.000000e+00 : f32
    %542 = vector.broadcast %cst_178 : f32 to vector<1x512xf32>
    %543 = arith.cmpf oge, %9, %542 : vector<1x512xf32>
    %cst_179 = arith.constant 2.400000e+02 : f32
    %544 = vector.broadcast %cst_179 : f32 to vector<1x512xf32>
    %545 = arith.cmpf olt, %9, %544 : vector<1x512xf32>
    %546 = arith.andi %543, %545 : vector<1x512xi1>
    %cst_180 = arith.constant 1.000000e+00 : f32
    %547 = vector.broadcast %cst_180 : f32 to vector<1x512xf32>
    %548 = arith.cmpf oge, %17, %547 : vector<1x512xf32>
    %549 = arith.andi %546, %548 : vector<1x512xi1>
    %550 = arith.extui %549 : vector<1x512xi1> to vector<1x512xi32>
    %551 = arith.sitofp %550 : vector<1x512xi32> to vector<1x512xf32>
    %552 = vector.broadcast %551 : vector<1x512xf32> to vector<16x512xf32>
    %553 = arith.mulf %541, %552 : vector<16x512xf32>
    %c6_181 = arith.constant 6 : index
    %c0_182 = arith.constant 0 : index
    %c0_183 = arith.constant 0 : index
    %554 = vector.load %arg9[%c6_181, %c0_182, %c0_183] : memref<9x3x16xf32, #tpu.memory_space<vmem>>, vector<1x3x16xf32>
    %555 = vector.shape_cast %554 : vector<1x3x16xf32> to vector<3x16xf32>
    %cst_184 = arith.constant dense<0.000000e+00> : vector<3x512xf32>
    %556 = tpu.matmul %555, %553, %cst_184 {dimension_numbers = #tpu.dot_dimension_numbers<[1], [0], [0], [1], [0, 0, 1, 1], [], []>} : vector<3x16xf32>, vector<16x512xf32>, vector<3x512xf32> -> vector<3x512xf32>
    %557 = arith.addf %540, %556 : vector<3x512xf32>
    %c496_i32_185 = arith.constant 496 : i32
    %558 = tpu.dynamic_rotate %445 by %c496_i32_185 dim 1 : vector<16x512xf32>, i32 -> vector<16x512xf32>
    %cst_186 = arith.constant 0.000000e+00 : f32
    %559 = vector.broadcast %cst_186 : f32 to vector<1x512xf32>
    %560 = arith.cmpf oge, %9, %559 : vector<1x512xf32>
    %cst_187 = arith.constant 2.400000e+02 : f32
    %561 = vector.broadcast %cst_187 : f32 to vector<1x512xf32>
    %562 = arith.cmpf olt, %9, %561 : vector<1x512xf32>
    %563 = arith.andi %560, %562 : vector<1x512xi1>
    %564 = arith.extui %563 : vector<1x512xi1> to vector<1x512xi32>
    %565 = arith.sitofp %564 : vector<1x512xi32> to vector<1x512xf32>
    %566 = vector.broadcast %565 : vector<1x512xf32> to vector<16x512xf32>
    %567 = arith.mulf %558, %566 : vector<16x512xf32>
    %c7_188 = arith.constant 7 : index
    %c0_189 = arith.constant 0 : index
    %c0_190 = arith.constant 0 : index
    %568 = vector.load %arg9[%c7_188, %c0_189, %c0_190] : memref<9x3x16xf32, #tpu.memory_space<vmem>>, vector<1x3x16xf32>
    %569 = vector.shape_cast %568 : vector<1x3x16xf32> to vector<3x16xf32>
    %cst_191 = arith.constant dense<0.000000e+00> : vector<3x512xf32>
    %570 = tpu.matmul %569, %567, %cst_191 {dimension_numbers = #tpu.dot_dimension_numbers<[1], [0], [0], [1], [0, 0, 1, 1], [], []>} : vector<3x16xf32>, vector<16x512xf32>, vector<3x512xf32> -> vector<3x512xf32>
    %571 = arith.addf %557, %570 : vector<3x512xf32>
    %c495_i32_192 = arith.constant 495 : i32
    %572 = tpu.dynamic_rotate %445 by %c495_i32_192 dim 1 : vector<16x512xf32>, i32 -> vector<16x512xf32>
    %cst_193 = arith.constant 0.000000e+00 : f32
    %573 = vector.broadcast %cst_193 : f32 to vector<1x512xf32>
    %574 = arith.cmpf oge, %9, %573 : vector<1x512xf32>
    %cst_194 = arith.constant 2.400000e+02 : f32
    %575 = vector.broadcast %cst_194 : f32 to vector<1x512xf32>
    %576 = arith.cmpf olt, %9, %575 : vector<1x512xf32>
    %577 = arith.andi %574, %576 : vector<1x512xi1>
    %cst_195 = arith.constant 1.500000e+01 : f32
    %578 = vector.broadcast %cst_195 : f32 to vector<1x512xf32>
    %579 = arith.cmpf olt, %17, %578 : vector<1x512xf32>
    %580 = arith.andi %577, %579 : vector<1x512xi1>
    %581 = arith.extui %580 : vector<1x512xi1> to vector<1x512xi32>
    %582 = arith.sitofp %581 : vector<1x512xi32> to vector<1x512xf32>
    %583 = vector.broadcast %582 : vector<1x512xf32> to vector<16x512xf32>
    %584 = arith.mulf %572, %583 : vector<16x512xf32>
    %c8_196 = arith.constant 8 : index
    %c0_197 = arith.constant 0 : index
    %c0_198 = arith.constant 0 : index
    %585 = vector.load %arg9[%c8_196, %c0_197, %c0_198] : memref<9x3x16xf32, #tpu.memory_space<vmem>>, vector<1x3x16xf32>
    %586 = vector.shape_cast %585 : vector<1x3x16xf32> to vector<3x16xf32>
    %cst_199 = arith.constant dense<0.000000e+00> : vector<3x512xf32>
    %587 = tpu.matmul %586, %584, %cst_199 {dimension_numbers = #tpu.dot_dimension_numbers<[1], [0], [0], [1], [0, 0, 1, 1], [], []>} : vector<3x16xf32>, vector<16x512xf32>, vector<3x512xf32> -> vector<3x512xf32>
    %588 = arith.addf %571, %587 : vector<3x512xf32>
    %589 = vector.broadcast %446 : vector<3x1xf32> to vector<3x512xf32>
    %590 = arith.addf %588, %589 : vector<3x512xf32>
    %c0_200 = arith.constant 0 : index
    %c0_201 = arith.constant 0 : index
    %c0_202 = arith.constant 0 : index
    %591 = vector.load %arg11[%c0_200, %c0_201, %c0_202] : memref<1x3x512xf32, #tpu.memory_space<vmem>>, vector<1x3x512xf32>
    %592 = vector.shape_cast %591 : vector<1x3x512xf32> to vector<3x512xf32>
    %593 = vector.shape_cast %590 : vector<3x512xf32> to vector<1x3x512xf32>
    tpu.vector_store %arg11[%c0_200, %c0_201, %c0_202], %593 {strides = array<i32>} : memref<1x3x512xf32, #tpu.memory_space<vmem>>, vector<1x3x512xf32>,
    return
  }
  func.func @transform_0(%arg0: i32) -> (i32, i32, i32) {
    %c0_i32 = arith.constant 0 : i32
    %c0_i32_0 = arith.constant 0 : i32
    %c0_i32_1 = arith.constant 0 : i32
    return %arg0, %c0_i32, %c0_i32_0 : i32, i32, i32
  }
  func.func @transform_1(%arg0: i32) -> (i32, i32, i32) {
    %c0_i32 = arith.constant 0 : i32
    %c0_i32_0 = arith.constant 0 : i32
    %c0_i32_1 = arith.constant 0 : i32
    %c0_i32_2 = arith.constant 0 : i32
    return %c0_i32, %c0_i32_0, %c0_i32_1 : i32, i32, i32
  }
  func.func @transform_2(%arg0: i32) -> (i32, i32) {
    %c0_i32 = arith.constant 0 : i32
    %c0_i32_0 = arith.constant 0 : i32
    %c0_i32_1 = arith.constant 0 : i32
    return %c0_i32, %c0_i32_0 : i32, i32
  }
  func.func @transform_3(%arg0: i32) -> (i32, i32) {
    %c0_i32 = arith.constant 0 : i32
    %c0_i32_0 = arith.constant 0 : i32
    %c0_i32_1 = arith.constant 0 : i32
    return %c0_i32, %c0_i32_0 : i32, i32
  }
  func.func @transform_4(%arg0: i32) -> (i32, i32) {
    %c0_i32 = arith.constant 0 : i32
    %c0_i32_0 = arith.constant 0 : i32
    %c0_i32_1 = arith.constant 0 : i32
    return %c0_i32, %c0_i32_0 : i32, i32
  }
  func.func @transform_5(%arg0: i32) -> (i32, i32) {
    %c0_i32 = arith.constant 0 : i32
    %c0_i32_0 = arith.constant 0 : i32
    %c0_i32_1 = arith.constant 0 : i32
    return %c0_i32, %c0_i32_0 : i32, i32
  }
  func.func @transform_6(%arg0: i32) -> (i32, i32) {
    %c0_i32 = arith.constant 0 : i32
    %c0_i32_0 = arith.constant 0 : i32
    %c0_i32_1 = arith.constant 0 : i32
    return %c0_i32, %c0_i32_0 : i32, i32
  }
  func.func @transform_7(%arg0: i32) -> (i32, i32) {
    %c0_i32 = arith.constant 0 : i32
    %c0_i32_0 = arith.constant 0 : i32
    %c0_i32_1 = arith.constant 0 : i32
    return %c0_i32, %c0_i32_0 : i32, i32
  }
  func.func @transform_8(%arg0: i32) -> (i32, i32, i32) {
    %c0_i32 = arith.constant 0 : i32
    %c0_i32_0 = arith.constant 0 : i32
    %c0_i32_1 = arith.constant 0 : i32
    %c0_i32_2 = arith.constant 0 : i32
    return %c0_i32, %c0_i32_0, %c0_i32_1 : i32, i32, i32
  }
  func.func @transform_9(%arg0: i32) -> (i32, i32) {
    %c0_i32 = arith.constant 0 : i32
    %c0_i32_0 = arith.constant 0 : i32
    %c0_i32_1 = arith.constant 0 : i32
    return %c0_i32, %c0_i32_0 : i32, i32
  }
  func.func @transform_10(%arg0: i32) -> (i32, i32, i32) {
    %c0_i32 = arith.constant 0 : i32
    %c0_i32_0 = arith.constant 0 : i32
    %c0_i32_1 = arith.constant 0 : i32
    return %arg0, %c0_i32, %c0_i32_0 : i32, i32, i32
  }
}

</mosaic_0001>

<llo_original>
// kernel: sub.1
$region0: #{sub.1}
  #allocation0 [shape = 's32[1]{0}', space=sflag, size = 0x4, scoped, tag = 'scoped memory for sub.1']
  %s0 = inlined_call_operand.vmem [shape: f32[2,3,16,16], index: 0, kind: input, shape index: {}]
  %s1 = inlined_call_operand.vmem [shape: f32[2,3,16,16], index: 1, kind: input, shape index: {}]
  %s2 = inlined_call_operand.vmem [shape: f32[2,3,16,16], index: 2, kind: output, shape index: {}]
  %v3 = vld [vmem:[%s0] sm:$0xff]
  %v4 = vld [vmem:[%s1] sm:$0xff]
  %5 = xla_tuple %v3, %v4
  %6 = xla_tuple %5
  %v7 = vsub.f32 %v3, %v4
  %8 = xla_tuple %v7
  %9 = vst [vmem:[%s2] sm:$0xff] %v7
  %s10 = scalar_lea.vmem %s0, 48
  %v11 = vld [vmem:[%s10] sm:$0xff]
  %s12 = scalar_lea.vmem %s1, 48
  %v13 = vld [vmem:[%s12] sm:$0xff]
  %14 = xla_tuple %v11, %v13
  %15 = xla_tuple %14
  %v16 = vsub.f32 %v11, %v13
  %17 = xla_tuple %v16
  %s18 = scalar_lea.vmem %s2, 48
  %19 = vst [vmem:[%s18] sm:$0xff] %v16
  %s20 = scalar_lea.vmem %s0, 16
  %v21 = vld [vmem:[%s20] sm:$0xff]
  %s22 = scalar_lea.vmem %s1, 16
  %v23 = vld [vmem:[%s22] sm:$0xff]
  %24 = xla_tuple %v21, %v23
  %25 = xla_tuple %24
  %v26 = vsub.f32 %v21, %v23
  %27 = xla_tuple %v26
  %s28 = scalar_lea.vmem %s2, 16
  %29 = vst [vmem:[%s28] sm:$0xff] %v26
  %s30 = scalar_lea.vmem %s0, 64
  %v31 = vld [vmem:[%s30] sm:$0xff]
  %s32 = scalar_lea.vmem %s1, 64
  %v33 = vld [vmem:[%s32] sm:$0xff]
  %34 = xla_tuple %v31, %v33
  %35 = xla_tuple %34
  %v36 = vsub.f32 %v31, %v33
  %37 = xla_tuple %v36
  %s38 = scalar_lea.vmem %s2, 64
  %39 = vst [vmem:[%s38] sm:$0xff] %v36
  %s40 = scalar_lea.vmem %s0, 32
  %v41 = vld [vmem:[%s40] sm:$0xff]
  %s42 = scalar_lea.vmem %s1, 32
  %v43 = vld [vmem:[%s42] sm:$0xff]
  %44 = xla_tuple %v41, %v43
  %45 = xla_tuple %44
  %v46 = vsub.f32 %v41, %v43
  %47 = xla_tuple %v46
  %s48 = scalar_lea.vmem %s2, 32
  %49 = vst [vmem:[%s48] sm:$0xff] %v46
  %s50 = scalar_lea.vmem %s0, 80
  %v51 = vld [vmem:[%s50] sm:$0xff]
  %s52 = scalar_lea.vmem %s1, 80
  %v53 = vld [vmem:[%s52] sm:$0xff]
  %54 = xla_tuple %v51, %v53
  %55 = xla_tuple %54
  %v56 = vsub.f32 %v51, %v53
  %57 = xla_tuple %v56
  %s58 = scalar_lea.vmem %s2, 80
  %59 = vst [vmem:[%s58] sm:$0xff] %v56
  %s60 = scalar_lea.vmem %s0, 8
  %v61 = vld [vmem:[%s60] sm:$0xff]
  %s62 = scalar_lea.vmem %s1, 8
  %v63 = vld [vmem:[%s62] sm:$0xff]
  %64 = xla_tuple %v61, %v63
  %65 = xla_tuple %64
  %v66 = vsub.f32 %v61, %v63
  %67 = xla_tuple %v66
  %s68 = scalar_lea.vmem %s2, 8
  %69 = vst [vmem:[%s68] sm:$0xff] %v66
  %s70 = scalar_lea.vmem %s0, 56
  %v71 = vld [vmem:[%s70] sm:$0xff]
  %s72 = scalar_lea.vmem %s1, 56
  %v73 = vld [vmem:[%s72] sm:$0xff]
  %74 = xla_tuple %v71, %v73
  %75 = xla_tuple %74
  %v76 = vsub.f32 %v71, %v73
  %77 = xla_tuple %v76
  %s78 = scalar_lea.vmem %s2, 56
  %79 = vst [vmem:[%s78] sm:$0xff] %v76
  %s80 = scalar_lea.vmem %s0, 24
  %v81 = vld [vmem:[%s80] sm:$0xff]
  %s82 = scalar_lea.vmem %s1, 24
  %v83 = vld [vmem:[%s82] sm:$0xff]
  %84 = xla_tuple %v81, %v83
  %85 = xla_tuple %84
  %v86 = vsub.f32 %v81, %v83
  %87 = xla_tuple %v86
  %s88 = scalar_lea.vmem %s2, 24
  %89 = vst [vmem:[%s88] sm:$0xff] %v86
  %s90 = scalar_lea.vmem %s0, 72
  %v91 = vld [vmem:[%s90] sm:$0xff]
  %s92 = scalar_lea.vmem %s1, 72
  %v93 = vld [vmem:[%s92] sm:$0xff]
  %94 = xla_tuple %v91, %v93
  %95 = xla_tuple %94
  %v96 = vsub.f32 %v91, %v93
  %97 = xla_tuple %v96
  %s98 = scalar_lea.vmem %s2, 72
  %99 = vst [vmem:[%s98] sm:$0xff] %v96
  %s100 = scalar_lea.vmem %s0, 40
  %v101 = vld [vmem:[%s100] sm:$0xff]
  %s102 = scalar_lea.vmem %s1, 40
  %v103 = vld [vmem:[%s102] sm:$0xff]
  %104 = xla_tuple %v101, %v103
  %105 = xla_tuple %104
  %v106 = vsub.f32 %v101, %v103
  %107 = xla_tuple %v106
  %s108 = scalar_lea.vmem %s2, 40
  %109 = vst [vmem:[%s108] sm:$0xff] %v106
  %s110 = scalar_lea.vmem %s0, 88
  %v111 = vld [vmem:[%s110] sm:$0xff]
  %s112 = scalar_lea.vmem %s1, 88
  %v113 = vld [vmem:[%s112] sm:$0xff]
  %114 = xla_tuple %v111, %v113
  %115 = xla_tuple %114
  %v116 = vsub.f32 %v111, %v113
  %117 = xla_tuple %v116
  %s118 = scalar_lea.vmem %s2, 88
  %119 = vst [vmem:[%s118] sm:$0xff] %v116

// kernel: conditional_nafnet_forward.1
$region0: #{conditional_nafnet_forward.1}
  #allocation0 [shape = 'u32[]', space=smem, size = 0x4, offset = 0x4, fixed_abs, tag = 'smem constant byte address 0x4 - core index']
  #allocation1 [shape = 'u32[144,128]{1,0:T(1,128)}', space=vmem, size = 0x12000, scoped, tag = 'internal scratch']
  %s0 = inlined_call_operand.vmem [shape: f32[1,8,512], index: 0, kind: input, shape index: {}]
  %s1 = inlined_call_operand.vmem [shape: f32[9,16,8], index: 1, kind: input, shape index: {}]
  %s2 = inlined_call_operand.vmem [shape: f32[16,1], index: 2, kind: input, shape index: {}]
  %s3 = inlined_call_operand.vmem [shape: f32[112,16], index: 3, kind: input, shape index: {}]
  %s4 = inlined_call_operand.vmem [shape: f32[32,9], index: 4, kind: input, shape index: {}]
  %s5 = inlined_call_operand.vmem [shape: f32[16,9], index: 5, kind: input, shape index: {}]
  %s6 = inlined_call_operand.vmem [shape: f32[32,3], index: 6, kind: input, shape index: {}]
  %s7 = inlined_call_operand.vmem [shape: f32[16,4], index: 7, kind: input, shape index: {}]
  %s8 = inlined_call_operand.vmem [shape: f32[9,3,16], index: 8, kind: input, shape index: {}]
  %s9 = inlined_call_operand.vmem [shape: f32[3,1], index: 9, kind: input, shape index: {}]
  %s10 = inlined_call_operand.vmem [shape: f32[1,3,512], index: 10, kind: output, shape index: {}]
  %s11 = sld [smem:[#allocation0]]
  $region50: #{conditional_nafnet_forward.1} parent=0
    _
  %s13 = ssub.s32 1, %s11
  %s14 = scalar_select 0, %s13, %s11
  // Predicated region
  $region2: #{conditional_nafnet_forward.1} parent=0 // pred_check
    _
  $region3: #{conditional_nafnet_forward.1} parent=0 // pred_check_branch
    %16 = sbr.rel (0) target = $region5
  $region4: #{conditional_nafnet_forward.1} parent=0 // pred_region
    _
  $region5: #{conditional_nafnet_forward.1} parent=0 // pred_fallthru
    _
  // Predicated region
  $region6: #{conditional_nafnet_forward.1} parent=0 // pred_check
    _
  $region7: #{conditional_nafnet_forward.1} parent=0 // pred_check_branch
    %18 = sbr.rel (0) target = $region9
  $region8: #{conditional_nafnet_forward.1} parent=0 // pred_region
    _
  $region9: #{conditional_nafnet_forward.1} parent=0 // pred_fallthru
    _
  // Predicated region
  $region10: #{conditional_nafnet_forward.1} parent=0 // pred_check
    _
  $region11: #{conditional_nafnet_forward.1} parent=0 // pred_check_branch
    %20 = sbr.rel (0) target = $region13
  $region12: #{conditional_nafnet_forward.1} parent=0 // pred_region
    _
  $region13: #{conditional_nafnet_forward.1} parent=0 // pred_fallthru
    _
  // Predicated region
  $region14: #{conditional_nafnet_forward.1} parent=0 // pred_check
    _
  $region15: #{conditional_nafnet_forward.1} parent=0 // pred_check_branch
    %22 = sbr.rel (0) target = $region17
  $region16: #{conditional_nafnet_forward.1} parent=0 // pred_region
    _
  $region17: #{conditional_nafnet_forward.1} parent=0 // pred_fallthru
    _
  // Predicated region
  $region18: #{conditional_nafnet_forward.1} parent=0 // pred_check
    _
  $region19: #{conditional_nafnet_forward.1} parent=0 // pred_check_branch
    %24 = sbr.rel (0) target = $region21
  $region20: #{conditional_nafnet_forward.1} parent=0 // pred_region
    _
  $region21: #{conditional_nafnet_forward.1} parent=0 // pred_fallthru
    _
  // Predicated region
  $region22: #{conditional_nafnet_forward.1} parent=0 // pred_check
    _
  $region23: #{conditional_nafnet_forward.1} parent=0 // pred_check_branch
    %26 = sbr.rel (0) target = $region25
  $region24: #{conditional_nafnet_forward.1} parent=0 // pred_region
    _
  $region25: #{conditional_nafnet_forward.1} parent=0 // pred_fallthru
    _
  // Predicated region
  $region26: #{conditional_nafnet_forward.1} parent=0 // pred_check
    _
  $region27: #{conditional_nafnet_forward.1} parent=0 // pred_check_branch
    %28 = sbr.rel (0) target = $region29
  $region28: #{conditional_nafnet_forward.1} parent=0 // pred_region
    _
  $region29: #{conditional_nafnet_forward.1} parent=0 // pred_fallthru
    _
  // Predicated region
  $region30: #{conditional_nafnet_forward.1} parent=0 // pred_check
    _
  $region31: #{conditional_nafnet_forward.1} parent=0 // pred_check_branch
    %30 = sbr.rel (0) target = $region33
  $region32: #{conditional_nafnet_forward.1} parent=0 // pred_region
    _
  $region33: #{conditional_nafnet_forward.1} parent=0 // pred_fallthru
    _
  // Predicated region
  $region34: #{conditional_nafnet_forward.1} parent=0 // pred_check
    _
  $region35: #{conditional_nafnet_forward.1} parent=0 // pred_check_branch
    %32 = sbr.rel (0) target = $region37
  $region36: #{conditional_nafnet_forward.1} parent=0 // pred_region
    _
  $region37: #{conditional_nafnet_forward.1} parent=0 // pred_fallthru
    _
  // Predicated region
  $region38: #{conditional_nafnet_forward.1} parent=0 // pred_check
    _
  $region39: #{conditional_nafnet_forward.1} parent=0 // pred_check_branch
    %34 = sbr.rel (0) target = $region41
  $region40: #{conditional_nafnet_forward.1} parent=0 // pred_region
    _
  $region41: #{conditional_nafnet_forward.1} parent=0 // pred_fallthru
    _
  %v35 = vlaneseq
  %v36 = vand.u32 %v35, 127
  %v37 = vadd.s32 %v36, 128
  %v38 = vadd.s32 %v36, 256
  %v39 = vadd.s32 %v36, 384
  %v40 = vcvt.s32.f32 %v36
  %v41 = vcvt.s32.f32 %v37
  %v42 = vcvt.s32.f32 %v38
  %v43 = vcvt.s32.f32 %v39
  %v44 = vadd.f32 %v40, 0.5
  %v45 = vadd.f32 %v41, 0.5
  %v46 = vadd.f32 %v42, 0.5
  %v47 = vadd.f32 %v43, 0.5
  %v48 = vmul.f32 %v44, 0.00390625
  %v49 = vmul.f32 %v45, 0.00390625
  %v50 = vmul.f32 %v46, 0.00390625
  %v51 = vmul.f32 %v47, 0.00390625
  %v52 = vfloor.f32 %v48
  %v53 = vfloor.f32 %v49
  %v54 = vfloor.f32 %v50
  %v55 = vfloor.f32 %v51
  %v56 = vmul.f32 %v52, 256.0
  %v57 = vmul.f32 %v53, 256.0
  %v58 = vmul.f32 %v54, 256.0
  %v59 = vmul.f32 %v55, 256.0
  %v60 = vsub.f32 %v40, %v56
  %v61 = vsub.f32 %v41, %v57
  %v62 = vsub.f32 %v42, %v58
  %v63 = vsub.f32 %v43, %v59
  %v64 = vadd.f32 %v60, 0.5
  %v65 = vadd.f32 %v61, 0.5
  %v66 = vadd.f32 %v62, 0.5
  %v67 = vadd.f32 %v63, 0.5
  %v68 = vmul.f32 %v64, 0.0625
  %v69 = vmul.f32 %v65, 0.0625
  %v70 = vmul.f32 %v66, 0.0625
  %v71 = vmul.f32 %v67, 0.0625
  %v72 = vfloor.f32 %v68
  %v73 = vfloor.f32 %v69
  %v74 = vfloor.f32 %v70
  %v75 = vfloor.f32 %v71
  %v76 = vmul.f32 %v72, 16.0
  %v77 = vmul.f32 %v73, 16.0
  %v78 = vmul.f32 %v74, 16.0
  %v79 = vmul.f32 %v75, 16.0
  %v80 = vsub.f32 %v60, %v76
  %v81 = vsub.f32 %v61, %v77
  %v82 = vsub.f32 %v62, %v78
  %v83 = vsub.f32 %v63, %v79
  %v84 = vlaneseq
  %v85 = vshrl.u32 %v84, 7
  %v86 = vadd.s32 %v85, 8
  %v87 = vadd.s32 %v85, 16
  %v88 = vadd.s32 %v85, 24
  %v89 = vadd.s32 %v85, 32
  %v90 = vadd.s32 %v85, 40
  %v91 = vadd.s32 %v85, 48
  %v92 = vadd.s32 %v85, 56
  %v93 = vadd.s32 %v85, 64
  %v94 = vadd.s32 %v85, 72
  %v95 = vadd.s32 %v85, 80
  %v96 = vadd.s32 %v85, 88
  %v97 = vadd.s32 %v85, 96
  %v98 = vadd.s32 %v85, 104
  %v99 = vadd.s32 %v85, 112
  %v100 = vadd.s32 %v85, 120
  %v101 = vadd.s32 %v85, 128
  %v102 = vadd.s32 %v85, 136
  %v103 = vadd.s32 %v85, 144
  %v104 = vadd.s32 %v85, 152
  %v105 = vadd.s32 %v85, 160
  %v106 = vadd.s32 %v85, 168
  %v107 = vadd.s32 %v85, 176
  %v108 = vadd.s32 %v85, 184
  %v109 = vadd.s32 %v85, 192
  %v110 = vadd.s32 %v85, 200
  %v111 = vadd.s32 %v85, 208
  %v112 = vadd.s32 %v85, 216
  %v113 = vadd.s32 %v85, 224
  %v114 = vadd.s32 %v85, 232
  %v115 = vadd.s32 %v85, 240
  %v116 = vadd.s32 %v85, 248
  %v117 = vadd.s32 %v85, 256
  %v118 = vadd.s32 %v85, 264
  %v119 = vadd.s32 %v85, 272
  %v120 = vadd.s32 %v85, 280
  %v121 = vadd.s32 %v85, 288
  %v122 = vadd.s32 %v85, 296
  %v123 = vadd.s32 %v85, 304
  %v124 = vadd.s32 %v85, 312
  %v125 = vadd.s32 %v85, 320
  %v126 = vadd.s32 %v85, 328
  %v127 = vadd.s32 %v85, 336
  %v128 = vadd.s32 %v85, 344
  %v129 = vadd.s32 %v85, 352
  %v130 = vadd.s32 %v85, 360
  %v131 = vadd.s32 %v85, 368
  %v132 = vadd.s32 %v85, 376
  %v133 = vadd.s32 %v85, 384
  %v134 = vadd.s32 %v85, 392
  %v135 = vadd.s32 %v85, 400
  %v136 = vadd.s32 %v85, 408
  %v137 = vadd.s32 %v85, 416
  %v138 = vadd.s32 %v85, 424
  %v139 = vadd.s32 %v85, 432
  %v140 = vadd.s32 %v85, 440
  %v141 = vadd.s32 %v85, 448
  %v142 = vadd.s32 %v85, 456
  %v143 = vadd.s32 %v85, 464
  %v144 = vadd.s32 %v85, 472
  %v145 = vadd.s32 %v85, 480
  %v146 = vadd.s32 %v85, 488
  %v147 = vadd.s32 %v85, 496
  %v148 = vadd.s32 %v85, 504
  %v149 = vcvt.s32.f32 %v85
  %v150 = vcvt.s32.f32 %v86
  %v151 = vcvt.s32.f32 %v87
  %v152 = vcvt.s32.f32 %v88
  %v153 = vcvt.s32.f32 %v89
  %v154 = vcvt.s32.f32 %v90
  %v155 = vcvt.s32.f32 %v91
  %v156 = vcvt.s32.f32 %v92
  %v157 = vcvt.s32.f32 %v93
  %v158 = vcvt.s32.f32 %v94
  %v159 = vcvt.s32.f32 %v95
  %v160 = vcvt.s32.f32 %v96
  %v161 = vcvt.s32.f32 %v97
  %v162 = vcvt.s32.f32 %v98
  %v163 = vcvt.s32.f32 %v99
  %v164 = vcvt.s32.f32 %v100
  %v165 = vcvt.s32.f32 %v101
  %v166 = vcvt.s32.f32 %v102
  %v167 = vcvt.s32.f32 %v103
  %v168 = vcvt.s32.f32 %v104
  %v169 = vcvt.s32.f32 %v105
  %v170 = vcvt.s32.f32 %v106
  %v171 = vcvt.s32.f32 %v107
  %v172 = vcvt.s32.f32 %v108
  %v173 = vcvt.s32.f32 %v109
  %v174 = vcvt.s32.f32 %v110
  %v175 = vcvt.s32.f32 %v111
  %v176 = vcvt.s32.f32 %v112
  %v177 = vcvt.s32.f32 %v113
  %v178 = vcvt.s32.f32 %v114
  %v179 = vcvt.s32.f32 %v115
  %v180 = vcvt.s32.f32 %v116
  %v181 = vcvt.s32.f32 %v117
  %v182 = vcvt.s32.f32 %v118
  %v183 = vcvt.s32.f32 %v119
  %v184 = vcvt.s32.f32 %v120
  %v185 = vcvt.s32.f32 %v121
  %v186 = vcvt.s32.f32 %v122
  %v187 = vcvt.s32.f32 %v123
  %v188 = vcvt.s32.f32 %v124
  %v189 = vcvt.s32.f32 %v125
  %v190 = vcvt.s32.f32 %v126
  %v191 = vcvt.s32.f32 %v127
  %v192 = vcvt.s32.f32 %v128
  %v193 = vcvt.s32.f32 %v129
  %v194 = vcvt.s32.f32 %v130
  %v195 = vcvt.s32.f32 %v131
  %v196 = vcvt.s32.f32 %v132
  %v197 = vcvt.s32.f32 %v133
  %v198 = vcvt.s32.f32 %v134
  %v199 = vcvt.s32.f32 %v135
  %v200 = vcvt.s32.f32 %v136
  %v201 = vcvt.s32.f32 %v137
  %v202 = vcvt.s32.f32 %v138
  %v203 = vcvt.s32.f32 %v139
  %v204 = vcvt.s32.f32 %v140
  %v205 = vcvt.s32.f32 %v141
  %v206 = vcvt.s32.f32 %v142
  %v207 = vcvt.s32.f32 %v143
  %v208 = vcvt.s32.f32 %v144
  %v209 = vcvt.s32.f32 %v145
  %v210 = vcvt.s32.f32 %v146
  %v211 = vcvt.s32.f32 %v147
  %v212 = vcvt.s32.f32 %v148
  %v213 = vmul.f32 %v40, 256.0
  %vm214 = vcmp.ge.f32.partialorder %v149, %v213
  %vm215 = vcmp.ge.f32.partialorder %v150, %v213
  %vm216 = vcmp.ge.f32.partialorder %v151, %v213
  %vm217 = vcmp.ge.f32.partialorder %v152, %v213
  %vm218 = vcmp.ge.f32.partialorder %v153, %v213
  %vm219 = vcmp.ge.f32.partialorder %v154, %v213
  %vm220 = vcmp.ge.f32.partialorder %v155, %v213
  %vm221 = vcmp.ge.f32.partialorder %v156, %v213
  %vm222 = vcmp.ge.f32.partialorder %v157, %v213
  %vm223 = vcmp.ge.f32.partialorder %v158, %v213
  %vm224 = vcmp.ge.f32.partialorder %v159, %v213
  %vm225 = vcmp.ge.f32.partialorder %v160, %v213
  %vm226 = vcmp.ge.f32.partialorder %v161, %v213
  %vm227 = vcmp.ge.f32.partialorder %v162, %v213
  %vm228 = vcmp.ge.f32.partialorder %v163, %v213
  %vm229 = vcmp.ge.f32.partialorder %v164, %v213
  %vm230 = vcmp.ge.f32.partialorder %v165, %v213
  %vm231 = vcmp.ge.f32.partialorder %v166, %v213
  %vm232 = vcmp.ge.f32.partialorder %v167, %v213
  %vm233 = vcmp.ge.f32.partialorder %v168, %v213
  %vm234 = vcmp.ge.f32.partialorder %v169, %v213
  %vm235 = vcmp.ge.f32.partialorder %v170, %v213
  %vm236 = vcmp.ge.f32.partialorder %v171, %v213
  %vm237 = vcmp.ge.f32.partialorder %v172, %v213
  %vm238 = vcmp.ge.f32.partialorder %v173, %v213
  %vm239 = vcmp.ge.f32.partialorder %v174, %v213
  %vm240 = vcmp.ge.f32.partialorder %v175, %v213
  %vm241 = vcmp.ge.f32.partialorder %v176, %v213
  %vm242 = vcmp.ge.f32.partialorder %v177, %v213
  %vm243 = vcmp.ge.f32.partialorder %v178, %v213
  %vm244 = vcmp.ge.f32.partialorder %v179, %v213
  %vm245 = vcmp.ge.f32.partialorder %v180, %v213
  %vm246 = vcmp.ge.f32.partialorder %v181, %v213
  %vm247 = vcmp.ge.f32.partialorder %v182, %v213
  %vm248 = vcmp.ge.f32.partialorder %v183, %v213
  %vm249 = vcmp.ge.f32.partialorder %v184, %v213
  %vm250 = vcmp.ge.f32.partialorder %v185, %v213
  %vm251 = vcmp.ge.f32.partialorder %v186, %v213
  %vm252 = vcmp.ge.f32.partialorder %v187, %v213
  %vm253 = vcmp.ge.f32.partialorder %v188, %v213
  %vm254 = vcmp.ge.f32.partialorder %v189, %v213
  %vm255 = vcmp.ge.f32.partialorder %v190, %v213
  %vm256 = vcmp.ge.f32.partialorder %v191, %v213
  %vm257 = vcmp.ge.f32.partialorder %v192, %v213
  %vm258 = vcmp.ge.f32.partialorder %v193, %v213
  %vm259 = vcmp.ge.f32.partialorder %v194, %v213
  %vm260 = vcmp.ge.f32.partialorder %v195, %v213
  %vm261 = vcmp.ge.f32.partialorder %v196, %v213
  %vm262 = vcmp.ge.f32.partialorder %v197, %v213
  %vm263 = vcmp.ge.f32.partialorder %v198, %v213
  %vm264 = vcmp.ge.f32.partialorder %v199, %v213
  %vm265 = vcmp.ge.f32.partialorder %v200, %v213
  %vm266 = vcmp.ge.f32.partialorder %v201, %v213
  %vm267 = vcmp.ge.f32.partialorder %v202, %v213
  %vm268 = vcmp.ge.f32.partialorder %v203, %v213
  %vm269 = vcmp.ge.f32.partialorder %v204, %v213
  %vm270 = vcmp.ge.f32.partialorder %v205, %v213
  %vm271 = vcmp.ge.f32.partialorder %v206, %v213
  %vm272 = vcmp.ge.f32.partialorder %v207, %v213
  %vm273 = vcmp.ge.f32.partialorder %v208, %v213
  %vm274 = vcmp.ge.f32.partialorder %v209, %v213
  %vm275 = vcmp.ge.f32.partialorder %v210, %v213
  %vm276 = vcmp.ge.f32.partialorder %v211, %v213
  %vm277 = vcmp.ge.f32.partialorder %v212, %v213
  %v278 = vadd.f32 %v40, 1.0
  %v279 = vmul.f32 %v278, 256.0
  %vm280 = vcmp.lt.f32.partialorder %v149, %v279
  %vm281 = vcmp.lt.f32.partialorder %v150, %v279
  %vm282 = vcmp.lt.f32.partialorder %v151, %v279
  %vm283 = vcmp.lt.f32.partialorder %v152, %v279
  %vm284 = vcmp.lt.f32.partialorder %v153, %v279
  %vm285 = vcmp.lt.f32.partialorder %v154, %v279
  %vm286 = vcmp.lt.f32.partialorder %v155, %v279
  %vm287 = vcmp.lt.f32.partialorder %v156, %v279
  %vm288 = vcmp.lt.f32.partialorder %v157, %v279
  %vm289 = vcmp.lt.f32.partialorder %v158, %v279
  %vm290 = vcmp.lt.f32.partialorder %v159, %v279
  %vm291 = vcmp.lt.f32.partialorder %v160, %v279
  %vm292 = vcmp.lt.f32.partialorder %v161, %v279
  %vm293 = vcmp.lt.f32.partialorder %v162, %v279
  %vm294 = vcmp.lt.f32.partialorder %v163, %v279
  %vm295 = vcmp.lt.f32.partialorder %v164, %v279
  %vm296 = vcmp.lt.f32.partialorder %v165, %v279
  %vm297 = vcmp.lt.f32.partialorder %v166, %v279
  %vm298 = vcmp.lt.f32.partialorder %v167, %v279
  %vm299 = vcmp.lt.f32.partialorder %v168, %v279
  %vm300 = vcmp.lt.f32.partialorder %v169, %v279
  %vm301 = vcmp.lt.f32.partialorder %v170, %v279
  %vm302 = vcmp.lt.f32.partialorder %v171, %v279
  %vm303 = vcmp.lt.f32.partialorder %v172, %v279
  %vm304 = vcmp.lt.f32.partialorder %v173, %v279
  %vm305 = vcmp.lt.f32.partialorder %v174, %v279
  %vm306 = vcmp.lt.f32.partialorder %v175, %v279
  %vm307 = vcmp.lt.f32.partialorder %v176, %v279
  %vm308 = vcmp.lt.f32.partialorder %v177, %v279
  %vm309 = vcmp.lt.f32.partialorder %v178, %v279
  %vm310 = vcmp.lt.f32.partialorder %v179, %v279
  %vm311 = vcmp.lt.f32.partialorder %v180, %v279
  %vm312 = vcmp.lt.f32.partialorder %v181, %v279
  %vm313 = vcmp.lt.f32.partialorder %v182, %v279
  %vm314 = vcmp.lt.f32.partialorder %v183, %v279
  %vm315 = vcmp.lt.f32.partialorder %v184, %v279
  %vm316 = vcmp.lt.f32.partialorder %v185, %v279
  %vm317 = vcmp.lt.f32.partialorder %v186, %v279
  %vm318 = vcmp.lt.f32.partialorder %v187, %v279
  %vm319 = vcmp.lt.f32.partialorder %v188, %v279
  %vm320 = vcmp.lt.f32.partialorder %v189, %v279
  %vm321 = vcmp.lt.f32.partialorder %v190, %v279
  %vm322 = vcmp.lt.f32.partialorder %v191, %v279
  %vm323 = vcmp.lt.f32.partialorder %v192, %v279
  %vm324 = vcmp.lt.f32.partialorder %v193, %v279
  %vm325 = vcmp.lt.f32.partialorder %v194, %v279
  %vm326 = vcmp.lt.f32.partialorder %v195, %v279
  %vm327 = vcmp.lt.f32.partialorder %v196, %v279
  %vm328 = vcmp.lt.f32.partialorder %v197, %v279
  %vm329 = vcmp.lt.f32.partialorder %v198, %v279
  %vm330 = vcmp.lt.f32.partialorder %v199, %v279
  %vm331 = vcmp.lt.f32.partialorder %v200, %v279
  %vm332 = vcmp.lt.f32.partialorder %v201, %v279
  %vm333 = vcmp.lt.f32.partialorder %v202, %v279
  %vm334 = vcmp.lt.f32.partialorder %v203, %v279
  %vm335 = vcmp.lt.f32.partialorder %v204, %v279
  %vm336 = vcmp.lt.f32.partialorder %v205, %v279
  %vm337 = vcmp.lt.f32.partialorder %v206, %v279
  %vm338 = vcmp.lt.f32.partialorder %v207, %v279
  %vm339 = vcmp.lt.f32.partialorder %v208, %v279
  %vm340 = vcmp.lt.f32.partialorder %v209, %v279
  %vm341 = vcmp.lt.f32.partialorder %v210, %v279
  %vm342 = vcmp.lt.f32.partialorder %v211, %v279
  %vm343 = vcmp.lt.f32.partialorder %v212, %v279
  %vm344 = vmand %vm214, %vm280
  %vm345 = vmand %vm215, %vm281
  %vm346 = vmand %vm216, %vm282
  %vm347 = vmand %vm217, %vm283
  %vm348 = vmand %vm218, %vm284
  %vm349 = vmand %vm219, %vm285
  %vm350 = vmand %vm220, %vm286
  %vm351 = vmand %vm221, %vm287
  %vm352 = vmand %vm222, %vm288
  %vm353 = vmand %vm223, %vm289
  %vm354 = vmand %vm224, %vm290
  %vm355 = vmand %vm225, %vm291
  %vm356 = vmand %vm226, %vm292
  %vm357 = vmand %vm227, %vm293
  %vm358 = vmand %vm228, %vm294
  %vm359 = vmand %vm229, %vm295
  %vm360 = vmand %vm230, %vm296
  %vm361 = vmand %vm231, %vm297
  %vm362 = vmand %vm232, %vm298
  %vm363 = vmand %vm233, %vm299
  %vm364 = vmand %vm234, %vm300
  %vm365 = vmand %vm235, %vm301
  %vm366 = vmand %vm236, %vm302
  %vm367 = vmand %vm237, %vm303
  %vm368 = vmand %vm238, %vm304
  %vm369 = vmand %vm239, %vm305
  %vm370 = vmand %vm240, %vm306
  %vm371 = vmand %vm241, %vm307
  %vm372 = vmand %vm242, %vm308
  %vm373 = vmand %vm243, %vm309
  %vm374 = vmand %vm244, %vm310
  %vm375 = vmand %vm245, %vm311
  %vm376 = vmand %vm246, %vm312
  %vm377 = vmand %vm247, %vm313
  %vm378 = vmand %vm248, %vm314
  %vm379 = vmand %vm249, %vm315
  %vm380 = vmand %vm250, %vm316
  %vm381 = vmand %vm251, %vm317
  %vm382 = vmand %vm252, %vm318
  %vm383 = vmand %vm253, %vm319
  %vm384 = vmand %vm254, %vm320
  %vm385 = vmand %vm255, %vm321
  %vm386 = vmand %vm256, %vm322
  %vm387 = vmand %vm257, %vm323
  %vm388 = vmand %vm258, %vm324
  %vm389 = vmand %vm259, %vm325
  %vm390 = vmand %vm260, %vm326
  %vm391 = vmand %vm261, %vm327
  %vm392 = vmand %vm262, %vm328
  %vm393 = vmand %vm263, %vm329
  %vm394 = vmand %vm264, %vm330
  %vm395 = vmand %vm265, %vm331
  %vm396 = vmand %vm266, %vm332
  %vm397 = vmand %vm267, %vm333
  %vm398 = vmand %vm268, %vm334
  %vm399 = vmand %vm269, %vm335
  %vm400 = vmand %vm270, %vm336
  %vm401 = vmand %vm271, %vm337
  %vm402 = vmand %vm272, %vm338
  %vm403 = vmand %vm273, %vm339
  %vm404 = vmand %vm274, %vm340
  %vm405 = vmand %vm275, %vm341
  %vm406 = vmand %vm276, %vm342
  %vm407 = vmand %vm277, %vm343
  %v408 = vsel %vm344, 1, 0
  %v409 = vsel %vm345, 1, 0
  %v410 = vsel %vm346, 1, 0
  %v411 = vsel %vm347, 1, 0
  %v412 = vsel %vm348, 1, 0
  %v413 = vsel %vm349, 1, 0
  %v414 = vsel %vm350, 1, 0
  %v415 = vsel %vm351, 1, 0
  %v416 = vsel %vm352, 1, 0
  %v417 = vsel %vm353, 1, 0
  %v418 = vsel %vm354, 1, 0
  %v419 = vsel %vm355, 1, 0
  %v420 = vsel %vm356, 1, 0
  %v421 = vsel %vm357, 1, 0
  %v422 = vsel %vm358, 1, 0
  %v423 = vsel %vm359, 1, 0
  %v424 = vsel %vm360, 1, 0
  %v425 = vsel %vm361, 1, 0
  %v426 = vsel %vm362, 1, 0
  %v427 = vsel %vm363, 1, 0
  %v428 = vsel %vm364, 1, 0
  %v429 = vsel %vm365, 1, 0
  %v430 = vsel %vm366, 1, 0
  %v431 = vsel %vm367, 1, 0
  %v432 = vsel %vm368, 1, 0
  %v433 = vsel %vm369, 1, 0
  %v434 = vsel %vm370, 1, 0
  %v435 = vsel %vm371, 1, 0
  %v436 = vsel %vm372, 1, 0
  %v437 = vsel %vm373, 1, 0
  %v438 = vsel %vm374, 1, 0
  %v439 = vsel %vm375, 1, 0
  %v440 = vsel %vm376, 1, 0
  %v441 = vsel %vm377, 1, 0
  %v442 = vsel %vm378, 1, 0
  %v443 = vsel %vm379, 1, 0
  %v444 = vsel %vm380, 1, 0
  %v445 = vsel %vm381, 1, 0
  %v446 = vsel %vm382, 1, 0
  %v447 = vsel %vm383, 1, 0
  %v448 = vsel %vm384, 1, 0
  %v449 = vsel %vm385, 1, 0
  %v450 = vsel %vm386, 1, 0
  %v451 = vsel %vm387, 1, 0
  %v452 = vsel %vm388, 1, 0
  %v453 = vsel %vm389, 1, 0
  %v454 = vsel %vm390, 1, 0
  %v455 = vsel %vm391, 1, 0
  %v456 = vsel %vm392, 1, 0
  %v457 = vsel %vm393, 1, 0
  %v458 = vsel %vm394, 1, 0
  %v459 = vsel %vm395, 1, 0
  %v460 = vsel %vm396, 1, 0
  %v461 = vsel %vm397, 1, 0
  %v462 = vsel %vm398, 1, 0
  %v463 = vsel %vm399, 1, 0
  %v464 = vsel %vm400, 1, 0
  %v465 = vsel %vm401, 1, 0
  %v466 = vsel %vm402, 1, 0
  %v467 = vsel %vm403, 1, 0
  %v468 = vsel %vm404, 1, 0
  %v469 = vsel %vm405, 1, 0
  %v470 = vsel %vm406, 1, 0
  %v471 = vsel %vm407, 1, 0
  %v472 = vcvt.s32.f32 %v408
  %v473 = vcvt.s32.f32 %v409
  %v474 = vcvt.s32.f32 %v410
  %v475 = vcvt.s32.f32 %v411
  %v476 = vcvt.s32.f32 %v412
  %v477 = vcvt.s32.f32 %v413
  %v478 = vcvt.s32.f32 %v414
  %v479 = vcvt.s32.f32 %v415
  %v480 = vcvt.s32.f32 %v416
  %v481 = vcvt.s32.f32 %v417
  %v482 = vcvt.s32.f32 %v418
  %v483 = vcvt.s32.f32 %v419
  %v484 = vcvt.s32.f32 %v420
  %v485 = vcvt.s32.f32 %v421
  %v486 = vcvt.s32.f32 %v422
  %v487 = vcvt.s32.f32 %v423
  %v488 = vcvt.s32.f32 %v424
  %v489 = vcvt.s32.f32 %v425
  %v490 = vcvt.s32.f32 %v426
  %v491 = vcvt.s32.f32 %v427
  %v492 = vcvt.s32.f32 %v428
  %v493 = vcvt.s32.f32 %v429
  %v494 = vcvt.s32.f32 %v430
  %v495 = vcvt.s32.f32 %v431
  %v496 = vcvt.s32.f32 %v432
  %v497 = vcvt.s32.f32 %v433
  %v498 = vcvt.s32.f32 %v434
  %v499 = vcvt.s32.f32 %v435
  %v500 = vcvt.s32.f32 %v436
  %v501 = vcvt.s32.f32 %v437
  %v502 = vcvt.s32.f32 %v438
  %v503 = vcvt.s32.f32 %v439
  %v504 = vcvt.s32.f32 %v440
  %v505 = vcvt.s32.f32 %v441
  %v506 = vcvt.s32.f32 %v442
  %v507 = vcvt.s32.f32 %v443
  %v508 = vcvt.s32.f32 %v444
  %v509 = vcvt.s32.f32 %v445
  %v510 = vcvt.s32.f32 %v446
  %v511 = vcvt.s32.f32 %v447
  %v512 = vcvt.s32.f32 %v448
  %v513 = vcvt.s32.f32 %v449
  %v514 = vcvt.s32.f32 %v450
  %v515 = vcvt.s32.f32 %v451
  %v516 = vcvt.s32.f32 %v452
  %v517 = vcvt.s32.f32 %v453
  %v518 = vcvt.s32.f32 %v454
  %v519 = vcvt.s32.f32 %v455
  %v520 = vcvt.s32.f32 %v456
  %v521 = vcvt.s32.f32 %v457
  %v522 = vcvt.s32.f32 %v458
  %v523 = vcvt.s32.f32 %v459
  %v524 = vcvt.s32.f32 %v460
  %v525 = vcvt.s32.f32 %v461
  %v526 = vcvt.s32.f32 %v462
  %v527 = vcvt.s32.f32 %v463
  %v528 = vcvt.s32.f32 %v464
  %v529 = vcvt.s32.f32 %v465
  %v530 = vcvt.s32.f32 %v466
  %v531 = vcvt.s32.f32 %v467
  %v532 = vcvt.s32.f32 %v468
  %v533 = vcvt.s32.f32 %v469
  %v534 = vcvt.s32.f32 %v470
  %v535 = vcvt.s32.f32 %v471
  %v536 = vmul.f32 %v149, 256.0
  %vm537 = vcmp.ge.f32.partialorder %v40, %v536
  %vm538 = vcmp.ge.f32.partialorder %v41, %v536
  %vm539 = vcmp.ge.f32.partialorder %v42, %v536
  %vm540 = vcmp.ge.f32.partialorder %v43, %v536
  %v541 = vadd.f32 %v149, 1.0
  %v542 = vmul.f32 %v541, 256.0
  %vm543 = vcmp.lt.f32.partialorder %v40, %v542
  %vm544 = vcmp.lt.f32.partialorder %v41, %v542
  %vm545 = vcmp.lt.f32.partialorder %v42, %v542
  %vm546 = vcmp.lt.f32.partialorder %v43, %v542
  %vm547 = vmand %vm537, %vm543
  %vm548 = vmand %vm538, %vm544
  %vm549 = vmand %vm539, %vm545
  %vm550 = vmand %vm540, %vm546
  %v551 = vsel %vm547, 1, 0
  %v552 = vsel %vm548, 1, 0
  %v553 = vsel %vm549, 1, 0
  %v554 = vsel %vm550, 1, 0
  %v555 = vcvt.s32.f32 %v551
  %v556 = vcvt.s32.f32 %v552
  %v557 = vcvt.s32.f32 %v553
  %v558 = vcvt.s32.f32 %v554
  %v559 = vld [vmem:[%s0] sm:$0xff]
  %v560 = vld [vmem:[%s0 + $0x8] sm:$0xff]
  %v561 = vld [vmem:[%s0 + $0x10] sm:$0xff]
  %v562 = vld [vmem:[%s0 + $0x18] sm:$0xff]
  %v563 = vld [vmem:[%s2] sm:$0xff]
  %v564 = vld [vmem:[%s2 + $0x8] sm:$0xff]
  %565 = vrot.lane.b32.xlu0 %v559, 17
  %v566 = vpop.permute.xlu0 %565
  %567 = vrot.lane.b32.xlu0 %v560, 17
  %v568 = vpop.permute.xlu0 %567
  %569 = vrot.lane.b32.xlu0 %v561, 17
  %v570 = vpop.permute.xlu0 %569
  %571 = vrot.lane.b32.xlu0 %v562, 17
  %v572 = vpop.permute.xlu0 %571
  %vm573 = vcmp.lt.s32.totalorder %v36, 17
  %v574 = vsel %vm573, %v570, %v572
  %v575 = vsel %vm573, %v568, %v570
  %v576 = vsel %vm573, %v566, %v568
  %v577 = vsel %vm573, %v572, %v566
  %vm578 = vcmp.ge.f32.partialorder %v60, 16.0
  %vm579 = vcmp.ge.f32.partialorder %v61, 16.0
  %vm580 = vcmp.ge.f32.partialorder %v62, 16.0
  %vm581 = vcmp.ge.f32.partialorder %v63, 16.0
  %vm582 = vcmp.lt.f32.partialorder %v60, 256.0
  %vm583 = vcmp.lt.f32.partialorder %v61, 256.0
  %vm584 = vcmp.lt.f32.partialorder %v62, 256.0
  %vm585 = vcmp.lt.f32.partialorder %v63, 256.0
  %vm586 = vmand %vm578, %vm582
  %vm587 = vmand %vm579, %vm583
  %vm588 = vmand %vm580, %vm584
  %vm589 = vmand %vm581, %vm585
  %vm590 = vcmp.ge.f32.partialorder %v80, 1.0
  %vm591 = vcmp.ge.f32.partialorder %v81, 1.0
  %vm592 = vcmp.ge.f32.partialorder %v82, 1.0
  %vm593 = vcmp.ge.f32.partialorder %v83, 1.0
  %vm594 = vmand %vm586, %vm590
  %vm595 = vmand %vm587, %vm591
  %vm596 = vmand %vm588, %vm592
  %vm597 = vmand %vm589, %vm593
  %v598 = vsel %vm594, 1, 0
  %v599 = vsel %vm595, 1, 0
  %v600 = vsel %vm596, 1, 0
  %v601 = vsel %vm597, 1, 0
  %v602 = vcvt.s32.f32 %v598
  %v603 = vcvt.s32.f32 %v599
  %v604 = vcvt.s32.f32 %v600
  %v605 = vcvt.s32.f32 %v601
  %v606 = vmul.f32 %v577, %v602
  %v607 = vmul.f32 %v576, %v603
  %v608 = vmul.f32 %v575, %v604
  %v609 = vmul.f32 %v574, %v605
  %v610 = vld [vmem:[%s1] sm:$0xff]
  %v611 = vld [vmem:[%s1 + $0x8] sm:$0xff]
  %612 = vrot.lane.b32.xlu0 %v559, 16
  %v613 = vpop.permute.xlu0 %612
  %614 = vrot.lane.b32.xlu0 %v560, 16
  %v615 = vpop.permute.xlu0 %614
  %616 = vrot.lane.b32.xlu0 %v561, 16
  %v617 = vpop.permute.xlu0 %616
  %618 = vrot.lane.b32.xlu0 %v562, 16
  %v619 = vpop.permute.xlu0 %618
  %vm620 = vcmp.lt.s32.totalorder %v36, 16
  %v621 = vsel %vm620, %v617, %v619
  %v622 = vsel %vm620, %v615, %v617
  %v623 = vsel %vm620, %v613, %v615
  %v624 = vsel %vm620, %v619, %v613
  %v625 = vsel %vm586, 1, 0
  %v626 = vsel %vm587, 1, 0
  %v627 = vsel %vm588, 1, 0
  %v628 = vsel %vm589, 1, 0
  %v629 = vcvt.s32.f32 %v625
  %v630 = vcvt.s32.f32 %v626
  %v631 = vcvt.s32.f32 %v627
  %v632 = vcvt.s32.f32 %v628
  %v633 = vmul.f32 %v624, %v629
  %v634 = vmul.f32 %v623, %v630
  %v635 = vmul.f32 %v622, %v631
  %v636 = vmul.f32 %v621, %v632
  %s637 = scalar_lea.vmem %s1, 16
  %v638 = vld [vmem:[%s637] sm:$0xff]
  %v639 = vld [vmem:[%s637 + $0x8] sm:$0xff]
  %vm640 = vcmask 64512
  %v642 = vsel %vm640, %v638, 0
  %v645 = vsel %vm640, %v639, 0
  %647 = vmatprep.subr.mxu0 0.0
  %648 = vmatpush1.msra.mxu0 0.0
  %649 = vmatprep.subr.mxu0 0.0
  %650 = vmatpush1.msra.mxu0 0.0
  %651 = vmatprep.subr.mxu0 0.0
  %652 = vmatpush1.msra.mxu0 0.0
  %653 = vmatprep.subr.mxu0 0.0
  %654 = vmatpush1.msra.mxu0 0.0
  %655 = vmatprep.subr.mxu0 0.0
  %656 = vmatpush1.msra.mxu0 0.0
  %657 = vmatprep.subr.mxu0 0.0
  %658 = vmatpush1.msra.mxu0 0.0
  %659 = vmatprep.subr.mxu0 0.0
  %660 = vmatpush1.msra.mxu0 0.0
  %661 = vmatprep.subr.mxu0 0.0
  %662 = vmatpush1.msra.mxu0 0.0
  %663 = vmatprep.subr.mxu0 0.0
  %664 = vmatpush1.msra.mxu0 0.0
  %665 = vmatprep.subr.mxu0 0.0
  %666 = vmatpush1.msra.mxu0 0.0
  %667 = vmatprep.subr.mxu0 0.0
  %668 = vmatpush1.msra.mxu0 0.0
  %669 = vmatprep.subr.mxu0 0.0
  %670 = vmatpush1.msra.mxu0 0.0
  %671 = vmatprep.subr.mxu0 0.0
  %672 = vmatpush1.msra.mxu0 0.0
  %673 = vmatprep.subr.mxu0 0.0
  %674 = vmatpush1.msra.mxu0 0.0
  %675 = vmatprep.subr.mxu0 0.0
  %676 = vmatpush1.msra.mxu0 0.0
  %677 = vmatprep.subr.mxu0 %v634
  %678 = vmatpush1.msra.mxu0 %v633
  %679 = vmatprep.subr.mxu0 0.0
  %680 = vmatpush2.msra.mxu0 0.0
  %681 = vmatprep.subr.mxu0 0.0
  %682 = vmatpush2.msra.mxu0 0.0
  %683 = vmatprep.subr.mxu0 0.0
  %684 = vmatpush2.msra.mxu0 0.0
  %685 = vmatprep.subr.mxu0 0.0
  %686 = vmatpush2.msra.mxu0 0.0
  %687 = vmatprep.subr.mxu0 0.0
  %688 = vmatpush2.msra.mxu0 0.0
  %689 = vmatprep.subr.mxu0 0.0
  %690 = vmatpush2.msra.mxu0 0.0
  %691 = vmatprep.subr.mxu0 0.0
  %692 = vmatpush2.msra.mxu0 0.0
  %693 = vmatprep.subr.mxu0 0.0
  %694 = vmatpush2.msra.mxu0 0.0
  %695 = vmatprep.subr.mxu0 0.0
  %696 = vmatpush2.msra.mxu0 0.0
  %697 = vmatprep.subr.mxu0 0.0
  %698 = vmatpush2.msra.mxu0 0.0
  %699 = vmatprep.subr.mxu0 0.0
  %700 = vmatpush2.msra.mxu0 0.0
  %701 = vmatprep.subr.mxu0 0.0
  %702 = vmatpush2.msra.mxu0 0.0
  %703 = vmatprep.subr.mxu0 0.0
  %704 = vmatpush2.msra.mxu0 0.0
  %705 = vmatprep.subr.mxu0 0.0
  %706 = vmatpush2.msra.mxu0 0.0
  %707 = vmatprep.subr.mxu0 0.0
  %708 = vmatpush2.msra.mxu0 0.0
  %709 = vmatprep.subr.mxu0 0.0
  %710 = vmatpush2.msra.mxu0 0.0
  %711 = vmatprep.mubr.f32.mxu0 0.0
  %712 = vmatmul.mubr.f32.gmra.mxu0 %v642
  %v713 = vpop.f32.mrf.mxu0
  %v714 = vadd.f32 0.0, %v713
  %v715 = vpop.f32.mrf.mxu0
  %v716 = vadd.f32 0.0, %v715
  %717 = vmatprep.mubr.f32.mxu0 0.0
  %718 = vmatmul.mubr.f32.gmra.mxu0 %v645
  %v719 = vpop.f32.mrf.mxu0
  %v720 = vadd.f32 0.0, %v719
  %v721 = vpop.f32.mrf.mxu0
  %v722 = vadd.f32 0.0, %v721
  %723 = vdwg.mxu0
  %724 = vmatprep.subr.mxu0 0.0
  %725 = vmatpush1.msra.mxu0 0.0
  %726 = vmatprep.subr.mxu0 0.0
  %727 = vmatpush1.msra.mxu0 0.0
  %728 = vmatprep.subr.mxu0 0.0
  %729 = vmatpush1.msra.mxu0 0.0
  %730 = vmatprep.subr.mxu0 0.0
  %731 = vmatpush1.msra.mxu0 0.0
  %732 = vmatprep.subr.mxu0 0.0
  %733 = vmatpush1.msra.mxu0 0.0
  %734 = vmatprep.subr.mxu0 0.0
  %735 = vmatpush1.msra.mxu0 0.0
  %736 = vmatprep.subr.mxu0 0.0
  %737 = vmatpush1.msra.mxu0 0.0
  %738 = vmatprep.subr.mxu0 0.0
  %739 = vmatpush1.msra.mxu0 0.0
  %740 = vmatprep.subr.mxu0 0.0
  %741 = vmatpush1.msra.mxu0 0.0
  %742 = vmatprep.subr.mxu0 0.0
  %743 = vmatpush1.msra.mxu0 0.0
  %744 = vmatprep.subr.mxu0 0.0
  %745 = vmatpush1.msra.mxu0 0.0
  %746 = vmatprep.subr.mxu0 0.0
  %747 = vmatpush1.msra.mxu0 0.0
  %748 = vmatprep.subr.mxu0 0.0
  %749 = vmatpush1.msra.mxu0 0.0
  %750 = vmatprep.subr.mxu0 0.0
  %751 = vmatpush1.msra.mxu0 0.0
  %752 = vmatprep.subr.mxu0 0.0
  %753 = vmatpush1.msra.mxu0 0.0
  %754 = vmatprep.subr.mxu0 %v636
  %755 = vmatpush1.msra.mxu0 %v635
  %756 = vmatprep.subr.mxu0 0.0
  %757 = vmatpush2.msra.mxu0 0.0
  %758 = vmatprep.subr.mxu0 0.0
  %759 = vmatpush2.msra.mxu0 0.0
  %760 = vmatprep.subr.mxu0 0.0
  %761 = vmatpush2.msra.mxu0 0.0
  %762 = vmatprep.subr.mxu0 0.0
  %763 = vmatpush2.msra.mxu0 0.0
  %764 = vmatprep.subr.mxu0 0.0
  %765 = vmatpush2.msra.mxu0 0.0
  %766 = vmatprep.subr.mxu0 0.0
  %767 = vmatpush2.msra.mxu0 0.0
  %768 = vmatprep.subr.mxu0 0.0
  %769 = vmatpush2.msra.mxu0 0.0
  %770 = vmatprep.subr.mxu0 0.0
  %771 = vmatpush2.msra.mxu0 0.0
  %772 = vmatprep.subr.mxu0 0.0
  %773 = vmatpush2.msra.mxu0 0.0
  %774 = vmatprep.subr.mxu0 0.0
  %775 = vmatpush2.msra.mxu0 0.0
  %776 = vmatprep.subr.mxu0 0.0
  %777 = vmatpush2.msra.mxu0 0.0
  %778 = vmatprep.subr.mxu0 0.0
  %779 = vmatpush2.msra.mxu0 0.0
  %780 = vmatprep.subr.mxu0 0.0
  %781 = vmatpush2.msra.mxu0 0.0
  %782 = vmatprep.subr.mxu0 0.0
  %783 = vmatpush2.msra.mxu0 0.0
  %784 = vmatprep.subr.mxu0 0.0
  %785 = vmatpush2.msra.mxu0 0.0
  %786 = vmatprep.subr.mxu0 0.0
  %787 = vmatpush2.msra.mxu0 0.0
  %788 = vmatprep.mubr.f32.mxu0 0.0
  %789 = vmatmul.mubr.f32.gmra.mxu0 %v642
  %v790 = vpop.f32.mrf.mxu0
  %v791 = vadd.f32 0.0, %v790
  %v792 = vpop.f32.mrf.mxu0
  %v793 = vadd.f32 0.0, %v792
  %794 = vmatprep.mubr.f32.mxu0 0.0
  %795 = vmatmul.mubr.f32.gmra.mxu0 %v645
  %v796 = vpop.f32.mrf.mxu0
  %v797 = vadd.f32 0.0, %v796
  %v798 = vpop.f32.mrf.mxu0
  %v799 = vadd.f32 0.0, %v798
  %800 = vdwg.mxu0
  %v802 = vsel %vm640, %v610, 0
  %v805 = vsel %vm640, %v611, 0
  %807 = vmatprep.subr.mxu0 0.0
  %808 = vmatpush1.msra.mxu0 0.0
  %809 = vmatprep.subr.mxu0 0.0
  %810 = vmatpush1.msra.mxu0 0.0
  %811 = vmatprep.subr.mxu0 0.0
  %812 = vmatpush1.msra.mxu0 0.0
  %813 = vmatprep.subr.mxu0 0.0
  %814 = vmatpush1.msra.mxu0 0.0
  %815 = vmatprep.subr.mxu0 0.0
  %816 = vmatpush1.msra.mxu0 0.0
  %817 = vmatprep.subr.mxu0 0.0
  %818 = vmatpush1.msra.mxu0 0.0
  %819 = vmatprep.subr.mxu0 0.0
  %820 = vmatpush1.msra.mxu0 0.0
  %821 = vmatprep.subr.mxu0 0.0
  %822 = vmatpush1.msra.mxu0 0.0
  %823 = vmatprep.subr.mxu0 0.0
  %824 = vmatpush1.msra.mxu0 0.0
  %825 = vmatprep.subr.mxu0 0.0
  %826 = vmatpush1.msra.mxu0 0.0
  %827 = vmatprep.subr.mxu0 0.0
  %828 = vmatpush1.msra.mxu0 0.0
  %829 = vmatprep.subr.mxu0 0.0
  %830 = vmatpush1.msra.mxu0 0.0
  %831 = vmatprep.subr.mxu0 0.0
  %832 = vmatpush1.msra.mxu0 0.0
  %833 = vmatprep.subr.mxu0 0.0
  %834 = vmatpush1.msra.mxu0 0.0
  %835 = vmatprep.subr.mxu0 0.0
  %836 = vmatpush1.msra.mxu0 0.0
  %837 = vmatprep.subr.mxu0 %v607
  %838 = vmatpush1.msra.mxu0 %v606
  %839 = vmatprep.subr.mxu0 0.0
  %840 = vmatpush2.msra.mxu0 0.0
  %841 = vmatprep.subr.mxu0 0.0
  %842 = vmatpush2.msra.mxu0 0.0
  %843 = vmatprep.subr.mxu0 0.0
  %844 = vmatpush2.msra.mxu0 0.0
  %845 = vmatprep.subr.mxu0 0.0
  %846 = vmatpush2.msra.mxu0 0.0
  %847 = vmatprep.subr.mxu0 0.0
  %848 = vmatpush2.msra.mxu0 0.0
  %849 = vmatprep.subr.mxu0 0.0
  %850 = vmatpush2.msra.mxu0 0.0
  %851 = vmatprep.subr.mxu0 0.0
  %852 = vmatpush2.msra.mxu0 0.0
  %853 = vmatprep.subr.mxu0 0.0
  %854 = vmatpush2.msra.mxu0 0.0
  %855 = vmatprep.subr.mxu0 0.0
  %856 = vmatpush2.msra.mxu0 0.0
  %857 = vmatprep.subr.mxu0 0.0
  %858 = vmatpush2.msra.mxu0 0.0
  %859 = vmatprep.subr.mxu0 0.0
  %860 = vmatpush2.msra.mxu0 0.0
  %861 = vmatprep.subr.mxu0 0.0
  %862 = vmatpush2.msra.mxu0 0.0
  %863 = vmatprep.subr.mxu0 0.0
  %864 = vmatpush2.msra.mxu0 0.0
  %865 = vmatprep.subr.mxu0 0.0
  %866 = vmatpush2.msra.mxu0 0.0
  %867 = vmatprep.subr.mxu0 0.0
  %868 = vmatpush2.msra.mxu0 0.0
  %869 = vmatprep.subr.mxu0 0.0
  %870 = vmatpush2.msra.mxu0 0.0
  %871 = vmatprep.mubr.f32.mxu0 0.0
  %872 = vmatmul.mubr.f32.gmra.mxu0 %v802
  %v873 = vpop.f32.mrf.mxu0
  %v874 = vadd.f32 %v714, %v873
  %v875 = vpop.f32.mrf.mxu0
  %v876 = vadd.f32 %v716, %v875
  %877 = vmatprep.mubr.f32.mxu0 0.0
  %878 = vmatmul.mubr.f32.gmra.mxu0 %v805
  %v879 = vpop.f32.mrf.mxu0
  %v880 = vadd.f32 %v720, %v879
  %v881 = vpop.f32.mrf.mxu0
  %v882 = vadd.f32 %v722, %v881
  %883 = vdwg.mxu0
  %884 = vmatprep.subr.mxu0 0.0
  %885 = vmatpush1.msra.mxu0 0.0
  %886 = vmatprep.subr.mxu0 0.0
  %887 = vmatpush1.msra.mxu0 0.0
  %888 = vmatprep.subr.mxu0 0.0
  %889 = vmatpush1.msra.mxu0 0.0
  %890 = vmatprep.subr.mxu0 0.0
  %891 = vmatpush1.msra.mxu0 0.0
  %892 = vmatprep.subr.mxu0 0.0
  %893 = vmatpush1.msra.mxu0 0.0
  %894 = vmatprep.subr.mxu0 0.0
  %895 = vmatpush1.msra.mxu0 0.0
  %896 = vmatprep.subr.mxu0 0.0
  %897 = vmatpush1.msra.mxu0 0.0
  %898 = vmatprep.subr.mxu0 0.0
  %899 = vmatpush1.msra.mxu0 0.0
  %900 = vmatprep.subr.mxu0 0.0
  %901 = vmatpush1.msra.mxu0 0.0
  %902 = vmatprep.subr.mxu0 0.0
  %903 = vmatpush1.msra.mxu0 0.0
  %904 = vmatprep.subr.mxu0 0.0
  %905 = vmatpush1.msra.mxu0 0.0
  %906 = vmatprep.subr.mxu0 0.0
  %907 = vmatpush1.msra.mxu0 0.0
  %908 = vmatprep.subr.mxu0 0.0
  %909 = vmatpush1.msra.mxu0 0.0
  %910 = vmatprep.subr.mxu0 0.0
  %911 = vmatpush1.msra.mxu0 0.0
  %912 = vmatprep.subr.mxu0 0.0
  %913 = vmatpush1.msra.mxu0 0.0
  %914 = vmatprep.subr.mxu0 %v609
  %915 = vmatpush1.msra.mxu0 %v608
  %916 = vmatprep.subr.mxu0 0.0
  %917 = vmatpush2.msra.mxu0 0.0
  %918 = vmatprep.subr.mxu0 0.0
  %919 = vmatpush2.msra.mxu0 0.0
  %920 = vmatprep.subr.mxu0 0.0
  %921 = vmatpush2.msra.mxu0 0.0
  %922 = vmatprep.subr.mxu0 0.0
  %923 = vmatpush2.msra.mxu0 0.0
  %924 = vmatprep.subr.mxu0 0.0
  %925 = vmatpush2.msra.mxu0 0.0
  %926 = vmatprep.subr.mxu0 0.0
  %927 = vmatpush2.msra.mxu0 0.0
  %928 = vmatprep.subr.mxu0 0.0
  %929 = vmatpush2.msra.mxu0 0.0
  %930 = vmatprep.subr.mxu0 0.0
  %931 = vmatpush2.msra.mxu0 0.0
  %932 = vmatprep.subr.mxu0 0.0
  %933 = vmatpush2.msra.mxu0 0.0
  %934 = vmatprep.subr.mxu0 0.0
  %935 = vmatpush2.msra.mxu0 0.0
  %936 = vmatprep.subr.mxu0 0.0
  %937 = vmatpush2.msra.mxu0 0.0
  %938 = vmatprep.subr.mxu0 0.0
  %939 = vmatpush2.msra.mxu0 0.0
  %940 = vmatprep.subr.mxu0 0.0
  %941 = vmatpush2.msra.mxu0 0.0
  %942 = vmatprep.subr.mxu0 0.0
  %943 = vmatpush2.msra.mxu0 0.0
  %944 = vmatprep.subr.mxu0 0.0
  %945 = vmatpush2.msra.mxu0 0.0
  %946 = vmatprep.subr.mxu0 0.0
  %947 = vmatpush2.msra.mxu0 0.0
  %948 = vmatprep.mubr.f32.mxu0 0.0
  %949 = vmatmul.mubr.f32.gmra.mxu0 %v802
  %v950 = vpop.f32.mrf.mxu0
  %v951 = vadd.f32 %v791, %v950
  %v952 = vpop.f32.mrf.mxu0
  %v953 = vadd.f32 %v793, %v952
  %954 = vmatprep.mubr.f32.mxu0 0.0
  %955 = vmatmul.mubr.f32.gmra.mxu0 %v805
  %v956 = vpop.f32.mrf.mxu0
  %v957 = vadd.f32 %v797, %v956
  %v958 = vpop.f32.mrf.mxu0
  %v959 = vadd.f32 %v799, %v958
  %960 = vdwg.mxu0
  %961 = vrot.lane.b32.xlu0 %v559, 15
  %v962 = vpop.permute.xlu0 %961
  %963 = vrot.lane.b32.xlu0 %v560, 15
  %v964 = vpop.permute.xlu0 %963
  %965 = vrot.lane.b32.xlu0 %v561, 15
  %v966 = vpop.permute.xlu0 %965
  %967 = vrot.lane.b32.xlu0 %v562, 15
  %v968 = vpop.permute.xlu0 %967
  %vm969 = vcmp.lt.s32.totalorder %v36, 15
  %v970 = vsel %vm969, %v966, %v968
  %v971 = vsel %vm969, %v964, %v966
  %v972 = vsel %vm969, %v962, %v964
  %v973 = vsel %vm969, %v968, %v962
  %vm974 = vcmp.lt.f32.partialorder %v80, 15.0
  %vm975 = vcmp.lt.f32.partialorder %v81, 15.0
  %vm976 = vcmp.lt.f32.partialorder %v82, 15.0
  %vm977 = vcmp.lt.f32.partialorder %v83, 15.0
  %vm978 = vmand %vm586, %vm974
  %vm979 = vmand %vm587, %vm975
  %vm980 = vmand %vm588, %vm976
  %vm981 = vmand %vm589, %vm977
  %v982 = vsel %vm978, 1, 0
  %v983 = vsel %vm979, 1, 0
  %v984 = vsel %vm980, 1, 0
  %v985 = vsel %vm981, 1, 0
  %v986 = vcvt.s32.f32 %v982
  %v987 = vcvt.s32.f32 %v983
  %v988 = vcvt.s32.f32 %v984
  %v989 = vcvt.s32.f32 %v985
  %v990 = vmul.f32 %v973, %v986
  %v991 = vmul.f32 %v972, %v987
  %v992 = vmul.f32 %v971, %v988
  %v993 = vmul.f32 %v970, %v989
  %s994 = scalar_lea.vmem %s1, 32
  %v995 = vld [vmem:[%s994] sm:$0xff]
  %v996 = vld [vmem:[%s994 + $0x8] sm:$0xff]
  %v998 = vsel %vm640, %v995, 0
  %v1001 = vsel %vm640, %v996, 0
  %1003 = vmatprep.subr.mxu0 0.0
  %1004 = vmatpush1.msra.mxu0 0.0
  %1005 = vmatprep.subr.mxu0 0.0
  %1006 = vmatpush1.msra.mxu0 0.0
  %1007 = vmatprep.subr.mxu0 0.0
  %1008 = vmatpush1.msra.mxu0 0.0
  %1009 = vmatprep.subr.mxu0 0.0
  %1010 = vmatpush1.msra.mxu0 0.0
  %1011 = vmatprep.subr.mxu0 0.0
  %1012 = vmatpush1.msra.mxu0 0.0
  %1013 = vmatprep.subr.mxu0 0.0
  %1014 = vmatpush1.msra.mxu0 0.0
  %1015 = vmatprep.subr.mxu0 0.0
  %1016 = vmatpush1.msra.mxu0 0.0
  %1017 = vmatprep.subr.mxu0 0.0
  %1018 = vmatpush1.msra.mxu0 0.0
  %1019 = vmatprep.subr.mxu0 0.0
  %1020 = vmatpush1.msra.mxu0 0.0
  %1021 = vmatprep.subr.mxu0 0.0
  %1022 = vmatpush1.msra.mxu0 0.0
  %1023 = vmatprep.subr.mxu0 0.0
  %1024 = vmatpush1.msra.mxu0 0.0
  %1025 = vmatprep.subr.mxu0 0.0
  %1026 = vmatpush1.msra.mxu0 0.0
  %1027 = vmatprep.subr.mxu0 0.0
  %1028 = vmatpush1.msra.mxu0 0.0
  %1029 = vmatprep.subr.mxu0 0.0
  %1030 = vmatpush1.msra.mxu0 0.0
  %1031 = vmatprep.subr.mxu0 0.0
  %1032 = vmatpush1.msra.mxu0 0.0
  %1033 = vmatprep.subr.mxu0 %v991
  %1034 = vmatpush1.msra.mxu0 %v990
  %1035 = vmatprep.subr.mxu0 0.0
  %1036 = vmatpush2.msra.mxu0 0.0
  %1037 = vmatprep.subr.mxu0 0.0
  %1038 = vmatpush2.msra.mxu0 0.0
  %1039 = vmatprep.subr.mxu0 0.0
  %1040 = vmatpush2.msra.mxu0 0.0
  %1041 = vmatprep.subr.mxu0 0.0
  %1042 = vmatpush2.msra.mxu0 0.0
  %1043 = vmatprep.subr.mxu0 0.0
  %1044 = vmatpush2.msra.mxu0 0.0
  %1045 = vmatprep.subr.mxu0 0.0
  %1046 = vmatpush2.msra.mxu0 0.0
  %1047 = vmatprep.subr.mxu0 0.0
  %1048 = vmatpush2.msra.mxu0 0.0
  %1049 = vmatprep.subr.mxu0 0.0
  %1050 = vmatpush2.msra.mxu0 0.0
  %1051 = vmatprep.subr.mxu0 0.0
  %1052 = vmatpush2.msra.mxu0 0.0
  %1053 = vmatprep.subr.mxu0 0.0
  %1054 = vmatpush2.msra.mxu0 0.0
  %1055 = vmatprep.subr.mxu0 0.0
  %1056 = vmatpush2.msra.mxu0 0.0
  %1057 = vmatprep.subr.mxu0 0.0
  %1058 = vmatpush2.msra.mxu0 0.0
  %1059 = vmatprep.subr.mxu0 0.0
  %1060 = vmatpush2.msra.mxu0 0.0
  %1061 = vmatprep.subr.mxu0 0.0
  %1062 = vmatpush2.msra.mxu0 0.0
  %1063 = vmatprep.subr.mxu0 0.0
  %1064 = vmatpush2.msra.mxu0 0.0
  %1065 = vmatprep.subr.mxu0 0.0
  %1066 = vmatpush2.msra.mxu0 0.0
  %1067 = vmatprep.mubr.f32.mxu0 0.0
  %1068 = vmatmul.mubr.f32.gmra.mxu0 %v998
  %v1069 = vpop.f32.mrf.mxu0
  %v1070 = vadd.f32 0.0, %v1069
  %v1071 = vpop.f32.mrf.mxu0
  %v1072 = vadd.f32 0.0, %v1071
  %1073 = vmatprep.mubr.f32.mxu0 0.0
  %1074 = vmatmul.mubr.f32.gmra.mxu0 %v1001
  %v1075 = vpop.f32.mrf.mxu0
  %v1076 = vadd.f32 0.0, %v1075
  %v1077 = vpop.f32.mrf.mxu0
  %v1078 = vadd.f32 0.0, %v1077
  %1079 = vdwg.mxu0
  %1080 = vmatprep.subr.mxu0 0.0
  %1081 = vmatpush1.msra.mxu0 0.0
  %1082 = vmatprep.subr.mxu0 0.0
  %1083 = vmatpush1.msra.mxu0 0.0
  %1084 = vmatprep.subr.mxu0 0.0
  %1085 = vmatpush1.msra.mxu0 0.0
  %1086 = vmatprep.subr.mxu0 0.0
  %1087 = vmatpush1.msra.mxu0 0.0
  %1088 = vmatprep.subr.mxu0 0.0
  %1089 = vmatpush1.msra.mxu0 0.0
  %1090 = vmatprep.subr.mxu0 0.0
  %1091 = vmatpush1.msra.mxu0 0.0
  %1092 = vmatprep.subr.mxu0 0.0
  %1093 = vmatpush1.msra.mxu0 0.0
  %1094 = vmatprep.subr.mxu0 0.0
  %1095 = vmatpush1.msra.mxu0 0.0
  %1096 = vmatprep.subr.mxu0 0.0
  %1097 = vmatpush1.msra.mxu0 0.0
  %1098 = vmatprep.subr.mxu0 0.0
  %1099 = vmatpush1.msra.mxu0 0.0
  %1100 = vmatprep.subr.mxu0 0.0
  %1101 = vmatpush1.msra.mxu0 0.0
  %1102 = vmatprep.subr.mxu0 0.0
  %1103 = vmatpush1.msra.mxu0 0.0
  %1104 = vmatprep.subr.mxu0 0.0
  %1105 = vmatpush1.msra.mxu0 0.0
  %1106 = vmatprep.subr.mxu0 0.0
  %1107 = vmatpush1.msra.mxu0 0.0
  %1108 = vmatprep.subr.mxu0 0.0
  %1109 = vmatpush1.msra.mxu0 0.0
  %1110 = vmatprep.subr.mxu0 %v993
  %1111 = vmatpush1.msra.mxu0 %v992
  %1112 = vmatprep.subr.mxu0 0.0
  %1113 = vmatpush2.msra.mxu0 0.0
  %1114 = vmatprep.subr.mxu0 0.0
  %1115 = vmatpush2.msra.mxu0 0.0
  %1116 = vmatprep.subr.mxu0 0.0
  %1117 = vmatpush2.msra.mxu0 0.0
  %1118 = vmatprep.subr.mxu0 0.0
  %1119 = vmatpush2.msra.mxu0 0.0
  %1120 = vmatprep.subr.mxu0 0.0
  %1121 = vmatpush2.msra.mxu0 0.0
  %1122 = vmatprep.subr.mxu0 0.0
  %1123 = vmatpush2.msra.mxu0 0.0
  %1124 = vmatprep.subr.mxu0 0.0
  %1125 = vmatpush2.msra.mxu0 0.0
  %1126 = vmatprep.subr.mxu0 0.0
  %1127 = vmatpush2.msra.mxu0 0.0
  %1128 = vmatprep.subr.mxu0 0.0
  %1129 = vmatpush2.msra.mxu0 0.0
  %1130 = vmatprep.subr.mxu0 0.0
  %1131 = vmatpush2.msra.mxu0 0.0
  %1132 = vmatprep.subr.mxu0 0.0
  %1133 = vmatpush2.msra.mxu0 0.0
  %1134 = vmatprep.subr.mxu0 0.0
  %1135 = vmatpush2.msra.mxu0 0.0
  %1136 = vmatprep.subr.mxu0 0.0
  %1137 = vmatpush2.msra.mxu0 0.0
  %1138 = vmatprep.subr.mxu0 0.0
  %1139 = vmatpush2.msra.mxu0 0.0
  %1140 = vmatprep.subr.mxu0 0.0
  %1141 = vmatpush2.msra.mxu0 0.0
  %1142 = vmatprep.subr.mxu0 0.0
  %1143 = vmatpush2.msra.mxu0 0.0
  %1144 = vmatprep.mubr.f32.mxu0 0.0
  %1145 = vmatmul.mubr.f32.gmra.mxu0 %v998
  %v1146 = vpop.f32.mrf.mxu0
  %v1147 = vadd.f32 0.0, %v1146
  %v1148 = vpop.f32.mrf.mxu0
  %v1149 = vadd.f32 0.0, %v1148
  %1150 = vmatprep.mubr.f32.mxu0 0.0
  %1151 = vmatmul.mubr.f32.gmra.mxu0 %v1001
  %v1152 = vpop.f32.mrf.mxu0
  %v1153 = vadd.f32 0.0, %v1152
  %v1154 = vpop.f32.mrf.mxu0
  %v1155 = vadd.f32 0.0, %v1154
  %1156 = vdwg.mxu0
  %v1157 = vadd.f32 %v874, %v1070
  %v1158 = vadd.f32 %v876, %v1072
  %v1159 = vadd.f32 %v951, %v1147
  %v1160 = vadd.f32 %v953, %v1149
  %v1161 = vadd.f32 %v880, %v1076
  %v1162 = vadd.f32 %v882, %v1078
  %v1163 = vadd.f32 %v957, %v1153
  %v1164 = vadd.f32 %v959, %v1155
  %1165 = vrot.lane.b32.xlu0 %v559, 1
  %v1166 = vpop.permute.xlu0 %1165
  %1167 = vrot.lane.b32.xlu0 %v560, 1
  %v1168 = vpop.permute.xlu0 %1167
  %1169 = vrot.lane.b32.xlu0 %v561, 1
  %v1170 = vpop.permute.xlu0 %1169
  %1171 = vrot.lane.b32.xlu0 %v562, 1
  %v1172 = vpop.permute.xlu0 %1171
  %vm1173 = vcmp.lt.s32.totalorder %v36, 1
  %v1174 = vsel %vm1173, %v1170, %v1172
  %v1175 = vsel %vm1173, %v1168, %v1170
  %v1176 = vsel %vm1173, %v1166, %v1168
  %v1177 = vsel %vm1173, %v1172, %v1166
  %vm1178 = vcmp.ge.f32.partialorder %v60, 0.0
  %vm1179 = vcmp.ge.f32.partialorder %v61, 0.0
  %vm1180 = vcmp.ge.f32.partialorder %v62, 0.0
  %vm1181 = vcmp.ge.f32.partialorder %v63, 0.0
  %vm1182 = vmand %vm1178, %vm582
  %vm1183 = vmand %vm1179, %vm583
  %vm1184 = vmand %vm1180, %vm584
  %vm1185 = vmand %vm1181, %vm585
  %vm1186 = vmand %vm1182, %vm590
  %vm1187 = vmand %vm1183, %vm591
  %vm1188 = vmand %vm1184, %vm592
  %vm1189 = vmand %vm1185, %vm593
  %v1190 = vsel %vm1186, 1, 0
  %v1191 = vsel %vm1187, 1, 0
  %v1192 = vsel %vm1188, 1, 0
  %v1193 = vsel %vm1189, 1, 0
  %v1194 = vcvt.s32.f32 %v1190
  %v1195 = vcvt.s32.f32 %v1191
  %v1196 = vcvt.s32.f32 %v1192
  %v1197 = vcvt.s32.f32 %v1193
  %v1198 = vmul.f32 %v1177, %v1194
  %v1199 = vmul.f32 %v1176, %v1195
  %v1200 = vmul.f32 %v1175, %v1196
  %v1201 = vmul.f32 %v1174, %v1197
  %s1202 = scalar_lea.vmem %s1, 48
  %v1203 = vld [vmem:[%s1202] sm:$0xff]
  %v1204 = vld [vmem:[%s1202 + $0x8] sm:$0xff]
  %v1206 = vsel %vm640, %v1203, 0
  %v1209 = vsel %vm640, %v1204, 0
  %1211 = vmatprep.subr.mxu0 0.0
  %1212 = vmatpush1.msra.mxu0 0.0
  %1213 = vmatprep.subr.mxu0 0.0
  %1214 = vmatpush1.msra.mxu0 0.0
  %1215 = vmatprep.subr.mxu0 0.0
  %1216 = vmatpush1.msra.mxu0 0.0
  %1217 = vmatprep.subr.mxu0 0.0
  %1218 = vmatpush1.msra.mxu0 0.0
  %1219 = vmatprep.subr.mxu0 0.0
  %1220 = vmatpush1.msra.mxu0 0.0
  %1221 = vmatprep.subr.mxu0 0.0
  %1222 = vmatpush1.msra.mxu0 0.0
  %1223 = vmatprep.subr.mxu0 0.0
  %1224 = vmatpush1.msra.mxu0 0.0
  %1225 = vmatprep.subr.mxu0 0.0
  %1226 = vmatpush1.msra.mxu0 0.0
  %1227 = vmatprep.subr.mxu0 0.0
  %1228 = vmatpush1.msra.mxu0 0.0
  %1229 = vmatprep.subr.mxu0 0.0
  %1230 = vmatpush1.msra.mxu0 0.0
  %1231 = vmatprep.subr.mxu0 0.0
  %1232 = vmatpush1.msra.mxu0 0.0
  %1233 = vmatprep.subr.mxu0 0.0
  %1234 = vmatpush1.msra.mxu0 0.0
  %1235 = vmatprep.subr.mxu0 0.0
  %1236 = vmatpush1.msra.mxu0 0.0
  %1237 = vmatprep.subr.mxu0 0.0
  %1238 = vmatpush1.msra.mxu0 0.0
  %1239 = vmatprep.subr.mxu0 0.0
  %1240 = vmatpush1.msra.mxu0 0.0
  %1241 = vmatprep.subr.mxu0 %v1199
  %1242 = vmatpush1.msra.mxu0 %v1198
  %1243 = vmatprep.subr.mxu0 0.0
  %1244 = vmatpush2.msra.mxu0 0.0
  %1245 = vmatprep.subr.mxu0 0.0
  %1246 = vmatpush2.msra.mxu0 0.0
  %1247 = vmatprep.subr.mxu0 0.0
  %1248 = vmatpush2.msra.mxu0 0.0
  %1249 = vmatprep.subr.mxu0 0.0
  %1250 = vmatpush2.msra.mxu0 0.0
  %1251 = vmatprep.subr.mxu0 0.0
  %1252 = vmatpush2.msra.mxu0 0.0
  %1253 = vmatprep.subr.mxu0 0.0
  %1254 = vmatpush2.msra.mxu0 0.0
  %1255 = vmatprep.subr.mxu0 0.0
  %1256 = vmatpush2.msra.mxu0 0.0
  %1257 = vmatprep.subr.mxu0 0.0
  %1258 = vmatpush2.msra.mxu0 0.0
  %1259 = vmatprep.subr.mxu0 0.0
  %1260 = vmatpush2.msra.mxu0 0.0
  %1261 = vmatprep.subr.mxu0 0.0
  %1262 = vmatpush2.msra.mxu0 0.0
  %1263 = vmatprep.subr.mxu0 0.0
  %1264 = vmatpush2.msra.mxu0 0.0
  %1265 = vmatprep.subr.mxu0 0.0
  %1266 = vmatpush2.msra.mxu0 0.0
  %1267 = vmatprep.subr.mxu0 0.0
  %1268 = vmatpush2.msra.mxu0 0.0
  %1269 = vmatprep.subr.mxu0 0.0
  %1270 = vmatpush2.msra.mxu0 0.0
  %1271 = vmatprep.subr.mxu0 0.0
  %1272 = vmatpush2.msra.mxu0 0.0
  %1273 = vmatprep.subr.mxu0 0.0
  %1274 = vmatpush2.msra.mxu0 0.0
  %1275 = vmatprep.mubr.f32.mxu0 0.0
  %1276 = vmatmul.mubr.f32.gmra.mxu0 %v1206
  %v1277 = vpop.f32.mrf.mxu0
  %v1278 = vadd.f32 0.0, %v1277
  %v1279 = vpop.f32.mrf.mxu0
  %v1280 = vadd.f32 0.0, %v1279
  %1281 = vmatprep.mubr.f32.mxu0 0.0
  %1282 = vmatmul.mubr.f32.gmra.mxu0 %v1209
  %v1283 = vpop.f32.mrf.mxu0
  %v1284 = vadd.f32 0.0, %v1283
  %v1285 = vpop.f32.mrf.mxu0
  %v1286 = vadd.f32 0.0, %v1285
  %1287 = vdwg.mxu0
  %1288 = vmatprep.subr.mxu0 0.0
  %1289 = vmatpush1.msra.mxu0 0.0
  %1290 = vmatprep.subr.mxu0 0.0
  %1291 = vmatpush1.msra.mxu0 0.0
  %1292 = vmatprep.subr.mxu0 0.0
  %1293 = vmatpush1.msra.mxu0 0.0
  %1294 = vmatprep.subr.mxu0 0.0
  %1295 = vmatpush1.msra.mxu0 0.0
  %1296 = vmatprep.subr.mxu0 0.0
  %1297 = vmatpush1.msra.mxu0 0.0
  %1298 = vmatprep.subr.mxu0 0.0
  %1299 = vmatpush1.msra.mxu0 0.0
  %1300 = vmatprep.subr.mxu0 0.0
  %1301 = vmatpush1.msra.mxu0 0.0
  %1302 = vmatprep.subr.mxu0 0.0
  %1303 = vmatpush1.msra.mxu0 0.0
  %1304 = vmatprep.subr.mxu0 0.0
  %1305 = vmatpush1.msra.mxu0 0.0
  %1306 = vmatprep.subr.mxu0 0.0
  %1307 = vmatpush1.msra.mxu0 0.0
  %1308 = vmatprep.subr.mxu0 0.0
  %1309 = vmatpush1.msra.mxu0 0.0
  %1310 = vmatprep.subr.mxu0 0.0
  %1311 = vmatpush1.msra.mxu0 0.0
  %1312 = vmatprep.subr.mxu0 0.0
  %1313 = vmatpush1.msra.mxu0 0.0
  %1314 = vmatprep.subr.mxu0 0.0
  %1315 = vmatpush1.msra.mxu0 0.0
  %1316 = vmatprep.subr.mxu0 0.0
  %1317 = vmatpush1.msra.mxu0 0.0
  %1318 = vmatprep.subr.mxu0 %v1201
  %1319 = vmatpush1.msra.mxu0 %v1200
  %1320 = vmatprep.subr.mxu0 0.0
  %1321 = vmatpush2.msra.mxu0 0.0
  %1322 = vmatprep.subr.mxu0 0.0
  %1323 = vmatpush2.msra.mxu0 0.0
  %1324 = vmatprep.subr.mxu0 0.0
  %1325 = vmatpush2.msra.mxu0 0.0
  %1326 = vmatprep.subr.mxu0 0.0
  %1327 = vmatpush2.msra.mxu0 0.0
  %1328 = vmatprep.subr.mxu0 0.0
  %1329 = vmatpush2.msra.mxu0 0.0
  %1330 = vmatprep.subr.mxu0 0.0
  %1331 = vmatpush2.msra.mxu0 0.0
  %1332 = vmatprep.subr.mxu0 0.0
  %1333 = vmatpush2.msra.mxu0 0.0
  %1334 = vmatprep.subr.mxu0 0.0
  %1335 = vmatpush2.msra.mxu0 0.0
  %1336 = vmatprep.subr.mxu0 0.0
  %1337 = vmatpush2.msra.mxu0 0.0
  %1338 = vmatprep.subr.mxu0 0.0
  %1339 = vmatpush2.msra.mxu0 0.0
  %1340 = vmatprep.subr.mxu0 0.0
  %1341 = vmatpush2.msra.mxu0 0.0
  %1342 = vmatprep.subr.mxu0 0.0
  %1343 = vmatpush2.msra.mxu0 0.0
  %1344 = vmatprep.subr.mxu0 0.0
  %1345 = vmatpush2.msra.mxu0 0.0
  %1346 = vmatprep.subr.mxu0 0.0
  %1347 = vmatpush2.msra.mxu0 0.0
  %1348 = vmatprep.subr.mxu0 0.0
  %1349 = vmatpush2.msra.mxu0 0.0
  %1350 = vmatprep.subr.mxu0 0.0
  %1351 = vmatpush2.msra.mxu0 0.0
  %1352 = vmatprep.mubr.f32.mxu0 0.0
  %1353 = vmatmul.mubr.f32.gmra.mxu0 %v1206
  %v1354 = vpop.f32.mrf.mxu0
  %v1355 = vadd.f32 0.0, %v1354
  %v1356 = vpop.f32.mrf.mxu0
  %v1357 = vadd.f32 0.0, %v1356
  %1358 = vmatprep.mubr.f32.mxu0 0.0
  %1359 = vmatmul.mubr.f32.gmra.mxu0 %v1209
  %v1360 = vpop.f32.mrf.mxu0
  %v1361 = vadd.f32 0.0, %v1360
  %v1362 = vpop.f32.mrf.mxu0
  %v1363 = vadd.f32 0.0, %v1362
  %1364 = vdwg.mxu0
  %v1365 = vadd.f32 %v1157, %v1278
  %v1366 = vadd.f32 %v1158, %v1280
  %v1367 = vadd.f32 %v1159, %v1355
  %v1368 = vadd.f32 %v1160, %v1357
  %v1369 = vadd.f32 %v1161, %v1284
  %v1370 = vadd.f32 %v1162, %v1286
  %v1371 = vadd.f32 %v1163, %v1361
  %v1372 = vadd.f32 %v1164, %v1363
  %v1373 = vsel %vm1182, 1, 0
  %v1374 = vsel %vm1183, 1, 0
  %v1375 = vsel %vm1184, 1, 0
  %v1376 = vsel %vm1185, 1, 0
  %v1377 = vcvt.s32.f32 %v1373
  %v1378 = vcvt.s32.f32 %v1374
  %v1379 = vcvt.s32.f32 %v1375
  %v1380 = vcvt.s32.f32 %v1376
  %v1381 = vmul.f32 %v559, %v1377
  %v1382 = vmul.f32 %v560, %v1378
  %v1383 = vmul.f32 %v561, %v1379
  %v1384 = vmul.f32 %v562, %v1380
  %s1385 = scalar_lea.vmem %s1, 64
  %v1386 = vld [vmem:[%s1385] sm:$0xff]
  %v1387 = vld [vmem:[%s1385 + $0x8] sm:$0xff]
  %v1389 = vsel %vm640, %v1386, 0
  %v1392 = vsel %vm640, %v1387, 0
  %1394 = vmatprep.subr.mxu0 0.0
  %1395 = vmatpush1.msra.mxu0 0.0
  %1396 = vmatprep.subr.mxu0 0.0
  %1397 = vmatpush1.msra.mxu0 0.0
  %1398 = vmatprep.subr.mxu0 0.0
  %1399 = vmatpush1.msra.mxu0 0.0
  %1400 = vmatprep.subr.mxu0 0.0
  %1401 = vmatpush1.msra.mxu0 0.0
  %1402 = vmatprep.subr.mxu0 0.0
  %1403 = vmatpush1.msra.mxu0 0.0
  %1404 = vmatprep.subr.mxu0 0.0
  %1405 = vmatpush1.msra.mxu0 0.0
  %1406 = vmatprep.subr.mxu0 0.0
  %1407 = vmatpush1.msra.mxu0 0.0
  %1408 = vmatprep.subr.mxu0 0.0
  %1409 = vmatpush1.msra.mxu0 0.0
  %1410 = vmatprep.subr.mxu0 0.0
  %1411 = vmatpush1.msra.mxu0 0.0
  %1412 = vmatprep.subr.mxu0 0.0
  %1413 = vmatpush1.msra.mxu0 0.0
  %1414 = vmatprep.subr.mxu0 0.0
  %1415 = vmatpush1.msra.mxu0 0.0
  %1416 = vmatprep.subr.mxu0 0.0
  %1417 = vmatpush1.msra.mxu0 0.0
  %1418 = vmatprep.subr.mxu0 0.0
  %1419 = vmatpush1.msra.mxu0 0.0
  %1420 = vmatprep.subr.mxu0 0.0
  %1421 = vmatpush1.msra.mxu0 0.0
  %1422 = vmatprep.subr.mxu0 0.0
  %1423 = vmatpush1.msra.mxu0 0.0
  %1424 = vmatprep.subr.mxu0 %v1382
  %1425 = vmatpush1.msra.mxu0 %v1381
  %1426 = vmatprep.subr.mxu0 0.0
  %1427 = vmatpush2.msra.mxu0 0.0
  %1428 = vmatprep.subr.mxu0 0.0
  %1429 = vmatpush2.msra.mxu0 0.0
  %1430 = vmatprep.subr.mxu0 0.0
  %1431 = vmatpush2.msra.mxu0 0.0
  %1432 = vmatprep.subr.mxu0 0.0
  %1433 = vmatpush2.msra.mxu0 0.0
  %1434 = vmatprep.subr.mxu0 0.0
  %1435 = vmatpush2.msra.mxu0 0.0
  %1436 = vmatprep.subr.mxu0 0.0
  %1437 = vmatpush2.msra.mxu0 0.0
  %1438 = vmatprep.subr.mxu0 0.0
  %1439 = vmatpush2.msra.mxu0 0.0
  %1440 = vmatprep.subr.mxu0 0.0
  %1441 = vmatpush2.msra.mxu0 0.0
  %1442 = vmatprep.subr.mxu0 0.0
  %1443 = vmatpush2.msra.mxu0 0.0
  %1444 = vmatprep.subr.mxu0 0.0
  %1445 = vmatpush2.msra.mxu0 0.0
  %1446 = vmatprep.subr.mxu0 0.0
  %1447 = vmatpush2.msra.mxu0 0.0
  %1448 = vmatprep.subr.mxu0 0.0
  %1449 = vmatpush2.msra.mxu0 0.0
  %1450 = vmatprep.subr.mxu0 0.0
  %1451 = vmatpush2.msra.mxu0 0.0
  %1452 = vmatprep.subr.mxu0 0.0
  %1453 = vmatpush2.msra.mxu0 0.0
  %1454 = vmatprep.subr.mxu0 0.0
  %1455 = vmatpush2.msra.mxu0 0.0
  %1456 = vmatprep.subr.mxu0 0.0
  %1457 = vmatpush2.msra.mxu0 0.0
  %1458 = vmatprep.mubr.f32.mxu0 0.0
  %1459 = vmatmul.mubr.f32.gmra.mxu0 %v1389
  %v1460 = vpop.f32.mrf.mxu0
  %v1461 = vadd.f32 0.0, %v1460
  %v1462 = vpop.f32.mrf.mxu0
  %v1463 = vadd.f32 0.0, %v1462
  %1464 = vmatprep.mubr.f32.mxu0 0.0
  %1465 = vmatmul.mubr.f32.gmra.mxu0 %v1392
  %v1466 = vpop.f32.mrf.mxu0
  %v1467 = vadd.f32 0.0, %v1466
  %v1468 = vpop.f32.mrf.mxu0
  %v1469 = vadd.f32 0.0, %v1468
  %1470 = vdwg.mxu0
  %1471 = vmatprep.subr.mxu0 0.0
  %1472 = vmatpush1.msra.mxu0 0.0
  %1473 = vmatprep.subr.mxu0 0.0
  %1474 = vmatpush1.msra.mxu0 0.0
  %1475 = vmatprep.subr.mxu0 0.0
  %1476 = vmatpush1.msra.mxu0 0.0
  %1477 = vmatprep.subr.mxu0 0.0
  %1478 = vmatpush1.msra.mxu0 0.0
  %1479 = vmatprep.subr.mxu0 0.0
  %1480 = vmatpush1.msra.mxu0 0.0
  %1481 = vmatprep.subr.mxu0 0.0
  %1482 = vmatpush1.msra.mxu0 0.0
  %1483 = vmatprep.subr.mxu0 0.0
  %1484 = vmatpush1.msra.mxu0 0.0
  %1485 = vmatprep.subr.mxu0 0.0
  %1486 = vmatpush1.msra.mxu0 0.0
  %1487 = vmatprep.subr.mxu0 0.0
  %1488 = vmatpush1.msra.mxu0 0.0
  %1489 = vmatprep.subr.mxu0 0.0
  %1490 = vmatpush1.msra.mxu0 0.0
  %1491 = vmatprep.subr.mxu0 0.0
  %1492 = vmatpush1.msra.mxu0 0.0
  %1493 = vmatprep.subr.mxu0 0.0
  %1494 = vmatpush1.msra.mxu0 0.0
  %1495 = vmatprep.subr.mxu0 0.0
  %1496 = vmatpush1.msra.mxu0 0.0
  %1497 = vmatprep.subr.mxu0 0.0
  %1498 = vmatpush1.msra.mxu0 0.0
  %1499 = vmatprep.subr.mxu0 0.0
  %1500 = vmatpush1.msra.mxu0 0.0
  %1501 = vmatprep.subr.mxu0 %v1384
  %1502 = vmatpush1.msra.mxu0 %v1383
  %1503 = vmatprep.subr.mxu0 0.0
  %1504 = vmatpush2.msra.mxu0 0.0
  %1505 = vmatprep.subr.mxu0 0.0
  %1506 = vmatpush2.msra.mxu0 0.0
  %1507 = vmatprep.subr.mxu0 0.0
  %1508 = vmatpush2.msra.mxu0 0.0
  %1509 = vmatprep.subr.mxu0 0.0
  %1510 = vmatpush2.msra.mxu0 0.0
  %1511 = vmatprep.subr.mxu0 0.0
  %1512 = vmatpush2.msra.mxu0 0.0
  %1513 = vmatprep.subr.mxu0 0.0
  %1514 = vmatpush2.msra.mxu0 0.0
  %1515 = vmatprep.subr.mxu0 0.0
  %1516 = vmatpush2.msra.mxu0 0.0
  %1517 = vmatprep.subr.mxu0 0.0
  %1518 = vmatpush2.msra.mxu0 0.0
  %1519 = vmatprep.subr.mxu0 0.0
  %1520 = vmatpush2.msra.mxu0 0.0
  %1521 = vmatprep.subr.mxu0 0.0
  %1522 = vmatpush2.msra.mxu0 0.0
  %1523 = vmatprep.subr.mxu0 0.0
  %1524 = vmatpush2.msra.mxu0 0.0
  %1525 = vmatprep.subr.mxu0 0.0
  %1526 = vmatpush2.msra.mxu0 0.0
  %1527 = vmatprep.subr.mxu0 0.0
  %1528 = vmatpush2.msra.mxu0 0.0
  %1529 = vmatprep.subr.mxu0 0.0
  %1530 = vmatpush2.msra.mxu0 0.0
  %1531 = vmatprep.subr.mxu0 0.0
  %1532 = vmatpush2.msra.mxu0 0.0
  %1533 = vmatprep.subr.mxu0 0.0
  %1534 = vmatpush2.msra.mxu0 0.0
  %1535 = vmatprep.mubr.f32.mxu0 0.0
  %1536 = vmatmul.mubr.f32.gmra.mxu0 %v1389
  %v1537 = vpop.f32.mrf.mxu0
  %v1538 = vadd.f32 0.0, %v1537
  %v1539 = vpop.f32.mrf.mxu0
  %v1540 = vadd.f32 0.0, %v1539
  %1541 = vmatprep.mubr.f32.mxu0 0.0
  %1542 = vmatmul.mubr.f32.gmra.mxu0 %v1392
  %v1543 = vpop.f32.mrf.mxu0
  %v1544 = vadd.f32 0.0, %v1543
  %v1545 = vpop.f32.mrf.mxu0
  %v1546 = vadd.f32 0.0, %v1545
  %1547 = vdwg.mxu0
  %v1548 = vadd.f32 %v1365, %v1461
  %v1549 = vadd.f32 %v1366, %v1463
  %v1550 = vadd.f32 %v1367, %v1538
  %v1551 = vadd.f32 %v1368, %v1540
  %v1552 = vadd.f32 %v1369, %v1467
  %v1553 = vadd.f32 %v1370, %v1469
  %v1554 = vadd.f32 %v1371, %v1544
  %v1555 = vadd.f32 %v1372, %v1546
  %1556 = vrot.lane.b32.xlu0 %v559, 127
  %v1557 = vpop.permute.xlu0 %1556
  %1558 = vrot.lane.b32.xlu0 %v560, 127
  %v1559 = vpop.permute.xlu0 %1558
  %1560 = vrot.lane.b32.xlu0 %v561, 127
  %v1561 = vpop.permute.xlu0 %1560
  %1562 = vrot.lane.b32.xlu0 %v562, 127
  %v1563 = vpop.permute.xlu0 %1562
  %vm1564 = vcmp.lt.s32.totalorder %v36, 127
  %v1565 = vsel %vm1564, %v1561, %v1563
  %v1566 = vsel %vm1564, %v1559, %v1561
  %v1567 = vsel %vm1564, %v1557, %v1559
  %v1568 = vsel %vm1564, %v1563, %v1557
  %vm1569 = vmand %vm1182, %vm974
  %vm1570 = vmand %vm1183, %vm975
  %vm1571 = vmand %vm1184, %vm976
  %vm1572 = vmand %vm1185, %vm977
  %v1573 = vsel %vm1569, 1, 0
  %v1574 = vsel %vm1570, 1, 0
  %v1575 = vsel %vm1571, 1, 0
  %v1576 = vsel %vm1572, 1, 0
  %v1577 = vcvt.s32.f32 %v1573
  %v1578 = vcvt.s32.f32 %v1574
  %v1579 = vcvt.s32.f32 %v1575
  %v1580 = vcvt.s32.f32 %v1576
  %v1581 = vmul.f32 %v1567, %v1577
  %v1582 = vmul.f32 %v1566, %v1578
  %v1583 = vmul.f32 %v1565, %v1579
  %v1584 = vmul.f32 %v1568, %v1580
  %s1585 = scalar_lea.vmem %s1, 80
  %v1586 = vld [vmem:[%s1585] sm:$0xff]
  %v1587 = vld [vmem:[%s1585 + $0x8] sm:$0xff]
  %v1589 = vsel %vm640, %v1586, 0
  %v1592 = vsel %vm640, %v1587, 0
  %1594 = vmatprep.subr.mxu0 0.0
  %1595 = vmatpush1.msra.mxu0 0.0
  %1596 = vmatprep.subr.mxu0 0.0
  %1597 = vmatpush1.msra.mxu0 0.0
  %1598 = vmatprep.subr.mxu0 0.0
  %1599 = vmatpush1.msra.mxu0 0.0
  %1600 = vmatprep.subr.mxu0 0.0
  %1601 = vmatpush1.msra.mxu0 0.0
  %1602 = vmatprep.subr.mxu0 0.0
  %1603 = vmatpush1.msra.mxu0 0.0
  %1604 = vmatprep.subr.mxu0 0.0
  %1605 = vmatpush1.msra.mxu0 0.0
  %1606 = vmatprep.subr.mxu0 0.0
  %1607 = vmatpush1.msra.mxu0 0.0
  %1608 = vmatprep.subr.mxu0 0.0
  %1609 = vmatpush1.msra.mxu0 0.0
  %1610 = vmatprep.subr.mxu0 0.0
  %1611 = vmatpush1.msra.mxu0 0.0
  %1612 = vmatprep.subr.mxu0 0.0
  %1613 = vmatpush1.msra.mxu0 0.0
  %1614 = vmatprep.subr.mxu0 0.0
  %1615 = vmatpush1.msra.mxu0 0.0
  %1616 = vmatprep.subr.mxu0 0.0
  %1617 = vmatpush1.msra.mxu0 0.0
  %1618 = vmatprep.subr.mxu0 0.0
  %1619 = vmatpush1.msra.mxu0 0.0
  %1620 = vmatprep.subr.mxu0 0.0
  %1621 = vmatpush1.msra.mxu0 0.0
  %1622 = vmatprep.subr.mxu0 0.0
  %1623 = vmatpush1.msra.mxu0 0.0
  %1624 = vmatprep.subr.mxu0 %v1582
  %1625 = vmatpush1.msra.mxu0 %v1581
  %1626 = vmatprep.subr.mxu0 0.0
  %1627 = vmatpush2.msra.mxu0 0.0
  %1628 = vmatprep.subr.mxu0 0.0
  %1629 = vmatpush2.msra.mxu0 0.0
  %1630 = vmatprep.subr.mxu0 0.0
  %1631 = vmatpush2.msra.mxu0 0.0
  %1632 = vmatprep.subr.mxu0 0.0
  %1633 = vmatpush2.msra.mxu0 0.0
  %1634 = vmatprep.subr.mxu0 0.0
  %1635 = vmatpush2.msra.mxu0 0.0
  %1636 = vmatprep.subr.mxu0 0.0
  %1637 = vmatpush2.msra.mxu0 0.0
  %1638 = vmatprep.subr.mxu0 0.0
  %1639 = vmatpush2.msra.mxu0 0.0
  %1640 = vmatprep.subr.mxu0 0.0
  %1641 = vmatpush2.msra.mxu0 0.0
  %1642 = vmatprep.subr.mxu0 0.0
  %1643 = vmatpush2.msra.mxu0 0.0
  %1644 = vmatprep.subr.mxu0 0.0
  %1645 = vmatpush2.msra.mxu0 0.0
  %1646 = vmatprep.subr.mxu0 0.0
  %1647 = vmatpush2.msra.mxu0 0.0
  %1648 = vmatprep.subr.mxu0 0.0
  %1649 = vmatpush2.msra.mxu0 0.0
  %1650 = vmatprep.subr.mxu0 0.0
  %1651 = vmatpush2.msra.mxu0 0.0
  %1652 = vmatprep.subr.mxu0 0.0
  %1653 = vmatpush2.msra.mxu0 0.0
  %1654 = vmatprep.subr.mxu0 0.0
  %1655 = vmatpush2.msra.mxu0 0.0
  %1656 = vmatprep.subr.mxu0 0.0
  %1657 = vmatpush2.msra.mxu0 0.0
  %1658 = vmatprep.mubr.f32.mxu0 0.0
  %1659 = vmatmul.mubr.f32.gmra.mxu0 %v1589
  %v1660 = vpop.f32.mrf.mxu0
  %v1661 = vadd.f32 0.0, %v1660
  %v1662 = vpop.f32.mrf.mxu0
  %v1663 = vadd.f32 0.0, %v1662
  %1664 = vmatprep.mubr.f32.mxu0 0.0
  %1665 = vmatmul.mubr.f32.gmra.mxu0 %v1592
  %v1666 = vpop.f32.mrf.mxu0
  %v1667 = vadd.f32 0.0, %v1666
  %v1668 = vpop.f32.mrf.mxu0
  %v1669 = vadd.f32 0.0, %v1668
  %1670 = vdwg.mxu0
  %1671 = vmatprep.subr.mxu0 0.0
  %1672 = vmatpush1.msra.mxu0 0.0
  %1673 = vmatprep.subr.mxu0 0.0
  %1674 = vmatpush1.msra.mxu0 0.0
  %1675 = vmatprep.subr.mxu0 0.0
  %1676 = vmatpush1.msra.mxu0 0.0
  %1677 = vmatprep.subr.mxu0 0.0
  %1678 = vmatpush1.msra.mxu0 0.0
  %1679 = vmatprep.subr.mxu0 0.0
  %1680 = vmatpush1.msra.mxu0 0.0
  %1681 = vmatprep.subr.mxu0 0.0
  %1682 = vmatpush1.msra.mxu0 0.0
  %1683 = vmatprep.subr.mxu0 0.0
  %1684 = vmatpush1.msra.mxu0 0.0
  %1685 = vmatprep.subr.mxu0 0.0
  %1686 = vmatpush1.msra.mxu0 0.0
  %1687 = vmatprep.subr.mxu0 0.0
  %1688 = vmatpush1.msra.mxu0 0.0
  %1689 = vmatprep.subr.mxu0 0.0
  %1690 = vmatpush1.msra.mxu0 0.0
  %1691 = vmatprep.subr.mxu0 0.0
  %1692 = vmatpush1.msra.mxu0 0.0
  %1693 = vmatprep.subr.mxu0 0.0
  %1694 = vmatpush1.msra.mxu0 0.0
  %1695 = vmatprep.subr.mxu0 0.0
  %1696 = vmatpush1.msra.mxu0 0.0
  %1697 = vmatprep.subr.mxu0 0.0
  %1698 = vmatpush1.msra.mxu0 0.0
  %1699 = vmatprep.subr.mxu0 0.0
  %1700 = vmatpush1.msra.mxu0 0.0
  %1701 = vmatprep.subr.mxu0 %v1584
  %1702 = vmatpush1.msra.mxu0 %v1583
  %1703 = vmatprep.subr.mxu0 0.0
  %1704 = vmatpush2.msra.mxu0 0.0
  %1705 = vmatprep.subr.mxu0 0.0
  %1706 = vmatpush2.msra.mxu0 0.0
  %1707 = vmatprep.subr.mxu0 0.0
  %1708 = vmatpush2.msra.mxu0 0.0
  %1709 = vmatprep.subr.mxu0 0.0
  %1710 = vmatpush2.msra.mxu0 0.0
  %1711 = vmatprep.subr.mxu0 0.0
  %1712 = vmatpush2.msra.mxu0 0.0
  %1713 = vmatprep.subr.mxu0 0.0
  %1714 = vmatpush2.msra.mxu0 0.0
  %1715 = vmatprep.subr.mxu0 0.0
  %1716 = vmatpush2.msra.mxu0 0.0
  %1717 = vmatprep.subr.mxu0 0.0
  %1718 = vmatpush2.msra.mxu0 0.0
  %1719 = vmatprep.subr.mxu0 0.0
  %1720 = vmatpush2.msra.mxu0 0.0
  %1721 = vmatprep.subr.mxu0 0.0
  %1722 = vmatpush2.msra.mxu0 0.0
  %1723 = vmatprep.subr.mxu0 0.0
  %1724 = vmatpush2.msra.mxu0 0.0
  %1725 = vmatprep.subr.mxu0 0.0
  %1726 = vmatpush2.msra.mxu0 0.0
  %1727 = vmatprep.subr.mxu0 0.0
  %1728 = vmatpush2.msra.mxu0 0.0
  %1729 = vmatprep.subr.mxu0 0.0
  %1730 = vmatpush2.msra.mxu0 0.0
  %1731 = vmatprep.subr.mxu0 0.0
  %1732 = vmatpush2.msra.mxu0 0.0
  %1733 = vmatprep.subr.mxu0 0.0
  %1734 = vmatpush2.msra.mxu0 0.0
  %1735 = vmatprep.mubr.f32.mxu0 0.0
  %1736 = vmatmul.mubr.f32.gmra.mxu0 %v1589
  %v1737 = vpop.f32.mrf.mxu0
  %v1738 = vadd.f32 0.0, %v1737
  %v1739 = vpop.f32.mrf.mxu0
  %v1740 = vadd.f32 0.0, %v1739
  %1741 = vmatprep.mubr.f32.mxu0 0.0
  %1742 = vmatmul.mubr.f32.gmra.mxu0 %v1592
  %v1743 = vpop.f32.mrf.mxu0
  %v1744 = vadd.f32 0.0, %v1743
  %v1745 = vpop.f32.mrf.mxu0
  %v1746 = vadd.f32 0.0, %v1745
  %1747 = vdwg.mxu0
  %v1748 = vadd.f32 %v1548, %v1661
  %v1749 = vadd.f32 %v1549, %v1663
  %v1750 = vadd.f32 %v1550, %v1738
  %v1751 = vadd.f32 %v1551, %v1740
  %v1752 = vadd.f32 %v1552, %v1667
  %v1753 = vadd.f32 %v1553, %v1669
  %v1754 = vadd.f32 %v1554, %v1744
  %v1755 = vadd.f32 %v1555, %v1746
  %1756 = vrot.lane.b32.xlu0 %v559, 113
  %v1757 = vpop.permute.xlu0 %1756
  %1758 = vrot.lane.b32.xlu0 %v560, 113
  %v1759 = vpop.permute.xlu0 %1758
  %1760 = vrot.lane.b32.xlu0 %v561, 113
  %v1761 = vpop.permute.xlu0 %1760
  %1762 = vrot.lane.b32.xlu0 %v562, 113
  %v1763 = vpop.permute.xlu0 %1762
  %vm1764 = vcmp.lt.s32.totalorder %v36, 113
  %v1765 = vsel %vm1764, %v1761, %v1763
  %v1766 = vsel %vm1764, %v1759, %v1761
  %v1767 = vsel %vm1764, %v1757, %v1759
  %v1768 = vsel %vm1764, %v1763, %v1757
  %vm1769 = vcmp.lt.f32.partialorder %v60, 240.0
  %vm1770 = vcmp.lt.f32.partialorder %v61, 240.0
  %vm1771 = vcmp.lt.f32.partialorder %v62, 240.0
  %vm1772 = vcmp.lt.f32.partialorder %v63, 240.0
  %vm1773 = vmand %vm1178, %vm1769
  %vm1774 = vmand %vm1179, %vm1770
  %vm1775 = vmand %vm1180, %vm1771
  %vm1776 = vmand %vm1181, %vm1772
  %vm1777 = vmand %vm1773, %vm590
  %vm1778 = vmand %vm1774, %vm591
  %vm1779 = vmand %vm1775, %vm592
  %vm1780 = vmand %vm1776, %vm593
  %v1781 = vsel %vm1777, 1, 0
  %v1782 = vsel %vm1778, 1, 0
  %v1783 = vsel %vm1779, 1, 0
  %v1784 = vsel %vm1780, 1, 0
  %v1785 = vcvt.s32.f32 %v1781
  %v1786 = vcvt.s32.f32 %v1782
  %v1787 = vcvt.s32.f32 %v1783
  %v1788 = vcvt.s32.f32 %v1784
  %v1789 = vmul.f32 %v1767, %v1785
  %v1790 = vmul.f32 %v1766, %v1786
  %v1791 = vmul.f32 %v1765, %v1787
  %v1792 = vmul.f32 %v1768, %v1788
  %s1793 = scalar_lea.vmem %s1, 96
  %v1794 = vld [vmem:[%s1793] sm:$0xff]
  %v1795 = vld [vmem:[%s1793 + $0x8] sm:$0xff]
  %v1797 = vsel %vm640, %v1794, 0
  %v1800 = vsel %vm640, %v1795, 0
  %1802 = vmatprep.subr.mxu0 0.0
  %1803 = vmatpush1.msra.mxu0 0.0
  %1804 = vmatprep.subr.mxu0 0.0
  %1805 = vmatpush1.msra.mxu0 0.0
  %1806 = vmatprep.subr.mxu0 0.0
  %1807 = vmatpush1.msra.mxu0 0.0
  %1808 = vmatprep.subr.mxu0 0.0
  %1809 = vmatpush1.msra.mxu0 0.0
  %1810 = vmatprep.subr.mxu0 0.0
  %1811 = vmatpush1.msra.mxu0 0.0
  %1812 = vmatprep.subr.mxu0 0.0
  %1813 = vmatpush1.msra.mxu0 0.0
  %1814 = vmatprep.subr.mxu0 0.0
  %1815 = vmatpush1.msra.mxu0 0.0
  %1816 = vmatprep.subr.mxu0 0.0
  %1817 = vmatpush1.msra.mxu0 0.0
  %1818 = vmatprep.subr.mxu0 0.0
  %1819 = vmatpush1.msra.mxu0 0.0
  %1820 = vmatprep.subr.mxu0 0.0
  %1821 = vmatpush1.msra.mxu0 0.0
  %1822 = vmatprep.subr.mxu0 0.0
  %1823 = vmatpush1.msra.mxu0 0.0
  %1824 = vmatprep.subr.mxu0 0.0
  %1825 = vmatpush1.msra.mxu0 0.0
  %1826 = vmatprep.subr.mxu0 0.0
  %1827 = vmatpush1.msra.mxu0 0.0
  %1828 = vmatprep.subr.mxu0 0.0
  %1829 = vmatpush1.msra.mxu0 0.0
  %1830 = vmatprep.subr.mxu0 0.0
  %1831 = vmatpush1.msra.mxu0 0.0
  %1832 = vmatprep.subr.mxu0 %v1790
  %1833 = vmatpush1.msra.mxu0 %v1789
  %1834 = vmatprep.subr.mxu0 0.0
  %1835 = vmatpush2.msra.mxu0 0.0
  %1836 = vmatprep.subr.mxu0 0.0
  %1837 = vmatpush2.msra.mxu0 0.0
  %1838 = vmatprep.subr.mxu0 0.0
  %1839 = vmatpush2.msra.mxu0 0.0
  %1840 = vmatprep.subr.mxu0 0.0
  %1841 = vmatpush2.msra.mxu0 0.0
  %1842 = vmatprep.subr.mxu0 0.0
  %1843 = vmatpush2.msra.mxu0 0.0
  %1844 = vmatprep.subr.mxu0 0.0
  %1845 = vmatpush2.msra.mxu0 0.0
  %1846 = vmatprep.subr.mxu0 0.0
  %1847 = vmatpush2.msra.mxu0 0.0
  %1848 = vmatprep.subr.mxu0 0.0
  %1849 = vmatpush2.msra.mxu0 0.0
  %1850 = vmatprep.subr.mxu0 0.0
  %1851 = vmatpush2.msra.mxu0 0.0
  %1852 = vmatprep.subr.mxu0 0.0
  %1853 = vmatpush2.msra.mxu0 0.0
  %1854 = vmatprep.subr.mxu0 0.0
  %1855 = vmatpush2.msra.mxu0 0.0
  %1856 = vmatprep.subr.mxu0 0.0
  %1857 = vmatpush2.msra.mxu0 0.0
  %1858 = vmatprep.subr.mxu0 0.0
  %1859 = vmatpush2.msra.mxu0 0.0
  %1860 = vmatprep.subr.mxu0 0.0
  %1861 = vmatpush2.msra.mxu0 0.0
  %1862 = vmatprep.subr.mxu0 0.0
  %1863 = vmatpush2.msra.mxu0 0.0
  %1864 = vmatprep.subr.mxu0 0.0
  %1865 = vmatpush2.msra.mxu0 0.0
  %1866 = vmatprep.mubr.f32.mxu0 0.0
  %1867 = vmatmul.mubr.f32.gmra.mxu0 %v1797
  %v1868 = vpop.f32.mrf.mxu0
  %v1869 = vadd.f32 0.0, %v1868
  %v1870 = vpop.f32.mrf.mxu0
  %v1871 = vadd.f32 0.0, %v1870
  %1872 = vmatprep.mubr.f32.mxu0 0.0
  %1873 = vmatmul.mubr.f32.gmra.mxu0 %v1800
  %v1874 = vpop.f32.mrf.mxu0
  %v1875 = vadd.f32 0.0, %v1874
  %v1876 = vpop.f32.mrf.mxu0
  %v1877 = vadd.f32 0.0, %v1876
  %1878 = vdwg.mxu0
  %1879 = vmatprep.subr.mxu0 0.0
  %1880 = vmatpush1.msra.mxu0 0.0
  %1881 = vmatprep.subr.mxu0 0.0
  %1882 = vmatpush1.msra.mxu0 0.0
  %1883 = vmatprep.subr.mxu0 0.0
  %1884 = vmatpush1.msra.mxu0 0.0
  %1885 = vmatprep.subr.mxu0 0.0
  %1886 = vmatpush1.msra.mxu0 0.0
  %1887 = vmatprep.subr.mxu0 0.0
  %1888 = vmatpush1.msra.mxu0 0.0
  %1889 = vmatprep.subr.mxu0 0.0
  %1890 = vmatpush1.msra.mxu0 0.0
  %1891 = vmatprep.subr.mxu0 0.0
  %1892 = vmatpush1.msra.mxu0 0.0
  %1893 = vmatprep.subr.mxu0 0.0
  %1894 = vmatpush1.msra.mxu0 0.0
  %1895 = vmatprep.subr.mxu0 0.0
  %1896 = vmatpush1.msra.mxu0 0.0
  %1897 = vmatprep.subr.mxu0 0.0
  %1898 = vmatpush1.msra.mxu0 0.0
  %1899 = vmatprep.subr.mxu0 0.0
  %1900 = vmatpush1.msra.mxu0 0.0
  %1901 = vmatprep.subr.mxu0 0.0
  %1902 = vmatpush1.msra.mxu0 0.0
  %1903 = vmatprep.subr.mxu0 0.0
  %1904 = vmatpush1.msra.mxu0 0.0
  %1905 = vmatprep.subr.mxu0 0.0
  %1906 = vmatpush1.msra.mxu0 0.0
  %1907 = vmatprep.subr.mxu0 0.0
  %1908 = vmatpush1.msra.mxu0 0.0
  %1909 = vmatprep.subr.mxu0 %v1792
  %1910 = vmatpush1.msra.mxu0 %v1791
  %1911 = vmatprep.subr.mxu0 0.0
  %1912 = vmatpush2.msra.mxu0 0.0
  %1913 = vmatprep.subr.mxu0 0.0
  %1914 = vmatpush2.msra.mxu0 0.0
  %1915 = vmatprep.subr.mxu0 0.0
  %1916 = vmatpush2.msra.mxu0 0.0
  %1917 = vmatprep.subr.mxu0 0.0
  %1918 = vmatpush2.msra.mxu0 0.0
  %1919 = vmatprep.subr.mxu0 0.0
  %1920 = vmatpush2.msra.mxu0 0.0
  %1921 = vmatprep.subr.mxu0 0.0
  %1922 = vmatpush2.msra.mxu0 0.0
  %1923 = vmatprep.subr.mxu0 0.0
  %1924 = vmatpush2.msra.mxu0 0.0
  %1925 = vmatprep.subr.mxu0 0.0
  %1926 = vmatpush2.msra.mxu0 0.0
  %1927 = vmatprep.subr.mxu0 0.0
  %1928 = vmatpush2.msra.mxu0 0.0
  %1929 = vmatprep.subr.mxu0 0.0
  %1930 = vmatpush2.msra.mxu0 0.0
  %1931 = vmatprep.subr.mxu0 0.0
  %1932 = vmatpush2.msra.mxu0 0.0
  %1933 = vmatprep.subr.mxu0 0.0
  %1934 = vmatpush2.msra.mxu0 0.0
  %1935 = vmatprep.subr.mxu0 0.0
  %1936 = vmatpush2.msra.mxu0 0.0
  %1937 = vmatprep.subr.mxu0 0.0
  %1938 = vmatpush2.msra.mxu0 0.0
  %1939 = vmatprep.subr.mxu0 0.0
  %1940 = vmatpush2.msra.mxu0 0.0
  %1941 = vmatprep.subr.mxu0 0.0
  %1942 = vmatpush2.msra.mxu0 0.0
  %1943 = vmatprep.mubr.f32.mxu0 0.0
  %1944 = vmatmul.mubr.f32.gmra.mxu0 %v1797
  %v1945 = vpop.f32.mrf.mxu0
  %v1946 = vadd.f32 0.0, %v1945
  %v1947 = vpop.f32.mrf.mxu0
  %v1948 = vadd.f32 0.0, %v1947
  %1949 = vmatprep.mubr.f32.mxu0 0.0
  %1950 = vmatmul.mubr.f32.gmra.mxu0 %v1800
  %v1951 = vpop.f32.mrf.mxu0
  %v1952 = vadd.f32 0.0, %v1951
  %v1953 = vpop.f32.mrf.mxu0
  %v1954 = vadd.f32 0.0, %v1953
  %1955 = vdwg.mxu0
  %v1956 = vadd.f32 %v1748, %v1869
  %v1957 = vadd.f32 %v1749, %v1871
  %v1958 = vadd.f32 %v1750, %v1946
  %v1959 = vadd.f32 %v1751, %v1948
  %v1960 = vadd.f32 %v1752, %v1875
  %v1961 = vadd.f32 %v1753, %v1877
  %v1962 = vadd.f32 %v1754, %v1952
  %v1963 = vadd.f32 %v1755, %v1954
  %1964 = vrot.lane.b32.xlu0 %v559, 112
  %v1965 = vpop.permute.xlu0 %1964
  %1966 = vrot.lane.b32.xlu0 %v560, 112
  %v1967 = vpop.permute.xlu0 %1966
  %1968 = vrot.lane.b32.xlu0 %v561, 112
  %v1969 = vpop.permute.xlu0 %1968
  %1970 = vrot.lane.b32.xlu0 %v562, 112
  %v1971 = vpop.permute.xlu0 %1970
  %vm1972 = vcmp.lt.s32.totalorder %v36, 112
  %v1973 = vsel %vm1972, %v1969, %v1971
  %v1974 = vsel %vm1972, %v1967, %v1969
  %v1975 = vsel %vm1972, %v1965, %v1967
  %v1976 = vsel %vm1972, %v1971, %v1965
  %v1977 = vsel %vm1773, 1, 0
  %v1978 = vsel %vm1774, 1, 0
  %v1979 = vsel %vm1775, 1, 0
  %v1980 = vsel %vm1776, 1, 0
  %v1981 = vcvt.s32.f32 %v1977
  %v1982 = vcvt.s32.f32 %v1978
  %v1983 = vcvt.s32.f32 %v1979
  %v1984 = vcvt.s32.f32 %v1980
  %v1985 = vmul.f32 %v1975, %v1981
  %v1986 = vmul.f32 %v1974, %v1982
  %v1987 = vmul.f32 %v1973, %v1983
  %v1988 = vmul.f32 %v1976, %v1984
  %s1989 = scalar_lea.vmem %s1, 112
  %v1990 = vld [vmem:[%s1989] sm:$0xff]
  %v1991 = vld [vmem:[%s1989 + $0x8] sm:$0xff]
  %v1993 = vsel %vm640, %v1990, 0
  %v1996 = vsel %vm640, %v1991, 0
  %1998 = vmatprep.subr.mxu0 0.0
  %1999 = vmatpush1.msra.mxu0 0.0
  %2000 = vmatprep.subr.mxu0 0.0
  %2001 = vmatpush1.msra.mxu0 0.0
  %2002 = vmatprep.subr.mxu0 0.0
  %2003 = vmatpush1.msra.mxu0 0.0
  %2004 = vmatprep.subr.mxu0 0.0
  %2005 = vmatpush1.msra.mxu0 0.0
  %2006 = vmatprep.subr.mxu0 0.0
  %2007 = vmatpush1.msra.mxu0 0.0
  %2008 = vmatprep.subr.mxu0 0.0
  %2009 = vmatpush1.msra.mxu0 0.0
  %2010 = vmatprep.subr.mxu0 0.0
  %2011 = vmatpush1.msra.mxu0 0.0
  %2012 = vmatprep.subr.mxu0 0.0
  %2013 = vmatpush1.msra.mxu0 0.0
  %2014 = vmatprep.subr.mxu0 0.0
  %2015 = vmatpush1.msra.mxu0 0.0
  %2016 = vmatprep.subr.mxu0 0.0
  %2017 = vmatpush1.msra.mxu0 0.0
  %2018 = vmatprep.subr.mxu0 0.0
  %2019 = vmatpush1.msra.mxu0 0.0
  %2020 = vmatprep.subr.mxu0 0.0
  %2021 = vmatpush1.msra.mxu0 0.0
  %2022 = vmatprep.subr.mxu0 0.0
  %2023 = vmatpush1.msra.mxu0 0.0
  %2024 = vmatprep.subr.mxu0 0.0
  %2025 = vmatpush1.msra.mxu0 0.0
  %2026 = vmatprep.subr.mxu0 0.0
  %2027 = vmatpush1.msra.mxu0 0.0
  %2028 = vmatprep.subr.mxu0 %v1986
  %2029 = vmatpush1.msra.mxu0 %v1985
  %2030 = vmatprep.subr.mxu0 0.0
  %2031 = vmatpush2.msra.mxu0 0.0
  %2032 = vmatprep.subr.mxu0 0.0
  %2033 = vmatpush2.msra.mxu0 0.0
  %2034 = vmatprep.subr.mxu0 0.0
  %2035 = vmatpush2.msra.mxu0 0.0
  %2036 = vmatprep.subr.mxu0 0.0
  %2037 = vmatpush2.msra.mxu0 0.0
  %2038 = vmatprep.subr.mxu0 0.0
  %2039 = vmatpush2.msra.mxu0 0.0
  %2040 = vmatprep.subr.mxu0 0.0
  %2041 = vmatpush2.msra.mxu0 0.0
  %2042 = vmatprep.subr.mxu0 0.0
  %2043 = vmatpush2.msra.mxu0 0.0
  %2044 = vmatprep.subr.mxu0 0.0
  %2045 = vmatpush2.msra.mxu0 0.0
  %2046 = vmatprep.subr.mxu0 0.0
  %2047 = vmatpush2.msra.mxu0 0.0
  %2048 = vmatprep.subr.mxu0 0.0
  %2049 = vmatpush2.msra.mxu0 0.0
  %2050 = vmatprep.subr.mxu0 0.0
  %2051 = vmatpush2.msra.mxu0 0.0
  %2052 = vmatprep.subr.mxu0 0.0
  %2053 = vmatpush2.msra.mxu0 0.0
  %2054 = vmatprep.subr.mxu0 0.0
  %2055 = vmatpush2.msra.mxu0 0.0
  %2056 = vmatprep.subr.mxu0 0.0
  %2057 = vmatpush2.msra.mxu0 0.0
  %2058 = vmatprep.subr.mxu0 0.0
  %2059 = vmatpush2.msra.mxu0 0.0
  %2060 = vmatprep.subr.mxu0 0.0
  %2061 = vmatpush2.msra.mxu0 0.0
  %2062 = vmatprep.mubr.f32.mxu0 0.0
  %2063 = vmatmul.mubr.f32.gmra.mxu0 %v1993
  %v2064 = vpop.f32.mrf.mxu0
  %v2065 = vadd.f32 0.0, %v2064
  %v2066 = vpop.f32.mrf.mxu0
  %v2067 = vadd.f32 0.0, %v2066
  %2068 = vmatprep.mubr.f32.mxu0 0.0
  %2069 = vmatmul.mubr.f32.gmra.mxu0 %v1996
  %v2070 = vpop.f32.mrf.mxu0
  %v2071 = vadd.f32 0.0, %v2070
  %v2072 = vpop.f32.mrf.mxu0
  %v2073 = vadd.f32 0.0, %v2072
  %2074 = vdwg.mxu0
  %2075 = vmatprep.subr.mxu0 0.0
  %2076 = vmatpush1.msra.mxu0 0.0
  %2077 = vmatprep.subr.mxu0 0.0
  %2078 = vmatpush1.msra.mxu0 0.0
  %2079 = vmatprep.subr.mxu0 0.0
  %2080 = vmatpush1.msra.mxu0 0.0
  %2081 = vmatprep.subr.mxu0 0.0
  %2082 = vmatpush1.msra.mxu0 0.0
  %2083 = vmatprep.subr.mxu0 0.0
  %2084 = vmatpush1.msra.mxu0 0.0
  %2085 = vmatprep.subr.mxu0 0.0
  %2086 = vmatpush1.msra.mxu0 0.0
  %2087 = vmatprep.subr.mxu0 0.0
  %2088 = vmatpush1.msra.mxu0 0.0
  %2089 = vmatprep.subr.mxu0 0.0
  %2090 = vmatpush1.msra.mxu0 0.0
  %2091 = vmatprep.subr.mxu0 0.0
  %2092 = vmatpush1.msra.mxu0 0.0
  %2093 = vmatprep.subr.mxu0 0.0
  %2094 = vmatpush1.msra.mxu0 0.0
  %2095 = vmatprep.subr.mxu0 0.0
  %2096 = vmatpush1.msra.mxu0 0.0
  %2097 = vmatprep.subr.mxu0 0.0
  %2098 = vmatpush1.msra.mxu0 0.0
  %2099 = vmatprep.subr.mxu0 0.0
  %2100 = vmatpush1.msra.mxu0 0.0
  %2101 = vmatprep.subr.mxu0 0.0
  %2102 = vmatpush1.msra.mxu0 0.0
  %2103 = vmatprep.subr.mxu0 0.0
  %2104 = vmatpush1.msra.mxu0 0.0
  %2105 = vmatprep.subr.mxu0 %v1988
  %2106 = vmatpush1.msra.mxu0 %v1987
  %2107 = vmatprep.subr.mxu0 0.0
  %2108 = vmatpush2.msra.mxu0 0.0
  %2109 = vmatprep.subr.mxu0 0.0
  %2110 = vmatpush2.msra.mxu0 0.0
  %2111 = vmatprep.subr.mxu0 0.0
  %2112 = vmatpush2.msra.mxu0 0.0
  %2113 = vmatprep.subr.mxu0 0.0
  %2114 = vmatpush2.msra.mxu0 0.0
  %2115 = vmatprep.subr.mxu0 0.0
  %2116 = vmatpush2.msra.mxu0 0.0
  %2117 = vmatprep.subr.mxu0 0.0
  %2118 = vmatpush2.msra.mxu0 0.0
  %2119 = vmatprep.subr.mxu0 0.0
  %2120 = vmatpush2.msra.mxu0 0.0
  %2121 = vmatprep.subr.mxu0 0.0
  %2122 = vmatpush2.msra.mxu0 0.0
  %2123 = vmatprep.subr.mxu0 0.0
  %2124 = vmatpush2.msra.mxu0 0.0
  %2125 = vmatprep.subr.mxu0 0.0
  %2126 = vmatpush2.msra.mxu0 0.0
  %2127 = vmatprep.subr.mxu0 0.0
  %2128 = vmatpush2.msra.mxu0 0.0
  %2129 = vmatprep.subr.mxu0 0.0
  %2130 = vmatpush2.msra.mxu0 0.0
  %2131 = vmatprep.subr.mxu0 0.0
  %2132 = vmatpush2.msra.mxu0 0.0
  %2133 = vmatprep.subr.mxu0 0.0
  %2134 = vmatpush2.msra.mxu0 0.0
  %2135 = vmatprep.subr.mxu0 0.0
  %2136 = vmatpush2.msra.mxu0 0.0
  %2137 = vmatprep.subr.mxu0 0.0
  %2138 = vmatpush2.msra.mxu0 0.0
  %2139 = vmatprep.mubr.f32.mxu0 0.0
  %2140 = vmatmul.mubr.f32.gmra.mxu0 %v1993
  %v2141 = vpop.f32.mrf.mxu0
  %v2142 = vadd.f32 0.0, %v2141
  %v2143 = vpop.f32.mrf.mxu0
  %v2144 = vadd.f32 0.0, %v2143
  %2145 = vmatprep.mubr.f32.mxu0 0.0
  %2146 = vmatmul.mubr.f32.gmra.mxu0 %v1996
  %v2147 = vpop.f32.mrf.mxu0
  %v2148 = vadd.f32 0.0, %v2147
  %v2149 = vpop.f32.mrf.mxu0
  %v2150 = vadd.f32 0.0, %v2149
  %2151 = vdwg.mxu0
  %v2152 = vadd.f32 %v1956, %v2065
  %v2153 = vadd.f32 %v1957, %v2067
  %v2154 = vadd.f32 %v1958, %v2142
  %v2155 = vadd.f32 %v1959, %v2144
  %v2156 = vadd.f32 %v1960, %v2071
  %v2157 = vadd.f32 %v1961, %v2073
  %v2158 = vadd.f32 %v1962, %v2148
  %v2159 = vadd.f32 %v1963, %v2150
  %2160 = vrot.lane.b32.xlu0 %v559, 111
  %v2161 = vpop.permute.xlu0 %2160
  %2162 = vrot.lane.b32.xlu0 %v560, 111
  %v2163 = vpop.permute.xlu0 %2162
  %2164 = vrot.lane.b32.xlu0 %v561, 111
  %v2165 = vpop.permute.xlu0 %2164
  %2166 = vrot.lane.b32.xlu0 %v562, 111
  %v2167 = vpop.permute.xlu0 %2166
  %vm2168 = vcmp.lt.s32.totalorder %v36, 111
  %v2169 = vsel %vm2168, %v2165, %v2167
  %v2170 = vsel %vm2168, %v2163, %v2165
  %v2171 = vsel %vm2168, %v2161, %v2163
  %v2172 = vsel %vm2168, %v2167, %v2161
  %vm2173 = vmand %vm1773, %vm974
  %vm2174 = vmand %vm1774, %vm975
  %vm2175 = vmand %vm1775, %vm976
  %vm2176 = vmand %vm1776, %vm977
  %v2177 = vsel %vm2173, 1, 0
  %v2178 = vsel %vm2174, 1, 0
  %v2179 = vsel %vm2175, 1, 0
  %v2180 = vsel %vm2176, 1, 0
  %v2181 = vcvt.s32.f32 %v2177
  %v2182 = vcvt.s32.f32 %v2178
  %v2183 = vcvt.s32.f32 %v2179
  %v2184 = vcvt.s32.f32 %v2180
  %v2185 = vmul.f32 %v2171, %v2181
  %v2186 = vmul.f32 %v2170, %v2182
  %v2187 = vmul.f32 %v2169, %v2183
  %v2188 = vmul.f32 %v2172, %v2184
  %s2189 = scalar_lea.vmem %s1, 128
  %v2190 = vld [vmem:[%s2189] sm:$0xff]
  %v2191 = vld [vmem:[%s2189 + $0x8] sm:$0xff]
  %v2193 = vsel %vm640, %v2190, 0
  %v2196 = vsel %vm640, %v2191, 0
  %2198 = vmatprep.subr.mxu0 0.0
  %2199 = vmatpush1.msra.mxu0 0.0
  %2200 = vmatprep.subr.mxu0 0.0
  %2201 = vmatpush1.msra.mxu0 0.0
  %2202 = vmatprep.subr.mxu0 0.0
  %2203 = vmatpush1.msra.mxu0 0.0
  %2204 = vmatprep.subr.mxu0 0.0
  %2205 = vmatpush1.msra.mxu0 0.0
  %2206 = vmatprep.subr.mxu0 0.0
  %2207 = vmatpush1.msra.mxu0 0.0
  %2208 = vmatprep.subr.mxu0 0.0
  %2209 = vmatpush1.msra.mxu0 0.0
  %2210 = vmatprep.subr.mxu0 0.0
  %2211 = vmatpush1.msra.mxu0 0.0
  %2212 = vmatprep.subr.mxu0 0.0
  %2213 = vmatpush1.msra.mxu0 0.0
  %2214 = vmatprep.subr.mxu0 0.0
  %2215 = vmatpush1.msra.mxu0 0.0
  %2216 = vmatprep.subr.mxu0 0.0
  %2217 = vmatpush1.msra.mxu0 0.0
  %2218 = vmatprep.subr.mxu0 0.0
  %2219 = vmatpush1.msra.mxu0 0.0
  %2220 = vmatprep.subr.mxu0 0.0
  %2221 = vmatpush1.msra.mxu0 0.0
  %2222 = vmatprep.subr.mxu0 0.0
  %2223 = vmatpush1.msra.mxu0 0.0
  %2224 = vmatprep.subr.mxu0 0.0
  %2225 = vmatpush1.msra.mxu0 0.0
  %2226 = vmatprep.subr.mxu0 0.0
  %2227 = vmatpush1.msra.mxu0 0.0
  %2228 = vmatprep.subr.mxu0 %v2186
  %2229 = vmatpush1.msra.mxu0 %v2185
  %2230 = vmatprep.subr.mxu0 0.0
  %2231 = vmatpush2.msra.mxu0 0.0
  %2232 = vmatprep.subr.mxu0 0.0
  %2233 = vmatpush2.msra.mxu0 0.0
  %2234 = vmatprep.subr.mxu0 0.0
  %2235 = vmatpush2.msra.mxu0 0.0
  %2236 = vmatprep.subr.mxu0 0.0
  %2237 = vmatpush2.msra.mxu0 0.0
  %2238 = vmatprep.subr.mxu0 0.0
  %2239 = vmatpush2.msra.mxu0 0.0
  %2240 = vmatprep.subr.mxu0 0.0
  %2241 = vmatpush2.msra.mxu0 0.0
  %2242 = vmatprep.subr.mxu0 0.0
  %2243 = vmatpush2.msra.mxu0 0.0
  %2244 = vmatprep.subr.mxu0 0.0
  %2245 = vmatpush2.msra.mxu0 0.0
  %2246 = vmatprep.subr.mxu0 0.0
  %2247 = vmatpush2.msra.mxu0 0.0
  %2248 = vmatprep.subr.mxu0 0.0
  %2249 = vmatpush2.msra.mxu0 0.0
  %2250 = vmatprep.subr.mxu0 0.0
  %2251 = vmatpush2.msra.mxu0 0.0
  %2252 = vmatprep.subr.mxu0 0.0
  %2253 = vmatpush2.msra.mxu0 0.0
  %2254 = vmatprep.subr.mxu0 0.0
  %2255 = vmatpush2.msra.mxu0 0.0
  %2256 = vmatprep.subr.mxu0 0.0
  %2257 = vmatpush2.msra.mxu0 0.0
  %2258 = vmatprep.subr.mxu0 0.0
  %2259 = vmatpush2.msra.mxu0 0.0
  %2260 = vmatprep.subr.mxu0 0.0
  %2261 = vmatpush2.msra.mxu0 0.0
  %2262 = vmatprep.mubr.f32.mxu0 0.0
  %2263 = vmatmul.mubr.f32.gmra.mxu0 %v2193
  %v2264 = vpop.f32.mrf.mxu0
  %v2265 = vadd.f32 0.0, %v2264
  %v2266 = vpop.f32.mrf.mxu0
  %v2267 = vadd.f32 0.0, %v2266
  %2268 = vmatprep.mubr.f32.mxu0 0.0
  %2269 = vmatmul.mubr.f32.gmra.mxu0 %v2196
  %v2270 = vpop.f32.mrf.mxu0
  %v2271 = vadd.f32 0.0, %v2270
  %v2272 = vpop.f32.mrf.mxu0
  %v2273 = vadd.f32 0.0, %v2272
  %2274 = vdwg.mxu0
  %2275 = vmatprep.subr.mxu0 0.0
  %2276 = vmatpush1.msra.mxu0 0.0
  %2277 = vmatprep.subr.mxu0 0.0
  %2278 = vmatpush1.msra.mxu0 0.0
  %2279 = vmatprep.subr.mxu0 0.0
  %2280 = vmatpush1.msra.mxu0 0.0
  %2281 = vmatprep.subr.mxu0 0.0
  %2282 = vmatpush1.msra.mxu0 0.0
  %2283 = vmatprep.subr.mxu0 0.0
  %2284 = vmatpush1.msra.mxu0 0.0
  %2285 = vmatprep.subr.mxu0 0.0
  %2286 = vmatpush1.msra.mxu0 0.0
  %2287 = vmatprep.subr.mxu0 0.0
  %2288 = vmatpush1.msra.mxu0 0.0
  %2289 = vmatprep.subr.mxu0 0.0
  %2290 = vmatpush1.msra.mxu0 0.0
  %2291 = vmatprep.subr.mxu0 0.0
  %2292 = vmatpush1.msra.mxu0 0.0
  %2293 = vmatprep.subr.mxu0 0.0
  %2294 = vmatpush1.msra.mxu0 0.0
  %2295 = vmatprep.subr.mxu0 0.0
  %2296 = vmatpush1.msra.mxu0 0.0
  %2297 = vmatprep.subr.mxu0 0.0
  %2298 = vmatpush1.msra.mxu0 0.0
  %2299 = vmatprep.subr.mxu0 0.0
  %2300 = vmatpush1.msra.mxu0 0.0
  %2301 = vmatprep.subr.mxu0 0.0
  %2302 = vmatpush1.msra.mxu0 0.0
  %2303 = vmatprep.subr.mxu0 0.0
  %2304 = vmatpush1.msra.mxu0 0.0
  %2305 = vmatprep.subr.mxu0 %v2188
  %2306 = vmatpush1.msra.mxu0 %v2187
  %2307 = vmatprep.subr.mxu0 0.0
  %2308 = vmatpush2.msra.mxu0 0.0
  %2309 = vmatprep.subr.mxu0 0.0
  %2310 = vmatpush2.msra.mxu0 0.0
  %2311 = vmatprep.subr.mxu0 0.0
  %2312 = vmatpush2.msra.mxu0 0.0
  %2313 = vmatprep.subr.mxu0 0.0
  %2314 = vmatpush2.msra.mxu0 0.0
  %2315 = vmatprep.subr.mxu0 0.0
  %2316 = vmatpush2.msra.mxu0 0.0
  %2317 = vmatprep.subr.mxu0 0.0
  %2318 = vmatpush2.msra.mxu0 0.0
  %2319 = vmatprep.subr.mxu0 0.0
  %2320 = vmatpush2.msra.mxu0 0.0
  %2321 = vmatprep.subr.mxu0 0.0
  %2322 = vmatpush2.msra.mxu0 0.0
  %2323 = vmatprep.subr.mxu0 0.0
  %2324 = vmatpush2.msra.mxu0 0.0
  %2325 = vmatprep.subr.mxu0 0.0
  %2326 = vmatpush2.msra.mxu0 0.0
  %2327 = vmatprep.subr.mxu0 0.0
  %2328 = vmatpush2.msra.mxu0 0.0
  %2329 = vmatprep.subr.mxu0 0.0
  %2330 = vmatpush2.msra.mxu0 0.0
  %2331 = vmatprep.subr.mxu0 0.0
  %2332 = vmatpush2.msra.mxu0 0.0
  %2333 = vmatprep.subr.mxu0 0.0
  %2334 = vmatpush2.msra.mxu0 0.0
  %2335 = vmatprep.subr.mxu0 0.0
  %2336 = vmatpush2.msra.mxu0 0.0
  %2337 = vmatprep.subr.mxu0 0.0
  %2338 = vmatpush2.msra.mxu0 0.0
  %2339 = vmatprep.mubr.f32.mxu0 0.0
  %2340 = vmatmul.mubr.f32.gmra.mxu0 %v2193
  %v2341 = vpop.f32.mrf.mxu0
  %v2342 = vadd.f32 0.0, %v2341
  %v2343 = vpop.f32.mrf.mxu0
  %v2344 = vadd.f32 0.0, %v2343
  %2345 = vmatprep.mubr.f32.mxu0 0.0
  %2346 = vmatmul.mubr.f32.gmra.mxu0 %v2196
  %v2347 = vpop.f32.mrf.mxu0
  %v2348 = vadd.f32 0.0, %v2347
  %v2349 = vpop.f32.mrf.mxu0
  %v2350 = vadd.f32 0.0, %v2349
  %2351 = vdwg.mxu0
  %v2352 = vadd.f32 %v2152, %v2265
  %v2353 = vadd.f32 %v2153, %v2267
  %v2354 = vadd.f32 %v2154, %v2342
  %v2355 = vadd.f32 %v2155, %v2344
  %v2356 = vadd.f32 %v2156, %v2271
  %v2357 = vadd.f32 %v2157, %v2273
  %v2358 = vadd.f32 %v2158, %v2348
  %v2359 = vadd.f32 %v2159, %v2350
  %2361 = vset.pattern.permute.xlu0 0
  %2362 = vperm.xlu0 %2361, %v563
  %v2363 = vpop.permute.xlu0 %2362
  %2366 = vset.pattern.permute.xlu0 0
  %2367 = vperm.xlu0 %2366, %v564
  %v2368 = vpop.permute.xlu0 %2367
  %v2370 = vadd.f32 %v2352, %v2363
  %v2371 = vadd.f32 %v2353, %v2363
  %v2372 = vadd.f32 %v2354, %v2363
  %v2373 = vadd.f32 %v2355, %v2363
  %v2374 = vadd.f32 %v2356, %v2368
  %v2375 = vadd.f32 %v2357, %v2368
  %v2376 = vadd.f32 %v2358, %v2368
  %v2377 = vadd.f32 %v2359, %v2368
  %v2378 = vld [vmem:[%s3] sm:$0xff]
  %v2379 = vld [vmem:[%s3 + $0x8] sm:$0xff]
  %v2380 = vld [vmem:[%s3 + $0x10] sm:$0xff]
  %v2381 = vld [vmem:[%s3 + $0x18] sm:$0xff]
  %v2382 = vld [vmem:[%s3 + $0x20] sm:$0xff]
  %v2383 = vld [vmem:[%s3 + $0x28] sm:$0xff]
  %v2384 = vld [vmem:[%s3 + $0x30] sm:$0xff]
  %v2385 = vld [vmem:[%s3 + $0x38] sm:$0xff]
  %v2386 = vld [vmem:[%s3 + $0x40] sm:$0xff]
  %v2387 = vld [vmem:[%s3 + $0x48] sm:$0xff]
  %v2388 = vld [vmem:[%s3 + $0x50] sm:$0xff]
  %v2389 = vld [vmem:[%s3 + $0x58] sm:$0xff]
  %v2390 = vld [vmem:[%s3 + $0x60] sm:$0xff]
  %v2391 = vld [vmem:[%s3 + $0x68] sm:$0xff]
  %v2392 = vld [vmem:[%s4] sm:$0xff]
  %v2393 = vld [vmem:[%s4 + $0x8] sm:$0xff]
  %v2394 = vld [vmem:[%s4 + $0x10] sm:$0xff]
  %v2395 = vld [vmem:[%s4 + $0x18] sm:$0xff]
  %v2396 = vld [vmem:[%s5] sm:$0xff]
  %v2397 = vld [vmem:[%s5 + $0x8] sm:$0xff]
  %v2398 = vld [vmem:[%s6] sm:$0xff]
  %v2399 = vld [vmem:[%s6 + $0x8] sm:$0xff]
  %v2400 = vld [vmem:[%s6 + $0x10] sm:$0xff]
  %v2401 = vld [vmem:[%s6 + $0x18] sm:$0xff]
  %v2402 = vld [vmem:[%s7] sm:$0xff]
  %v2403 = vld [vmem:[%s7 + $0x8] sm:$0xff]
  %vm2404 = vcmask 130048
  %v2406 = vsel %vm2404, 1.0, 0
  %2408 = vmatprep.subr.mxu0 0.0
  %2409 = vmatpush1.msra.mxu0 0.0
  %2410 = vmatprep.subr.mxu0 0.0
  %2411 = vmatpush1.msra.mxu0 0.0
  %2412 = vmatprep.subr.mxu0 0.0
  %2413 = vmatpush1.msra.mxu0 0.0
  %2414 = vmatprep.subr.mxu0 0.0
  %2415 = vmatpush1.msra.mxu0 0.0
  %2416 = vmatprep.subr.mxu0 0.0
  %2417 = vmatpush1.msra.mxu0 0.0
  %2418 = vmatprep.subr.mxu0 0.0
  %2419 = vmatpush1.msra.mxu0 0.0
  %2420 = vmatprep.subr.mxu0 0.0
  %2421 = vmatpush1.msra.mxu0 0.0
  %2422 = vmatprep.subr.mxu0 0.0
  %2423 = vmatpush1.msra.mxu0 0.0
  %2424 = vmatprep.subr.mxu0 0.0
  %2425 = vmatpush1.msra.mxu0 0.0
  %2426 = vmatprep.subr.mxu0 0.0
  %2427 = vmatpush1.msra.mxu0 0.0
  %2428 = vmatprep.subr.mxu0 0.0
  %2429 = vmatpush1.msra.mxu0 0.0
  %2430 = vmatprep.subr.mxu0 0.0
  %2431 = vmatpush1.msra.mxu0 0.0
  %2432 = vmatprep.subr.mxu0 0.0
  %2433 = vmatpush1.msra.mxu0 0.0
  %2434 = vmatprep.subr.mxu0 0.0
  %2435 = vmatpush1.msra.mxu0 0.0
  %2436 = vmatprep.subr.mxu0 %v2375
  %2437 = vmatpush1.msra.mxu0 %v2374
  %2438 = vmatprep.subr.mxu0 %v2371
  %2439 = vmatpush1.msra.mxu0 %v2370
  %2440 = vmatprep.subr.mxu0 0.0
  %2441 = vmatpush2.msra.mxu0 0.0
  %2442 = vmatprep.subr.mxu0 0.0
  %2443 = vmatpush2.msra.mxu0 0.0
  %2444 = vmatprep.subr.mxu0 0.0
  %2445 = vmatpush2.msra.mxu0 0.0
  %2446 = vmatprep.subr.mxu0 0.0
  %2447 = vmatpush2.msra.mxu0 0.0
  %2448 = vmatprep.subr.mxu0 0.0
  %2449 = vmatpush2.msra.mxu0 0.0
  %2450 = vmatprep.subr.mxu0 0.0
  %2451 = vmatpush2.msra.mxu0 0.0
  %2452 = vmatprep.subr.mxu0 0.0
  %2453 = vmatpush2.msra.mxu0 0.0
  %2454 = vmatprep.subr.mxu0 0.0
  %2455 = vmatpush2.msra.mxu0 0.0
  %2456 = vmatprep.subr.mxu0 0.0
  %2457 = vmatpush2.msra.mxu0 0.0
  %2458 = vmatprep.subr.mxu0 0.0
  %2459 = vmatpush2.msra.mxu0 0.0
  %2460 = vmatprep.subr.mxu0 0.0
  %2461 = vmatpush2.msra.mxu0 0.0
  %2462 = vmatprep.subr.mxu0 0.0
  %2463 = vmatpush2.msra.mxu0 0.0
  %2464 = vmatprep.subr.mxu0 0.0
  %2465 = vmatpush2.msra.mxu0 0.0
  %2466 = vmatprep.subr.mxu0 0.0
  %2467 = vmatpush2.msra.mxu0 0.0
  %2468 = vmatprep.subr.mxu0 0.0
  %2469 = vmatpush2.msra.mxu0 0.0
  %2470 = vmatprep.subr.mxu0 0.0
  %2471 = vmatpush2.msra.mxu0 0.0
  %2472 = vmatprep.mubr.f32.mxu0 0.0
  %2473 = vmatmul.mubr.f32.gmra.mxu0 %v2406
  %v2474 = vpop.f32.mrf.mxu0
  %v2475 = vadd.f32 0.0, %v2474
  %v2476 = vpop.f32.mrf.mxu0
  %v2477 = vadd.f32 0.0, %v2476
  %2478 = vdwg.mxu0
  %2479 = vmatprep.subr.mxu0 0.0
  %2480 = vmatpush1.msra.mxu0 0.0
  %2481 = vmatprep.subr.mxu0 0.0
  %2482 = vmatpush1.msra.mxu0 0.0
  %2483 = vmatprep.subr.mxu0 0.0
  %2484 = vmatpush1.msra.mxu0 0.0
  %2485 = vmatprep.subr.mxu0 0.0
  %2486 = vmatpush1.msra.mxu0 0.0
  %2487 = vmatprep.subr.mxu0 0.0
  %2488 = vmatpush1.msra.mxu0 0.0
  %2489 = vmatprep.subr.mxu0 0.0
  %2490 = vmatpush1.msra.mxu0 0.0
  %2491 = vmatprep.subr.mxu0 0.0
  %2492 = vmatpush1.msra.mxu0 0.0
  %2493 = vmatprep.subr.mxu0 0.0
  %2494 = vmatpush1.msra.mxu0 0.0
  %2495 = vmatprep.subr.mxu0 0.0
  %2496 = vmatpush1.msra.mxu0 0.0
  %2497 = vmatprep.subr.mxu0 0.0
  %2498 = vmatpush1.msra.mxu0 0.0
  %2499 = vmatprep.subr.mxu0 0.0
  %2500 = vmatpush1.msra.mxu0 0.0
  %2501 = vmatprep.subr.mxu0 0.0
  %2502 = vmatpush1.msra.mxu0 0.0
  %2503 = vmatprep.subr.mxu0 0.0
  %2504 = vmatpush1.msra.mxu0 0.0
  %2505 = vmatprep.subr.mxu0 0.0
  %2506 = vmatpush1.msra.mxu0 0.0
  %2507 = vmatprep.subr.mxu0 %v2377
  %2508 = vmatpush1.msra.mxu0 %v2376
  %2509 = vmatprep.subr.mxu0 %v2373
  %2510 = vmatpush1.msra.mxu0 %v2372
  %2511 = vmatprep.subr.mxu0 0.0
  %2512 = vmatpush2.msra.mxu0 0.0
  %2513 = vmatprep.subr.mxu0 0.0
  %2514 = vmatpush2.msra.mxu0 0.0
  %2515 = vmatprep.subr.mxu0 0.0
  %2516 = vmatpush2.msra.mxu0 0.0
  %2517 = vmatprep.subr.mxu0 0.0
  %2518 = vmatpush2.msra.mxu0 0.0
  %2519 = vmatprep.subr.mxu0 0.0
  %2520 = vmatpush2.msra.mxu0 0.0
  %2521 = vmatprep.subr.mxu0 0.0
  %2522 = vmatpush2.msra.mxu0 0.0
  %2523 = vmatprep.subr.mxu0 0.0
  %2524 = vmatpush2.msra.mxu0 0.0
  %2525 = vmatprep.subr.mxu0 0.0
  %2526 = vmatpush2.msra.mxu0 0.0
  %2527 = vmatprep.subr.mxu0 0.0
  %2528 = vmatpush2.msra.mxu0 0.0
  %2529 = vmatprep.subr.mxu0 0.0
  %2530 = vmatpush2.msra.mxu0 0.0
  %2531 = vmatprep.subr.mxu0 0.0
  %2532 = vmatpush2.msra.mxu0 0.0
  %2533 = vmatprep.subr.mxu0 0.0
  %2534 = vmatpush2.msra.mxu0 0.0
  %2535 = vmatprep.subr.mxu0 0.0
  %2536 = vmatpush2.msra.mxu0 0.0
  %2537 = vmatprep.subr.mxu0 0.0
  %2538 = vmatpush2.msra.mxu0 0.0
  %2539 = vmatprep.subr.mxu0 0.0
  %2540 = vmatpush2.msra.mxu0 0.0
  %2541 = vmatprep.subr.mxu0 0.0
  %2542 = vmatpush2.msra.mxu0 0.0
  %2543 = vmatprep.mubr.f32.mxu0 0.0
  %2544 = vmatmul.mubr.f32.gmra.mxu0 %v2406
  %v2545 = vpop.f32.mrf.mxu0
  %v2546 = vadd.f32 0.0, %v2545
  %v2547 = vpop.f32.mrf.mxu0
  %v2548 = vadd.f32 0.0, %v2547
  %2549 = vdwg.mxu0
  %v2550 = vmul.f32 %v2475, 0.0625
  %v2551 = vmul.f32 %v2477, 0.0625
  %v2552 = vmul.f32 %v2546, 0.0625
  %v2553 = vmul.f32 %v2548, 0.0625
  %v2554 = vlaneseq
  %v2555 = vshrl.u32 %v2554, 7
  %v2556 = vsub.s32 0, %v2555
  %v2557 = vrot.slane %v2550, %v2556
  %v2558 = vlaneseq
  %v2559 = vshrl.u32 %v2558, 7
  %v2560 = vsub.s32 0, %v2559
  %v2561 = vrot.slane %v2551, %v2560
  %v2562 = vlaneseq
  %v2563 = vshrl.u32 %v2562, 7
  %v2564 = vsub.s32 0, %v2563
  %v2565 = vrot.slane %v2552, %v2564
  %v2566 = vlaneseq
  %v2567 = vshrl.u32 %v2566, 7
  %v2568 = vsub.s32 0, %v2567
  %v2569 = vrot.slane %v2553, %v2568
  %v2570 = vsub.f32 %v2370, %v2557
  %v2571 = vsub.f32 %v2371, %v2561
  %v2572 = vsub.f32 %v2372, %v2565
  %v2573 = vsub.f32 %v2373, %v2569
  %v2574 = vsub.f32 %v2374, %v2557
  %v2575 = vsub.f32 %v2375, %v2561
  %v2576 = vsub.f32 %v2376, %v2565
  %v2577 = vsub.f32 %v2377, %v2569
  %v2578 = vmul.f32 %v2570, %v2570
  %v2579 = vmul.f32 %v2571, %v2571
  %v2580 = vmul.f32 %v2572, %v2572
  %v2581 = vmul.f32 %v2573, %v2573
  %v2582 = vmul.f32 %v2574, %v2574
  %v2583 = vmul.f32 %v2575, %v2575
  %v2584 = vmul.f32 %v2576, %v2576
  %v2585 = vmul.f32 %v2577, %v2577
  %2586 = vmatprep.subr.mxu0 0.0
  %2587 = vmatpush1.msra.mxu0 0.0
  %2588 = vmatprep.subr.mxu0 0.0
  %2589 = vmatpush1.msra.mxu0 0.0
  %2590 = vmatprep.subr.mxu0 0.0
  %2591 = vmatpush1.msra.mxu0 0.0
  %2592 = vmatprep.subr.mxu0 0.0
  %2593 = vmatpush1.msra.mxu0 0.0
  %2594 = vmatprep.subr.mxu0 0.0
  %2595 = vmatpush1.msra.mxu0 0.0
  %2596 = vmatprep.subr.mxu0 0.0
  %2597 = vmatpush1.msra.mxu0 0.0
  %2598 = vmatprep.subr.mxu0 0.0
  %2599 = vmatpush1.msra.mxu0 0.0
  %2600 = vmatprep.subr.mxu0 0.0
  %2601 = vmatpush1.msra.mxu0 0.0
  %2602 = vmatprep.subr.mxu0 0.0
  %2603 = vmatpush1.msra.mxu0 0.0
  %2604 = vmatprep.subr.mxu0 0.0
  %2605 = vmatpush1.msra.mxu0 0.0
  %2606 = vmatprep.subr.mxu0 0.0
  %2607 = vmatpush1.msra.mxu0 0.0
  %2608 = vmatprep.subr.mxu0 0.0
  %2609 = vmatpush1.msra.mxu0 0.0
  %2610 = vmatprep.subr.mxu0 0.0
  %2611 = vmatpush1.msra.mxu0 0.0
  %2612 = vmatprep.subr.mxu0 0.0
  %2613 = vmatpush1.msra.mxu0 0.0
  %2614 = vmatprep.subr.mxu0 %v2583
  %2615 = vmatpush1.msra.mxu0 %v2582
  %2616 = vmatprep.subr.mxu0 %v2579
  %2617 = vmatpush1.msra.mxu0 %v2578
  %2618 = vmatprep.subr.mxu0 0.0
  %2619 = vmatpush2.msra.mxu0 0.0
  %2620 = vmatprep.subr.mxu0 0.0
  %2621 = vmatpush2.msra.mxu0 0.0
  %2622 = vmatprep.subr.mxu0 0.0
  %2623 = vmatpush2.msra.mxu0 0.0
  %2624 = vmatprep.subr.mxu0 0.0
  %2625 = vmatpush2.msra.mxu0 0.0
  %2626 = vmatprep.subr.mxu0 0.0
  %2627 = vmatpush2.msra.mxu0 0.0
  %2628 = vmatprep.subr.mxu0 0.0
  %2629 = vmatpush2.msra.mxu0 0.0
  %2630 = vmatprep.subr.mxu0 0.0
  %2631 = vmatpush2.msra.mxu0 0.0
  %2632 = vmatprep.subr.mxu0 0.0
  %2633 = vmatpush2.msra.mxu0 0.0
  %2634 = vmatprep.subr.mxu0 0.0
  %2635 = vmatpush2.msra.mxu0 0.0
  %2636 = vmatprep.subr.mxu0 0.0
  %2637 = vmatpush2.msra.mxu0 0.0
  %2638 = vmatprep.subr.mxu0 0.0
  %2639 = vmatpush2.msra.mxu0 0.0
  %2640 = vmatprep.subr.mxu0 0.0
  %2641 = vmatpush2.msra.mxu0 0.0
  %2642 = vmatprep.subr.mxu0 0.0
  %2643 = vmatpush2.msra.mxu0 0.0
  %2644 = vmatprep.subr.mxu0 0.0
  %2645 = vmatpush2.msra.mxu0 0.0
  %2646 = vmatprep.subr.mxu0 0.0
  %2647 = vmatpush2.msra.mxu0 0.0
  %2648 = vmatprep.subr.mxu0 0.0
  %2649 = vmatpush2.msra.mxu0 0.0
  %2650 = vmatprep.mubr.f32.mxu0 0.0
  %2651 = vmatmul.mubr.f32.gmra.mxu0 %v2406
  %v2652 = vpop.f32.mrf.mxu0
  %v2653 = vadd.f32 0.0, %v2652
  %v2654 = vpop.f32.mrf.mxu0
  %v2655 = vadd.f32 0.0, %v2654
  %2656 = vdwg.mxu0
  %2657 = vmatprep.subr.mxu0 0.0
  %2658 = vmatpush1.msra.mxu0 0.0
  %2659 = vmatprep.subr.mxu0 0.0
  %2660 = vmatpush1.msra.mxu0 0.0
  %2661 = vmatprep.subr.mxu0 0.0
  %2662 = vmatpush1.msra.mxu0 0.0
  %2663 = vmatprep.subr.mxu0 0.0
  %2664 = vmatpush1.msra.mxu0 0.0
  %2665 = vmatprep.subr.mxu0 0.0
  %2666 = vmatpush1.msra.mxu0 0.0
  %2667 = vmatprep.subr.mxu0 0.0
  %2668 = vmatpush1.msra.mxu0 0.0
  %2669 = vmatprep.subr.mxu0 0.0
  %2670 = vmatpush1.msra.mxu0 0.0
  %2671 = vmatprep.subr.mxu0 0.0
  %2672 = vmatpush1.msra.mxu0 0.0
  %2673 = vmatprep.subr.mxu0 0.0
  %2674 = vmatpush1.msra.mxu0 0.0
  %2675 = vmatprep.subr.mxu0 0.0
  %2676 = vmatpush1.msra.mxu0 0.0
  %2677 = vmatprep.subr.mxu0 0.0
  %2678 = vmatpush1.msra.mxu0 0.0
  %2679 = vmatprep.subr.mxu0 0.0
  %2680 = vmatpush1.msra.mxu0 0.0
  %2681 = vmatprep.subr.mxu0 0.0
  %2682 = vmatpush1.msra.mxu0 0.0
  %2683 = vmatprep.subr.mxu0 0.0
  %2684 = vmatpush1.msra.mxu0 0.0
  %2685 = vmatprep.subr.mxu0 %v2585
  %2686 = vmatpush1.msra.mxu0 %v2584
  %2687 = vmatprep.subr.mxu0 %v2581
  %2688 = vmatpush1.msra.mxu0 %v2580
  %2689 = vmatprep.subr.mxu0 0.0
  %2690 = vmatpush2.msra.mxu0 0.0
  %2691 = vmatprep.subr.mxu0 0.0
  %2692 = vmatpush2.msra.mxu0 0.0
  %2693 = vmatprep.subr.mxu0 0.0
  %2694 = vmatpush2.msra.mxu0 0.0
  %2695 = vmatprep.subr.mxu0 0.0
  %2696 = vmatpush2.msra.mxu0 0.0
  %2697 = vmatprep.subr.mxu0 0.0
  %2698 = vmatpush2.msra.mxu0 0.0
  %2699 = vmatprep.subr.mxu0 0.0
  %2700 = vmatpush2.msra.mxu0 0.0
  %2701 = vmatprep.subr.mxu0 0.0
  %2702 = vmatpush2.msra.mxu0 0.0
  %2703 = vmatprep.subr.mxu0 0.0
  %2704 = vmatpush2.msra.mxu0 0.0
  %2705 = vmatprep.subr.mxu0 0.0
  %2706 = vmatpush2.msra.mxu0 0.0
  %2707 = vmatprep.subr.mxu0 0.0
  %2708 = vmatpush2.msra.mxu0 0.0
  %2709 = vmatprep.subr.mxu0 0.0
  %2710 = vmatpush2.msra.mxu0 0.0
  %2711 = vmatprep.subr.mxu0 0.0
  %2712 = vmatpush2.msra.mxu0 0.0
  %2713 = vmatprep.subr.mxu0 0.0
  %2714 = vmatpush2.msra.mxu0 0.0
  %2715 = vmatprep.subr.mxu0 0.0
  %2716 = vmatpush2.msra.mxu0 0.0
  %2717 = vmatprep.subr.mxu0 0.0
  %2718 = vmatpush2.msra.mxu0 0.0
  %2719 = vmatprep.subr.mxu0 0.0
  %2720 = vmatpush2.msra.mxu0 0.0
  %2721 = vmatprep.mubr.f32.mxu0 0.0
  %2722 = vmatmul.mubr.f32.gmra.mxu0 %v2406
  %v2723 = vpop.f32.mrf.mxu0
  %v2724 = vadd.f32 0.0, %v2723
  %v2725 = vpop.f32.mrf.mxu0
  %v2726 = vadd.f32 0.0, %v2725
  %2727 = vdwg.mxu0
  %v2728 = vmul.f32 %v2653, 0.0625
  %v2729 = vmul.f32 %v2655, 0.0625
  %v2730 = vmul.f32 %v2724, 0.0625
  %v2731 = vmul.f32 %v2726, 0.0625
  %v2732 = vadd.f32 %v2728, 1e-05
  %v2733 = vadd.f32 %v2729, 1e-05
  %v2734 = vadd.f32 %v2730, 1e-05
  %v2735 = vadd.f32 %v2731, 1e-05
  %v2736 = vrsqrt.pop %v2732
  %v2737 = vrsqrt.pop %v2733
  %v2738 = vrsqrt.pop %v2734
  %v2739 = vrsqrt.pop %v2735
  %v2740 = vlaneseq
  %v2741 = vshrl.u32 %v2740, 7
  %v2742 = vsub.s32 0, %v2741
  %v2743 = vrot.slane %v2736, %v2742
  %v2744 = vlaneseq
  %v2745 = vshrl.u32 %v2744, 7
  %v2746 = vsub.s32 0, %v2745
  %v2747 = vrot.slane %v2737, %v2746
  %v2748 = vlaneseq
  %v2749 = vshrl.u32 %v2748, 7
  %v2750 = vsub.s32 0, %v2749
  %v2751 = vrot.slane %v2738, %v2750
  %v2752 = vlaneseq
  %v2753 = vshrl.u32 %v2752, 7
  %v2754 = vsub.s32 0, %v2753
  %v2755 = vrot.slane %v2739, %v2754
  %v2756 = vmul.f32 %v2570, %v2743
  %v2757 = vmul.f32 %v2571, %v2747
  %v2758 = vmul.f32 %v2572, %v2751
  %v2759 = vmul.f32 %v2573, %v2755
  %v2760 = vmul.f32 %v2574, %v2743
  %v2761 = vmul.f32 %v2575, %v2747
  %v2762 = vmul.f32 %v2576, %v2751
  %v2763 = vmul.f32 %v2577, %v2755
  %2765 = vset.pattern.permute.xlu0 0
  %2766 = vperm.xlu0 %2765, %v2396
  %v2767 = vpop.permute.xlu0 %2766
  %2770 = vset.pattern.permute.xlu0 0
  %2771 = vperm.xlu0 %2770, %v2397
  %v2772 = vpop.permute.xlu0 %2771
  %v2774 = vmul.f32 %v2756, %v2767
  %v2775 = vmul.f32 %v2757, %v2767
  %v2776 = vmul.f32 %v2758, %v2767
  %v2777 = vmul.f32 %v2759, %v2767
  %v2778 = vmul.f32 %v2760, %v2772
  %v2779 = vmul.f32 %v2761, %v2772
  %v2780 = vmul.f32 %v2762, %v2772
  %v2781 = vmul.f32 %v2763, %v2772
  %2782 = vset.pattern.permute.xlu0 1
  %2783 = vperm.xlu0 %2782, %v2396
  %v2784 = vpop.permute.xlu0 %2783
  %2786 = vset.pattern.permute.xlu0 1
  %2787 = vperm.xlu0 %2786, %v2397
  %v2788 = vpop.permute.xlu0 %2787
  %v2790 = vadd.f32 %v2774, %v2784
  %v2791 = vadd.f32 %v2775, %v2784
  %v2792 = vadd.f32 %v2776, %v2784
  %v2793 = vadd.f32 %v2777, %v2784
  %v2794 = vadd.f32 %v2778, %v2788
  %v2795 = vadd.f32 %v2779, %v2788
  %v2796 = vadd.f32 %v2780, %v2788
  %v2797 = vadd.f32 %v2781, %v2788
  %v2798 = vadd.f32 %v2402, 1.0
  %v2799 = vadd.f32 %v2403, 1.0
  %2801 = vset.pattern.permute.xlu0 1
  %2802 = vperm.xlu0 %2801, %v2798
  %v2803 = vpop.permute.xlu0 %2802
  %2806 = vset.pattern.permute.xlu0 1
  %2807 = vperm.xlu0 %2806, %v2799
  %v2808 = vpop.permute.xlu0 %2807
  %v2810 = vmul.f32 %v2790, %v2803
  %v2811 = vmul.f32 %v2791, %v2803
  %v2812 = vmul.f32 %v2792, %v2803
  %v2813 = vmul.f32 %v2793, %v2803
  %v2814 = vmul.f32 %v2794, %v2808
  %v2815 = vmul.f32 %v2795, %v2808
  %v2816 = vmul.f32 %v2796, %v2808
  %v2817 = vmul.f32 %v2797, %v2808
  %2819 = vset.pattern.permute.xlu0 0
  %2820 = vperm.xlu0 %2819, %v2402
  %v2821 = vpop.permute.xlu0 %2820
  %2824 = vset.pattern.permute.xlu0 0
  %2825 = vperm.xlu0 %2824, %v2403
  %v2826 = vpop.permute.xlu0 %2825
  %v2828 = vadd.f32 %v2810, %v2821
  %v2829 = vadd.f32 %v2811, %v2821
  %v2830 = vadd.f32 %v2812, %v2821
  %v2831 = vadd.f32 %v2813, %v2821
  %v2832 = vadd.f32 %v2814, %v2826
  %v2833 = vadd.f32 %v2815, %v2826
  %v2834 = vadd.f32 %v2816, %v2826
  %v2835 = vadd.f32 %v2817, %v2826
  %2837 = vset.pattern.permute.xlu0 0
  %2838 = vperm.xlu0 %2837, %v2398
  %v2839 = vpop.permute.xlu0 %2838
  %2842 = vset.pattern.permute.xlu0 0
  %2843 = vperm.xlu0 %2842, %v2399
  %v2844 = vpop.permute.xlu0 %2843
  %2847 = vset.pattern.permute.xlu0 0
  %2848 = vperm.xlu0 %2847, %v2400
  %v2849 = vpop.permute.xlu0 %2848
  %2852 = vset.pattern.permute.xlu0 0
  %2853 = vperm.xlu0 %2852, %v2401
  %v2854 = vpop.permute.xlu0 %2853
  %v2857 = vsel %vm2404, %v2378, 0
  %v2860 = vsel %vm2404, %v2379, 0
  %v2863 = vsel %vm2404, %v2380, 0
  %v2866 = vsel %vm2404, %v2381, 0
  %2868 = vmatprep.subr.mxu0 0.0
  %2869 = vmatpush1.msra.mxu0 0.0
  %2870 = vmatprep.subr.mxu0 0.0
  %2871 = vmatpush1.msra.mxu0 0.0
  %2872 = vmatprep.subr.mxu0 0.0
  %2873 = vmatpush1.msra.mxu0 0.0
  %2874 = vmatprep.subr.mxu0 0.0
  %2875 = vmatpush1.msra.mxu0 0.0
  %2876 = vmatprep.subr.mxu0 0.0
  %2877 = vmatpush1.msra.mxu0 0.0
  %2878 = vmatprep.subr.mxu0 0.0
  %2879 = vmatpush1.msra.mxu0 0.0
  %2880 = vmatprep.subr.mxu0 0.0
  %2881 = vmatpush1.msra.mxu0 0.0
  %2882 = vmatprep.subr.mxu0 0.0
  %2883 = vmatpush1.msra.mxu0 0.0
  %2884 = vmatprep.subr.mxu0 0.0
  %2885 = vmatpush1.msra.mxu0 0.0
  %2886 = vmatprep.subr.mxu0 0.0
  %2887 = vmatpush1.msra.mxu0 0.0
  %2888 = vmatprep.subr.mxu0 0.0
  %2889 = vmatpush1.msra.mxu0 0.0
  %2890 = vmatprep.subr.mxu0 0.0
  %2891 = vmatpush1.msra.mxu0 0.0
  %2892 = vmatprep.subr.mxu0 0.0
  %2893 = vmatpush1.msra.mxu0 0.0
  %2894 = vmatprep.subr.mxu0 0.0
  %2895 = vmatpush1.msra.mxu0 0.0
  %2896 = vmatprep.subr.mxu0 %v2833
  %2897 = vmatpush1.msra.mxu0 %v2832
  %2898 = vmatprep.subr.mxu0 %v2829
  %2899 = vmatpush1.msra.mxu0 %v2828
  %2900 = vmatprep.subr.mxu0 0.0
  %2901 = vmatpush2.msra.mxu0 0.0
  %2902 = vmatprep.subr.mxu0 0.0
  %2903 = vmatpush2.msra.mxu0 0.0
  %2904 = vmatprep.subr.mxu0 0.0
  %2905 = vmatpush2.msra.mxu0 0.0
  %2906 = vmatprep.subr.mxu0 0.0
  %2907 = vmatpush2.msra.mxu0 0.0
  %2908 = vmatprep.subr.mxu0 0.0
  %2909 = vmatpush2.msra.mxu0 0.0
  %2910 = vmatprep.subr.mxu0 0.0
  %2911 = vmatpush2.msra.mxu0 0.0
  %2912 = vmatprep.subr.mxu0 0.0
  %2913 = vmatpush2.msra.mxu0 0.0
  %2914 = vmatprep.subr.mxu0 0.0
  %2915 = vmatpush2.msra.mxu0 0.0
  %2916 = vmatprep.subr.mxu0 0.0
  %2917 = vmatpush2.msra.mxu0 0.0
  %2918 = vmatprep.subr.mxu0 0.0
  %2919 = vmatpush2.msra.mxu0 0.0
  %2920 = vmatprep.subr.mxu0 0.0
  %2921 = vmatpush2.msra.mxu0 0.0
  %2922 = vmatprep.subr.mxu0 0.0
  %2923 = vmatpush2.msra.mxu0 0.0
  %2924 = vmatprep.subr.mxu0 0.0
  %2925 = vmatpush2.msra.mxu0 0.0
  %2926 = vmatprep.subr.mxu0 0.0
  %2927 = vmatpush2.msra.mxu0 0.0
  %2928 = vmatprep.subr.mxu0 0.0
  %2929 = vmatpush2.msra.mxu0 0.0
  %2930 = vmatprep.subr.mxu0 0.0
  %2931 = vmatpush2.msra.mxu0 0.0
  %2932 = vmatprep.mubr.f32.mxu0 0.0
  %2933 = vmatmul.mubr.f32.gmra.mxu0 %v2857
  %v2934 = vpop.f32.mrf.mxu0
  %v2935 = vadd.f32 %v2839, %v2934
  %v2936 = vpop.f32.mrf.mxu0
  %v2937 = vadd.f32 %v2839, %v2936
  %2938 = vmatprep.mubr.f32.mxu0 0.0
  %2939 = vmatmul.mubr.f32.gmra.mxu0 %v2860
  %v2940 = vpop.f32.mrf.mxu0
  %v2941 = vadd.f32 %v2844, %v2940
  %v2942 = vpop.f32.mrf.mxu0
  %v2943 = vadd.f32 %v2844, %v2942
  %2944 = vmatprep.mubr.f32.mxu0 0.0
  %2945 = vmatmul.mubr.f32.gmra.mxu0 %v2863
  %v2946 = vpop.f32.mrf.mxu0
  %v2947 = vadd.f32 %v2849, %v2946
  %v2948 = vpop.f32.mrf.mxu0
  %v2949 = vadd.f32 %v2849, %v2948
  %2950 = vmatprep.mubr.f32.mxu0 0.0
  %2951 = vmatmul.mubr.f32.gmra.mxu0 %v2866
  %v2952 = vpop.f32.mrf.mxu0
  %v2953 = vadd.f32 %v2854, %v2952
  %v2954 = vpop.f32.mrf.mxu0
  %v2955 = vadd.f32 %v2854, %v2954
  %2956 = vdwg.mxu0
  %2957 = vmatprep.subr.mxu0 0.0
  %2958 = vmatpush1.msra.mxu0 0.0
  %2959 = vmatprep.subr.mxu0 0.0
  %2960 = vmatpush1.msra.mxu0 0.0
  %2961 = vmatprep.subr.mxu0 0.0
  %2962 = vmatpush1.msra.mxu0 0.0
  %2963 = vmatprep.subr.mxu0 0.0
  %2964 = vmatpush1.msra.mxu0 0.0
  %2965 = vmatprep.subr.mxu0 0.0
  %2966 = vmatpush1.msra.mxu0 0.0
  %2967 = vmatprep.subr.mxu0 0.0
  %2968 = vmatpush1.msra.mxu0 0.0
  %2969 = vmatprep.subr.mxu0 0.0
  %2970 = vmatpush1.msra.mxu0 0.0
  %2971 = vmatprep.subr.mxu0 0.0
  %2972 = vmatpush1.msra.mxu0 0.0
  %2973 = vmatprep.subr.mxu0 0.0
  %2974 = vmatpush1.msra.mxu0 0.0
  %2975 = vmatprep.subr.mxu0 0.0
  %2976 = vmatpush1.msra.mxu0 0.0
  %2977 = vmatprep.subr.mxu0 0.0
  %2978 = vmatpush1.msra.mxu0 0.0
  %2979 = vmatprep.subr.mxu0 0.0
  %2980 = vmatpush1.msra.mxu0 0.0
  %2981 = vmatprep.subr.mxu0 0.0
  %2982 = vmatpush1.msra.mxu0 0.0
  %2983 = vmatprep.subr.mxu0 0.0
  %2984 = vmatpush1.msra.mxu0 0.0
  %2985 = vmatprep.subr.mxu0 %v2835
  %2986 = vmatpush1.msra.mxu0 %v2834
  %2987 = vmatprep.subr.mxu0 %v2831
  %2988 = vmatpush1.msra.mxu0 %v2830
  %2989 = vmatprep.subr.mxu0 0.0
  %2990 = vmatpush2.msra.mxu0 0.0
  %2991 = vmatprep.subr.mxu0 0.0
  %2992 = vmatpush2.msra.mxu0 0.0
  %2993 = vmatprep.subr.mxu0 0.0
  %2994 = vmatpush2.msra.mxu0 0.0
  %2995 = vmatprep.subr.mxu0 0.0
  %2996 = vmatpush2.msra.mxu0 0.0
  %2997 = vmatprep.subr.mxu0 0.0
  %2998 = vmatpush2.msra.mxu0 0.0
  %2999 = vmatprep.subr.mxu0 0.0
  %3000 = vmatpush2.msra.mxu0 0.0
  %3001 = vmatprep.subr.mxu0 0.0
  %3002 = vmatpush2.msra.mxu0 0.0
  %3003 = vmatprep.subr.mxu0 0.0
  %3004 = vmatpush2.msra.mxu0 0.0
  %3005 = vmatprep.subr.mxu0 0.0
  %3006 = vmatpush2.msra.mxu0 0.0
  %3007 = vmatprep.subr.mxu0 0.0
  %3008 = vmatpush2.msra.mxu0 0.0
  %3009 = vmatprep.subr.mxu0 0.0
  %3010 = vmatpush2.msra.mxu0 0.0
  %3011 = vmatprep.subr.mxu0 0.0
  %3012 = vmatpush2.msra.mxu0 0.0
  %3013 = vmatprep.subr.mxu0 0.0
  %3014 = vmatpush2.msra.mxu0 0.0
  %3015 = vmatprep.subr.mxu0 0.0
  %3016 = vmatpush2.msra.mxu0 0.0
  %3017 = vmatprep.subr.mxu0 0.0
  %3018 = vmatpush2.msra.mxu0 0.0
  %3019 = vmatprep.subr.mxu0 0.0
  %3020 = vmatpush2.msra.mxu0 0.0
  %3021 = vmatprep.mubr.f32.mxu0 0.0
  %3022 = vmatmul.mubr.f32.gmra.mxu0 %v2857
  %v3023 = vpop.f32.mrf.mxu0
  %v3024 = vadd.f32 %v2839, %v3023
  %v3025 = vpop.f32.mrf.mxu0
  %v3026 = vadd.f32 %v2839, %v3025
  %3027 = vmatprep.mubr.f32.mxu0 0.0
  %3028 = vmatmul.mubr.f32.gmra.mxu0 %v2860
  %v3029 = vpop.f32.mrf.mxu0
  %v3030 = vadd.f32 %v2844, %v3029
  %v3031 = vpop.f32.mrf.mxu0
  %v3032 = vadd.f32 %v2844, %v3031
  %3033 = vmatprep.mubr.f32.mxu0 0.0
  %3034 = vmatmul.mubr.f32.gmra.mxu0 %v2863
  %v3035 = vpop.f32.mrf.mxu0
  %v3036 = vadd.f32 %v2849, %v3035
  %v3037 = vpop.f32.mrf.mxu0
  %v3038 = vadd.f32 %v2849, %v3037
  %3039 = vmatprep.mubr.f32.mxu0 0.0
  %3040 = vmatmul.mubr.f32.gmra.mxu0 %v2866
  %v3041 = vpop.f32.mrf.mxu0
  %v3042 = vadd.f32 %v2854, %v3041
  %v3043 = vpop.f32.mrf.mxu0
  %v3044 = vadd.f32 %v2854, %v3043
  %3045 = vdwg.mxu0
  %3046 = vrot.lane.b32.xlu0 %v2935, 17
  %v3047 = vpop.permute.xlu0 %3046
  %3048 = vrot.lane.b32.xlu0 %v2941, 17
  %v3049 = vpop.permute.xlu0 %3048
  %3050 = vrot.lane.b32.xlu0 %v2947, 17
  %v3051 = vpop.permute.xlu0 %3050
  %3052 = vrot.lane.b32.xlu0 %v2953, 17
  %v3053 = vpop.permute.xlu0 %3052
  %3054 = vrot.lane.b32.xlu0 %v2937, 17
  %v3055 = vpop.permute.xlu0 %3054
  %3056 = vrot.lane.b32.xlu0 %v2943, 17
  %v3057 = vpop.permute.xlu0 %3056
  %3058 = vrot.lane.b32.xlu0 %v2949, 17
  %v3059 = vpop.permute.xlu0 %3058
  %3060 = vrot.lane.b32.xlu0 %v2955, 17
  %v3061 = vpop.permute.xlu0 %3060
  %3062 = vrot.lane.b32.xlu0 %v3024, 17
  %v3063 = vpop.permute.xlu0 %3062
  %3064 = vrot.lane.b32.xlu0 %v3030, 17
  %v3065 = vpop.permute.xlu0 %3064
  %3066 = vrot.lane.b32.xlu0 %v3036, 17
  %v3067 = vpop.permute.xlu0 %3066
  %3068 = vrot.lane.b32.xlu0 %v3042, 17
  %v3069 = vpop.permute.xlu0 %3068
  %3070 = vrot.lane.b32.xlu0 %v3026, 17
  %v3071 = vpop.permute.xlu0 %3070
  %3072 = vrot.lane.b32.xlu0 %v3032, 17
  %v3073 = vpop.permute.xlu0 %3072
  %3074 = vrot.lane.b32.xlu0 %v3038, 17
  %v3075 = vpop.permute.xlu0 %3074
  %3076 = vrot.lane.b32.xlu0 %v3044, 17
  %v3077 = vpop.permute.xlu0 %3076
  %v3078 = vsel %vm573, %v3063, %v3071
  %v3079 = vsel %vm573, %v3065, %v3073
  %v3080 = vsel %vm573, %v3067, %v3075
  %v3081 = vsel %vm573, %v3069, %v3077
  %v3082 = vsel %vm573, %v3055, %v3063
  %v3083 = vsel %vm573, %v3057, %v3065
  %v3084 = vsel %vm573, %v3059, %v3067
  %v3085 = vsel %vm573, %v3061, %v3069
  %v3086 = vsel %vm573, %v3047, %v3055
  %v3087 = vsel %vm573, %v3049, %v3057
  %v3088 = vsel %vm573, %v3051, %v3059
  %v3089 = vsel %vm573, %v3053, %v3061
  %v3090 = vsel %vm573, %v3071, %v3047
  %v3091 = vsel %vm573, %v3073, %v3049
  %v3092 = vsel %vm573, %v3075, %v3051
  %v3093 = vsel %vm573, %v3077, %v3053
  %v3094 = vmul.f32 %v3090, %v602
  %v3095 = vmul.f32 %v3086, %v603
  %v3096 = vmul.f32 %v3082, %v604
  %v3097 = vmul.f32 %v3078, %v605
  %v3098 = vmul.f32 %v3091, %v602
  %v3099 = vmul.f32 %v3087, %v603
  %v3100 = vmul.f32 %v3083, %v604
  %v3101 = vmul.f32 %v3079, %v605
  %v3102 = vmul.f32 %v3092, %v602
  %v3103 = vmul.f32 %v3088, %v603
  %v3104 = vmul.f32 %v3084, %v604
  %v3105 = vmul.f32 %v3080, %v605
  %v3106 = vmul.f32 %v3093, %v602
  %v3107 = vmul.f32 %v3089, %v603
  %v3108 = vmul.f32 %v3085, %v604
  %v3109 = vmul.f32 %v3081, %v605
  %3111 = vset.pattern.permute.xlu0 0
  %3112 = vperm.xlu0 %3111, %v2392
  %v3113 = vpop.permute.xlu0 %3112
  %3116 = vset.pattern.permute.xlu0 0
  %3117 = vperm.xlu0 %3116, %v2393
  %v3118 = vpop.permute.xlu0 %3117
  %3121 = vset.pattern.permute.xlu0 0
  %3122 = vperm.xlu0 %3121, %v2394
  %v3123 = vpop.permute.xlu0 %3122
  %3126 = vset.pattern.permute.xlu0 0
  %3127 = vperm.xlu0 %3126, %v2395
  %v3128 = vpop.permute.xlu0 %3127
  %v3130 = vmul.f32 %v3094, %v3113
  %v3131 = vmul.f32 %v3095, %v3113
  %v3132 = vmul.f32 %v3096, %v3113
  %v3133 = vmul.f32 %v3097, %v3113
  %v3134 = vmul.f32 %v3098, %v3118
  %v3135 = vmul.f32 %v3099, %v3118
  %v3136 = vmul.f32 %v3100, %v3118
  %v3137 = vmul.f32 %v3101, %v3118
  %v3138 = vmul.f32 %v3102, %v3123
  %v3139 = vmul.f32 %v3103, %v3123
  %v3140 = vmul.f32 %v3104, %v3123
  %v3141 = vmul.f32 %v3105, %v3123
  %v3142 = vmul.f32 %v3106, %v3128
  %v3143 = vmul.f32 %v3107, %v3128
  %v3144 = vmul.f32 %v3108, %v3128
  %v3145 = vmul.f32 %v3109, %v3128
  %3146 = vrot.lane.b32.xlu0 %v2935, 16
  %v3147 = vpop.permute.xlu0 %3146
  %3148 = vrot.lane.b32.xlu0 %v2941, 16
  %v3149 = vpop.permute.xlu0 %3148
  %3150 = vrot.lane.b32.xlu0 %v2947, 16
  %v3151 = vpop.permute.xlu0 %3150
  %3152 = vrot.lane.b32.xlu0 %v2953, 16
  %v3153 = vpop.permute.xlu0 %3152
  %3154 = vrot.lane.b32.xlu0 %v2937, 16
  %v3155 = vpop.permute.xlu0 %3154
  %3156 = vrot.lane.b32.xlu0 %v2943, 16
  %v3157 = vpop.permute.xlu0 %3156
  %3158 = vrot.lane.b32.xlu0 %v2949, 16
  %v3159 = vpop.permute.xlu0 %3158
  %3160 = vrot.lane.b32.xlu0 %v2955, 16
  %v3161 = vpop.permute.xlu0 %3160
  %3162 = vrot.lane.b32.xlu0 %v3024, 16
  %v3163 = vpop.permute.xlu0 %3162
  %3164 = vrot.lane.b32.xlu0 %v3030, 16
  %v3165 = vpop.permute.xlu0 %3164
  %3166 = vrot.lane.b32.xlu0 %v3036, 16
  %v3167 = vpop.permute.xlu0 %3166
  %3168 = vrot.lane.b32.xlu0 %v3042, 16
  %v3169 = vpop.permute.xlu0 %3168
  %3170 = vrot.lane.b32.xlu0 %v3026, 16
  %v3171 = vpop.permute.xlu0 %3170
  %3172 = vrot.lane.b32.xlu0 %v3032, 16
  %v3173 = vpop.permute.xlu0 %3172
  %3174 = vrot.lane.b32.xlu0 %v3038, 16
  %v3175 = vpop.permute.xlu0 %3174
  %3176 = vrot.lane.b32.xlu0 %v3044, 16
  %v3177 = vpop.permute.xlu0 %3176
  %v3178 = vsel %vm620, %v3163, %v3171
  %v3179 = vsel %vm620, %v3165, %v3173
  %v3180 = vsel %vm620, %v3167, %v3175
  %v3181 = vsel %vm620, %v3169, %v3177
  %v3182 = vsel %vm620, %v3155, %v3163
  %v3183 = vsel %vm620, %v3157, %v3165
  %v3184 = vsel %vm620, %v3159, %v3167
  %v3185 = vsel %vm620, %v3161, %v3169
  %v3186 = vsel %vm620, %v3147, %v3155
  %v3187 = vsel %vm620, %v3149, %v3157
  %v3188 = vsel %vm620, %v3151, %v3159
  %v3189 = vsel %vm620, %v3153, %v3161
  %v3190 = vsel %vm620, %v3171, %v3147
  %v3191 = vsel %vm620, %v3173, %v3149
  %v3192 = vsel %vm620, %v3175, %v3151
  %v3193 = vsel %vm620, %v3177, %v3153
  %v3194 = vmul.f32 %v3190, %v629
  %v3195 = vmul.f32 %v3186, %v630
  %v3196 = vmul.f32 %v3182, %v631
  %v3197 = vmul.f32 %v3178, %v632
  %v3198 = vmul.f32 %v3191, %v629
  %v3199 = vmul.f32 %v3187, %v630
  %v3200 = vmul.f32 %v3183, %v631
  %v3201 = vmul.f32 %v3179, %v632
  %v3202 = vmul.f32 %v3192, %v629
  %v3203 = vmul.f32 %v3188, %v630
  %v3204 = vmul.f32 %v3184, %v631
  %v3205 = vmul.f32 %v3180, %v632
  %v3206 = vmul.f32 %v3193, %v629
  %v3207 = vmul.f32 %v3189, %v630
  %v3208 = vmul.f32 %v3185, %v631
  %v3209 = vmul.f32 %v3181, %v632
  %3210 = vset.pattern.permute.xlu0 1
  %3211 = vperm.xlu0 %3210, %v2392
  %v3212 = vpop.permute.xlu0 %3211
  %3214 = vset.pattern.permute.xlu0 1
  %3215 = vperm.xlu0 %3214, %v2393
  %v3216 = vpop.permute.xlu0 %3215
  %3218 = vset.pattern.permute.xlu0 1
  %3219 = vperm.xlu0 %3218, %v2394
  %v3220 = vpop.permute.xlu0 %3219
  %3222 = vset.pattern.permute.xlu0 1
  %3223 = vperm.xlu0 %3222, %v2395
  %v3224 = vpop.permute.xlu0 %3223
  %v3226 = vmul.f32 %v3194, %v3212
  %v3227 = vmul.f32 %v3195, %v3212
  %v3228 = vmul.f32 %v3196, %v3212
  %v3229 = vmul.f32 %v3197, %v3212
  %v3230 = vmul.f32 %v3198, %v3216
  %v3231 = vmul.f32 %v3199, %v3216
  %v3232 = vmul.f32 %v3200, %v3216
  %v3233 = vmul.f32 %v3201, %v3216
  %v3234 = vmul.f32 %v3202, %v3220
  %v3235 = vmul.f32 %v3203, %v3220
  %v3236 = vmul.f32 %v3204, %v3220
  %v3237 = vmul.f32 %v3205, %v3220
  %v3238 = vmul.f32 %v3206, %v3224
  %v3239 = vmul.f32 %v3207, %v3224
  %v3240 = vmul.f32 %v3208, %v3224
  %v3241 = vmul.f32 %v3209, %v3224
  %v3242 = vadd.f32 %v3130, %v3226
  %v3243 = vadd.f32 %v3131, %v3227
  %v3244 = vadd.f32 %v3132, %v3228
  %v3245 = vadd.f32 %v3133, %v3229
  %v3246 = vadd.f32 %v3134, %v3230
  %v3247 = vadd.f32 %v3135, %v3231
  %v3248 = vadd.f32 %v3136, %v3232
  %v3249 = vadd.f32 %v3137, %v3233
  %v3250 = vadd.f32 %v3138, %v3234
  %v3251 = vadd.f32 %v3139, %v3235
  %v3252 = vadd.f32 %v3140, %v3236
  %v3253 = vadd.f32 %v3141, %v3237
  %v3254 = vadd.f32 %v3142, %v3238
  %v3255 = vadd.f32 %v3143, %v3239
  %v3256 = vadd.f32 %v3144, %v3240
  %v3257 = vadd.f32 %v3145, %v3241
  %3258 = vrot.lane.b32.xlu0 %v2935, 15
  %v3259 = vpop.permute.xlu0 %3258
  %3260 = vrot.lane.b32.xlu0 %v2941, 15
  %v3261 = vpop.permute.xlu0 %3260
  %3262 = vrot.lane.b32.xlu0 %v2947, 15
  %v3263 = vpop.permute.xlu0 %3262
  %3264 = vrot.lane.b32.xlu0 %v2953, 15
  %v3265 = vpop.permute.xlu0 %3264
  %3266 = vrot.lane.b32.xlu0 %v2937, 15
  %v3267 = vpop.permute.xlu0 %3266
  %3268 = vrot.lane.b32.xlu0 %v2943, 15
  %v3269 = vpop.permute.xlu0 %3268
  %3270 = vrot.lane.b32.xlu0 %v2949, 15
  %v3271 = vpop.permute.xlu0 %3270
  %3272 = vrot.lane.b32.xlu0 %v2955, 15
  %v3273 = vpop.permute.xlu0 %3272
  %3274 = vrot.lane.b32.xlu0 %v3024, 15
  %v3275 = vpop.permute.xlu0 %3274
  %3276 = vrot.lane.b32.xlu0 %v3030, 15
  %v3277 = vpop.permute.xlu0 %3276
  %3278 = vrot.lane.b32.xlu0 %v3036, 15
  %v3279 = vpop.permute.xlu0 %3278
  %3280 = vrot.lane.b32.xlu0 %v3042, 15
  %v3281 = vpop.permute.xlu0 %3280
  %3282 = vrot.lane.b32.xlu0 %v3026, 15
  %v3283 = vpop.permute.xlu0 %3282
  %3284 = vrot.lane.b32.xlu0 %v3032, 15
  %v3285 = vpop.permute.xlu0 %3284
  %3286 = vrot.lane.b32.xlu0 %v3038, 15
  %v3287 = vpop.permute.xlu0 %3286
  %3288 = vrot.lane.b32.xlu0 %v3044, 15
  %v3289 = vpop.permute.xlu0 %3288
  %v3290 = vsel %vm969, %v3275, %v3283
  %v3291 = vsel %vm969, %v3277, %v3285
  %v3292 = vsel %vm969, %v3279, %v3287
  %v3293 = vsel %vm969, %v3281, %v3289
  %v3294 = vsel %vm969, %v3267, %v3275
  %v3295 = vsel %vm969, %v3269, %v3277
  %v3296 = vsel %vm969, %v3271, %v3279
  %v3297 = vsel %vm969, %v3273, %v3281
  %v3298 = vsel %vm969, %v3259, %v3267
  %v3299 = vsel %vm969, %v3261, %v3269
  %v3300 = vsel %vm969, %v3263, %v3271
  %v3301 = vsel %vm969, %v3265, %v3273
  %v3302 = vsel %vm969, %v3283, %v3259
  %v3303 = vsel %vm969, %v3285, %v3261
  %v3304 = vsel %vm969, %v3287, %v3263
  %v3305 = vsel %vm969, %v3289, %v3265
  %v3306 = vmul.f32 %v3302, %v986
  %v3307 = vmul.f32 %v3298, %v987
  %v3308 = vmul.f32 %v3294, %v988
  %v3309 = vmul.f32 %v3290, %v989
  %v3310 = vmul.f32 %v3303, %v986
  %v3311 = vmul.f32 %v3299, %v987
  %v3312 = vmul.f32 %v3295, %v988
  %v3313 = vmul.f32 %v3291, %v989
  %v3314 = vmul.f32 %v3304, %v986
  %v3315 = vmul.f32 %v3300, %v987
  %v3316 = vmul.f32 %v3296, %v988
  %v3317 = vmul.f32 %v3292, %v989
  %v3318 = vmul.f32 %v3305, %v986
  %v3319 = vmul.f32 %v3301, %v987
  %v3320 = vmul.f32 %v3297, %v988
  %v3321 = vmul.f32 %v3293, %v989
  %3322 = vset.pattern.permute.xlu0 2
  %3323 = vperm.xlu0 %3322, %v2392
  %v3324 = vpop.permute.xlu0 %3323
  %3326 = vset.pattern.permute.xlu0 2
  %3327 = vperm.xlu0 %3326, %v2393
  %v3328 = vpop.permute.xlu0 %3327
  %3330 = vset.pattern.permute.xlu0 2
  %3331 = vperm.xlu0 %3330, %v2394
  %v3332 = vpop.permute.xlu0 %3331
  %3334 = vset.pattern.permute.xlu0 2
  %3335 = vperm.xlu0 %3334, %v2395
  %v3336 = vpop.permute.xlu0 %3335
  %v3338 = vmul.f32 %v3306, %v3324
  %v3339 = vmul.f32 %v3307, %v3324
  %v3340 = vmul.f32 %v3308, %v3324
  %v3341 = vmul.f32 %v3309, %v3324
  %v3342 = vmul.f32 %v3310, %v3328
  %v3343 = vmul.f32 %v3311, %v3328
  %v3344 = vmul.f32 %v3312, %v3328
  %v3345 = vmul.f32 %v3313, %v3328
  %v3346 = vmul.f32 %v3314, %v3332
  %v3347 = vmul.f32 %v3315, %v3332
  %v3348 = vmul.f32 %v3316, %v3332
  %v3349 = vmul.f32 %v3317, %v3332
  %v3350 = vmul.f32 %v3318, %v3336
  %v3351 = vmul.f32 %v3319, %v3336
  %v3352 = vmul.f32 %v3320, %v3336
  %v3353 = vmul.f32 %v3321, %v3336
  %v3354 = vadd.f32 %v3242, %v3338
  %v3355 = vadd.f32 %v3243, %v3339
  %v3356 = vadd.f32 %v3244, %v3340
  %v3357 = vadd.f32 %v3245, %v3341
  %v3358 = vadd.f32 %v3246, %v3342
  %v3359 = vadd.f32 %v3247, %v3343
  %v3360 = vadd.f32 %v3248, %v3344
  %v3361 = vadd.f32 %v3249, %v3345
  %v3362 = vadd.f32 %v3250, %v3346
  %v3363 = vadd.f32 %v3251, %v3347
  %v3364 = vadd.f32 %v3252, %v3348
  %v3365 = vadd.f32 %v3253, %v3349
  %v3366 = vadd.f32 %v3254, %v3350
  %v3367 = vadd.f32 %v3255, %v3351
  %v3368 = vadd.f32 %v3256, %v3352
  %v3369 = vadd.f32 %v3257, %v3353
  %3370 = vrot.lane.b32.xlu0 %v2935, 1
  %v3371 = vpop.permute.xlu0 %3370
  %3372 = vrot.lane.b32.xlu0 %v2941, 1
  %v3373 = vpop.permute.xlu0 %3372
  %3374 = vrot.lane.b32.xlu0 %v2947, 1
  %v3375 = vpop.permute.xlu0 %3374
  %3376 = vrot.lane.b32.xlu0 %v2953, 1
  %v3377 = vpop.permute.xlu0 %3376
  %3378 = vrot.lane.b32.xlu0 %v2937, 1
  %v3379 = vpop.permute.xlu0 %3378
  %3380 = vrot.lane.b32.xlu0 %v2943, 1
  %v3381 = vpop.permute.xlu0 %3380
  %3382 = vrot.lane.b32.xlu0 %v2949, 1
  %v3383 = vpop.permute.xlu0 %3382
  %3384 = vrot.lane.b32.xlu0 %v2955, 1
  %v3385 = vpop.permute.xlu0 %3384
  %3386 = vrot.lane.b32.xlu0 %v3024, 1
  %v3387 = vpop.permute.xlu0 %3386
  %3388 = vrot.lane.b32.xlu0 %v3030, 1
  %v3389 = vpop.permute.xlu0 %3388
  %3390 = vrot.lane.b32.xlu0 %v3036, 1
  %v3391 = vpop.permute.xlu0 %3390
  %3392 = vrot.lane.b32.xlu0 %v3042, 1
  %v3393 = vpop.permute.xlu0 %3392
  %3394 = vrot.lane.b32.xlu0 %v3026, 1
  %v3395 = vpop.permute.xlu0 %3394
  %3396 = vrot.lane.b32.xlu0 %v3032, 1
  %v3397 = vpop.permute.xlu0 %3396
  %3398 = vrot.lane.b32.xlu0 %v3038, 1
  %v3399 = vpop.permute.xlu0 %3398
  %3400 = vrot.lane.b32.xlu0 %v3044, 1
  %v3401 = vpop.permute.xlu0 %3400
  %v3402 = vsel %vm1173, %v3387, %v3395
  %v3403 = vsel %vm1173, %v3389, %v3397
  %v3404 = vsel %vm1173, %v3391, %v3399
  %v3405 = vsel %vm1173, %v3393, %v3401
  %v3406 = vsel %vm1173, %v3379, %v3387
  %v3407 = vsel %vm1173, %v3381, %v3389
  %v3408 = vsel %vm1173, %v3383, %v3391
  %v3409 = vsel %vm1173, %v3385, %v3393
  %v3410 = vsel %vm1173, %v3371, %v3379
  %v3411 = vsel %vm1173, %v3373, %v3381
  %v3412 = vsel %vm1173, %v3375, %v3383
  %v3413 = vsel %vm1173, %v3377, %v3385
  %v3414 = vsel %vm1173, %v3395, %v3371
  %v3415 = vsel %vm1173, %v3397, %v3373
  %v3416 = vsel %vm1173, %v3399, %v3375
  %v3417 = vsel %vm1173, %v3401, %v3377
  %v3418 = vmul.f32 %v3414, %v1194
  %v3419 = vmul.f32 %v3410, %v1195
  %v3420 = vmul.f32 %v3406, %v1196
  %v3421 = vmul.f32 %v3402, %v1197
  %v3422 = vmul.f32 %v3415, %v1194
  %v3423 = vmul.f32 %v3411, %v1195
  %v3424 = vmul.f32 %v3407, %v1196
  %v3425 = vmul.f32 %v3403, %v1197
  %v3426 = vmul.f32 %v3416, %v1194
  %v3427 = vmul.f32 %v3412, %v1195
  %v3428 = vmul.f32 %v3408, %v1196
  %v3429 = vmul.f32 %v3404, %v1197
  %v3430 = vmul.f32 %v3417, %v1194
  %v3431 = vmul.f32 %v3413, %v1195
  %v3432 = vmul.f32 %v3409, %v1196
  %v3433 = vmul.f32 %v3405, %v1197
  %3434 = vset.pattern.permute.xlu0 3
  %3435 = vperm.xlu0 %3434, %v2392
  %v3436 = vpop.permute.xlu0 %3435
  %3438 = vset.pattern.permute.xlu0 3
  %3439 = vperm.xlu0 %3438, %v2393
  %v3440 = vpop.permute.xlu0 %3439
  %3442 = vset.pattern.permute.xlu0 3
  %3443 = vperm.xlu0 %3442, %v2394
  %v3444 = vpop.permute.xlu0 %3443
  %3446 = vset.pattern.permute.xlu0 3
  %3447 = vperm.xlu0 %3446, %v2395
  %v3448 = vpop.permute.xlu0 %3447
  %v3450 = vmul.f32 %v3418, %v3436
  %v3451 = vmul.f32 %v3419, %v3436
  %v3452 = vmul.f32 %v3420, %v3436
  %v3453 = vmul.f32 %v3421, %v3436
  %v3454 = vmul.f32 %v3422, %v3440
  %v3455 = vmul.f32 %v3423, %v3440
  %v3456 = vmul.f32 %v3424, %v3440
  %v3457 = vmul.f32 %v3425, %v3440
  %v3458 = vmul.f32 %v3426, %v3444
  %v3459 = vmul.f32 %v3427, %v3444
  %v3460 = vmul.f32 %v3428, %v3444
  %v3461 = vmul.f32 %v3429, %v3444
  %v3462 = vmul.f32 %v3430, %v3448
  %v3463 = vmul.f32 %v3431, %v3448
  %v3464 = vmul.f32 %v3432, %v3448
  %v3465 = vmul.f32 %v3433, %v3448
  %v3466 = vadd.f32 %v3354, %v3450
  %v3467 = vadd.f32 %v3355, %v3451
  %v3468 = vadd.f32 %v3356, %v3452
  %v3469 = vadd.f32 %v3357, %v3453
  %v3470 = vadd.f32 %v3358, %v3454
  %v3471 = vadd.f32 %v3359, %v3455
  %v3472 = vadd.f32 %v3360, %v3456
  %v3473 = vadd.f32 %v3361, %v3457
  %v3474 = vadd.f32 %v3362, %v3458
  %v3475 = vadd.f32 %v3363, %v3459
  %v3476 = vadd.f32 %v3364, %v3460
  %v3477 = vadd.f32 %v3365, %v3461
  %v3478 = vadd.f32 %v3366, %v3462
  %v3479 = vadd.f32 %v3367, %v3463
  %v3480 = vadd.f32 %v3368, %v3464
  %v3481 = vadd.f32 %v3369, %v3465
  %v3482 = vmul.f32 %v2935, %v1377
  %v3483 = vmul.f32 %v2937, %v1378
  %v3484 = vmul.f32 %v3024, %v1379
  %v3485 = vmul.f32 %v3026, %v1380
  %v3486 = vmul.f32 %v2941, %v1377
  %v3487 = vmul.f32 %v2943, %v1378
  %v3488 = vmul.f32 %v3030, %v1379
  %v3489 = vmul.f32 %v3032, %v1380
  %v3490 = vmul.f32 %v2947, %v1377
  %v3491 = vmul.f32 %v2949, %v1378
  %v3492 = vmul.f32 %v3036, %v1379
  %v3493 = vmul.f32 %v3038, %v1380
  %v3494 = vmul.f32 %v2953, %v1377
  %v3495 = vmul.f32 %v2955, %v1378
  %v3496 = vmul.f32 %v3042, %v1379
  %v3497 = vmul.f32 %v3044, %v1380
  %3498 = vset.pattern.permute.xlu0 4
  %3499 = vperm.xlu0 %3498, %v2392
  %v3500 = vpop.permute.xlu0 %3499
  %3502 = vset.pattern.permute.xlu0 4
  %3503 = vperm.xlu0 %3502, %v2393
  %v3504 = vpop.permute.xlu0 %3503
  %3506 = vset.pattern.permute.xlu0 4
  %3507 = vperm.xlu0 %3506, %v2394
  %v3508 = vpop.permute.xlu0 %3507
  %3510 = vset.pattern.permute.xlu0 4
  %3511 = vperm.xlu0 %3510, %v2395
  %v3512 = vpop.permute.xlu0 %3511
  %v3514 = vmul.f32 %v3482, %v3500
  %v3515 = vmul.f32 %v3483, %v3500
  %v3516 = vmul.f32 %v3484, %v3500
  %v3517 = vmul.f32 %v3485, %v3500
  %v3518 = vmul.f32 %v3486, %v3504
  %v3519 = vmul.f32 %v3487, %v3504
  %v3520 = vmul.f32 %v3488, %v3504
  %v3521 = vmul.f32 %v3489, %v3504
  %v3522 = vmul.f32 %v3490, %v3508
  %v3523 = vmul.f32 %v3491, %v3508
  %v3524 = vmul.f32 %v3492, %v3508
  %v3525 = vmul.f32 %v3493, %v3508
  %v3526 = vmul.f32 %v3494, %v3512
  %v3527 = vmul.f32 %v3495, %v3512
  %v3528 = vmul.f32 %v3496, %v3512
  %v3529 = vmul.f32 %v3497, %v3512
  %v3530 = vadd.f32 %v3466, %v3514
  %v3531 = vadd.f32 %v3467, %v3515
  %v3532 = vadd.f32 %v3468, %v3516
  %v3533 = vadd.f32 %v3469, %v3517
  %v3534 = vadd.f32 %v3470, %v3518
  %v3535 = vadd.f32 %v3471, %v3519
  %v3536 = vadd.f32 %v3472, %v3520
  %v3537 = vadd.f32 %v3473, %v3521
  %v3538 = vadd.f32 %v3474, %v3522
  %v3539 = vadd.f32 %v3475, %v3523
  %v3540 = vadd.f32 %v3476, %v3524
  %v3541 = vadd.f32 %v3477, %v3525
  %v3542 = vadd.f32 %v3478, %v3526
  %v3543 = vadd.f32 %v3479, %v3527
  %v3544 = vadd.f32 %v3480, %v3528
  %v3545 = vadd.f32 %v3481, %v3529
  %3546 = vrot.lane.b32.xlu0 %v2935, 127
  %v3547 = vpop.permute.xlu0 %3546
  %3548 = vrot.lane.b32.xlu0 %v2941, 127
  %v3549 = vpop.permute.xlu0 %3548
  %3550 = vrot.lane.b32.xlu0 %v2947, 127
  %v3551 = vpop.permute.xlu0 %3550
  %3552 = vrot.lane.b32.xlu0 %v2953, 127
  %v3553 = vpop.permute.xlu0 %3552
  %3554 = vrot.lane.b32.xlu0 %v2937, 127
  %v3555 = vpop.permute.xlu0 %3554
  %3556 = vrot.lane.b32.xlu0 %v2943, 127
  %v3557 = vpop.permute.xlu0 %3556
  %3558 = vrot.lane.b32.xlu0 %v2949, 127
  %v3559 = vpop.permute.xlu0 %3558
  %3560 = vrot.lane.b32.xlu0 %v2955, 127
  %v3561 = vpop.permute.xlu0 %3560
  %3562 = vrot.lane.b32.xlu0 %v3024, 127
  %v3563 = vpop.permute.xlu0 %3562
  %3564 = vrot.lane.b32.xlu0 %v3030, 127
  %v3565 = vpop.permute.xlu0 %3564
  %3566 = vrot.lane.b32.xlu0 %v3036, 127
  %v3567 = vpop.permute.xlu0 %3566
  %3568 = vrot.lane.b32.xlu0 %v3042, 127
  %v3569 = vpop.permute.xlu0 %3568
  %3570 = vrot.lane.b32.xlu0 %v3026, 127
  %v3571 = vpop.permute.xlu0 %3570
  %3572 = vrot.lane.b32.xlu0 %v3032, 127
  %v3573 = vpop.permute.xlu0 %3572
  %3574 = vrot.lane.b32.xlu0 %v3038, 127
  %v3575 = vpop.permute.xlu0 %3574
  %3576 = vrot.lane.b32.xlu0 %v3044, 127
  %v3577 = vpop.permute.xlu0 %3576
  %v3578 = vsel %vm1564, %v3563, %v3571
  %v3579 = vsel %vm1564, %v3565, %v3573
  %v3580 = vsel %vm1564, %v3567, %v3575
  %v3581 = vsel %vm1564, %v3569, %v3577
  %v3582 = vsel %vm1564, %v3555, %v3563
  %v3583 = vsel %vm1564, %v3557, %v3565
  %v3584 = vsel %vm1564, %v3559, %v3567
  %v3585 = vsel %vm1564, %v3561, %v3569
  %v3586 = vsel %vm1564, %v3547, %v3555
  %v3587 = vsel %vm1564, %v3549, %v3557
  %v3588 = vsel %vm1564, %v3551, %v3559
  %v3589 = vsel %vm1564, %v3553, %v3561
  %v3590 = vsel %vm1564, %v3571, %v3547
  %v3591 = vsel %vm1564, %v3573, %v3549
  %v3592 = vsel %vm1564, %v3575, %v3551
  %v3593 = vsel %vm1564, %v3577, %v3553
  %v3594 = vmul.f32 %v3586, %v1577
  %v3595 = vmul.f32 %v3582, %v1578
  %v3596 = vmul.f32 %v3578, %v1579
  %v3597 = vmul.f32 %v3590, %v1580
  %v3598 = vmul.f32 %v3587, %v1577
  %v3599 = vmul.f32 %v3583, %v1578
  %v3600 = vmul.f32 %v3579, %v1579
  %v3601 = vmul.f32 %v3591, %v1580
  %v3602 = vmul.f32 %v3588, %v1577
  %v3603 = vmul.f32 %v3584, %v1578
  %v3604 = vmul.f32 %v3580, %v1579
  %v3605 = vmul.f32 %v3592, %v1580
  %v3606 = vmul.f32 %v3589, %v1577
  %v3607 = vmul.f32 %v3585, %v1578
  %v3608 = vmul.f32 %v3581, %v1579
  %v3609 = vmul.f32 %v3593, %v1580
  %3610 = vset.pattern.permute.xlu0 5
  %3611 = vperm.xlu0 %3610, %v2392
  %v3612 = vpop.permute.xlu0 %3611
  %3614 = vset.pattern.permute.xlu0 5
  %3615 = vperm.xlu0 %3614, %v2393
  %v3616 = vpop.permute.xlu0 %3615
  %3618 = vset.pattern.permute.xlu0 5
  %3619 = vperm.xlu0 %3618, %v2394
  %v3620 = vpop.permute.xlu0 %3619
  %3622 = vset.pattern.permute.xlu0 5
  %3623 = vperm.xlu0 %3622, %v2395
  %v3624 = vpop.permute.xlu0 %3623
  %v3626 = vmul.f32 %v3594, %v3612
  %v3627 = vmul.f32 %v3595, %v3612
  %v3628 = vmul.f32 %v3596, %v3612
  %v3629 = vmul.f32 %v3597, %v3612
  %v3630 = vmul.f32 %v3598, %v3616
  %v3631 = vmul.f32 %v3599, %v3616
  %v3632 = vmul.f32 %v3600, %v3616
  %v3633 = vmul.f32 %v3601, %v3616
  %v3634 = vmul.f32 %v3602, %v3620
  %v3635 = vmul.f32 %v3603, %v3620
  %v3636 = vmul.f32 %v3604, %v3620
  %v3637 = vmul.f32 %v3605, %v3620
  %v3638 = vmul.f32 %v3606, %v3624
  %v3639 = vmul.f32 %v3607, %v3624
  %v3640 = vmul.f32 %v3608, %v3624
  %v3641 = vmul.f32 %v3609, %v3624
  %v3642 = vadd.f32 %v3530, %v3626
  %v3643 = vadd.f32 %v3531, %v3627
  %v3644 = vadd.f32 %v3532, %v3628
  %v3645 = vadd.f32 %v3533, %v3629
  %v3646 = vadd.f32 %v3534, %v3630
  %v3647 = vadd.f32 %v3535, %v3631
  %v3648 = vadd.f32 %v3536, %v3632
  %v3649 = vadd.f32 %v3537, %v3633
  %v3650 = vadd.f32 %v3538, %v3634
  %v3651 = vadd.f32 %v3539, %v3635
  %v3652 = vadd.f32 %v3540, %v3636
  %v3653 = vadd.f32 %v3541, %v3637
  %v3654 = vadd.f32 %v3542, %v3638
  %v3655 = vadd.f32 %v3543, %v3639
  %v3656 = vadd.f32 %v3544, %v3640
  %v3657 = vadd.f32 %v3545, %v3641
  %3658 = vrot.lane.b32.xlu0 %v2935, 113
  %v3659 = vpop.permute.xlu0 %3658
  %3660 = vrot.lane.b32.xlu0 %v2941, 113
  %v3661 = vpop.permute.xlu0 %3660
  %3662 = vrot.lane.b32.xlu0 %v2947, 113
  %v3663 = vpop.permute.xlu0 %3662
  %3664 = vrot.lane.b32.xlu0 %v2953, 113
  %v3665 = vpop.permute.xlu0 %3664
  %3666 = vrot.lane.b32.xlu0 %v2937, 113
  %v3667 = vpop.permute.xlu0 %3666
  %3668 = vrot.lane.b32.xlu0 %v2943, 113
  %v3669 = vpop.permute.xlu0 %3668
  %3670 = vrot.lane.b32.xlu0 %v2949, 113
  %v3671 = vpop.permute.xlu0 %3670
  %3672 = vrot.lane.b32.xlu0 %v2955, 113
  %v3673 = vpop.permute.xlu0 %3672
  %3674 = vrot.lane.b32.xlu0 %v3024, 113
  %v3675 = vpop.permute.xlu0 %3674
  %3676 = vrot.lane.b32.xlu0 %v3030, 113
  %v3677 = vpop.permute.xlu0 %3676
  %3678 = vrot.lane.b32.xlu0 %v3036, 113
  %v3679 = vpop.permute.xlu0 %3678
  %3680 = vrot.lane.b32.xlu0 %v3042, 113
  %v3681 = vpop.permute.xlu0 %3680
  %3682 = vrot.lane.b32.xlu0 %v3026, 113
  %v3683 = vpop.permute.xlu0 %3682
  %3684 = vrot.lane.b32.xlu0 %v3032, 113
  %v3685 = vpop.permute.xlu0 %3684
  %3686 = vrot.lane.b32.xlu0 %v3038, 113
  %v3687 = vpop.permute.xlu0 %3686
  %3688 = vrot.lane.b32.xlu0 %v3044, 113
  %v3689 = vpop.permute.xlu0 %3688
  %v3690 = vsel %vm1764, %v3675, %v3683
  %v3691 = vsel %vm1764, %v3677, %v3685
  %v3692 = vsel %vm1764, %v3679, %v3687
  %v3693 = vsel %vm1764, %v3681, %v3689
  %v3694 = vsel %vm1764, %v3667, %v3675
  %v3695 = vsel %vm1764, %v3669, %v3677
  %v3696 = vsel %vm1764, %v3671, %v3679
  %v3697 = vsel %vm1764, %v3673, %v3681
  %v3698 = vsel %vm1764, %v3659, %v3667
  %v3699 = vsel %vm1764, %v3661, %v3669
  %v3700 = vsel %vm1764, %v3663, %v3671
  %v3701 = vsel %vm1764, %v3665, %v3673
  %v3702 = vsel %vm1764, %v3683, %v3659
  %v3703 = vsel %vm1764, %v3685, %v3661
  %v3704 = vsel %vm1764, %v3687, %v3663
  %v3705 = vsel %vm1764, %v3689, %v3665
  %v3706 = vmul.f32 %v3698, %v1785
  %v3707 = vmul.f32 %v3694, %v1786
  %v3708 = vmul.f32 %v3690, %v1787
  %v3709 = vmul.f32 %v3702, %v1788
  %v3710 = vmul.f32 %v3699, %v1785
  %v3711 = vmul.f32 %v3695, %v1786
  %v3712 = vmul.f32 %v3691, %v1787
  %v3713 = vmul.f32 %v3703, %v1788
  %v3714 = vmul.f32 %v3700, %v1785
  %v3715 = vmul.f32 %v3696, %v1786
  %v3716 = vmul.f32 %v3692, %v1787
  %v3717 = vmul.f32 %v3704, %v1788
  %v3718 = vmul.f32 %v3701, %v1785
  %v3719 = vmul.f32 %v3697, %v1786
  %v3720 = vmul.f32 %v3693, %v1787
  %v3721 = vmul.f32 %v3705, %v1788
  %3722 = vset.pattern.permute.xlu0 6
  %3723 = vperm.xlu0 %3722, %v2392
  %v3724 = vpop.permute.xlu0 %3723
  %3726 = vset.pattern.permute.xlu0 6
  %3727 = vperm.xlu0 %3726, %v2393
  %v3728 = vpop.permute.xlu0 %3727
  %3730 = vset.pattern.permute.xlu0 6
  %3731 = vperm.xlu0 %3730, %v2394
  %v3732 = vpop.permute.xlu0 %3731
  %3734 = vset.pattern.permute.xlu0 6
  %3735 = vperm.xlu0 %3734, %v2395
  %v3736 = vpop.permute.xlu0 %3735
  %v3738 = vmul.f32 %v3706, %v3724
  %v3739 = vmul.f32 %v3707, %v3724
  %v3740 = vmul.f32 %v3708, %v3724
  %v3741 = vmul.f32 %v3709, %v3724
  %v3742 = vmul.f32 %v3710, %v3728
  %v3743 = vmul.f32 %v3711, %v3728
  %v3744 = vmul.f32 %v3712, %v3728
  %v3745 = vmul.f32 %v3713, %v3728
  %v3746 = vmul.f32 %v3714, %v3732
  %v3747 = vmul.f32 %v3715, %v3732
  %v3748 = vmul.f32 %v3716, %v3732
  %v3749 = vmul.f32 %v3717, %v3732
  %v3750 = vmul.f32 %v3718, %v3736
  %v3751 = vmul.f32 %v3719, %v3736
  %v3752 = vmul.f32 %v3720, %v3736
  %v3753 = vmul.f32 %v3721, %v3736
  %v3754 = vadd.f32 %v3642, %v3738
  %v3755 = vadd.f32 %v3643, %v3739
  %v3756 = vadd.f32 %v3644, %v3740
  %v3757 = vadd.f32 %v3645, %v3741
  %v3758 = vadd.f32 %v3646, %v3742
  %v3759 = vadd.f32 %v3647, %v3743
  %v3760 = vadd.f32 %v3648, %v3744
  %v3761 = vadd.f32 %v3649, %v3745
  %v3762 = vadd.f32 %v3650, %v3746
  %v3763 = vadd.f32 %v3651, %v3747
  %v3764 = vadd.f32 %v3652, %v3748
  %v3765 = vadd.f32 %v3653, %v3749
  %v3766 = vadd.f32 %v3654, %v3750
  %v3767 = vadd.f32 %v3655, %v3751
  %v3768 = vadd.f32 %v3656, %v3752
  %v3769 = vadd.f32 %v3657, %v3753
  %3770 = vrot.lane.b32.xlu0 %v2935, 112
  %v3771 = vpop.permute.xlu0 %3770
  %3772 = vrot.lane.b32.xlu0 %v2941, 112
  %v3773 = vpop.permute.xlu0 %3772
  %3774 = vrot.lane.b32.xlu0 %v2947, 112
  %v3775 = vpop.permute.xlu0 %3774
  %3776 = vrot.lane.b32.xlu0 %v2953, 112
  %v3777 = vpop.permute.xlu0 %3776
  %3778 = vrot.lane.b32.xlu0 %v2937, 112
  %v3779 = vpop.permute.xlu0 %3778
  %3780 = vrot.lane.b32.xlu0 %v2943, 112
  %v3781 = vpop.permute.xlu0 %3780
  %3782 = vrot.lane.b32.xlu0 %v2949, 112
  %v3783 = vpop.permute.xlu0 %3782
  %3784 = vrot.lane.b32.xlu0 %v2955, 112
  %v3785 = vpop.permute.xlu0 %3784
  %3786 = vrot.lane.b32.xlu0 %v3024, 112
  %v3787 = vpop.permute.xlu0 %3786
  %3788 = vrot.lane.b32.xlu0 %v3030, 112
  %v3789 = vpop.permute.xlu0 %3788
  %3790 = vrot.lane.b32.xlu0 %v3036, 112
  %v3791 = vpop.permute.xlu0 %3790
  %3792 = vrot.lane.b32.xlu0 %v3042, 112
  %v3793 = vpop.permute.xlu0 %3792
  %3794 = vrot.lane.b32.xlu0 %v3026, 112
  %v3795 = vpop.permute.xlu0 %3794
  %3796 = vrot.lane.b32.xlu0 %v3032, 112
  %v3797 = vpop.permute.xlu0 %3796
  %3798 = vrot.lane.b32.xlu0 %v3038, 112
  %v3799 = vpop.permute.xlu0 %3798
  %3800 = vrot.lane.b32.xlu0 %v3044, 112
  %v3801 = vpop.permute.xlu0 %3800
  %v3802 = vsel %vm1972, %v3787, %v3795
  %v3803 = vsel %vm1972, %v3789, %v3797
  %v3804 = vsel %vm1972, %v3791, %v3799
  %v3805 = vsel %vm1972, %v3793, %v3801
  %v3806 = vsel %vm1972, %v3779, %v3787
  %v3807 = vsel %vm1972, %v3781, %v3789
  %v3808 = vsel %vm1972, %v3783, %v3791
  %v3809 = vsel %vm1972, %v3785, %v3793
  %v3810 = vsel %vm1972, %v3771, %v3779
  %v3811 = vsel %vm1972, %v3773, %v3781
  %v3812 = vsel %vm1972, %v3775, %v3783
  %v3813 = vsel %vm1972, %v3777, %v3785
  %v3814 = vsel %vm1972, %v3795, %v3771
  %v3815 = vsel %vm1972, %v3797, %v3773
  %v3816 = vsel %vm1972, %v3799, %v3775
  %v3817 = vsel %vm1972, %v3801, %v3777
  %v3818 = vmul.f32 %v3810, %v1981
  %v3819 = vmul.f32 %v3806, %v1982
  %v3820 = vmul.f32 %v3802, %v1983
  %v3821 = vmul.f32 %v3814, %v1984
  %v3822 = vmul.f32 %v3811, %v1981
  %v3823 = vmul.f32 %v3807, %v1982
  %v3824 = vmul.f32 %v3803, %v1983
  %v3825 = vmul.f32 %v3815, %v1984
  %v3826 = vmul.f32 %v3812, %v1981
  %v3827 = vmul.f32 %v3808, %v1982
  %v3828 = vmul.f32 %v3804, %v1983
  %v3829 = vmul.f32 %v3816, %v1984
  %v3830 = vmul.f32 %v3813, %v1981
  %v3831 = vmul.f32 %v3809, %v1982
  %v3832 = vmul.f32 %v3805, %v1983
  %v3833 = vmul.f32 %v3817, %v1984
  %3834 = vset.pattern.permute.xlu0 7
  %3835 = vperm.xlu0 %3834, %v2392
  %v3836 = vpop.permute.xlu0 %3835
  %3838 = vset.pattern.permute.xlu0 7
  %3839 = vperm.xlu0 %3838, %v2393
  %v3840 = vpop.permute.xlu0 %3839
  %3842 = vset.pattern.permute.xlu0 7
  %3843 = vperm.xlu0 %3842, %v2394
  %v3844 = vpop.permute.xlu0 %3843
  %3846 = vset.pattern.permute.xlu0 7
  %3847 = vperm.xlu0 %3846, %v2395
  %v3848 = vpop.permute.xlu0 %3847
  %v3850 = vmul.f32 %v3818, %v3836
  %v3851 = vmul.f32 %v3819, %v3836
  %v3852 = vmul.f32 %v3820, %v3836
  %v3853 = vmul.f32 %v3821, %v3836
  %v3854 = vmul.f32 %v3822, %v3840
  %v3855 = vmul.f32 %v3823, %v3840
  %v3856 = vmul.f32 %v3824, %v3840
  %v3857 = vmul.f32 %v3825, %v3840
  %v3858 = vmul.f32 %v3826, %v3844
  %v3859 = vmul.f32 %v3827, %v3844
  %v3860 = vmul.f32 %v3828, %v3844
  %v3861 = vmul.f32 %v3829, %v3844
  %v3862 = vmul.f32 %v3830, %v3848
  %v3863 = vmul.f32 %v3831, %v3848
  %v3864 = vmul.f32 %v3832, %v3848
  %v3865 = vmul.f32 %v3833, %v3848
  %v3866 = vadd.f32 %v3754, %v3850
  %v3867 = vadd.f32 %v3755, %v3851
  %v3868 = vadd.f32 %v3756, %v3852
  %v3869 = vadd.f32 %v3757, %v3853
  %v3870 = vadd.f32 %v3758, %v3854
  %v3871 = vadd.f32 %v3759, %v3855
  %v3872 = vadd.f32 %v3760, %v3856
  %v3873 = vadd.f32 %v3761, %v3857
  %v3874 = vadd.f32 %v3762, %v3858
  %v3875 = vadd.f32 %v3763, %v3859
  %v3876 = vadd.f32 %v3764, %v3860
  %v3877 = vadd.f32 %v3765, %v3861
  %v3878 = vadd.f32 %v3766, %v3862
  %v3879 = vadd.f32 %v3767, %v3863
  %v3880 = vadd.f32 %v3768, %v3864
  %v3881 = vadd.f32 %v3769, %v3865
  %3882 = vrot.lane.b32.xlu0 %v2935, 111
  %v3883 = vpop.permute.xlu0 %3882
  %3884 = vrot.lane.b32.xlu0 %v2941, 111
  %v3885 = vpop.permute.xlu0 %3884
  %3886 = vrot.lane.b32.xlu0 %v2947, 111
  %v3887 = vpop.permute.xlu0 %3886
  %3888 = vrot.lane.b32.xlu0 %v2953, 111
  %v3889 = vpop.permute.xlu0 %3888
  %3890 = vrot.lane.b32.xlu0 %v2937, 111
  %v3891 = vpop.permute.xlu0 %3890
  %3892 = vrot.lane.b32.xlu0 %v2943, 111
  %v3893 = vpop.permute.xlu0 %3892
  %3894 = vrot.lane.b32.xlu0 %v2949, 111
  %v3895 = vpop.permute.xlu0 %3894
  %3896 = vrot.lane.b32.xlu0 %v2955, 111
  %v3897 = vpop.permute.xlu0 %3896
  %3898 = vrot.lane.b32.xlu0 %v3024, 111
  %v3899 = vpop.permute.xlu0 %3898
  %3900 = vrot.lane.b32.xlu0 %v3030, 111
  %v3901 = vpop.permute.xlu0 %3900
  %3902 = vrot.lane.b32.xlu0 %v3036, 111
  %v3903 = vpop.permute.xlu0 %3902
  %3904 = vrot.lane.b32.xlu0 %v3042, 111
  %v3905 = vpop.permute.xlu0 %3904
  %3906 = vrot.lane.b32.xlu0 %v3026, 111
  %v3907 = vpop.permute.xlu0 %3906
  %3908 = vrot.lane.b32.xlu0 %v3032, 111
  %v3909 = vpop.permute.xlu0 %3908
  %3910 = vrot.lane.b32.xlu0 %v3038, 111
  %v3911 = vpop.permute.xlu0 %3910
  %3912 = vrot.lane.b32.xlu0 %v3044, 111
  %v3913 = vpop.permute.xlu0 %3912
  %v3914 = vsel %vm2168, %v3899, %v3907
  %v3915 = vsel %vm2168, %v3901, %v3909
  %v3916 = vsel %vm2168, %v3903, %v3911
  %v3917 = vsel %vm2168, %v3905, %v3913
  %v3918 = vsel %vm2168, %v3891, %v3899
  %v3919 = vsel %vm2168, %v3893, %v3901
  %v3920 = vsel %vm2168, %v3895, %v3903
  %v3921 = vsel %vm2168, %v3897, %v3905
  %v3922 = vsel %vm2168, %v3883, %v3891
  %v3923 = vsel %vm2168, %v3885, %v3893
  %v3924 = vsel %vm2168, %v3887, %v3895
  %v3925 = vsel %vm2168, %v3889, %v3897
  %v3926 = vsel %vm2168, %v3907, %v3883
  %v3927 = vsel %vm2168, %v3909, %v3885
  %v3928 = vsel %vm2168, %v3911, %v3887
  %v3929 = vsel %vm2168, %v3913, %v3889
  %v3930 = vmul.f32 %v3922, %v2181
  %v3931 = vmul.f32 %v3918, %v2182
  %v3932 = vmul.f32 %v3914, %v2183
  %v3933 = vmul.f32 %v3926, %v2184
  %v3934 = vmul.f32 %v3923, %v2181
  %v3935 = vmul.f32 %v3919, %v2182
  %v3936 = vmul.f32 %v3915, %v2183
  %v3937 = vmul.f32 %v3927, %v2184
  %v3938 = vmul.f32 %v3924, %v2181
  %v3939 = vmul.f32 %v3920, %v2182
  %v3940 = vmul.f32 %v3916, %v2183
  %v3941 = vmul.f32 %v3928, %v2184
  %v3942 = vmul.f32 %v3925, %v2181
  %v3943 = vmul.f32 %v3921, %v2182
  %v3944 = vmul.f32 %v3917, %v2183
  %v3945 = vmul.f32 %v3929, %v2184
  %3946 = vset.pattern.permute.xlu0 8
  %3947 = vperm.xlu0 %3946, %v2392
  %v3948 = vpop.permute.xlu0 %3947
  %3950 = vset.pattern.permute.xlu0 8
  %3951 = vperm.xlu0 %3950, %v2393
  %v3952 = vpop.permute.xlu0 %3951
  %3954 = vset.pattern.permute.xlu0 8
  %3955 = vperm.xlu0 %3954, %v2394
  %v3956 = vpop.permute.xlu0 %3955
  %3958 = vset.pattern.permute.xlu0 8
  %3959 = vperm.xlu0 %3958, %v2395
  %v3960 = vpop.permute.xlu0 %3959
  %v3962 = vmul.f32 %v3930, %v3948
  %v3963 = vmul.f32 %v3931, %v3948
  %v3964 = vmul.f32 %v3932, %v3948
  %v3965 = vmul.f32 %v3933, %v3948
  %v3966 = vmul.f32 %v3934, %v3952
  %v3967 = vmul.f32 %v3935, %v3952
  %v3968 = vmul.f32 %v3936, %v3952
  %v3969 = vmul.f32 %v3937, %v3952
  %v3970 = vmul.f32 %v3938, %v3956
  %v3971 = vmul.f32 %v3939, %v3956
  %v3972 = vmul.f32 %v3940, %v3956
  %v3973 = vmul.f32 %v3941, %v3956
  %v3974 = vmul.f32 %v3942, %v3960
  %v3975 = vmul.f32 %v3943, %v3960
  %v3976 = vmul.f32 %v3944, %v3960
  %v3977 = vmul.f32 %v3945, %v3960
  %v3978 = vadd.f32 %v3866, %v3962
  %v3979 = vadd.f32 %v3867, %v3963
  %v3980 = vadd.f32 %v3868, %v3964
  %v3981 = vadd.f32 %v3869, %v3965
  %v3982 = vadd.f32 %v3870, %v3966
  %v3983 = vadd.f32 %v3871, %v3967
  %v3984 = vadd.f32 %v3872, %v3968
  %v3985 = vadd.f32 %v3873, %v3969
  %v3986 = vadd.f32 %v3874, %v3970
  %v3987 = vadd.f32 %v3875, %v3971
  %v3988 = vadd.f32 %v3876, %v3972
  %v3989 = vadd.f32 %v3877, %v3973
  %v3990 = vadd.f32 %v3878, %v3974
  %v3991 = vadd.f32 %v3879, %v3975
  %v3992 = vadd.f32 %v3880, %v3976
  %v3993 = vadd.f32 %v3881, %v3977
  %3994 = vset.pattern.permute.xlu0 1
  %3995 = vperm.xlu0 %3994, %v2398
  %v3996 = vpop.permute.xlu0 %3995
  %3998 = vset.pattern.permute.xlu0 1
  %3999 = vperm.xlu0 %3998, %v2399
  %v4000 = vpop.permute.xlu0 %3999
  %4002 = vset.pattern.permute.xlu0 1
  %4003 = vperm.xlu0 %4002, %v2400
  %v4004 = vpop.permute.xlu0 %4003
  %4006 = vset.pattern.permute.xlu0 1
  %4007 = vperm.xlu0 %4006, %v2401
  %v4008 = vpop.permute.xlu0 %4007
  %v4010 = vadd.f32 %v3978, %v3996
  %v4011 = vadd.f32 %v3979, %v3996
  %v4012 = vadd.f32 %v3980, %v3996
  %v4013 = vadd.f32 %v3981, %v3996
  %v4014 = vadd.f32 %v3982, %v4000
  %v4015 = vadd.f32 %v3983, %v4000
  %v4016 = vadd.f32 %v3984, %v4000
  %v4017 = vadd.f32 %v3985, %v4000
  %v4018 = vadd.f32 %v3986, %v4004
  %v4019 = vadd.f32 %v3987, %v4004
  %v4020 = vadd.f32 %v3988, %v4004
  %v4021 = vadd.f32 %v3989, %v4004
  %v4022 = vadd.f32 %v3990, %v4008
  %v4023 = vadd.f32 %v3991, %v4008
  %v4024 = vadd.f32 %v3992, %v4008
  %v4025 = vadd.f32 %v3993, %v4008
  %v4026 = vmul.f32 %v4010, %v4018
  %v4027 = vmul.f32 %v4011, %v4019
  %v4028 = vmul.f32 %v4012, %v4020
  %v4029 = vmul.f32 %v4013, %v4021
  %v4030 = vmul.f32 %v4014, %v4022
  %v4031 = vmul.f32 %v4015, %v4023
  %v4032 = vmul.f32 %v4016, %v4024
  %v4033 = vmul.f32 %v4017, %v4025
  %4034 = vmatprep.subr.mxu0 0.0
  %4035 = vmatpush1.msra.mxu0 %v487
  %4036 = vmatprep.subr.mxu0 0.0
  %4037 = vmatpush1.msra.mxu0 %v486
  %4038 = vmatprep.subr.mxu0 0.0
  %4039 = vmatpush1.msra.mxu0 %v485
  %4040 = vmatprep.subr.mxu0 0.0
  %4041 = vmatpush1.msra.mxu0 %v484
  %4042 = vmatprep.subr.mxu0 0.0
  %4043 = vmatpush1.msra.mxu0 %v483
  %4044 = vmatprep.subr.mxu0 0.0
  %4045 = vmatpush1.msra.mxu0 %v482
  %4046 = vmatprep.subr.mxu0 0.0
  %4047 = vmatpush1.msra.mxu0 %v481
  %4048 = vmatprep.subr.mxu0 0.0
  %4049 = vmatpush1.msra.mxu0 %v480
  %4050 = vmatprep.subr.mxu0 0.0
  %4051 = vmatpush1.msra.mxu0 %v479
  %4052 = vmatprep.subr.mxu0 0.0
  %4053 = vmatpush1.msra.mxu0 %v478
  %4054 = vmatprep.subr.mxu0 0.0
  %4055 = vmatpush1.msra.mxu0 %v477
  %4056 = vmatprep.subr.mxu0 0.0
  %4057 = vmatpush1.msra.mxu0 %v476
  %4058 = vmatprep.subr.mxu0 0.0
  %4059 = vmatpush1.msra.mxu0 %v475
  %4060 = vmatprep.subr.mxu0 0.0
  %4061 = vmatpush1.msra.mxu0 %v474
  %4062 = vmatprep.subr.mxu0 0.0
  %4063 = vmatpush1.msra.mxu0 %v473
  %4064 = vmatprep.subr.mxu0 0.0
  %4065 = vmatpush1.msra.mxu0 %v472
  %4066 = vmatprep.subr.mxu0 0.0
  %4067 = vmatpush2.msra.mxu0 %v503
  %4068 = vmatprep.subr.mxu0 0.0
  %4069 = vmatpush2.msra.mxu0 %v502
  %4070 = vmatprep.subr.mxu0 0.0
  %4071 = vmatpush2.msra.mxu0 %v501
  %4072 = vmatprep.subr.mxu0 0.0
  %4073 = vmatpush2.msra.mxu0 %v500
  %4074 = vmatprep.subr.mxu0 0.0
  %4075 = vmatpush2.msra.mxu0 %v499
  %4076 = vmatprep.subr.mxu0 0.0
  %4077 = vmatpush2.msra.mxu0 %v498
  %4078 = vmatprep.subr.mxu0 0.0
  %4079 = vmatpush2.msra.mxu0 %v497
  %4080 = vmatprep.subr.mxu0 0.0
  %4081 = vmatpush2.msra.mxu0 %v496
  %4082 = vmatprep.subr.mxu0 0.0
  %4083 = vmatpush2.msra.mxu0 %v495
  %4084 = vmatprep.subr.mxu0 0.0
  %4085 = vmatpush2.msra.mxu0 %v494
  %4086 = vmatprep.subr.mxu0 0.0
  %4087 = vmatpush2.msra.mxu0 %v493
  %4088 = vmatprep.subr.mxu0 0.0
  %4089 = vmatpush2.msra.mxu0 %v492
  %4090 = vmatprep.subr.mxu0 0.0
  %4091 = vmatpush2.msra.mxu0 %v491
  %4092 = vmatprep.subr.mxu0 0.0
  %4093 = vmatpush2.msra.mxu0 %v490
  %4094 = vmatprep.subr.mxu0 0.0
  %4095 = vmatpush2.msra.mxu0 %v489
  %4096 = vmatprep.subr.mxu0 0.0
  %4097 = vmatpush2.msra.mxu0 %v488
  %4098 = vmatprep.mubr.f32.mxu0 %v4027
  %4099 = vmatmul.mubr.f32.gmra.mxu0 %v4026
  %v4100 = vpop.f32.mrf.mxu0
  %v4101 = vadd.f32 0.0, %v4100
  %v4102 = vpop.f32.mrf.mxu0
  %4103 = vmatprep.mubr.f32.mxu0 %v4031
  %4104 = vmatmul.mubr.f32.gmra.mxu0 %v4030
  %v4105 = vpop.f32.mrf.mxu0
  %v4106 = vadd.f32 0.0, %v4105
  %v4107 = vpop.f32.mrf.mxu0
  %4108 = vdwg.mxu0
  %4109 = vmatprep.subr.mxu0 0.0
  %4110 = vmatpush1.msra.mxu0 %v519
  %4111 = vmatprep.subr.mxu0 0.0
  %4112 = vmatpush1.msra.mxu0 %v518
  %4113 = vmatprep.subr.mxu0 0.0
  %4114 = vmatpush1.msra.mxu0 %v517
  %4115 = vmatprep.subr.mxu0 0.0
  %4116 = vmatpush1.msra.mxu0 %v516
  %4117 = vmatprep.subr.mxu0 0.0
  %4118 = vmatpush1.msra.mxu0 %v515
  %4119 = vmatprep.subr.mxu0 0.0
  %4120 = vmatpush1.msra.mxu0 %v514
  %4121 = vmatprep.subr.mxu0 0.0
  %4122 = vmatpush1.msra.mxu0 %v513
  %4123 = vmatprep.subr.mxu0 0.0
  %4124 = vmatpush1.msra.mxu0 %v512
  %4125 = vmatprep.subr.mxu0 0.0
  %4126 = vmatpush1.msra.mxu0 %v511
  %4127 = vmatprep.subr.mxu0 0.0
  %4128 = vmatpush1.msra.mxu0 %v510
  %4129 = vmatprep.subr.mxu0 0.0
  %4130 = vmatpush1.msra.mxu0 %v509
  %4131 = vmatprep.subr.mxu0 0.0
  %4132 = vmatpush1.msra.mxu0 %v508
  %4133 = vmatprep.subr.mxu0 0.0
  %4134 = vmatpush1.msra.mxu0 %v507
  %4135 = vmatprep.subr.mxu0 0.0
  %4136 = vmatpush1.msra.mxu0 %v506
  %4137 = vmatprep.subr.mxu0 0.0
  %4138 = vmatpush1.msra.mxu0 %v505
  %4139 = vmatprep.subr.mxu0 0.0
  %4140 = vmatpush1.msra.mxu0 %v504
  %4141 = vmatprep.subr.mxu0 0.0
  %4142 = vmatpush2.msra.mxu0 %v535
  %4143 = vmatprep.subr.mxu0 0.0
  %4144 = vmatpush2.msra.mxu0 %v534
  %4145 = vmatprep.subr.mxu0 0.0
  %4146 = vmatpush2.msra.mxu0 %v533
  %4147 = vmatprep.subr.mxu0 0.0
  %4148 = vmatpush2.msra.mxu0 %v532
  %4149 = vmatprep.subr.mxu0 0.0
  %4150 = vmatpush2.msra.mxu0 %v531
  %4151 = vmatprep.subr.mxu0 0.0
  %4152 = vmatpush2.msra.mxu0 %v530
  %4153 = vmatprep.subr.mxu0 0.0
  %4154 = vmatpush2.msra.mxu0 %v529
  %4155 = vmatprep.subr.mxu0 0.0
  %4156 = vmatpush2.msra.mxu0 %v528
  %4157 = vmatprep.subr.mxu0 0.0
  %4158 = vmatpush2.msra.mxu0 %v527
  %4159 = vmatprep.subr.mxu0 0.0
  %4160 = vmatpush2.msra.mxu0 %v526
  %4161 = vmatprep.subr.mxu0 0.0
  %4162 = vmatpush2.msra.mxu0 %v525
  %4163 = vmatprep.subr.mxu0 0.0
  %4164 = vmatpush2.msra.mxu0 %v524
  %4165 = vmatprep.subr.mxu0 0.0
  %4166 = vmatpush2.msra.mxu0 %v523
  %4167 = vmatprep.subr.mxu0 0.0
  %4168 = vmatpush2.msra.mxu0 %v522
  %4169 = vmatprep.subr.mxu0 0.0
  %4170 = vmatpush2.msra.mxu0 %v521
  %4171 = vmatprep.subr.mxu0 0.0
  %4172 = vmatpush2.msra.mxu0 %v520
  %4173 = vmatprep.mubr.f32.mxu0 %v4029
  %4174 = vmatmul.mubr.f32.gmra.mxu0 %v4028
  %v4175 = vpop.f32.mrf.mxu0
  %v4176 = vadd.f32 %v4101, %v4175
  %v4177 = vpop.f32.mrf.mxu0
  %4178 = vmatprep.mubr.f32.mxu0 %v4033
  %4179 = vmatmul.mubr.f32.gmra.mxu0 %v4032
  %v4180 = vpop.f32.mrf.mxu0
  %v4181 = vadd.f32 %v4106, %v4180
  %v4182 = vpop.f32.mrf.mxu0
  %4183 = vdwg.mxu0
  %v4184 = vmul.f32 %v4176, 0.00390625
  %v4185 = vmul.f32 %v4181, 0.00390625
  %4186 = vset.pattern.permute.xlu0 6
  %4187 = vperm.xlu0 %4186, %v2396
  %v4188 = vpop.permute.xlu0 %4187
  %4190 = vset.pattern.permute.xlu0 6
  %4191 = vperm.xlu0 %4190, %v2397
  %v4192 = vpop.permute.xlu0 %4191
  %v4195 = vsel %vm2404, %v2388, 0
  %v4198 = vsel %vm2404, %v2389, 0
  %4200 = vmatprep.subr.mxu0 0.0
  %4201 = vmatpush1.msra.mxu0 0.0
  %4202 = vmatprep.subr.mxu0 0.0
  %4203 = vmatpush1.msra.mxu0 0.0
  %4204 = vmatprep.subr.mxu0 0.0
  %4205 = vmatpush1.msra.mxu0 0.0
  %4206 = vmatprep.subr.mxu0 0.0
  %4207 = vmatpush1.msra.mxu0 0.0
  %4208 = vmatprep.subr.mxu0 0.0
  %4209 = vmatpush1.msra.mxu0 0.0
  %4210 = vmatprep.subr.mxu0 0.0
  %4211 = vmatpush1.msra.mxu0 0.0
  %4212 = vmatprep.subr.mxu0 0.0
  %4213 = vmatpush1.msra.mxu0 0.0
  %4214 = vmatprep.subr.mxu0 0.0
  %4215 = vmatpush1.msra.mxu0 0.0
  %4216 = vmatprep.subr.mxu0 0.0
  %4217 = vmatpush1.msra.mxu0 0.0
  %4218 = vmatprep.subr.mxu0 0.0
  %4219 = vmatpush1.msra.mxu0 0.0
  %4220 = vmatprep.subr.mxu0 0.0
  %4221 = vmatpush1.msra.mxu0 0.0
  %4222 = vmatprep.subr.mxu0 0.0
  %4223 = vmatpush1.msra.mxu0 0.0
  %4224 = vmatprep.subr.mxu0 0.0
  %4225 = vmatpush1.msra.mxu0 0.0
  %4226 = vmatprep.subr.mxu0 0.0
  %4227 = vmatpush1.msra.mxu0 0.0
  %4228 = vmatprep.subr.mxu0 0.0
  %4229 = vmatpush1.msra.mxu0 %v4185
  %4230 = vmatprep.subr.mxu0 0.0
  %4231 = vmatpush1.msra.mxu0 %v4184
  %4232 = vmatprep.subr.mxu0 0.0
  %4233 = vmatpush2.msra.mxu0 0.0
  %4234 = vmatprep.subr.mxu0 0.0
  %4235 = vmatpush2.msra.mxu0 0.0
  %4236 = vmatprep.subr.mxu0 0.0
  %4237 = vmatpush2.msra.mxu0 0.0
  %4238 = vmatprep.subr.mxu0 0.0
  %4239 = vmatpush2.msra.mxu0 0.0
  %4240 = vmatprep.subr.mxu0 0.0
  %4241 = vmatpush2.msra.mxu0 0.0
  %4242 = vmatprep.subr.mxu0 0.0
  %4243 = vmatpush2.msra.mxu0 0.0
  %4244 = vmatprep.subr.mxu0 0.0
  %4245 = vmatpush2.msra.mxu0 0.0
  %4246 = vmatprep.subr.mxu0 0.0
  %4247 = vmatpush2.msra.mxu0 0.0
  %4248 = vmatprep.subr.mxu0 0.0
  %4249 = vmatpush2.msra.mxu0 0.0
  %4250 = vmatprep.subr.mxu0 0.0
  %4251 = vmatpush2.msra.mxu0 0.0
  %4252 = vmatprep.subr.mxu0 0.0
  %4253 = vmatpush2.msra.mxu0 0.0
  %4254 = vmatprep.subr.mxu0 0.0
  %4255 = vmatpush2.msra.mxu0 0.0
  %4256 = vmatprep.subr.mxu0 0.0
  %4257 = vmatpush2.msra.mxu0 0.0
  %4258 = vmatprep.subr.mxu0 0.0
  %4259 = vmatpush2.msra.mxu0 0.0
  %4260 = vmatprep.subr.mxu0 0.0
  %4261 = vmatpush2.msra.mxu0 0.0
  %4262 = vmatprep.subr.mxu0 0.0
  %4263 = vmatpush2.msra.mxu0 0.0
  %4264 = vmatprep.mubr.f32.mxu0 0.0
  %4265 = vmatmul.mubr.f32.gmra.mxu0 %v4195
  %v4266 = vpop.f32.mrf.mxu0
  %v4267 = vadd.f32 %v4188, %v4266
  %v4268 = vpop.f32.mrf.mxu0
  %4269 = vmatprep.mubr.f32.mxu0 0.0
  %4270 = vmatmul.mubr.f32.gmra.mxu0 %v4198
  %v4271 = vpop.f32.mrf.mxu0
  %v4272 = vadd.f32 %v4192, %v4271
  %v4273 = vpop.f32.mrf.mxu0
  %4274 = vdwg.mxu0
  %v4276 = vsel %vm640, %v4267, 0
  %v4279 = vsel %vm640, %v4272, 0
  %4281 = vmatprep.subr.mxu0 0.0
  %4282 = vmatpush1.msra.mxu0 0.0
  %4283 = vmatprep.subr.mxu0 0.0
  %4284 = vmatpush1.msra.mxu0 0.0
  %4285 = vmatprep.subr.mxu0 0.0
  %4286 = vmatpush1.msra.mxu0 0.0
  %4287 = vmatprep.subr.mxu0 0.0
  %4288 = vmatpush1.msra.mxu0 0.0
  %4289 = vmatprep.subr.mxu0 0.0
  %4290 = vmatpush1.msra.mxu0 0.0
  %4291 = vmatprep.subr.mxu0 0.0
  %4292 = vmatpush1.msra.mxu0 0.0
  %4293 = vmatprep.subr.mxu0 0.0
  %4294 = vmatpush1.msra.mxu0 0.0
  %4295 = vmatprep.subr.mxu0 0.0
  %4296 = vmatpush1.msra.mxu0 0.0
  %4297 = vmatprep.subr.mxu0 0.0
  %4298 = vmatpush1.msra.mxu0 0.0
  %4299 = vmatprep.subr.mxu0 0.0
  %4300 = vmatpush1.msra.mxu0 0.0
  %4301 = vmatprep.subr.mxu0 0.0
  %4302 = vmatpush1.msra.mxu0 0.0
  %4303 = vmatprep.subr.mxu0 0.0
  %4304 = vmatpush1.msra.mxu0 0.0
  %4305 = vmatprep.subr.mxu0 0.0
  %4306 = vmatpush1.msra.mxu0 0.0
  %4307 = vmatprep.subr.mxu0 0.0
  %4308 = vmatpush1.msra.mxu0 0.0
  %4309 = vmatprep.subr.mxu0 0.0
  %4310 = vmatpush1.msra.mxu0 0.0
  %4311 = vmatprep.subr.mxu0 %v556
  %4312 = vmatpush1.msra.mxu0 %v555
  %4313 = vmatprep.subr.mxu0 0.0
  %4314 = vmatpush2.msra.mxu0 0.0
  %4315 = vmatprep.subr.mxu0 0.0
  %4316 = vmatpush2.msra.mxu0 0.0
  %4317 = vmatprep.subr.mxu0 0.0
  %4318 = vmatpush2.msra.mxu0 0.0
  %4319 = vmatprep.subr.mxu0 0.0
  %4320 = vmatpush2.msra.mxu0 0.0
  %4321 = vmatprep.subr.mxu0 0.0
  %4322 = vmatpush2.msra.mxu0 0.0
  %4323 = vmatprep.subr.mxu0 0.0
  %4324 = vmatpush2.msra.mxu0 0.0
  %4325 = vmatprep.subr.mxu0 0.0
  %4326 = vmatpush2.msra.mxu0 0.0
  %4327 = vmatprep.subr.mxu0 0.0
  %4328 = vmatpush2.msra.mxu0 0.0
  %4329 = vmatprep.subr.mxu0 0.0
  %4330 = vmatpush2.msra.mxu0 0.0
  %4331 = vmatprep.subr.mxu0 0.0
  %4332 = vmatpush2.msra.mxu0 0.0
  %4333 = vmatprep.subr.mxu0 0.0
  %4334 = vmatpush2.msra.mxu0 0.0
  %4335 = vmatprep.subr.mxu0 0.0
  %4336 = vmatpush2.msra.mxu0 0.0
  %4337 = vmatprep.subr.mxu0 0.0
  %4338 = vmatpush2.msra.mxu0 0.0
  %4339 = vmatprep.subr.mxu0 0.0
  %4340 = vmatpush2.msra.mxu0 0.0
  %4341 = vmatprep.subr.mxu0 0.0
  %4342 = vmatpush2.msra.mxu0 0.0
  %4343 = vmatprep.subr.mxu0 0.0
  %4344 = vmatpush2.msra.mxu0 0.0
  %4345 = vmatprep.mubr.f32.mxu0 0.0
  %4346 = vmatmul.mubr.f32.gmra.mxu0 %v4276
  %v4347 = vpop.f32.mrf.mxu0
  %v4348 = vadd.f32 0.0, %v4347
  %v4349 = vpop.f32.mrf.mxu0
  %v4350 = vadd.f32 0.0, %v4349
  %4351 = vmatprep.mubr.f32.mxu0 0.0
  %4352 = vmatmul.mubr.f32.gmra.mxu0 %v4279
  %v4353 = vpop.f32.mrf.mxu0
  %v4354 = vadd.f32 0.0, %v4353
  %v4355 = vpop.f32.mrf.mxu0
  %v4356 = vadd.f32 0.0, %v4355
  %4357 = vdwg.mxu0
  %4358 = vmatprep.subr.mxu0 0.0
  %4359 = vmatpush1.msra.mxu0 0.0
  %4360 = vmatprep.subr.mxu0 0.0
  %4361 = vmatpush1.msra.mxu0 0.0
  %4362 = vmatprep.subr.mxu0 0.0
  %4363 = vmatpush1.msra.mxu0 0.0
  %4364 = vmatprep.subr.mxu0 0.0
  %4365 = vmatpush1.msra.mxu0 0.0
  %4366 = vmatprep.subr.mxu0 0.0
  %4367 = vmatpush1.msra.mxu0 0.0
  %4368 = vmatprep.subr.mxu0 0.0
  %4369 = vmatpush1.msra.mxu0 0.0
  %4370 = vmatprep.subr.mxu0 0.0
  %4371 = vmatpush1.msra.mxu0 0.0
  %4372 = vmatprep.subr.mxu0 0.0
  %4373 = vmatpush1.msra.mxu0 0.0
  %4374 = vmatprep.subr.mxu0 0.0
  %4375 = vmatpush1.msra.mxu0 0.0
  %4376 = vmatprep.subr.mxu0 0.0
  %4377 = vmatpush1.msra.mxu0 0.0
  %4378 = vmatprep.subr.mxu0 0.0
  %4379 = vmatpush1.msra.mxu0 0.0
  %4380 = vmatprep.subr.mxu0 0.0
  %4381 = vmatpush1.msra.mxu0 0.0
  %4382 = vmatprep.subr.mxu0 0.0
  %4383 = vmatpush1.msra.mxu0 0.0
  %4384 = vmatprep.subr.mxu0 0.0
  %4385 = vmatpush1.msra.mxu0 0.0
  %4386 = vmatprep.subr.mxu0 0.0
  %4387 = vmatpush1.msra.mxu0 0.0
  %4388 = vmatprep.subr.mxu0 %v558
  %4389 = vmatpush1.msra.mxu0 %v557
  %4390 = vmatprep.subr.mxu0 0.0
  %4391 = vmatpush2.msra.mxu0 0.0
  %4392 = vmatprep.subr.mxu0 0.0
  %4393 = vmatpush2.msra.mxu0 0.0
  %4394 = vmatprep.subr.mxu0 0.0
  %4395 = vmatpush2.msra.mxu0 0.0
  %4396 = vmatprep.subr.mxu0 0.0
  %4397 = vmatpush2.msra.mxu0 0.0
  %4398 = vmatprep.subr.mxu0 0.0
  %4399 = vmatpush2.msra.mxu0 0.0
  %4400 = vmatprep.subr.mxu0 0.0
  %4401 = vmatpush2.msra.mxu0 0.0
  %4402 = vmatprep.subr.mxu0 0.0
  %4403 = vmatpush2.msra.mxu0 0.0
  %4404 = vmatprep.subr.mxu0 0.0
  %4405 = vmatpush2.msra.mxu0 0.0
  %4406 = vmatprep.subr.mxu0 0.0
  %4407 = vmatpush2.msra.mxu0 0.0
  %4408 = vmatprep.subr.mxu0 0.0
  %4409 = vmatpush2.msra.mxu0 0.0
  %4410 = vmatprep.subr.mxu0 0.0
  %4411 = vmatpush2.msra.mxu0 0.0
  %4412 = vmatprep.subr.mxu0 0.0
  %4413 = vmatpush2.msra.mxu0 0.0
  %4414 = vmatprep.subr.mxu0 0.0
  %4415 = vmatpush2.msra.mxu0 0.0
  %4416 = vmatprep.subr.mxu0 0.0
  %4417 = vmatpush2.msra.mxu0 0.0
  %4418 = vmatprep.subr.mxu0 0.0
  %4419 = vmatpush2.msra.mxu0 0.0
  %4420 = vmatprep.subr.mxu0 0.0
  %4421 = vmatpush2.msra.mxu0 0.0
  %4422 = vmatprep.mubr.f32.mxu0 0.0
  %4423 = vmatmul.mubr.f32.gmra.mxu0 %v4276
  %v4424 = vpop.f32.mrf.mxu0
  %v4425 = vadd.f32 0.0, %v4424
  %v4426 = vpop.f32.mrf.mxu0
  %v4427 = vadd.f32 0.0, %v4426
  %4428 = vmatprep.mubr.f32.mxu0 0.0
  %4429 = vmatmul.mubr.f32.gmra.mxu0 %v4279
  %v4430 = vpop.f32.mrf.mxu0
  %v4431 = vadd.f32 0.0, %v4430
  %v4432 = vpop.f32.mrf.mxu0
  %v4433 = vadd.f32 0.0, %v4432
  %4434 = vdwg.mxu0
  %v4435 = vmul.f32 %v4026, %v4348
  %v4436 = vmul.f32 %v4027, %v4350
  %v4437 = vmul.f32 %v4028, %v4425
  %v4438 = vmul.f32 %v4029, %v4427
  %v4439 = vmul.f32 %v4030, %v4354
  %v4440 = vmul.f32 %v4031, %v4356
  %v4441 = vmul.f32 %v4032, %v4431
  %v4442 = vmul.f32 %v4033, %v4433
  %4443 = vset.pattern.permute.xlu0 4
  %4444 = vperm.xlu0 %4443, %v2396
  %v4445 = vpop.permute.xlu0 %4444
  %4447 = vset.pattern.permute.xlu0 4
  %4448 = vperm.xlu0 %4447, %v2397
  %v4449 = vpop.permute.xlu0 %4448
  %v4452 = vsel %vm2404, %v2386, 0
  %v4455 = vsel %vm2404, %v2387, 0
  %4457 = vmatprep.subr.mxu0 0.0
  %4458 = vmatpush1.msra.mxu0 0.0
  %4459 = vmatprep.subr.mxu0 0.0
  %4460 = vmatpush1.msra.mxu0 0.0
  %4461 = vmatprep.subr.mxu0 0.0
  %4462 = vmatpush1.msra.mxu0 0.0
  %4463 = vmatprep.subr.mxu0 0.0
  %4464 = vmatpush1.msra.mxu0 0.0
  %4465 = vmatprep.subr.mxu0 0.0
  %4466 = vmatpush1.msra.mxu0 0.0
  %4467 = vmatprep.subr.mxu0 0.0
  %4468 = vmatpush1.msra.mxu0 0.0
  %4469 = vmatprep.subr.mxu0 0.0
  %4470 = vmatpush1.msra.mxu0 0.0
  %4471 = vmatprep.subr.mxu0 0.0
  %4472 = vmatpush1.msra.mxu0 0.0
  %4473 = vmatprep.subr.mxu0 0.0
  %4474 = vmatpush1.msra.mxu0 0.0
  %4475 = vmatprep.subr.mxu0 0.0
  %4476 = vmatpush1.msra.mxu0 0.0
  %4477 = vmatprep.subr.mxu0 0.0
  %4478 = vmatpush1.msra.mxu0 0.0
  %4479 = vmatprep.subr.mxu0 0.0
  %4480 = vmatpush1.msra.mxu0 0.0
  %4481 = vmatprep.subr.mxu0 0.0
  %4482 = vmatpush1.msra.mxu0 0.0
  %4483 = vmatprep.subr.mxu0 0.0
  %4484 = vmatpush1.msra.mxu0 0.0
  %4485 = vmatprep.subr.mxu0 %v4440
  %4486 = vmatpush1.msra.mxu0 %v4439
  %4487 = vmatprep.subr.mxu0 %v4436
  %4488 = vmatpush1.msra.mxu0 %v4435
  %4489 = vmatprep.subr.mxu0 0.0
  %4490 = vmatpush2.msra.mxu0 0.0
  %4491 = vmatprep.subr.mxu0 0.0
  %4492 = vmatpush2.msra.mxu0 0.0
  %4493 = vmatprep.subr.mxu0 0.0
  %4494 = vmatpush2.msra.mxu0 0.0
  %4495 = vmatprep.subr.mxu0 0.0
  %4496 = vmatpush2.msra.mxu0 0.0
  %4497 = vmatprep.subr.mxu0 0.0
  %4498 = vmatpush2.msra.mxu0 0.0
  %4499 = vmatprep.subr.mxu0 0.0
  %4500 = vmatpush2.msra.mxu0 0.0
  %4501 = vmatprep.subr.mxu0 0.0
  %4502 = vmatpush2.msra.mxu0 0.0
  %4503 = vmatprep.subr.mxu0 0.0
  %4504 = vmatpush2.msra.mxu0 0.0
  %4505 = vmatprep.subr.mxu0 0.0
  %4506 = vmatpush2.msra.mxu0 0.0
  %4507 = vmatprep.subr.mxu0 0.0
  %4508 = vmatpush2.msra.mxu0 0.0
  %4509 = vmatprep.subr.mxu0 0.0
  %4510 = vmatpush2.msra.mxu0 0.0
  %4511 = vmatprep.subr.mxu0 0.0
  %4512 = vmatpush2.msra.mxu0 0.0
  %4513 = vmatprep.subr.mxu0 0.0
  %4514 = vmatpush2.msra.mxu0 0.0
  %4515 = vmatprep.subr.mxu0 0.0
  %4516 = vmatpush2.msra.mxu0 0.0
  %4517 = vmatprep.subr.mxu0 0.0
  %4518 = vmatpush2.msra.mxu0 0.0
  %4519 = vmatprep.subr.mxu0 0.0
  %4520 = vmatpush2.msra.mxu0 0.0
  %4521 = vmatprep.mubr.f32.mxu0 0.0
  %4522 = vmatmul.mubr.f32.gmra.mxu0 %v4452
  %v4523 = vpop.f32.mrf.mxu0
  %v4524 = vadd.f32 %v4445, %v4523
  %v4525 = vpop.f32.mrf.mxu0
  %v4526 = vadd.f32 %v4445, %v4525
  %4527 = vmatprep.mubr.f32.mxu0 0.0
  %4528 = vmatmul.mubr.f32.gmra.mxu0 %v4455
  %v4529 = vpop.f32.mrf.mxu0
  %v4530 = vadd.f32 %v4449, %v4529
  %v4531 = vpop.f32.mrf.mxu0
  %v4532 = vadd.f32 %v4449, %v4531
  %4533 = vdwg.mxu0
  %4534 = vmatprep.subr.mxu0 0.0
  %4535 = vmatpush1.msra.mxu0 0.0
  %4536 = vmatprep.subr.mxu0 0.0
  %4537 = vmatpush1.msra.mxu0 0.0
  %4538 = vmatprep.subr.mxu0 0.0
  %4539 = vmatpush1.msra.mxu0 0.0
  %4540 = vmatprep.subr.mxu0 0.0
  %4541 = vmatpush1.msra.mxu0 0.0
  %4542 = vmatprep.subr.mxu0 0.0
  %4543 = vmatpush1.msra.mxu0 0.0
  %4544 = vmatprep.subr.mxu0 0.0
  %4545 = vmatpush1.msra.mxu0 0.0
  %4546 = vmatprep.subr.mxu0 0.0
  %4547 = vmatpush1.msra.mxu0 0.0
  %4548 = vmatprep.subr.mxu0 0.0
  %4549 = vmatpush1.msra.mxu0 0.0
  %4550 = vmatprep.subr.mxu0 0.0
  %4551 = vmatpush1.msra.mxu0 0.0
  %4552 = vmatprep.subr.mxu0 0.0
  %4553 = vmatpush1.msra.mxu0 0.0
  %4554 = vmatprep.subr.mxu0 0.0
  %4555 = vmatpush1.msra.mxu0 0.0
  %4556 = vmatprep.subr.mxu0 0.0
  %4557 = vmatpush1.msra.mxu0 0.0
  %4558 = vmatprep.subr.mxu0 0.0
  %4559 = vmatpush1.msra.mxu0 0.0
  %4560 = vmatprep.subr.mxu0 0.0
  %4561 = vmatpush1.msra.mxu0 0.0
  %4562 = vmatprep.subr.mxu0 %v4442
  %4563 = vmatpush1.msra.mxu0 %v4441
  %4564 = vmatprep.subr.mxu0 %v4438
  %4565 = vmatpush1.msra.mxu0 %v4437
  %4566 = vmatprep.subr.mxu0 0.0
  %4567 = vmatpush2.msra.mxu0 0.0
  %4568 = vmatprep.subr.mxu0 0.0
  %4569 = vmatpush2.msra.mxu0 0.0
  %4570 = vmatprep.subr.mxu0 0.0
  %4571 = vmatpush2.msra.mxu0 0.0
  %4572 = vmatprep.subr.mxu0 0.0
  %4573 = vmatpush2.msra.mxu0 0.0
  %4574 = vmatprep.subr.mxu0 0.0
  %4575 = vmatpush2.msra.mxu0 0.0
  %4576 = vmatprep.subr.mxu0 0.0
  %4577 = vmatpush2.msra.mxu0 0.0
  %4578 = vmatprep.subr.mxu0 0.0
  %4579 = vmatpush2.msra.mxu0 0.0
  %4580 = vmatprep.subr.mxu0 0.0
  %4581 = vmatpush2.msra.mxu0 0.0
  %4582 = vmatprep.subr.mxu0 0.0
  %4583 = vmatpush2.msra.mxu0 0.0
  %4584 = vmatprep.subr.mxu0 0.0
  %4585 = vmatpush2.msra.mxu0 0.0
  %4586 = vmatprep.subr.mxu0 0.0
  %4587 = vmatpush2.msra.mxu0 0.0
  %4588 = vmatprep.subr.mxu0 0.0
  %4589 = vmatpush2.msra.mxu0 0.0
  %4590 = vmatprep.subr.mxu0 0.0
  %4591 = vmatpush2.msra.mxu0 0.0
  %4592 = vmatprep.subr.mxu0 0.0
  %4593 = vmatpush2.msra.mxu0 0.0
  %4594 = vmatprep.subr.mxu0 0.0
  %4595 = vmatpush2.msra.mxu0 0.0
  %4596 = vmatprep.subr.mxu0 0.0
  %4597 = vmatpush2.msra.mxu0 0.0
  %4598 = vmatprep.mubr.f32.mxu0 0.0
  %4599 = vmatmul.mubr.f32.gmra.mxu0 %v4452
  %v4600 = vpop.f32.mrf.mxu0
  %v4601 = vadd.f32 %v4445, %v4600
  %v4602 = vpop.f32.mrf.mxu0
  %v4603 = vadd.f32 %v4445, %v4602
  %4604 = vmatprep.mubr.f32.mxu0 0.0
  %4605 = vmatmul.mubr.f32.gmra.mxu0 %v4455
  %v4606 = vpop.f32.mrf.mxu0
  %v4607 = vadd.f32 %v4449, %v4606
  %v4608 = vpop.f32.mrf.mxu0
  %v4609 = vadd.f32 %v4449, %v4608
  %4610 = vdwg.mxu0
  %4611 = vset.pattern.permute.xlu0 7
  %4612 = vperm.xlu0 %4611, %v2396
  %v4613 = vpop.permute.xlu0 %4612
  %4615 = vset.pattern.permute.xlu0 7
  %4616 = vperm.xlu0 %4615, %v2397
  %v4617 = vpop.permute.xlu0 %4616
  %v4619 = vmul.f32 %v4524, %v4613
  %v4620 = vmul.f32 %v4526, %v4613
  %v4621 = vmul.f32 %v4601, %v4613
  %v4622 = vmul.f32 %v4603, %v4613
  %v4623 = vmul.f32 %v4530, %v4617
  %v4624 = vmul.f32 %v4532, %v4617
  %v4625 = vmul.f32 %v4607, %v4617
  %v4626 = vmul.f32 %v4609, %v4617
  %v4627 = vadd.f32 %v2370, %v4619
  %v4628 = vadd.f32 %v2371, %v4620
  %v4629 = vadd.f32 %v2372, %v4621
  %v4630 = vadd.f32 %v2373, %v4622
  %v4631 = vadd.f32 %v2374, %v4623
  %v4632 = vadd.f32 %v2375, %v4624
  %v4633 = vadd.f32 %v2376, %v4625
  %v4634 = vadd.f32 %v2377, %v4626
  %4635 = vmatprep.subr.mxu0 0.0
  %4636 = vmatpush1.msra.mxu0 0.0
  %4637 = vmatprep.subr.mxu0 0.0
  %4638 = vmatpush1.msra.mxu0 0.0
  %4639 = vmatprep.subr.mxu0 0.0
  %4640 = vmatpush1.msra.mxu0 0.0
  %4641 = vmatprep.subr.mxu0 0.0
  %4642 = vmatpush1.msra.mxu0 0.0
  %4643 = vmatprep.subr.mxu0 0.0
  %4644 = vmatpush1.msra.mxu0 0.0
  %4645 = vmatprep.subr.mxu0 0.0
  %4646 = vmatpush1.msra.mxu0 0.0
  %4647 = vmatprep.subr.mxu0 0.0
  %4648 = vmatpush1.msra.mxu0 0.0
  %4649 = vmatprep.subr.mxu0 0.0
  %4650 = vmatpush1.msra.mxu0 0.0
  %4651 = vmatprep.subr.mxu0 0.0
  %4652 = vmatpush1.msra.mxu0 0.0
  %4653 = vmatprep.subr.mxu0 0.0
  %4654 = vmatpush1.msra.mxu0 0.0
  %4655 = vmatprep.subr.mxu0 0.0
  %4656 = vmatpush1.msra.mxu0 0.0
  %4657 = vmatprep.subr.mxu0 0.0
  %4658 = vmatpush1.msra.mxu0 0.0
  %4659 = vmatprep.subr.mxu0 0.0
  %4660 = vmatpush1.msra.mxu0 0.0
  %4661 = vmatprep.subr.mxu0 0.0
  %4662 = vmatpush1.msra.mxu0 0.0
  %4663 = vmatprep.subr.mxu0 %v4632
  %4664 = vmatpush1.msra.mxu0 %v4631
  %4665 = vmatprep.subr.mxu0 %v4628
  %4666 = vmatpush1.msra.mxu0 %v4627
  %4667 = vmatprep.subr.mxu0 0.0
  %4668 = vmatpush2.msra.mxu0 0.0
  %4669 = vmatprep.subr.mxu0 0.0
  %4670 = vmatpush2.msra.mxu0 0.0
  %4671 = vmatprep.subr.mxu0 0.0
  %4672 = vmatpush2.msra.mxu0 0.0
  %4673 = vmatprep.subr.mxu0 0.0
  %4674 = vmatpush2.msra.mxu0 0.0
  %4675 = vmatprep.subr.mxu0 0.0
  %4676 = vmatpush2.msra.mxu0 0.0
  %4677 = vmatprep.subr.mxu0 0.0
  %4678 = vmatpush2.msra.mxu0 0.0
  %4679 = vmatprep.subr.mxu0 0.0
  %4680 = vmatpush2.msra.mxu0 0.0
  %4681 = vmatprep.subr.mxu0 0.0
  %4682 = vmatpush2.msra.mxu0 0.0
  %4683 = vmatprep.subr.mxu0 0.0
  %4684 = vmatpush2.msra.mxu0 0.0
  %4685 = vmatprep.subr.mxu0 0.0
  %4686 = vmatpush2.msra.mxu0 0.0
  %4687 = vmatprep.subr.mxu0 0.0
  %4688 = vmatpush2.msra.mxu0 0.0
  %4689 = vmatprep.subr.mxu0 0.0
  %4690 = vmatpush2.msra.mxu0 0.0
  %4691 = vmatprep.subr.mxu0 0.0
  %4692 = vmatpush2.msra.mxu0 0.0
  %4693 = vmatprep.subr.mxu0 0.0
  %4694 = vmatpush2.msra.mxu0 0.0
  %4695 = vmatprep.subr.mxu0 0.0
  %4696 = vmatpush2.msra.mxu0 0.0
  %4697 = vmatprep.subr.mxu0 0.0
  %4698 = vmatpush2.msra.mxu0 0.0
  %4699 = vmatprep.mubr.f32.mxu0 0.0
  %4700 = vmatmul.mubr.f32.gmra.mxu0 %v2406
  %v4701 = vpop.f32.mrf.mxu0
  %v4702 = vadd.f32 0.0, %v4701
  %v4703 = vpop.f32.mrf.mxu0
  %v4704 = vadd.f32 0.0, %v4703
  %4705 = vdwg.mxu0
  %4706 = vmatprep.subr.mxu0 0.0
  %4707 = vmatpush1.msra.mxu0 0.0
  %4708 = vmatprep.subr.mxu0 0.0
  %4709 = vmatpush1.msra.mxu0 0.0
  %4710 = vmatprep.subr.mxu0 0.0
  %4711 = vmatpush1.msra.mxu0 0.0
  %4712 = vmatprep.subr.mxu0 0.0
  %4713 = vmatpush1.msra.mxu0 0.0
  %4714 = vmatprep.subr.mxu0 0.0
  %4715 = vmatpush1.msra.mxu0 0.0
  %4716 = vmatprep.subr.mxu0 0.0
  %4717 = vmatpush1.msra.mxu0 0.0
  %4718 = vmatprep.subr.mxu0 0.0
  %4719 = vmatpush1.msra.mxu0 0.0
  %4720 = vmatprep.subr.mxu0 0.0
  %4721 = vmatpush1.msra.mxu0 0.0
  %4722 = vmatprep.subr.mxu0 0.0
  %4723 = vmatpush1.msra.mxu0 0.0
  %4724 = vmatprep.subr.mxu0 0.0
  %4725 = vmatpush1.msra.mxu0 0.0
  %4726 = vmatprep.subr.mxu0 0.0
  %4727 = vmatpush1.msra.mxu0 0.0
  %4728 = vmatprep.subr.mxu0 0.0
  %4729 = vmatpush1.msra.mxu0 0.0
  %4730 = vmatprep.subr.mxu0 0.0
  %4731 = vmatpush1.msra.mxu0 0.0
  %4732 = vmatprep.subr.mxu0 0.0
  %4733 = vmatpush1.msra.mxu0 0.0
  %4734 = vmatprep.subr.mxu0 %v4634
  %4735 = vmatpush1.msra.mxu0 %v4633
  %4736 = vmatprep.subr.mxu0 %v4630
  %4737 = vmatpush1.msra.mxu0 %v4629
  %4738 = vmatprep.subr.mxu0 0.0
  %4739 = vmatpush2.msra.mxu0 0.0
  %4740 = vmatprep.subr.mxu0 0.0
  %4741 = vmatpush2.msra.mxu0 0.0
  %4742 = vmatprep.subr.mxu0 0.0
  %4743 = vmatpush2.msra.mxu0 0.0
  %4744 = vmatprep.subr.mxu0 0.0
  %4745 = vmatpush2.msra.mxu0 0.0
  %4746 = vmatprep.subr.mxu0 0.0
  %4747 = vmatpush2.msra.mxu0 0.0
  %4748 = vmatprep.subr.mxu0 0.0
  %4749 = vmatpush2.msra.mxu0 0.0
  %4750 = vmatprep.subr.mxu0 0.0
  %4751 = vmatpush2.msra.mxu0 0.0
  %4752 = vmatprep.subr.mxu0 0.0
  %4753 = vmatpush2.msra.mxu0 0.0
  %4754 = vmatprep.subr.mxu0 0.0
  %4755 = vmatpush2.msra.mxu0 0.0
  %4756 = vmatprep.subr.mxu0 0.0
  %4757 = vmatpush2.msra.mxu0 0.0
  %4758 = vmatprep.subr.mxu0 0.0
  %4759 = vmatpush2.msra.mxu0 0.0
  %4760 = vmatprep.subr.mxu0 0.0
  %4761 = vmatpush2.msra.mxu0 0.0
  %4762 = vmatprep.subr.mxu0 0.0
  %4763 = vmatpush2.msra.mxu0 0.0
  %4764 = vmatprep.subr.mxu0 0.0
  %4765 = vmatpush2.msra.mxu0 0.0
  %4766 = vmatprep.subr.mxu0 0.0
  %4767 = vmatpush2.msra.mxu0 0.0
  %4768 = vmatprep.subr.mxu0 0.0
  %4769 = vmatpush2.msra.mxu0 0.0
  %4770 = vmatprep.mubr.f32.mxu0 0.0
  %4771 = vmatmul.mubr.f32.gmra.mxu0 %v2406
  %v4772 = vpop.f32.mrf.mxu0
  %v4773 = vadd.f32 0.0, %v4772
  %v4774 = vpop.f32.mrf.mxu0
  %v4775 = vadd.f32 0.0, %v4774
  %4776 = vdwg.mxu0
  %v4777 = vmul.f32 %v4702, 0.0625
  %v4778 = vmul.f32 %v4704, 0.0625
  %v4779 = vmul.f32 %v4773, 0.0625
  %v4780 = vmul.f32 %v4775, 0.0625
  %v4781 = vlaneseq
  %v4782 = vshrl.u32 %v4781, 7
  %v4783 = vsub.s32 0, %v4782
  %v4784 = vrot.slane %v4777, %v4783
  %v4785 = vlaneseq
  %v4786 = vshrl.u32 %v4785, 7
  %v4787 = vsub.s32 0, %v4786
  %v4788 = vrot.slane %v4778, %v4787
  %v4789 = vlaneseq
  %v4790 = vshrl.u32 %v4789, 7
  %v4791 = vsub.s32 0, %v4790
  %v4792 = vrot.slane %v4779, %v4791
  %v4793 = vlaneseq
  %v4794 = vshrl.u32 %v4793, 7
  %v4795 = vsub.s32 0, %v4794
  %v4796 = vrot.slane %v4780, %v4795
  %v4797 = vsub.f32 %v4627, %v4784
  %v4798 = vsub.f32 %v4628, %v4788
  %v4799 = vsub.f32 %v4629, %v4792
  %v4800 = vsub.f32 %v4630, %v4796
  %v4801 = vsub.f32 %v4631, %v4784
  %v4802 = vsub.f32 %v4632, %v4788
  %v4803 = vsub.f32 %v4633, %v4792
  %v4804 = vsub.f32 %v4634, %v4796
  %v4805 = vmul.f32 %v4797, %v4797
  %v4806 = vmul.f32 %v4798, %v4798
  %v4807 = vmul.f32 %v4799, %v4799
  %v4808 = vmul.f32 %v4800, %v4800
  %v4809 = vmul.f32 %v4801, %v4801
  %v4810 = vmul.f32 %v4802, %v4802
  %v4811 = vmul.f32 %v4803, %v4803
  %v4812 = vmul.f32 %v4804, %v4804
  %4813 = vmatprep.subr.mxu0 0.0
  %4814 = vmatpush1.msra.mxu0 0.0
  %4815 = vmatprep.subr.mxu0 0.0
  %4816 = vmatpush1.msra.mxu0 0.0
  %4817 = vmatprep.subr.mxu0 0.0
  %4818 = vmatpush1.msra.mxu0 0.0
  %4819 = vmatprep.subr.mxu0 0.0
  %4820 = vmatpush1.msra.mxu0 0.0
  %4821 = vmatprep.subr.mxu0 0.0
  %4822 = vmatpush1.msra.mxu0 0.0
  %4823 = vmatprep.subr.mxu0 0.0
  %4824 = vmatpush1.msra.mxu0 0.0
  %4825 = vmatprep.subr.mxu0 0.0
  %4826 = vmatpush1.msra.mxu0 0.0
  %4827 = vmatprep.subr.mxu0 0.0
  %4828 = vmatpush1.msra.mxu0 0.0
  %4829 = vmatprep.subr.mxu0 0.0
  %4830 = vmatpush1.msra.mxu0 0.0
  %4831 = vmatprep.subr.mxu0 0.0
  %4832 = vmatpush1.msra.mxu0 0.0
  %4833 = vmatprep.subr.mxu0 0.0
  %4834 = vmatpush1.msra.mxu0 0.0
  %4835 = vmatprep.subr.mxu0 0.0
  %4836 = vmatpush1.msra.mxu0 0.0
  %4837 = vmatprep.subr.mxu0 0.0
  %4838 = vmatpush1.msra.mxu0 0.0
  %4839 = vmatprep.subr.mxu0 0.0
  %4840 = vmatpush1.msra.mxu0 0.0
  %4841 = vmatprep.subr.mxu0 %v4810
  %4842 = vmatpush1.msra.mxu0 %v4809
  %4843 = vmatprep.subr.mxu0 %v4806
  %4844 = vmatpush1.msra.mxu0 %v4805
  %4845 = vmatprep.subr.mxu0 0.0
  %4846 = vmatpush2.msra.mxu0 0.0
  %4847 = vmatprep.subr.mxu0 0.0
  %4848 = vmatpush2.msra.mxu0 0.0
  %4849 = vmatprep.subr.mxu0 0.0
  %4850 = vmatpush2.msra.mxu0 0.0
  %4851 = vmatprep.subr.mxu0 0.0
  %4852 = vmatpush2.msra.mxu0 0.0
  %4853 = vmatprep.subr.mxu0 0.0
  %4854 = vmatpush2.msra.mxu0 0.0
  %4855 = vmatprep.subr.mxu0 0.0
  %4856 = vmatpush2.msra.mxu0 0.0
  %4857 = vmatprep.subr.mxu0 0.0
  %4858 = vmatpush2.msra.mxu0 0.0
  %4859 = vmatprep.subr.mxu0 0.0
  %4860 = vmatpush2.msra.mxu0 0.0
  %4861 = vmatprep.subr.mxu0 0.0
  %4862 = vmatpush2.msra.mxu0 0.0
  %4863 = vmatprep.subr.mxu0 0.0
  %4864 = vmatpush2.msra.mxu0 0.0
  %4865 = vmatprep.subr.mxu0 0.0
  %4866 = vmatpush2.msra.mxu0 0.0
  %4867 = vmatprep.subr.mxu0 0.0
  %4868 = vmatpush2.msra.mxu0 0.0
  %4869 = vmatprep.subr.mxu0 0.0
  %4870 = vmatpush2.msra.mxu0 0.0
  %4871 = vmatprep.subr.mxu0 0.0
  %4872 = vmatpush2.msra.mxu0 0.0
  %4873 = vmatprep.subr.mxu0 0.0
  %4874 = vmatpush2.msra.mxu0 0.0
  %4875 = vmatprep.subr.mxu0 0.0
  %4876 = vmatpush2.msra.mxu0 0.0
  %4877 = vmatprep.mubr.f32.mxu0 0.0
  %4878 = vmatmul.mubr.f32.gmra.mxu0 %v2406
  %v4879 = vpop.f32.mrf.mxu0
  %v4880 = vadd.f32 0.0, %v4879
  %v4881 = vpop.f32.mrf.mxu0
  %v4882 = vadd.f32 0.0, %v4881
  %4883 = vdwg.mxu0
  %4884 = vmatprep.subr.mxu0 0.0
  %4885 = vmatpush1.msra.mxu0 0.0
  %4886 = vmatprep.subr.mxu0 0.0
  %4887 = vmatpush1.msra.mxu0 0.0
  %4888 = vmatprep.subr.mxu0 0.0
  %4889 = vmatpush1.msra.mxu0 0.0
  %4890 = vmatprep.subr.mxu0 0.0
  %4891 = vmatpush1.msra.mxu0 0.0
  %4892 = vmatprep.subr.mxu0 0.0
  %4893 = vmatpush1.msra.mxu0 0.0
  %4894 = vmatprep.subr.mxu0 0.0
  %4895 = vmatpush1.msra.mxu0 0.0
  %4896 = vmatprep.subr.mxu0 0.0
  %4897 = vmatpush1.msra.mxu0 0.0
  %4898 = vmatprep.subr.mxu0 0.0
  %4899 = vmatpush1.msra.mxu0 0.0
  %4900 = vmatprep.subr.mxu0 0.0
  %4901 = vmatpush1.msra.mxu0 0.0
  %4902 = vmatprep.subr.mxu0 0.0
  %4903 = vmatpush1.msra.mxu0 0.0
  %4904 = vmatprep.subr.mxu0 0.0
  %4905 = vmatpush1.msra.mxu0 0.0
  %4906 = vmatprep.subr.mxu0 0.0
  %4907 = vmatpush1.msra.mxu0 0.0
  %4908 = vmatprep.subr.mxu0 0.0
  %4909 = vmatpush1.msra.mxu0 0.0
  %4910 = vmatprep.subr.mxu0 0.0
  %4911 = vmatpush1.msra.mxu0 0.0
  %4912 = vmatprep.subr.mxu0 %v4812
  %4913 = vmatpush1.msra.mxu0 %v4811
  %4914 = vmatprep.subr.mxu0 %v4808
  %4915 = vmatpush1.msra.mxu0 %v4807
  %4916 = vmatprep.subr.mxu0 0.0
  %4917 = vmatpush2.msra.mxu0 0.0
  %4918 = vmatprep.subr.mxu0 0.0
  %4919 = vmatpush2.msra.mxu0 0.0
  %4920 = vmatprep.subr.mxu0 0.0
  %4921 = vmatpush2.msra.mxu0 0.0
  %4922 = vmatprep.subr.mxu0 0.0
  %4923 = vmatpush2.msra.mxu0 0.0
  %4924 = vmatprep.subr.mxu0 0.0
  %4925 = vmatpush2.msra.mxu0 0.0
  %4926 = vmatprep.subr.mxu0 0.0
  %4927 = vmatpush2.msra.mxu0 0.0
  %4928 = vmatprep.subr.mxu0 0.0
  %4929 = vmatpush2.msra.mxu0 0.0
  %4930 = vmatprep.subr.mxu0 0.0
  %4931 = vmatpush2.msra.mxu0 0.0
  %4932 = vmatprep.subr.mxu0 0.0
  %4933 = vmatpush2.msra.mxu0 0.0
  %4934 = vmatprep.subr.mxu0 0.0
  %4935 = vmatpush2.msra.mxu0 0.0
  %4936 = vmatprep.subr.mxu0 0.0
  %4937 = vmatpush2.msra.mxu0 0.0
  %4938 = vmatprep.subr.mxu0 0.0
  %4939 = vmatpush2.msra.mxu0 0.0
  %4940 = vmatprep.subr.mxu0 0.0
  %4941 = vmatpush2.msra.mxu0 0.0
  %4942 = vmatprep.subr.mxu0 0.0
  %4943 = vmatpush2.msra.mxu0 0.0
  %4944 = vmatprep.subr.mxu0 0.0
  %4945 = vmatpush2.msra.mxu0 0.0
  %4946 = vmatprep.subr.mxu0 0.0
  %4947 = vmatpush2.msra.mxu0 0.0
  %4948 = vmatprep.mubr.f32.mxu0 0.0
  %4949 = vmatmul.mubr.f32.gmra.mxu0 %v2406
  %v4950 = vpop.f32.mrf.mxu0
  %v4951 = vadd.f32 0.0, %v4950
  %v4952 = vpop.f32.mrf.mxu0
  %v4953 = vadd.f32 0.0, %v4952
  %4954 = vdwg.mxu0
  %v4955 = vmul.f32 %v4880, 0.0625
  %v4956 = vmul.f32 %v4882, 0.0625
  %v4957 = vmul.f32 %v4951, 0.0625
  %v4958 = vmul.f32 %v4953, 0.0625
  %v4959 = vadd.f32 %v4955, 1e-05
  %v4960 = vadd.f32 %v4956, 1e-05
  %v4961 = vadd.f32 %v4957, 1e-05
  %v4962 = vadd.f32 %v4958, 1e-05
  %v4963 = vrsqrt.pop %v4959
  %v4964 = vrsqrt.pop %v4960
  %v4965 = vrsqrt.pop %v4961
  %v4966 = vrsqrt.pop %v4962
  %v4967 = vlaneseq
  %v4968 = vshrl.u32 %v4967, 7
  %v4969 = vsub.s32 0, %v4968
  %v4970 = vrot.slane %v4963, %v4969
  %v4971 = vlaneseq
  %v4972 = vshrl.u32 %v4971, 7
  %v4973 = vsub.s32 0, %v4972
  %v4974 = vrot.slane %v4964, %v4973
  %v4975 = vlaneseq
  %v4976 = vshrl.u32 %v4975, 7
  %v4977 = vsub.s32 0, %v4976
  %v4978 = vrot.slane %v4965, %v4977
  %v4979 = vlaneseq
  %v4980 = vshrl.u32 %v4979, 7
  %v4981 = vsub.s32 0, %v4980
  %v4982 = vrot.slane %v4966, %v4981
  %v4983 = vmul.f32 %v4797, %v4970
  %v4984 = vmul.f32 %v4798, %v4974
  %v4985 = vmul.f32 %v4799, %v4978
  %v4986 = vmul.f32 %v4800, %v4982
  %v4987 = vmul.f32 %v4801, %v4970
  %v4988 = vmul.f32 %v4802, %v4974
  %v4989 = vmul.f32 %v4803, %v4978
  %v4990 = vmul.f32 %v4804, %v4982
  %4991 = vset.pattern.permute.xlu0 2
  %4992 = vperm.xlu0 %4991, %v2396
  %v4993 = vpop.permute.xlu0 %4992
  %4995 = vset.pattern.permute.xlu0 2
  %4996 = vperm.xlu0 %4995, %v2397
  %v4997 = vpop.permute.xlu0 %4996
  %v4999 = vmul.f32 %v4983, %v4993
  %v5000 = vmul.f32 %v4984, %v4993
  %v5001 = vmul.f32 %v4985, %v4993
  %v5002 = vmul.f32 %v4986, %v4993
  %v5003 = vmul.f32 %v4987, %v4997
  %v5004 = vmul.f32 %v4988, %v4997
  %v5005 = vmul.f32 %v4989, %v4997
  %v5006 = vmul.f32 %v4990, %v4997
  %5007 = vset.pattern.permute.xlu0 3
  %5008 = vperm.xlu0 %5007, %v2396
  %v5009 = vpop.permute.xlu0 %5008
  %5011 = vset.pattern.permute.xlu0 3
  %5012 = vperm.xlu0 %5011, %v2397
  %v5013 = vpop.permute.xlu0 %5012
  %v5015 = vadd.f32 %v4999, %v5009
  %v5016 = vadd.f32 %v5000, %v5009
  %v5017 = vadd.f32 %v5001, %v5009
  %v5018 = vadd.f32 %v5002, %v5009
  %v5019 = vadd.f32 %v5003, %v5013
  %v5020 = vadd.f32 %v5004, %v5013
  %v5021 = vadd.f32 %v5005, %v5013
  %v5022 = vadd.f32 %v5006, %v5013
  %5023 = vset.pattern.permute.xlu0 3
  %5024 = vperm.xlu0 %5023, %v2798
  %v5025 = vpop.permute.xlu0 %5024
  %5027 = vset.pattern.permute.xlu0 3
  %5028 = vperm.xlu0 %5027, %v2799
  %v5029 = vpop.permute.xlu0 %5028
  %v5031 = vmul.f32 %v5015, %v5025
  %v5032 = vmul.f32 %v5016, %v5025
  %v5033 = vmul.f32 %v5017, %v5025
  %v5034 = vmul.f32 %v5018, %v5025
  %v5035 = vmul.f32 %v5019, %v5029
  %v5036 = vmul.f32 %v5020, %v5029
  %v5037 = vmul.f32 %v5021, %v5029
  %v5038 = vmul.f32 %v5022, %v5029
  %5039 = vset.pattern.permute.xlu0 2
  %5040 = vperm.xlu0 %5039, %v2402
  %v5041 = vpop.permute.xlu0 %5040
  %5043 = vset.pattern.permute.xlu0 2
  %5044 = vperm.xlu0 %5043, %v2403
  %v5045 = vpop.permute.xlu0 %5044
  %v5047 = vadd.f32 %v5031, %v5041
  %v5048 = vadd.f32 %v5032, %v5041
  %v5049 = vadd.f32 %v5033, %v5041
  %v5050 = vadd.f32 %v5034, %v5041
  %v5051 = vadd.f32 %v5035, %v5045
  %v5052 = vadd.f32 %v5036, %v5045
  %v5053 = vadd.f32 %v5037, %v5045
  %v5054 = vadd.f32 %v5038, %v5045
  %5055 = vset.pattern.permute.xlu0 2
  %5056 = vperm.xlu0 %5055, %v2398
  %v5057 = vpop.permute.xlu0 %5056
  %5059 = vset.pattern.permute.xlu0 2
  %5060 = vperm.xlu0 %5059, %v2399
  %v5061 = vpop.permute.xlu0 %5060
  %5063 = vset.pattern.permute.xlu0 2
  %5064 = vperm.xlu0 %5063, %v2400
  %v5065 = vpop.permute.xlu0 %5064
  %5067 = vset.pattern.permute.xlu0 2
  %5068 = vperm.xlu0 %5067, %v2401
  %v5069 = vpop.permute.xlu0 %5068
  %v5072 = vsel %vm2404, %v2382, 0
  %v5075 = vsel %vm2404, %v2383, 0
  %v5078 = vsel %vm2404, %v2384, 0
  %v5081 = vsel %vm2404, %v2385, 0
  %5083 = vmatprep.subr.mxu0 0.0
  %5084 = vmatpush1.msra.mxu0 0.0
  %5085 = vmatprep.subr.mxu0 0.0
  %5086 = vmatpush1.msra.mxu0 0.0
  %5087 = vmatprep.subr.mxu0 0.0
  %5088 = vmatpush1.msra.mxu0 0.0
  %5089 = vmatprep.subr.mxu0 0.0
  %5090 = vmatpush1.msra.mxu0 0.0
  %5091 = vmatprep.subr.mxu0 0.0
  %5092 = vmatpush1.msra.mxu0 0.0
  %5093 = vmatprep.subr.mxu0 0.0
  %5094 = vmatpush1.msra.mxu0 0.0
  %5095 = vmatprep.subr.mxu0 0.0
  %5096 = vmatpush1.msra.mxu0 0.0
  %5097 = vmatprep.subr.mxu0 0.0
  %5098 = vmatpush1.msra.mxu0 0.0
  %5099 = vmatprep.subr.mxu0 0.0
  %5100 = vmatpush1.msra.mxu0 0.0
  %5101 = vmatprep.subr.mxu0 0.0
  %5102 = vmatpush1.msra.mxu0 0.0
  %5103 = vmatprep.subr.mxu0 0.0
  %5104 = vmatpush1.msra.mxu0 0.0
  %5105 = vmatprep.subr.mxu0 0.0
  %5106 = vmatpush1.msra.mxu0 0.0
  %5107 = vmatprep.subr.mxu0 0.0
  %5108 = vmatpush1.msra.mxu0 0.0
  %5109 = vmatprep.subr.mxu0 0.0
  %5110 = vmatpush1.msra.mxu0 0.0
  %5111 = vmatprep.subr.mxu0 %v5052
  %5112 = vmatpush1.msra.mxu0 %v5051
  %5113 = vmatprep.subr.mxu0 %v5048
  %5114 = vmatpush1.msra.mxu0 %v5047
  %5115 = vmatprep.subr.mxu0 0.0
  %5116 = vmatpush2.msra.mxu0 0.0
  %5117 = vmatprep.subr.mxu0 0.0
  %5118 = vmatpush2.msra.mxu0 0.0
  %5119 = vmatprep.subr.mxu0 0.0
  %5120 = vmatpush2.msra.mxu0 0.0
  %5121 = vmatprep.subr.mxu0 0.0
  %5122 = vmatpush2.msra.mxu0 0.0
  %5123 = vmatprep.subr.mxu0 0.0
  %5124 = vmatpush2.msra.mxu0 0.0
  %5125 = vmatprep.subr.mxu0 0.0
  %5126 = vmatpush2.msra.mxu0 0.0
  %5127 = vmatprep.subr.mxu0 0.0
  %5128 = vmatpush2.msra.mxu0 0.0
  %5129 = vmatprep.subr.mxu0 0.0
  %5130 = vmatpush2.msra.mxu0 0.0
  %5131 = vmatprep.subr.mxu0 0.0
  %5132 = vmatpush2.msra.mxu0 0.0
  %5133 = vmatprep.subr.mxu0 0.0
  %5134 = vmatpush2.msra.mxu0 0.0
  %5135 = vmatprep.subr.mxu0 0.0
  %5136 = vmatpush2.msra.mxu0 0.0
  %5137 = vmatprep.subr.mxu0 0.0
  %5138 = vmatpush2.msra.mxu0 0.0
  %5139 = vmatprep.subr.mxu0 0.0
  %5140 = vmatpush2.msra.mxu0 0.0
  %5141 = vmatprep.subr.mxu0 0.0
  %5142 = vmatpush2.msra.mxu0 0.0
  %5143 = vmatprep.subr.mxu0 0.0
  %5144 = vmatpush2.msra.mxu0 0.0
  %5145 = vmatprep.subr.mxu0 0.0
  %5146 = vmatpush2.msra.mxu0 0.0
  %5147 = vmatprep.mubr.f32.mxu0 0.0
  %5148 = vmatmul.mubr.f32.gmra.mxu0 %v5072
  %v5149 = vpop.f32.mrf.mxu0
  %v5150 = vadd.f32 %v5057, %v5149
  %v5151 = vpop.f32.mrf.mxu0
  %v5152 = vadd.f32 %v5057, %v5151
  %5153 = vmatprep.mubr.f32.mxu0 0.0
  %5154 = vmatmul.mubr.f32.gmra.mxu0 %v5075
  %v5155 = vpop.f32.mrf.mxu0
  %v5156 = vadd.f32 %v5061, %v5155
  %v5157 = vpop.f32.mrf.mxu0
  %v5158 = vadd.f32 %v5061, %v5157
  %5159 = vmatprep.mubr.f32.mxu0 0.0
  %5160 = vmatmul.mubr.f32.gmra.mxu0 %v5078
  %v5161 = vpop.f32.mrf.mxu0
  %v5162 = vadd.f32 %v5065, %v5161
  %v5163 = vpop.f32.mrf.mxu0
  %v5164 = vadd.f32 %v5065, %v5163
  %5165 = vmatprep.mubr.f32.mxu0 0.0
  %5166 = vmatmul.mubr.f32.gmra.mxu0 %v5081
  %v5167 = vpop.f32.mrf.mxu0
  %v5168 = vadd.f32 %v5069, %v5167
  %v5169 = vpop.f32.mrf.mxu0
  %v5170 = vadd.f32 %v5069, %v5169
  %5171 = vdwg.mxu0
  %5172 = vmatprep.subr.mxu0 0.0
  %5173 = vmatpush1.msra.mxu0 0.0
  %5174 = vmatprep.subr.mxu0 0.0
  %5175 = vmatpush1.msra.mxu0 0.0
  %5176 = vmatprep.subr.mxu0 0.0
  %5177 = vmatpush1.msra.mxu0 0.0
  %5178 = vmatprep.subr.mxu0 0.0
  %5179 = vmatpush1.msra.mxu0 0.0
  %5180 = vmatprep.subr.mxu0 0.0
  %5181 = vmatpush1.msra.mxu0 0.0
  %5182 = vmatprep.subr.mxu0 0.0
  %5183 = vmatpush1.msra.mxu0 0.0
  %5184 = vmatprep.subr.mxu0 0.0
  %5185 = vmatpush1.msra.mxu0 0.0
  %5186 = vmatprep.subr.mxu0 0.0
  %5187 = vmatpush1.msra.mxu0 0.0
  %5188 = vmatprep.subr.mxu0 0.0
  %5189 = vmatpush1.msra.mxu0 0.0
  %5190 = vmatprep.subr.mxu0 0.0
  %5191 = vmatpush1.msra.mxu0 0.0
  %5192 = vmatprep.subr.mxu0 0.0
  %5193 = vmatpush1.msra.mxu0 0.0
  %5194 = vmatprep.subr.mxu0 0.0
  %5195 = vmatpush1.msra.mxu0 0.0
  %5196 = vmatprep.subr.mxu0 0.0
  %5197 = vmatpush1.msra.mxu0 0.0
  %5198 = vmatprep.subr.mxu0 0.0
  %5199 = vmatpush1.msra.mxu0 0.0
  %5200 = vmatprep.subr.mxu0 %v5054
  %5201 = vmatpush1.msra.mxu0 %v5053
  %5202 = vmatprep.subr.mxu0 %v5050
  %5203 = vmatpush1.msra.mxu0 %v5049
  %5204 = vmatprep.subr.mxu0 0.0
  %5205 = vmatpush2.msra.mxu0 0.0
  %5206 = vmatprep.subr.mxu0 0.0
  %5207 = vmatpush2.msra.mxu0 0.0
  %5208 = vmatprep.subr.mxu0 0.0
  %5209 = vmatpush2.msra.mxu0 0.0
  %5210 = vmatprep.subr.mxu0 0.0
  %5211 = vmatpush2.msra.mxu0 0.0
  %5212 = vmatprep.subr.mxu0 0.0
  %5213 = vmatpush2.msra.mxu0 0.0
  %5214 = vmatprep.subr.mxu0 0.0
  %5215 = vmatpush2.msra.mxu0 0.0
  %5216 = vmatprep.subr.mxu0 0.0
  %5217 = vmatpush2.msra.mxu0 0.0
  %5218 = vmatprep.subr.mxu0 0.0
  %5219 = vmatpush2.msra.mxu0 0.0
  %5220 = vmatprep.subr.mxu0 0.0
  %5221 = vmatpush2.msra.mxu0 0.0
  %5222 = vmatprep.subr.mxu0 0.0
  %5223 = vmatpush2.msra.mxu0 0.0
  %5224 = vmatprep.subr.mxu0 0.0
  %5225 = vmatpush2.msra.mxu0 0.0
  %5226 = vmatprep.subr.mxu0 0.0
  %5227 = vmatpush2.msra.mxu0 0.0
  %5228 = vmatprep.subr.mxu0 0.0
  %5229 = vmatpush2.msra.mxu0 0.0
  %5230 = vmatprep.subr.mxu0 0.0
  %5231 = vmatpush2.msra.mxu0 0.0
  %5232 = vmatprep.subr.mxu0 0.0
  %5233 = vmatpush2.msra.mxu0 0.0
  %5234 = vmatprep.subr.mxu0 0.0
  %5235 = vmatpush2.msra.mxu0 0.0
  %5236 = vmatprep.mubr.f32.mxu0 0.0
  %5237 = vmatmul.mubr.f32.gmra.mxu0 %v5072
  %v5238 = vpop.f32.mrf.mxu0
  %v5239 = vadd.f32 %v5057, %v5238
  %v5240 = vpop.f32.mrf.mxu0
  %v5241 = vadd.f32 %v5057, %v5240
  %5242 = vmatprep.mubr.f32.mxu0 0.0
  %5243 = vmatmul.mubr.f32.gmra.mxu0 %v5075
  %v5244 = vpop.f32.mrf.mxu0
  %v5245 = vadd.f32 %v5061, %v5244
  %v5246 = vpop.f32.mrf.mxu0
  %v5247 = vadd.f32 %v5061, %v5246
  %5248 = vmatprep.mubr.f32.mxu0 0.0
  %5249 = vmatmul.mubr.f32.gmra.mxu0 %v5078
  %v5250 = vpop.f32.mrf.mxu0
  %v5251 = vadd.f32 %v5065, %v5250
  %v5252 = vpop.f32.mrf.mxu0
  %v5253 = vadd.f32 %v5065, %v5252
  %5254 = vmatprep.mubr.f32.mxu0 0.0
  %5255 = vmatmul.mubr.f32.gmra.mxu0 %v5081
  %v5256 = vpop.f32.mrf.mxu0
  %v5257 = vadd.f32 %v5069, %v5256
  %v5258 = vpop.f32.mrf.mxu0
  %v5259 = vadd.f32 %v5069, %v5258
  %5260 = vdwg.mxu0
  %v5261 = vmul.f32 %v5150, %v5162
  %v5262 = vmul.f32 %v5152, %v5164
  %v5263 = vmul.f32 %v5239, %v5251
  %v5264 = vmul.f32 %v5241, %v5253
  %v5265 = vmul.f32 %v5156, %v5168
  %v5266 = vmul.f32 %v5158, %v5170
  %v5267 = vmul.f32 %v5245, %v5257
  %v5268 = vmul.f32 %v5247, %v5259
  %5269 = vset.pattern.permute.xlu0 5
  %5270 = vperm.xlu0 %5269, %v2396
  %v5271 = vpop.permute.xlu0 %5270
  %5273 = vset.pattern.permute.xlu0 5
  %5274 = vperm.xlu0 %5273, %v2397
  %v5275 = vpop.permute.xlu0 %5274
  %v5278 = vsel %vm2404, %v2390, 0
  %v5281 = vsel %vm2404, %v2391, 0
  %5283 = vmatprep.subr.mxu0 0.0
  %5284 = vmatpush1.msra.mxu0 0.0
  %5285 = vmatprep.subr.mxu0 0.0
  %5286 = vmatpush1.msra.mxu0 0.0
  %5287 = vmatprep.subr.mxu0 0.0
  %5288 = vmatpush1.msra.mxu0 0.0
  %5289 = vmatprep.subr.mxu0 0.0
  %5290 = vmatpush1.msra.mxu0 0.0
  %5291 = vmatprep.subr.mxu0 0.0
  %5292 = vmatpush1.msra.mxu0 0.0
  %5293 = vmatprep.subr.mxu0 0.0
  %5294 = vmatpush1.msra.mxu0 0.0
  %5295 = vmatprep.subr.mxu0 0.0
  %5296 = vmatpush1.msra.mxu0 0.0
  %5297 = vmatprep.subr.mxu0 0.0
  %5298 = vmatpush1.msra.mxu0 0.0
  %5299 = vmatprep.subr.mxu0 0.0
  %5300 = vmatpush1.msra.mxu0 0.0
  %5301 = vmatprep.subr.mxu0 0.0
  %5302 = vmatpush1.msra.mxu0 0.0
  %5303 = vmatprep.subr.mxu0 0.0
  %5304 = vmatpush1.msra.mxu0 0.0
  %5305 = vmatprep.subr.mxu0 0.0
  %5306 = vmatpush1.msra.mxu0 0.0
  %5307 = vmatprep.subr.mxu0 0.0
  %5308 = vmatpush1.msra.mxu0 0.0
  %5309 = vmatprep.subr.mxu0 0.0
  %5310 = vmatpush1.msra.mxu0 0.0
  %5311 = vmatprep.subr.mxu0 %v5266
  %5312 = vmatpush1.msra.mxu0 %v5265
  %5313 = vmatprep.subr.mxu0 %v5262
  %5314 = vmatpush1.msra.mxu0 %v5261
  %5315 = vmatprep.subr.mxu0 0.0
  %5316 = vmatpush2.msra.mxu0 0.0
  %5317 = vmatprep.subr.mxu0 0.0
  %5318 = vmatpush2.msra.mxu0 0.0
  %5319 = vmatprep.subr.mxu0 0.0
  %5320 = vmatpush2.msra.mxu0 0.0
  %5321 = vmatprep.subr.mxu0 0.0
  %5322 = vmatpush2.msra.mxu0 0.0
  %5323 = vmatprep.subr.mxu0 0.0
  %5324 = vmatpush2.msra.mxu0 0.0
  %5325 = vmatprep.subr.mxu0 0.0
  %5326 = vmatpush2.msra.mxu0 0.0
  %5327 = vmatprep.subr.mxu0 0.0
  %5328 = vmatpush2.msra.mxu0 0.0
  %5329 = vmatprep.subr.mxu0 0.0
  %5330 = vmatpush2.msra.mxu0 0.0
  %5331 = vmatprep.subr.mxu0 0.0
  %5332 = vmatpush2.msra.mxu0 0.0
  %5333 = vmatprep.subr.mxu0 0.0
  %5334 = vmatpush2.msra.mxu0 0.0
  %5335 = vmatprep.subr.mxu0 0.0
  %5336 = vmatpush2.msra.mxu0 0.0
  %5337 = vmatprep.subr.mxu0 0.0
  %5338 = vmatpush2.msra.mxu0 0.0
  %5339 = vmatprep.subr.mxu0 0.0
  %5340 = vmatpush2.msra.mxu0 0.0
  %5341 = vmatprep.subr.mxu0 0.0
  %5342 = vmatpush2.msra.mxu0 0.0
  %5343 = vmatprep.subr.mxu0 0.0
  %5344 = vmatpush2.msra.mxu0 0.0
  %5345 = vmatprep.subr.mxu0 0.0
  %5346 = vmatpush2.msra.mxu0 0.0
  %5347 = vmatprep.mubr.f32.mxu0 0.0
  %5348 = vmatmul.mubr.f32.gmra.mxu0 %v5278
  %v5349 = vpop.f32.mrf.mxu0
  %v5350 = vadd.f32 %v5271, %v5349
  %v5351 = vpop.f32.mrf.mxu0
  %v5352 = vadd.f32 %v5271, %v5351
  %5353 = vmatprep.mubr.f32.mxu0 0.0
  %5354 = vmatmul.mubr.f32.gmra.mxu0 %v5281
  %v5355 = vpop.f32.mrf.mxu0
  %v5356 = vadd.f32 %v5275, %v5355
  %v5357 = vpop.f32.mrf.mxu0
  %v5358 = vadd.f32 %v5275, %v5357
  %5359 = vdwg.mxu0
  %5360 = vmatprep.subr.mxu0 0.0
  %5361 = vmatpush1.msra.mxu0 0.0
  %5362 = vmatprep.subr.mxu0 0.0
  %5363 = vmatpush1.msra.mxu0 0.0
  %5364 = vmatprep.subr.mxu0 0.0
  %5365 = vmatpush1.msra.mxu0 0.0
  %5366 = vmatprep.subr.mxu0 0.0
  %5367 = vmatpush1.msra.mxu0 0.0
  %5368 = vmatprep.subr.mxu0 0.0
  %5369 = vmatpush1.msra.mxu0 0.0
  %5370 = vmatprep.subr.mxu0 0.0
  %5371 = vmatpush1.msra.mxu0 0.0
  %5372 = vmatprep.subr.mxu0 0.0
  %5373 = vmatpush1.msra.mxu0 0.0
  %5374 = vmatprep.subr.mxu0 0.0
  %5375 = vmatpush1.msra.mxu0 0.0
  %5376 = vmatprep.subr.mxu0 0.0
  %5377 = vmatpush1.msra.mxu0 0.0
  %5378 = vmatprep.subr.mxu0 0.0
  %5379 = vmatpush1.msra.mxu0 0.0
  %5380 = vmatprep.subr.mxu0 0.0
  %5381 = vmatpush1.msra.mxu0 0.0
  %5382 = vmatprep.subr.mxu0 0.0
  %5383 = vmatpush1.msra.mxu0 0.0
  %5384 = vmatprep.subr.mxu0 0.0
  %5385 = vmatpush1.msra.mxu0 0.0
  %5386 = vmatprep.subr.mxu0 0.0
  %5387 = vmatpush1.msra.mxu0 0.0
  %5388 = vmatprep.subr.mxu0 %v5268
  %5389 = vmatpush1.msra.mxu0 %v5267
  %5390 = vmatprep.subr.mxu0 %v5264
  %5391 = vmatpush1.msra.mxu0 %v5263
  %5392 = vmatprep.subr.mxu0 0.0
  %5393 = vmatpush2.msra.mxu0 0.0
  %5394 = vmatprep.subr.mxu0 0.0
  %5395 = vmatpush2.msra.mxu0 0.0
  %5396 = vmatprep.subr.mxu0 0.0
  %5397 = vmatpush2.msra.mxu0 0.0
  %5398 = vmatprep.subr.mxu0 0.0
  %5399 = vmatpush2.msra.mxu0 0.0
  %5400 = vmatprep.subr.mxu0 0.0
  %5401 = vmatpush2.msra.mxu0 0.0
  %5402 = vmatprep.subr.mxu0 0.0
  %5403 = vmatpush2.msra.mxu0 0.0
  %5404 = vmatprep.subr.mxu0 0.0
  %5405 = vmatpush2.msra.mxu0 0.0
  %5406 = vmatprep.subr.mxu0 0.0
  %5407 = vmatpush2.msra.mxu0 0.0
  %5408 = vmatprep.subr.mxu0 0.0
  %5409 = vmatpush2.msra.mxu0 0.0
  %5410 = vmatprep.subr.mxu0 0.0
  %5411 = vmatpush2.msra.mxu0 0.0
  %5412 = vmatprep.subr.mxu0 0.0
  %5413 = vmatpush2.msra.mxu0 0.0
  %5414 = vmatprep.subr.mxu0 0.0
  %5415 = vmatpush2.msra.mxu0 0.0
  %5416 = vmatprep.subr.mxu0 0.0
  %5417 = vmatpush2.msra.mxu0 0.0
  %5418 = vmatprep.subr.mxu0 0.0
  %5419 = vmatpush2.msra.mxu0 0.0
  %5420 = vmatprep.subr.mxu0 0.0
  %5421 = vmatpush2.msra.mxu0 0.0
  %5422 = vmatprep.subr.mxu0 0.0
  %5423 = vmatpush2.msra.mxu0 0.0
  %5424 = vmatprep.mubr.f32.mxu0 0.0
  %5425 = vmatmul.mubr.f32.gmra.mxu0 %v5278
  %v5426 = vpop.f32.mrf.mxu0
  %v5427 = vadd.f32 %v5271, %v5426
  %v5428 = vpop.f32.mrf.mxu0
  %v5429 = vadd.f32 %v5271, %v5428
  %5430 = vmatprep.mubr.f32.mxu0 0.0
  %5431 = vmatmul.mubr.f32.gmra.mxu0 %v5281
  %v5432 = vpop.f32.mrf.mxu0
  %v5433 = vadd.f32 %v5275, %v5432
  %v5434 = vpop.f32.mrf.mxu0
  %v5435 = vadd.f32 %v5275, %v5434
  %5436 = vdwg.mxu0
  %5437 = vset.pattern.permute.xlu0 8
  %5438 = vperm.xlu0 %5437, %v2396
  %v5439 = vpop.permute.xlu0 %5438
  %5441 = vset.pattern.permute.xlu0 8
  %5442 = vperm.xlu0 %5441, %v2397
  %v5443 = vpop.permute.xlu0 %5442
  %v5445 = vmul.f32 %v5350, %v5439
  %v5446 = vmul.f32 %v5352, %v5439
  %v5447 = vmul.f32 %v5427, %v5439
  %v5448 = vmul.f32 %v5429, %v5439
  %v5449 = vmul.f32 %v5356, %v5443
  %v5450 = vmul.f32 %v5358, %v5443
  %v5451 = vmul.f32 %v5433, %v5443
  %v5452 = vmul.f32 %v5435, %v5443
  %v5453 = vadd.f32 %v4627, %v5445
  %v5454 = vadd.f32 %v4628, %v5446
  %v5455 = vadd.f32 %v4629, %v5447
  %v5456 = vadd.f32 %v4630, %v5448
  %v5457 = vadd.f32 %v4631, %v5449
  %v5458 = vadd.f32 %v4632, %v5450
  %v5459 = vadd.f32 %v4633, %v5451
  %v5460 = vadd.f32 %v4634, %v5452
  %v5461 = vld [vmem:[%s9] sm:$0x7]
  %5462 = vrot.lane.b32.xlu0 %v5453, 17
  %v5463 = vpop.permute.xlu0 %5462
  %5464 = vrot.lane.b32.xlu0 %v5457, 17
  %v5465 = vpop.permute.xlu0 %5464
  %5466 = vrot.lane.b32.xlu0 %v5454, 17
  %v5467 = vpop.permute.xlu0 %5466
  %5468 = vrot.lane.b32.xlu0 %v5458, 17
  %v5469 = vpop.permute.xlu0 %5468
  %5470 = vrot.lane.b32.xlu0 %v5455, 17
  %v5471 = vpop.permute.xlu0 %5470
  %5472 = vrot.lane.b32.xlu0 %v5459, 17
  %v5473 = vpop.permute.xlu0 %5472
  %5474 = vrot.lane.b32.xlu0 %v5456, 17
  %v5475 = vpop.permute.xlu0 %5474
  %5476 = vrot.lane.b32.xlu0 %v5460, 17
  %v5477 = vpop.permute.xlu0 %5476
  %v5478 = vsel %vm573, %v5471, %v5475
  %v5479 = vsel %vm573, %v5473, %v5477
  %v5480 = vsel %vm573, %v5467, %v5471
  %v5481 = vsel %vm573, %v5469, %v5473
  %v5482 = vsel %vm573, %v5463, %v5467
  %v5483 = vsel %vm573, %v5465, %v5469
  %v5484 = vsel %vm573, %v5475, %v5463
  %v5485 = vsel %vm573, %v5477, %v5465
  %v5486 = vmul.f32 %v5484, %v602
  %v5487 = vmul.f32 %v5482, %v603
  %v5488 = vmul.f32 %v5480, %v604
  %v5489 = vmul.f32 %v5478, %v605
  %v5490 = vmul.f32 %v5485, %v602
  %v5491 = vmul.f32 %v5483, %v603
  %v5492 = vmul.f32 %v5481, %v604
  %v5493 = vmul.f32 %v5479, %v605
  %v5494 = vld [vmem:[%s8] sm:$0x7]
  %5495 = vrot.lane.b32.xlu0 %v5453, 16
  %v5496 = vpop.permute.xlu0 %5495
  %5497 = vrot.lane.b32.xlu0 %v5457, 16
  %v5498 = vpop.permute.xlu0 %5497
  %5499 = vrot.lane.b32.xlu0 %v5454, 16
  %v5500 = vpop.permute.xlu0 %5499
  %5501 = vrot.lane.b32.xlu0 %v5458, 16
  %v5502 = vpop.permute.xlu0 %5501
  %5503 = vrot.lane.b32.xlu0 %v5455, 16
  %v5504 = vpop.permute.xlu0 %5503
  %5505 = vrot.lane.b32.xlu0 %v5459, 16
  %v5506 = vpop.permute.xlu0 %5505
  %5507 = vrot.lane.b32.xlu0 %v5456, 16
  %v5508 = vpop.permute.xlu0 %5507
  %5509 = vrot.lane.b32.xlu0 %v5460, 16
  %v5510 = vpop.permute.xlu0 %5509
  %v5511 = vsel %vm620, %v5504, %v5508
  %v5512 = vsel %vm620, %v5506, %v5510
  %v5513 = vsel %vm620, %v5500, %v5504
  %v5514 = vsel %vm620, %v5502, %v5506
  %v5515 = vsel %vm620, %v5496, %v5500
  %v5516 = vsel %vm620, %v5498, %v5502
  %v5517 = vsel %vm620, %v5508, %v5496
  %v5518 = vsel %vm620, %v5510, %v5498
  %v5519 = vmul.f32 %v5517, %v629
  %v5520 = vmul.f32 %v5515, %v630
  %v5521 = vmul.f32 %v5513, %v631
  %v5522 = vmul.f32 %v5511, %v632
  %v5523 = vmul.f32 %v5518, %v629
  %v5524 = vmul.f32 %v5516, %v630
  %v5525 = vmul.f32 %v5514, %v631
  %v5526 = vmul.f32 %v5512, %v632
  %s5527 = scalar_lea.vmem %s8, 4
  %v5528 = vld [vmem:[%s5527] sm:$0x7]
  %v5530 = vsel %vm2404, %v5528, 0
  %5532 = vmatprep.subr.mxu0 0.0
  %5533 = vmatpush1.msra.mxu0 0.0
  %5534 = vmatprep.subr.mxu0 0.0
  %5535 = vmatpush1.msra.mxu0 0.0
  %5536 = vmatprep.subr.mxu0 0.0
  %5537 = vmatpush1.msra.mxu0 0.0
  %5538 = vmatprep.subr.mxu0 0.0
  %5539 = vmatpush1.msra.mxu0 0.0
  %5540 = vmatprep.subr.mxu0 0.0
  %5541 = vmatpush1.msra.mxu0 0.0
  %5542 = vmatprep.subr.mxu0 0.0
  %5543 = vmatpush1.msra.mxu0 0.0
  %5544 = vmatprep.subr.mxu0 0.0
  %5545 = vmatpush1.msra.mxu0 0.0
  %5546 = vmatprep.subr.mxu0 0.0
  %5547 = vmatpush1.msra.mxu0 0.0
  %5548 = vmatprep.subr.mxu0 0.0
  %5549 = vmatpush1.msra.mxu0 0.0
  %5550 = vmatprep.subr.mxu0 0.0
  %5551 = vmatpush1.msra.mxu0 0.0
  %5552 = vmatprep.subr.mxu0 0.0
  %5553 = vmatpush1.msra.mxu0 0.0
  %5554 = vmatprep.subr.mxu0 0.0
  %5555 = vmatpush1.msra.mxu0 0.0
  %5556 = vmatprep.subr.mxu0 0.0
  %5557 = vmatpush1.msra.mxu0 0.0
  %5558 = vmatprep.subr.mxu0 0.0
  %5559 = vmatpush1.msra.mxu0 0.0
  %5560 = vmatprep.subr.mxu0 %v5524
  %5561 = vmatpush1.msra.mxu0 %v5523
  %5562 = vmatprep.subr.mxu0 %v5520
  %5563 = vmatpush1.msra.mxu0 %v5519
  %5564 = vmatprep.subr.mxu0 0.0
  %5565 = vmatpush2.msra.mxu0 0.0
  %5566 = vmatprep.subr.mxu0 0.0
  %5567 = vmatpush2.msra.mxu0 0.0
  %5568 = vmatprep.subr.mxu0 0.0
  %5569 = vmatpush2.msra.mxu0 0.0
  %5570 = vmatprep.subr.mxu0 0.0
  %5571 = vmatpush2.msra.mxu0 0.0
  %5572 = vmatprep.subr.mxu0 0.0
  %5573 = vmatpush2.msra.mxu0 0.0
  %5574 = vmatprep.subr.mxu0 0.0
  %5575 = vmatpush2.msra.mxu0 0.0
  %5576 = vmatprep.subr.mxu0 0.0
  %5577 = vmatpush2.msra.mxu0 0.0
  %5578 = vmatprep.subr.mxu0 0.0
  %5579 = vmatpush2.msra.mxu0 0.0
  %5580 = vmatprep.subr.mxu0 0.0
  %5581 = vmatpush2.msra.mxu0 0.0
  %5582 = vmatprep.subr.mxu0 0.0
  %5583 = vmatpush2.msra.mxu0 0.0
  %5584 = vmatprep.subr.mxu0 0.0
  %5585 = vmatpush2.msra.mxu0 0.0
  %5586 = vmatprep.subr.mxu0 0.0
  %5587 = vmatpush2.msra.mxu0 0.0
  %5588 = vmatprep.subr.mxu0 0.0
  %5589 = vmatpush2.msra.mxu0 0.0
  %5590 = vmatprep.subr.mxu0 0.0
  %5591 = vmatpush2.msra.mxu0 0.0
  %5592 = vmatprep.subr.mxu0 0.0
  %5593 = vmatpush2.msra.mxu0 0.0
  %5594 = vmatprep.subr.mxu0 0.0
  %5595 = vmatpush2.msra.mxu0 0.0
  %5596 = vmatprep.mubr.f32.mxu0 0.0
  %5597 = vmatmul.mubr.f32.gmra.mxu0 %v5530
  %v5598 = vpop.f32.mrf.mxu0
  %v5599 = vadd.f32 0.0, %v5598
  %v5600 = vpop.f32.mrf.mxu0
  %v5601 = vadd.f32 0.0, %v5600
  %5602 = vdwg.mxu0
  %5603 = vmatprep.subr.mxu0 0.0
  %5604 = vmatpush1.msra.mxu0 0.0
  %5605 = vmatprep.subr.mxu0 0.0
  %5606 = vmatpush1.msra.mxu0 0.0
  %5607 = vmatprep.subr.mxu0 0.0
  %5608 = vmatpush1.msra.mxu0 0.0
  %5609 = vmatprep.subr.mxu0 0.0
  %5610 = vmatpush1.msra.mxu0 0.0
  %5611 = vmatprep.subr.mxu0 0.0
  %5612 = vmatpush1.msra.mxu0 0.0
  %5613 = vmatprep.subr.mxu0 0.0
  %5614 = vmatpush1.msra.mxu0 0.0
  %5615 = vmatprep.subr.mxu0 0.0
  %5616 = vmatpush1.msra.mxu0 0.0
  %5617 = vmatprep.subr.mxu0 0.0
  %5618 = vmatpush1.msra.mxu0 0.0
  %5619 = vmatprep.subr.mxu0 0.0
  %5620 = vmatpush1.msra.mxu0 0.0
  %5621 = vmatprep.subr.mxu0 0.0
  %5622 = vmatpush1.msra.mxu0 0.0
  %5623 = vmatprep.subr.mxu0 0.0
  %5624 = vmatpush1.msra.mxu0 0.0
  %5625 = vmatprep.subr.mxu0 0.0
  %5626 = vmatpush1.msra.mxu0 0.0
  %5627 = vmatprep.subr.mxu0 0.0
  %5628 = vmatpush1.msra.mxu0 0.0
  %5629 = vmatprep.subr.mxu0 0.0
  %5630 = vmatpush1.msra.mxu0 0.0
  %5631 = vmatprep.subr.mxu0 %v5526
  %5632 = vmatpush1.msra.mxu0 %v5525
  %5633 = vmatprep.subr.mxu0 %v5522
  %5634 = vmatpush1.msra.mxu0 %v5521
  %5635 = vmatprep.subr.mxu0 0.0
  %5636 = vmatpush2.msra.mxu0 0.0
  %5637 = vmatprep.subr.mxu0 0.0
  %5638 = vmatpush2.msra.mxu0 0.0
  %5639 = vmatprep.subr.mxu0 0.0
  %5640 = vmatpush2.msra.mxu0 0.0
  %5641 = vmatprep.subr.mxu0 0.0
  %5642 = vmatpush2.msra.mxu0 0.0
  %5643 = vmatprep.subr.mxu0 0.0
  %5644 = vmatpush2.msra.mxu0 0.0
  %5645 = vmatprep.subr.mxu0 0.0
  %5646 = vmatpush2.msra.mxu0 0.0
  %5647 = vmatprep.subr.mxu0 0.0
  %5648 = vmatpush2.msra.mxu0 0.0
  %5649 = vmatprep.subr.mxu0 0.0
  %5650 = vmatpush2.msra.mxu0 0.0
  %5651 = vmatprep.subr.mxu0 0.0
  %5652 = vmatpush2.msra.mxu0 0.0
  %5653 = vmatprep.subr.mxu0 0.0
  %5654 = vmatpush2.msra.mxu0 0.0
  %5655 = vmatprep.subr.mxu0 0.0
  %5656 = vmatpush2.msra.mxu0 0.0
  %5657 = vmatprep.subr.mxu0 0.0
  %5658 = vmatpush2.msra.mxu0 0.0
  %5659 = vmatprep.subr.mxu0 0.0
  %5660 = vmatpush2.msra.mxu0 0.0
  %5661 = vmatprep.subr.mxu0 0.0
  %5662 = vmatpush2.msra.mxu0 0.0
  %5663 = vmatprep.subr.mxu0 0.0
  %5664 = vmatpush2.msra.mxu0 0.0
  %5665 = vmatprep.subr.mxu0 0.0
  %5666 = vmatpush2.msra.mxu0 0.0
  %5667 = vmatprep.mubr.f32.mxu0 0.0
  %5668 = vmatmul.mubr.f32.gmra.mxu0 %v5530
  %v5669 = vpop.f32.mrf.mxu0
  %v5670 = vadd.f32 0.0, %v5669
  %v5671 = vpop.f32.mrf.mxu0
  %v5672 = vadd.f32 0.0, %v5671
  %5673 = vdwg.mxu0
  %v5675 = vsel %vm2404, %v5494, 0
  %5677 = vmatprep.subr.mxu0 0.0
  %5678 = vmatpush1.msra.mxu0 0.0
  %5679 = vmatprep.subr.mxu0 0.0
  %5680 = vmatpush1.msra.mxu0 0.0
  %5681 = vmatprep.subr.mxu0 0.0
  %5682 = vmatpush1.msra.mxu0 0.0
  %5683 = vmatprep.subr.mxu0 0.0
  %5684 = vmatpush1.msra.mxu0 0.0
  %5685 = vmatprep.subr.mxu0 0.0
  %5686 = vmatpush1.msra.mxu0 0.0
  %5687 = vmatprep.subr.mxu0 0.0
  %5688 = vmatpush1.msra.mxu0 0.0
  %5689 = vmatprep.subr.mxu0 0.0
  %5690 = vmatpush1.msra.mxu0 0.0
  %5691 = vmatprep.subr.mxu0 0.0
  %5692 = vmatpush1.msra.mxu0 0.0
  %5693 = vmatprep.subr.mxu0 0.0
  %5694 = vmatpush1.msra.mxu0 0.0
  %5695 = vmatprep.subr.mxu0 0.0
  %5696 = vmatpush1.msra.mxu0 0.0
  %5697 = vmatprep.subr.mxu0 0.0
  %5698 = vmatpush1.msra.mxu0 0.0
  %5699 = vmatprep.subr.mxu0 0.0
  %5700 = vmatpush1.msra.mxu0 0.0
  %5701 = vmatprep.subr.mxu0 0.0
  %5702 = vmatpush1.msra.mxu0 0.0
  %5703 = vmatprep.subr.mxu0 0.0
  %5704 = vmatpush1.msra.mxu0 0.0
  %5705 = vmatprep.subr.mxu0 %v5491
  %5706 = vmatpush1.msra.mxu0 %v5490
  %5707 = vmatprep.subr.mxu0 %v5487
  %5708 = vmatpush1.msra.mxu0 %v5486
  %5709 = vmatprep.subr.mxu0 0.0
  %5710 = vmatpush2.msra.mxu0 0.0
  %5711 = vmatprep.subr.mxu0 0.0
  %5712 = vmatpush2.msra.mxu0 0.0
  %5713 = vmatprep.subr.mxu0 0.0
  %5714 = vmatpush2.msra.mxu0 0.0
  %5715 = vmatprep.subr.mxu0 0.0
  %5716 = vmatpush2.msra.mxu0 0.0
  %5717 = vmatprep.subr.mxu0 0.0
  %5718 = vmatpush2.msra.mxu0 0.0
  %5719 = vmatprep.subr.mxu0 0.0
  %5720 = vmatpush2.msra.mxu0 0.0
  %5721 = vmatprep.subr.mxu0 0.0
  %5722 = vmatpush2.msra.mxu0 0.0
  %5723 = vmatprep.subr.mxu0 0.0
  %5724 = vmatpush2.msra.mxu0 0.0
  %5725 = vmatprep.subr.mxu0 0.0
  %5726 = vmatpush2.msra.mxu0 0.0
  %5727 = vmatprep.subr.mxu0 0.0
  %5728 = vmatpush2.msra.mxu0 0.0
  %5729 = vmatprep.subr.mxu0 0.0
  %5730 = vmatpush2.msra.mxu0 0.0
  %5731 = vmatprep.subr.mxu0 0.0
  %5732 = vmatpush2.msra.mxu0 0.0
  %5733 = vmatprep.subr.mxu0 0.0
  %5734 = vmatpush2.msra.mxu0 0.0
  %5735 = vmatprep.subr.mxu0 0.0
  %5736 = vmatpush2.msra.mxu0 0.0
  %5737 = vmatprep.subr.mxu0 0.0
  %5738 = vmatpush2.msra.mxu0 0.0
  %5739 = vmatprep.subr.mxu0 0.0
  %5740 = vmatpush2.msra.mxu0 0.0
  %5741 = vmatprep.mubr.f32.mxu0 0.0
  %5742 = vmatmul.mubr.f32.gmra.mxu0 %v5675
  %v5743 = vpop.f32.mrf.mxu0
  %v5744 = vadd.f32 %v5599, %v5743
  %v5745 = vpop.f32.mrf.mxu0
  %v5746 = vadd.f32 %v5601, %v5745
  %5747 = vdwg.mxu0
  %5748 = vmatprep.subr.mxu0 0.0
  %5749 = vmatpush1.msra.mxu0 0.0
  %5750 = vmatprep.subr.mxu0 0.0
  %5751 = vmatpush1.msra.mxu0 0.0
  %5752 = vmatprep.subr.mxu0 0.0
  %5753 = vmatpush1.msra.mxu0 0.0
  %5754 = vmatprep.subr.mxu0 0.0
  %5755 = vmatpush1.msra.mxu0 0.0
  %5756 = vmatprep.subr.mxu0 0.0
  %5757 = vmatpush1.msra.mxu0 0.0
  %5758 = vmatprep.subr.mxu0 0.0
  %5759 = vmatpush1.msra.mxu0 0.0
  %5760 = vmatprep.subr.mxu0 0.0
  %5761 = vmatpush1.msra.mxu0 0.0
  %5762 = vmatprep.subr.mxu0 0.0
  %5763 = vmatpush1.msra.mxu0 0.0
  %5764 = vmatprep.subr.mxu0 0.0
  %5765 = vmatpush1.msra.mxu0 0.0
  %5766 = vmatprep.subr.mxu0 0.0
  %5767 = vmatpush1.msra.mxu0 0.0
  %5768 = vmatprep.subr.mxu0 0.0
  %5769 = vmatpush1.msra.mxu0 0.0
  %5770 = vmatprep.subr.mxu0 0.0
  %5771 = vmatpush1.msra.mxu0 0.0
  %5772 = vmatprep.subr.mxu0 0.0
  %5773 = vmatpush1.msra.mxu0 0.0
  %5774 = vmatprep.subr.mxu0 0.0
  %5775 = vmatpush1.msra.mxu0 0.0
  %5776 = vmatprep.subr.mxu0 %v5493
  %5777 = vmatpush1.msra.mxu0 %v5492
  %5778 = vmatprep.subr.mxu0 %v5489
  %5779 = vmatpush1.msra.mxu0 %v5488
  %5780 = vmatprep.subr.mxu0 0.0
  %5781 = vmatpush2.msra.mxu0 0.0
  %5782 = vmatprep.subr.mxu0 0.0
  %5783 = vmatpush2.msra.mxu0 0.0
  %5784 = vmatprep.subr.mxu0 0.0
  %5785 = vmatpush2.msra.mxu0 0.0
  %5786 = vmatprep.subr.mxu0 0.0
  %5787 = vmatpush2.msra.mxu0 0.0
  %5788 = vmatprep.subr.mxu0 0.0
  %5789 = vmatpush2.msra.mxu0 0.0
  %5790 = vmatprep.subr.mxu0 0.0
  %5791 = vmatpush2.msra.mxu0 0.0
  %5792 = vmatprep.subr.mxu0 0.0
  %5793 = vmatpush2.msra.mxu0 0.0
  %5794 = vmatprep.subr.mxu0 0.0
  %5795 = vmatpush2.msra.mxu0 0.0
  %5796 = vmatprep.subr.mxu0 0.0
  %5797 = vmatpush2.msra.mxu0 0.0
  %5798 = vmatprep.subr.mxu0 0.0
  %5799 = vmatpush2.msra.mxu0 0.0
  %5800 = vmatprep.subr.mxu0 0.0
  %5801 = vmatpush2.msra.mxu0 0.0
  %5802 = vmatprep.subr.mxu0 0.0
  %5803 = vmatpush2.msra.mxu0 0.0
  %5804 = vmatprep.subr.mxu0 0.0
  %5805 = vmatpush2.msra.mxu0 0.0
  %5806 = vmatprep.subr.mxu0 0.0
  %5807 = vmatpush2.msra.mxu0 0.0
  %5808 = vmatprep.subr.mxu0 0.0
  %5809 = vmatpush2.msra.mxu0 0.0
  %5810 = vmatprep.subr.mxu0 0.0
  %5811 = vmatpush2.msra.mxu0 0.0
  %5812 = vmatprep.mubr.f32.mxu0 0.0
  %5813 = vmatmul.mubr.f32.gmra.mxu0 %v5675
  %v5814 = vpop.f32.mrf.mxu0
  %v5815 = vadd.f32 %v5670, %v5814
  %v5816 = vpop.f32.mrf.mxu0
  %v5817 = vadd.f32 %v5672, %v5816
  %5818 = vdwg.mxu0
  %5819 = vrot.lane.b32.xlu0 %v5453, 15
  %v5820 = vpop.permute.xlu0 %5819
  %5821 = vrot.lane.b32.xlu0 %v5457, 15
  %v5822 = vpop.permute.xlu0 %5821
  %5823 = vrot.lane.b32.xlu0 %v5454, 15
  %v5824 = vpop.permute.xlu0 %5823
  %5825 = vrot.lane.b32.xlu0 %v5458, 15
  %v5826 = vpop.permute.xlu0 %5825
  %5827 = vrot.lane.b32.xlu0 %v5455, 15
  %v5828 = vpop.permute.xlu0 %5827
  %5829 = vrot.lane.b32.xlu0 %v5459, 15
  %v5830 = vpop.permute.xlu0 %5829
  %5831 = vrot.lane.b32.xlu0 %v5456, 15
  %v5832 = vpop.permute.xlu0 %5831
  %5833 = vrot.lane.b32.xlu0 %v5460, 15
  %v5834 = vpop.permute.xlu0 %5833
  %v5835 = vsel %vm969, %v5828, %v5832
  %v5836 = vsel %vm969, %v5830, %v5834
  %v5837 = vsel %vm969, %v5824, %v5828
  %v5838 = vsel %vm969, %v5826, %v5830
  %v5839 = vsel %vm969, %v5820, %v5824
  %v5840 = vsel %vm969, %v5822, %v5826
  %v5841 = vsel %vm969, %v5832, %v5820
  %v5842 = vsel %vm969, %v5834, %v5822
  %v5843 = vmul.f32 %v5841, %v986
  %v5844 = vmul.f32 %v5839, %v987
  %v5845 = vmul.f32 %v5837, %v988
  %v5846 = vmul.f32 %v5835, %v989
  %v5847 = vmul.f32 %v5842, %v986
  %v5848 = vmul.f32 %v5840, %v987
  %v5849 = vmul.f32 %v5838, %v988
  %v5850 = vmul.f32 %v5836, %v989
  %s5851 = scalar_lea.vmem %s8, 8
  %v5852 = vld [vmem:[%s5851] sm:$0x7]
  %v5854 = vsel %vm2404, %v5852, 0
  %5856 = vmatprep.subr.mxu0 0.0
  %5857 = vmatpush1.msra.mxu0 0.0
  %5858 = vmatprep.subr.mxu0 0.0
  %5859 = vmatpush1.msra.mxu0 0.0
  %5860 = vmatprep.subr.mxu0 0.0
  %5861 = vmatpush1.msra.mxu0 0.0
  %5862 = vmatprep.subr.mxu0 0.0
  %5863 = vmatpush1.msra.mxu0 0.0
  %5864 = vmatprep.subr.mxu0 0.0
  %5865 = vmatpush1.msra.mxu0 0.0
  %5866 = vmatprep.subr.mxu0 0.0
  %5867 = vmatpush1.msra.mxu0 0.0
  %5868 = vmatprep.subr.mxu0 0.0
  %5869 = vmatpush1.msra.mxu0 0.0
  %5870 = vmatprep.subr.mxu0 0.0
  %5871 = vmatpush1.msra.mxu0 0.0
  %5872 = vmatprep.subr.mxu0 0.0
  %5873 = vmatpush1.msra.mxu0 0.0
  %5874 = vmatprep.subr.mxu0 0.0
  %5875 = vmatpush1.msra.mxu0 0.0
  %5876 = vmatprep.subr.mxu0 0.0
  %5877 = vmatpush1.msra.mxu0 0.0
  %5878 = vmatprep.subr.mxu0 0.0
  %5879 = vmatpush1.msra.mxu0 0.0
  %5880 = vmatprep.subr.mxu0 0.0
  %5881 = vmatpush1.msra.mxu0 0.0
  %5882 = vmatprep.subr.mxu0 0.0
  %5883 = vmatpush1.msra.mxu0 0.0
  %5884 = vmatprep.subr.mxu0 %v5848
  %5885 = vmatpush1.msra.mxu0 %v5847
  %5886 = vmatprep.subr.mxu0 %v5844
  %5887 = vmatpush1.msra.mxu0 %v5843
  %5888 = vmatprep.subr.mxu0 0.0
  %5889 = vmatpush2.msra.mxu0 0.0
  %5890 = vmatprep.subr.mxu0 0.0
  %5891 = vmatpush2.msra.mxu0 0.0
  %5892 = vmatprep.subr.mxu0 0.0
  %5893 = vmatpush2.msra.mxu0 0.0
  %5894 = vmatprep.subr.mxu0 0.0
  %5895 = vmatpush2.msra.mxu0 0.0
  %5896 = vmatprep.subr.mxu0 0.0
  %5897 = vmatpush2.msra.mxu0 0.0
  %5898 = vmatprep.subr.mxu0 0.0
  %5899 = vmatpush2.msra.mxu0 0.0
  %5900 = vmatprep.subr.mxu0 0.0
  %5901 = vmatpush2.msra.mxu0 0.0
  %5902 = vmatprep.subr.mxu0 0.0
  %5903 = vmatpush2.msra.mxu0 0.0
  %5904 = vmatprep.subr.mxu0 0.0
  %5905 = vmatpush2.msra.mxu0 0.0
  %5906 = vmatprep.subr.mxu0 0.0
  %5907 = vmatpush2.msra.mxu0 0.0
  %5908 = vmatprep.subr.mxu0 0.0
  %5909 = vmatpush2.msra.mxu0 0.0
  %5910 = vmatprep.subr.mxu0 0.0
  %5911 = vmatpush2.msra.mxu0 0.0
  %5912 = vmatprep.subr.mxu0 0.0
  %5913 = vmatpush2.msra.mxu0 0.0
  %5914 = vmatprep.subr.mxu0 0.0
  %5915 = vmatpush2.msra.mxu0 0.0
  %5916 = vmatprep.subr.mxu0 0.0
  %5917 = vmatpush2.msra.mxu0 0.0
  %5918 = vmatprep.subr.mxu0 0.0
  %5919 = vmatpush2.msra.mxu0 0.0
  %5920 = vmatprep.mubr.f32.mxu0 0.0
  %5921 = vmatmul.mubr.f32.gmra.mxu0 %v5854
  %v5922 = vpop.f32.mrf.mxu0
  %v5923 = vadd.f32 0.0, %v5922
  %v5924 = vpop.f32.mrf.mxu0
  %v5925 = vadd.f32 0.0, %v5924
  %5926 = vdwg.mxu0
  %5927 = vmatprep.subr.mxu0 0.0
  %5928 = vmatpush1.msra.mxu0 0.0
  %5929 = vmatprep.subr.mxu0 0.0
  %5930 = vmatpush1.msra.mxu0 0.0
  %5931 = vmatprep.subr.mxu0 0.0
  %5932 = vmatpush1.msra.mxu0 0.0
  %5933 = vmatprep.subr.mxu0 0.0
  %5934 = vmatpush1.msra.mxu0 0.0
  %5935 = vmatprep.subr.mxu0 0.0
  %5936 = vmatpush1.msra.mxu0 0.0
  %5937 = vmatprep.subr.mxu0 0.0
  %5938 = vmatpush1.msra.mxu0 0.0
  %5939 = vmatprep.subr.mxu0 0.0
  %5940 = vmatpush1.msra.mxu0 0.0
  %5941 = vmatprep.subr.mxu0 0.0
  %5942 = vmatpush1.msra.mxu0 0.0
  %5943 = vmatprep.subr.mxu0 0.0
  %5944 = vmatpush1.msra.mxu0 0.0
  %5945 = vmatprep.subr.mxu0 0.0
  %5946 = vmatpush1.msra.mxu0 0.0
  %5947 = vmatprep.subr.mxu0 0.0
  %5948 = vmatpush1.msra.mxu0 0.0
  %5949 = vmatprep.subr.mxu0 0.0
  %5950 = vmatpush1.msra.mxu0 0.0
  %5951 = vmatprep.subr.mxu0 0.0
  %5952 = vmatpush1.msra.mxu0 0.0
  %5953 = vmatprep.subr.mxu0 0.0
  %5954 = vmatpush1.msra.mxu0 0.0
  %5955 = vmatprep.subr.mxu0 %v5850
  %5956 = vmatpush1.msra.mxu0 %v5849
  %5957 = vmatprep.subr.mxu0 %v5846
  %5958 = vmatpush1.msra.mxu0 %v5845
  %5959 = vmatprep.subr.mxu0 0.0
  %5960 = vmatpush2.msra.mxu0 0.0
  %5961 = vmatprep.subr.mxu0 0.0
  %5962 = vmatpush2.msra.mxu0 0.0
  %5963 = vmatprep.subr.mxu0 0.0
  %5964 = vmatpush2.msra.mxu0 0.0
  %5965 = vmatprep.subr.mxu0 0.0
  %5966 = vmatpush2.msra.mxu0 0.0
  %5967 = vmatprep.subr.mxu0 0.0
  %5968 = vmatpush2.msra.mxu0 0.0
  %5969 = vmatprep.subr.mxu0 0.0
  %5970 = vmatpush2.msra.mxu0 0.0
  %5971 = vmatprep.subr.mxu0 0.0
  %5972 = vmatpush2.msra.mxu0 0.0
  %5973 = vmatprep.subr.mxu0 0.0
  %5974 = vmatpush2.msra.mxu0 0.0
  %5975 = vmatprep.subr.mxu0 0.0
  %5976 = vmatpush2.msra.mxu0 0.0
  %5977 = vmatprep.subr.mxu0 0.0
  %5978 = vmatpush2.msra.mxu0 0.0
  %5979 = vmatprep.subr.mxu0 0.0
  %5980 = vmatpush2.msra.mxu0 0.0
  %5981 = vmatprep.subr.mxu0 0.0
  %5982 = vmatpush2.msra.mxu0 0.0
  %5983 = vmatprep.subr.mxu0 0.0
  %5984 = vmatpush2.msra.mxu0 0.0
  %5985 = vmatprep.subr.mxu0 0.0
  %5986 = vmatpush2.msra.mxu0 0.0
  %5987 = vmatprep.subr.mxu0 0.0
  %5988 = vmatpush2.msra.mxu0 0.0
  %5989 = vmatprep.subr.mxu0 0.0
  %5990 = vmatpush2.msra.mxu0 0.0
  %5991 = vmatprep.mubr.f32.mxu0 0.0
  %5992 = vmatmul.mubr.f32.gmra.mxu0 %v5854
  %v5993 = vpop.f32.mrf.mxu0
  %v5994 = vadd.f32 0.0, %v5993
  %v5995 = vpop.f32.mrf.mxu0
  %v5996 = vadd.f32 0.0, %v5995
  %5997 = vdwg.mxu0
  %v5998 = vadd.f32 %v5744, %v5923
  %v5999 = vadd.f32 %v5746, %v5925
  %v6000 = vadd.f32 %v5815, %v5994
  %v6001 = vadd.f32 %v5817, %v5996
  %6002 = vrot.lane.b32.xlu0 %v5453, 1
  %v6003 = vpop.permute.xlu0 %6002
  %6004 = vrot.lane.b32.xlu0 %v5457, 1
  %v6005 = vpop.permute.xlu0 %6004
  %6006 = vrot.lane.b32.xlu0 %v5454, 1
  %v6007 = vpop.permute.xlu0 %6006
  %6008 = vrot.lane.b32.xlu0 %v5458, 1
  %v6009 = vpop.permute.xlu0 %6008
  %6010 = vrot.lane.b32.xlu0 %v5455, 1
  %v6011 = vpop.permute.xlu0 %6010
  %6012 = vrot.lane.b32.xlu0 %v5459, 1
  %v6013 = vpop.permute.xlu0 %6012
  %6014 = vrot.lane.b32.xlu0 %v5456, 1
  %v6015 = vpop.permute.xlu0 %6014
  %6016 = vrot.lane.b32.xlu0 %v5460, 1
  %v6017 = vpop.permute.xlu0 %6016
  %v6018 = vsel %vm1173, %v6011, %v6015
  %v6019 = vsel %vm1173, %v6013, %v6017
  %v6020 = vsel %vm1173, %v6007, %v6011
  %v6021 = vsel %vm1173, %v6009, %v6013
  %v6022 = vsel %vm1173, %v6003, %v6007
  %v6023 = vsel %vm1173, %v6005, %v6009
  %v6024 = vsel %vm1173, %v6015, %v6003
  %v6025 = vsel %vm1173, %v6017, %v6005
  %v6026 = vmul.f32 %v6024, %v1194
  %v6027 = vmul.f32 %v6022, %v1195
  %v6028 = vmul.f32 %v6020, %v1196
  %v6029 = vmul.f32 %v6018, %v1197
  %v6030 = vmul.f32 %v6025, %v1194
  %v6031 = vmul.f32 %v6023, %v1195
  %v6032 = vmul.f32 %v6021, %v1196
  %v6033 = vmul.f32 %v6019, %v1197
  %s6034 = scalar_lea.vmem %s8, 12
  %v6035 = vld [vmem:[%s6034] sm:$0x7]
  %v6037 = vsel %vm2404, %v6035, 0
  %6039 = vmatprep.subr.mxu0 0.0
  %6040 = vmatpush1.msra.mxu0 0.0
  %6041 = vmatprep.subr.mxu0 0.0
  %6042 = vmatpush1.msra.mxu0 0.0
  %6043 = vmatprep.subr.mxu0 0.0
  %6044 = vmatpush1.msra.mxu0 0.0
  %6045 = vmatprep.subr.mxu0 0.0
  %6046 = vmatpush1.msra.mxu0 0.0
  %6047 = vmatprep.subr.mxu0 0.0
  %6048 = vmatpush1.msra.mxu0 0.0
  %6049 = vmatprep.subr.mxu0 0.0
  %6050 = vmatpush1.msra.mxu0 0.0
  %6051 = vmatprep.subr.mxu0 0.0
  %6052 = vmatpush1.msra.mxu0 0.0
  %6053 = vmatprep.subr.mxu0 0.0
  %6054 = vmatpush1.msra.mxu0 0.0
  %6055 = vmatprep.subr.mxu0 0.0
  %6056 = vmatpush1.msra.mxu0 0.0
  %6057 = vmatprep.subr.mxu0 0.0
  %6058 = vmatpush1.msra.mxu0 0.0
  %6059 = vmatprep.subr.mxu0 0.0
  %6060 = vmatpush1.msra.mxu0 0.0
  %6061 = vmatprep.subr.mxu0 0.0
  %6062 = vmatpush1.msra.mxu0 0.0
  %6063 = vmatprep.subr.mxu0 0.0
  %6064 = vmatpush1.msra.mxu0 0.0
  %6065 = vmatprep.subr.mxu0 0.0
  %6066 = vmatpush1.msra.mxu0 0.0
  %6067 = vmatprep.subr.mxu0 %v6031
  %6068 = vmatpush1.msra.mxu0 %v6030
  %6069 = vmatprep.subr.mxu0 %v6027
  %6070 = vmatpush1.msra.mxu0 %v6026
  %6071 = vmatprep.subr.mxu0 0.0
  %6072 = vmatpush2.msra.mxu0 0.0
  %6073 = vmatprep.subr.mxu0 0.0
  %6074 = vmatpush2.msra.mxu0 0.0
  %6075 = vmatprep.subr.mxu0 0.0
  %6076 = vmatpush2.msra.mxu0 0.0
  %6077 = vmatprep.subr.mxu0 0.0
  %6078 = vmatpush2.msra.mxu0 0.0
  %6079 = vmatprep.subr.mxu0 0.0
  %6080 = vmatpush2.msra.mxu0 0.0
  %6081 = vmatprep.subr.mxu0 0.0
  %6082 = vmatpush2.msra.mxu0 0.0
  %6083 = vmatprep.subr.mxu0 0.0
  %6084 = vmatpush2.msra.mxu0 0.0
  %6085 = vmatprep.subr.mxu0 0.0
  %6086 = vmatpush2.msra.mxu0 0.0
  %6087 = vmatprep.subr.mxu0 0.0
  %6088 = vmatpush2.msra.mxu0 0.0
  %6089 = vmatprep.subr.mxu0 0.0
  %6090 = vmatpush2.msra.mxu0 0.0
  %6091 = vmatprep.subr.mxu0 0.0
  %6092 = vmatpush2.msra.mxu0 0.0
  %6093 = vmatprep.subr.mxu0 0.0
  %6094 = vmatpush2.msra.mxu0 0.0
  %6095 = vmatprep.subr.mxu0 0.0
  %6096 = vmatpush2.msra.mxu0 0.0
  %6097 = vmatprep.subr.mxu0 0.0
  %6098 = vmatpush2.msra.mxu0 0.0
  %6099 = vmatprep.subr.mxu0 0.0
  %6100 = vmatpush2.msra.mxu0 0.0
  %6101 = vmatprep.subr.mxu0 0.0
  %6102 = vmatpush2.msra.mxu0 0.0
  %6103 = vmatprep.mubr.f32.mxu0 0.0
  %6104 = vmatmul.mubr.f32.gmra.mxu0 %v6037
  %v6105 = vpop.f32.mrf.mxu0
  %v6106 = vadd.f32 0.0, %v6105
  %v6107 = vpop.f32.mrf.mxu0
  %v6108 = vadd.f32 0.0, %v6107
  %6109 = vdwg.mxu0
  %6110 = vmatprep.subr.mxu0 0.0
  %6111 = vmatpush1.msra.mxu0 0.0
  %6112 = vmatprep.subr.mxu0 0.0
  %6113 = vmatpush1.msra.mxu0 0.0
  %6114 = vmatprep.subr.mxu0 0.0
  %6115 = vmatpush1.msra.mxu0 0.0
  %6116 = vmatprep.subr.mxu0 0.0
  %6117 = vmatpush1.msra.mxu0 0.0
  %6118 = vmatprep.subr.mxu0 0.0
  %6119 = vmatpush1.msra.mxu0 0.0
  %6120 = vmatprep.subr.mxu0 0.0
  %6121 = vmatpush1.msra.mxu0 0.0
  %6122 = vmatprep.subr.mxu0 0.0
  %6123 = vmatpush1.msra.mxu0 0.0
  %6124 = vmatprep.subr.mxu0 0.0
  %6125 = vmatpush1.msra.mxu0 0.0
  %6126 = vmatprep.subr.mxu0 0.0
  %6127 = vmatpush1.msra.mxu0 0.0
  %6128 = vmatprep.subr.mxu0 0.0
  %6129 = vmatpush1.msra.mxu0 0.0
  %6130 = vmatprep.subr.mxu0 0.0
  %6131 = vmatpush1.msra.mxu0 0.0
  %6132 = vmatprep.subr.mxu0 0.0
  %6133 = vmatpush1.msra.mxu0 0.0
  %6134 = vmatprep.subr.mxu0 0.0
  %6135 = vmatpush1.msra.mxu0 0.0
  %6136 = vmatprep.subr.mxu0 0.0
  %6137 = vmatpush1.msra.mxu0 0.0
  %6138 = vmatprep.subr.mxu0 %v6033
  %6139 = vmatpush1.msra.mxu0 %v6032
  %6140 = vmatprep.subr.mxu0 %v6029
  %6141 = vmatpush1.msra.mxu0 %v6028
  %6142 = vmatprep.subr.mxu0 0.0
  %6143 = vmatpush2.msra.mxu0 0.0
  %6144 = vmatprep.subr.mxu0 0.0
  %6145 = vmatpush2.msra.mxu0 0.0
  %6146 = vmatprep.subr.mxu0 0.0
  %6147 = vmatpush2.msra.mxu0 0.0
  %6148 = vmatprep.subr.mxu0 0.0
  %6149 = vmatpush2.msra.mxu0 0.0
  %6150 = vmatprep.subr.mxu0 0.0
  %6151 = vmatpush2.msra.mxu0 0.0
  %6152 = vmatprep.subr.mxu0 0.0
  %6153 = vmatpush2.msra.mxu0 0.0
  %6154 = vmatprep.subr.mxu0 0.0
  %6155 = vmatpush2.msra.mxu0 0.0
  %6156 = vmatprep.subr.mxu0 0.0
  %6157 = vmatpush2.msra.mxu0 0.0
  %6158 = vmatprep.subr.mxu0 0.0
  %6159 = vmatpush2.msra.mxu0 0.0
  %6160 = vmatprep.subr.mxu0 0.0
  %6161 = vmatpush2.msra.mxu0 0.0
  %6162 = vmatprep.subr.mxu0 0.0
  %6163 = vmatpush2.msra.mxu0 0.0
  %6164 = vmatprep.subr.mxu0 0.0
  %6165 = vmatpush2.msra.mxu0 0.0
  %6166 = vmatprep.subr.mxu0 0.0
  %6167 = vmatpush2.msra.mxu0 0.0
  %6168 = vmatprep.subr.mxu0 0.0
  %6169 = vmatpush2.msra.mxu0 0.0
  %6170 = vmatprep.subr.mxu0 0.0
  %6171 = vmatpush2.msra.mxu0 0.0
  %6172 = vmatprep.subr.mxu0 0.0
  %6173 = vmatpush2.msra.mxu0 0.0
  %6174 = vmatprep.mubr.f32.mxu0 0.0
  %6175 = vmatmul.mubr.f32.gmra.mxu0 %v6037
  %v6176 = vpop.f32.mrf.mxu0
  %v6177 = vadd.f32 0.0, %v6176
  %v6178 = vpop.f32.mrf.mxu0
  %v6179 = vadd.f32 0.0, %v6178
  %6180 = vdwg.mxu0
  %v6181 = vadd.f32 %v5998, %v6106
  %v6182 = vadd.f32 %v5999, %v6108
  %v6183 = vadd.f32 %v6000, %v6177
  %v6184 = vadd.f32 %v6001, %v6179
  %v6185 = vmul.f32 %v5453, %v1377
  %v6186 = vmul.f32 %v5454, %v1378
  %v6187 = vmul.f32 %v5455, %v1379
  %v6188 = vmul.f32 %v5456, %v1380
  %v6189 = vmul.f32 %v5457, %v1377
  %v6190 = vmul.f32 %v5458, %v1378
  %v6191 = vmul.f32 %v5459, %v1379
  %v6192 = vmul.f32 %v5460, %v1380
  %s6193 = scalar_lea.vmem %s8, 16
  %v6194 = vld [vmem:[%s6193] sm:$0x7]
  %v6196 = vsel %vm2404, %v6194, 0
  %6198 = vmatprep.subr.mxu0 0.0
  %6199 = vmatpush1.msra.mxu0 0.0
  %6200 = vmatprep.subr.mxu0 0.0
  %6201 = vmatpush1.msra.mxu0 0.0
  %6202 = vmatprep.subr.mxu0 0.0
  %6203 = vmatpush1.msra.mxu0 0.0
  %6204 = vmatprep.subr.mxu0 0.0
  %6205 = vmatpush1.msra.mxu0 0.0
  %6206 = vmatprep.subr.mxu0 0.0
  %6207 = vmatpush1.msra.mxu0 0.0
  %6208 = vmatprep.subr.mxu0 0.0
  %6209 = vmatpush1.msra.mxu0 0.0
  %6210 = vmatprep.subr.mxu0 0.0
  %6211 = vmatpush1.msra.mxu0 0.0
  %6212 = vmatprep.subr.mxu0 0.0
  %6213 = vmatpush1.msra.mxu0 0.0
  %6214 = vmatprep.subr.mxu0 0.0
  %6215 = vmatpush1.msra.mxu0 0.0
  %6216 = vmatprep.subr.mxu0 0.0
  %6217 = vmatpush1.msra.mxu0 0.0
  %6218 = vmatprep.subr.mxu0 0.0
  %6219 = vmatpush1.msra.mxu0 0.0
  %6220 = vmatprep.subr.mxu0 0.0
  %6221 = vmatpush1.msra.mxu0 0.0
  %6222 = vmatprep.subr.mxu0 0.0
  %6223 = vmatpush1.msra.mxu0 0.0
  %6224 = vmatprep.subr.mxu0 0.0
  %6225 = vmatpush1.msra.mxu0 0.0
  %6226 = vmatprep.subr.mxu0 %v6190
  %6227 = vmatpush1.msra.mxu0 %v6189
  %6228 = vmatprep.subr.mxu0 %v6186
  %6229 = vmatpush1.msra.mxu0 %v6185
  %6230 = vmatprep.subr.mxu0 0.0
  %6231 = vmatpush2.msra.mxu0 0.0
  %6232 = vmatprep.subr.mxu0 0.0
  %6233 = vmatpush2.msra.mxu0 0.0
  %6234 = vmatprep.subr.mxu0 0.0
  %6235 = vmatpush2.msra.mxu0 0.0
  %6236 = vmatprep.subr.mxu0 0.0
  %6237 = vmatpush2.msra.mxu0 0.0
  %6238 = vmatprep.subr.mxu0 0.0
  %6239 = vmatpush2.msra.mxu0 0.0
  %6240 = vmatprep.subr.mxu0 0.0
  %6241 = vmatpush2.msra.mxu0 0.0
  %6242 = vmatprep.subr.mxu0 0.0
  %6243 = vmatpush2.msra.mxu0 0.0
  %6244 = vmatprep.subr.mxu0 0.0
  %6245 = vmatpush2.msra.mxu0 0.0
  %6246 = vmatprep.subr.mxu0 0.0
  %6247 = vmatpush2.msra.mxu0 0.0
  %6248 = vmatprep.subr.mxu0 0.0
  %6249 = vmatpush2.msra.mxu0 0.0
  %6250 = vmatprep.subr.mxu0 0.0
  %6251 = vmatpush2.msra.mxu0 0.0
  %6252 = vmatprep.subr.mxu0 0.0
  %6253 = vmatpush2.msra.mxu0 0.0
  %6254 = vmatprep.subr.mxu0 0.0
  %6255 = vmatpush2.msra.mxu0 0.0
  %6256 = vmatprep.subr.mxu0 0.0
  %6257 = vmatpush2.msra.mxu0 0.0
  %6258 = vmatprep.subr.mxu0 0.0
  %6259 = vmatpush2.msra.mxu0 0.0
  %6260 = vmatprep.subr.mxu0 0.0
  %6261 = vmatpush2.msra.mxu0 0.0
  %6262 = vmatprep.mubr.f32.mxu0 0.0
  %6263 = vmatmul.mubr.f32.gmra.mxu0 %v6196
  %v6264 = vpop.f32.mrf.mxu0
  %v6265 = vadd.f32 0.0, %v6264
  %v6266 = vpop.f32.mrf.mxu0
  %v6267 = vadd.f32 0.0, %v6266
  %6268 = vdwg.mxu0
  %6269 = vmatprep.subr.mxu0 0.0
  %6270 = vmatpush1.msra.mxu0 0.0
  %6271 = vmatprep.subr.mxu0 0.0
  %6272 = vmatpush1.msra.mxu0 0.0
  %6273 = vmatprep.subr.mxu0 0.0
  %6274 = vmatpush1.msra.mxu0 0.0
  %6275 = vmatprep.subr.mxu0 0.0
  %6276 = vmatpush1.msra.mxu0 0.0
  %6277 = vmatprep.subr.mxu0 0.0
  %6278 = vmatpush1.msra.mxu0 0.0
  %6279 = vmatprep.subr.mxu0 0.0
  %6280 = vmatpush1.msra.mxu0 0.0
  %6281 = vmatprep.subr.mxu0 0.0
  %6282 = vmatpush1.msra.mxu0 0.0
  %6283 = vmatprep.subr.mxu0 0.0
  %6284 = vmatpush1.msra.mxu0 0.0
  %6285 = vmatprep.subr.mxu0 0.0
  %6286 = vmatpush1.msra.mxu0 0.0
  %6287 = vmatprep.subr.mxu0 0.0
  %6288 = vmatpush1.msra.mxu0 0.0
  %6289 = vmatprep.subr.mxu0 0.0
  %6290 = vmatpush1.msra.mxu0 0.0
  %6291 = vmatprep.subr.mxu0 0.0
  %6292 = vmatpush1.msra.mxu0 0.0
  %6293 = vmatprep.subr.mxu0 0.0
  %6294 = vmatpush1.msra.mxu0 0.0
  %6295 = vmatprep.subr.mxu0 0.0
  %6296 = vmatpush1.msra.mxu0 0.0
  %6297 = vmatprep.subr.mxu0 %v6192
  %6298 = vmatpush1.msra.mxu0 %v6191
  %6299 = vmatprep.subr.mxu0 %v6188
  %6300 = vmatpush1.msra.mxu0 %v6187
  %6301 = vmatprep.subr.mxu0 0.0
  %6302 = vmatpush2.msra.mxu0 0.0
  %6303 = vmatprep.subr.mxu0 0.0
  %6304 = vmatpush2.msra.mxu0 0.0
  %6305 = vmatprep.subr.mxu0 0.0
  %6306 = vmatpush2.msra.mxu0 0.0
  %6307 = vmatprep.subr.mxu0 0.0
  %6308 = vmatpush2.msra.mxu0 0.0
  %6309 = vmatprep.subr.mxu0 0.0
  %6310 = vmatpush2.msra.mxu0 0.0
  %6311 = vmatprep.subr.mxu0 0.0
  %6312 = vmatpush2.msra.mxu0 0.0
  %6313 = vmatprep.subr.mxu0 0.0
  %6314 = vmatpush2.msra.mxu0 0.0
  %6315 = vmatprep.subr.mxu0 0.0
  %6316 = vmatpush2.msra.mxu0 0.0
  %6317 = vmatprep.subr.mxu0 0.0
  %6318 = vmatpush2.msra.mxu0 0.0
  %6319 = vmatprep.subr.mxu0 0.0
  %6320 = vmatpush2.msra.mxu0 0.0
  %6321 = vmatprep.subr.mxu0 0.0
  %6322 = vmatpush2.msra.mxu0 0.0
  %6323 = vmatprep.subr.mxu0 0.0
  %6324 = vmatpush2.msra.mxu0 0.0
  %6325 = vmatprep.subr.mxu0 0.0
  %6326 = vmatpush2.msra.mxu0 0.0
  %6327 = vmatprep.subr.mxu0 0.0
  %6328 = vmatpush2.msra.mxu0 0.0
  %6329 = vmatprep.subr.mxu0 0.0
  %6330 = vmatpush2.msra.mxu0 0.0
  %6331 = vmatprep.subr.mxu0 0.0
  %6332 = vmatpush2.msra.mxu0 0.0
  %6333 = vmatprep.mubr.f32.mxu0 0.0
  %6334 = vmatmul.mubr.f32.gmra.mxu0 %v6196
  %v6335 = vpop.f32.mrf.mxu0
  %v6336 = vadd.f32 0.0, %v6335
  %v6337 = vpop.f32.mrf.mxu0
  %v6338 = vadd.f32 0.0, %v6337
  %6339 = vdwg.mxu0
  %v6340 = vadd.f32 %v6181, %v6265
  %v6341 = vadd.f32 %v6182, %v6267
  %v6342 = vadd.f32 %v6183, %v6336
  %v6343 = vadd.f32 %v6184, %v6338
  %6344 = vrot.lane.b32.xlu0 %v5453, 127
  %v6345 = vpop.permute.xlu0 %6344
  %6346 = vrot.lane.b32.xlu0 %v5457, 127
  %v6347 = vpop.permute.xlu0 %6346
  %6348 = vrot.lane.b32.xlu0 %v5454, 127
  %v6349 = vpop.permute.xlu0 %6348
  %6350 = vrot.lane.b32.xlu0 %v5458, 127
  %v6351 = vpop.permute.xlu0 %6350
  %6352 = vrot.lane.b32.xlu0 %v5455, 127
  %v6353 = vpop.permute.xlu0 %6352
  %6354 = vrot.lane.b32.xlu0 %v5459, 127
  %v6355 = vpop.permute.xlu0 %6354
  %6356 = vrot.lane.b32.xlu0 %v5456, 127
  %v6357 = vpop.permute.xlu0 %6356
  %6358 = vrot.lane.b32.xlu0 %v5460, 127
  %v6359 = vpop.permute.xlu0 %6358
  %v6360 = vsel %vm1564, %v6353, %v6357
  %v6361 = vsel %vm1564, %v6355, %v6359
  %v6362 = vsel %vm1564, %v6349, %v6353
  %v6363 = vsel %vm1564, %v6351, %v6355
  %v6364 = vsel %vm1564, %v6345, %v6349
  %v6365 = vsel %vm1564, %v6347, %v6351
  %v6366 = vsel %vm1564, %v6357, %v6345
  %v6367 = vsel %vm1564, %v6359, %v6347
  %v6368 = vmul.f32 %v6364, %v1577
  %v6369 = vmul.f32 %v6362, %v1578
  %v6370 = vmul.f32 %v6360, %v1579
  %v6371 = vmul.f32 %v6366, %v1580
  %v6372 = vmul.f32 %v6365, %v1577
  %v6373 = vmul.f32 %v6363, %v1578
  %v6374 = vmul.f32 %v6361, %v1579
  %v6375 = vmul.f32 %v6367, %v1580
  %s6376 = scalar_lea.vmem %s8, 20
  %v6377 = vld [vmem:[%s6376] sm:$0x7]
  %v6379 = vsel %vm2404, %v6377, 0
  %6381 = vmatprep.subr.mxu0 0.0
  %6382 = vmatpush1.msra.mxu0 0.0
  %6383 = vmatprep.subr.mxu0 0.0
  %6384 = vmatpush1.msra.mxu0 0.0
  %6385 = vmatprep.subr.mxu0 0.0
  %6386 = vmatpush1.msra.mxu0 0.0
  %6387 = vmatprep.subr.mxu0 0.0
  %6388 = vmatpush1.msra.mxu0 0.0
  %6389 = vmatprep.subr.mxu0 0.0
  %6390 = vmatpush1.msra.mxu0 0.0
  %6391 = vmatprep.subr.mxu0 0.0
  %6392 = vmatpush1.msra.mxu0 0.0
  %6393 = vmatprep.subr.mxu0 0.0
  %6394 = vmatpush1.msra.mxu0 0.0
  %6395 = vmatprep.subr.mxu0 0.0
  %6396 = vmatpush1.msra.mxu0 0.0
  %6397 = vmatprep.subr.mxu0 0.0
  %6398 = vmatpush1.msra.mxu0 0.0
  %6399 = vmatprep.subr.mxu0 0.0
  %6400 = vmatpush1.msra.mxu0 0.0
  %6401 = vmatprep.subr.mxu0 0.0
  %6402 = vmatpush1.msra.mxu0 0.0
  %6403 = vmatprep.subr.mxu0 0.0
  %6404 = vmatpush1.msra.mxu0 0.0
  %6405 = vmatprep.subr.mxu0 0.0
  %6406 = vmatpush1.msra.mxu0 0.0
  %6407 = vmatprep.subr.mxu0 0.0
  %6408 = vmatpush1.msra.mxu0 0.0
  %6409 = vmatprep.subr.mxu0 %v6373
  %6410 = vmatpush1.msra.mxu0 %v6372
  %6411 = vmatprep.subr.mxu0 %v6369
  %6412 = vmatpush1.msra.mxu0 %v6368
  %6413 = vmatprep.subr.mxu0 0.0
  %6414 = vmatpush2.msra.mxu0 0.0
  %6415 = vmatprep.subr.mxu0 0.0
  %6416 = vmatpush2.msra.mxu0 0.0
  %6417 = vmatprep.subr.mxu0 0.0
  %6418 = vmatpush2.msra.mxu0 0.0
  %6419 = vmatprep.subr.mxu0 0.0
  %6420 = vmatpush2.msra.mxu0 0.0
  %6421 = vmatprep.subr.mxu0 0.0
  %6422 = vmatpush2.msra.mxu0 0.0
  %6423 = vmatprep.subr.mxu0 0.0
  %6424 = vmatpush2.msra.mxu0 0.0
  %6425 = vmatprep.subr.mxu0 0.0
  %6426 = vmatpush2.msra.mxu0 0.0
  %6427 = vmatprep.subr.mxu0 0.0
  %6428 = vmatpush2.msra.mxu0 0.0
  %6429 = vmatprep.subr.mxu0 0.0
  %6430 = vmatpush2.msra.mxu0 0.0
  %6431 = vmatprep.subr.mxu0 0.0
  %6432 = vmatpush2.msra.mxu0 0.0
  %6433 = vmatprep.subr.mxu0 0.0
  %6434 = vmatpush2.msra.mxu0 0.0
  %6435 = vmatprep.subr.mxu0 0.0
  %6436 = vmatpush2.msra.mxu0 0.0
  %6437 = vmatprep.subr.mxu0 0.0
  %6438 = vmatpush2.msra.mxu0 0.0
  %6439 = vmatprep.subr.mxu0 0.0
  %6440 = vmatpush2.msra.mxu0 0.0
  %6441 = vmatprep.subr.mxu0 0.0
  %6442 = vmatpush2.msra.mxu0 0.0
  %6443 = vmatprep.subr.mxu0 0.0
  %6444 = vmatpush2.msra.mxu0 0.0
  %6445 = vmatprep.mubr.f32.mxu0 0.0
  %6446 = vmatmul.mubr.f32.gmra.mxu0 %v6379
  %v6447 = vpop.f32.mrf.mxu0
  %v6448 = vadd.f32 0.0, %v6447
  %v6449 = vpop.f32.mrf.mxu0
  %v6450 = vadd.f32 0.0, %v6449
  %6451 = vdwg.mxu0
  %6452 = vmatprep.subr.mxu0 0.0
  %6453 = vmatpush1.msra.mxu0 0.0
  %6454 = vmatprep.subr.mxu0 0.0
  %6455 = vmatpush1.msra.mxu0 0.0
  %6456 = vmatprep.subr.mxu0 0.0
  %6457 = vmatpush1.msra.mxu0 0.0
  %6458 = vmatprep.subr.mxu0 0.0
  %6459 = vmatpush1.msra.mxu0 0.0
  %6460 = vmatprep.subr.mxu0 0.0
  %6461 = vmatpush1.msra.mxu0 0.0
  %6462 = vmatprep.subr.mxu0 0.0
  %6463 = vmatpush1.msra.mxu0 0.0
  %6464 = vmatprep.subr.mxu0 0.0
  %6465 = vmatpush1.msra.mxu0 0.0
  %6466 = vmatprep.subr.mxu0 0.0
  %6467 = vmatpush1.msra.mxu0 0.0
  %6468 = vmatprep.subr.mxu0 0.0
  %6469 = vmatpush1.msra.mxu0 0.0
  %6470 = vmatprep.subr.mxu0 0.0
  %6471 = vmatpush1.msra.mxu0 0.0
  %6472 = vmatprep.subr.mxu0 0.0
  %6473 = vmatpush1.msra.mxu0 0.0
  %6474 = vmatprep.subr.mxu0 0.0
  %6475 = vmatpush1.msra.mxu0 0.0
  %6476 = vmatprep.subr.mxu0 0.0
  %6477 = vmatpush1.msra.mxu0 0.0
  %6478 = vmatprep.subr.mxu0 0.0
  %6479 = vmatpush1.msra.mxu0 0.0
  %6480 = vmatprep.subr.mxu0 %v6375
  %6481 = vmatpush1.msra.mxu0 %v6374
  %6482 = vmatprep.subr.mxu0 %v6371
  %6483 = vmatpush1.msra.mxu0 %v6370
  %6484 = vmatprep.subr.mxu0 0.0
  %6485 = vmatpush2.msra.mxu0 0.0
  %6486 = vmatprep.subr.mxu0 0.0
  %6487 = vmatpush2.msra.mxu0 0.0
  %6488 = vmatprep.subr.mxu0 0.0
  %6489 = vmatpush2.msra.mxu0 0.0
  %6490 = vmatprep.subr.mxu0 0.0
  %6491 = vmatpush2.msra.mxu0 0.0
  %6492 = vmatprep.subr.mxu0 0.0
  %6493 = vmatpush2.msra.mxu0 0.0
  %6494 = vmatprep.subr.mxu0 0.0
  %6495 = vmatpush2.msra.mxu0 0.0
  %6496 = vmatprep.subr.mxu0 0.0
  %6497 = vmatpush2.msra.mxu0 0.0
  %6498 = vmatprep.subr.mxu0 0.0
  %6499 = vmatpush2.msra.mxu0 0.0
  %6500 = vmatprep.subr.mxu0 0.0
  %6501 = vmatpush2.msra.mxu0 0.0
  %6502 = vmatprep.subr.mxu0 0.0
  %6503 = vmatpush2.msra.mxu0 0.0
  %6504 = vmatprep.subr.mxu0 0.0
  %6505 = vmatpush2.msra.mxu0 0.0
  %6506 = vmatprep.subr.mxu0 0.0
  %6507 = vmatpush2.msra.mxu0 0.0
  %6508 = vmatprep.subr.mxu0 0.0
  %6509 = vmatpush2.msra.mxu0 0.0
  %6510 = vmatprep.subr.mxu0 0.0
  %6511 = vmatpush2.msra.mxu0 0.0
  %6512 = vmatprep.subr.mxu0 0.0
  %6513 = vmatpush2.msra.mxu0 0.0
  %6514 = vmatprep.subr.mxu0 0.0
  %6515 = vmatpush2.msra.mxu0 0.0
  %6516 = vmatprep.mubr.f32.mxu0 0.0
  %6517 = vmatmul.mubr.f32.gmra.mxu0 %v6379
  %v6518 = vpop.f32.mrf.mxu0
  %v6519 = vadd.f32 0.0, %v6518
  %v6520 = vpop.f32.mrf.mxu0
  %v6521 = vadd.f32 0.0, %v6520
  %6522 = vdwg.mxu0
  %v6523 = vadd.f32 %v6340, %v6448
  %v6524 = vadd.f32 %v6341, %v6450
  %v6525 = vadd.f32 %v6342, %v6519
  %v6526 = vadd.f32 %v6343, %v6521
  %6527 = vrot.lane.b32.xlu0 %v5453, 113
  %v6528 = vpop.permute.xlu0 %6527
  %6529 = vrot.lane.b32.xlu0 %v5457, 113
  %v6530 = vpop.permute.xlu0 %6529
  %6531 = vrot.lane.b32.xlu0 %v5454, 113
  %v6532 = vpop.permute.xlu0 %6531
  %6533 = vrot.lane.b32.xlu0 %v5458, 113
  %v6534 = vpop.permute.xlu0 %6533
  %6535 = vrot.lane.b32.xlu0 %v5455, 113
  %v6536 = vpop.permute.xlu0 %6535
  %6537 = vrot.lane.b32.xlu0 %v5459, 113
  %v6538 = vpop.permute.xlu0 %6537
  %6539 = vrot.lane.b32.xlu0 %v5456, 113
  %v6540 = vpop.permute.xlu0 %6539
  %6541 = vrot.lane.b32.xlu0 %v5460, 113
  %v6542 = vpop.permute.xlu0 %6541
  %v6543 = vsel %vm1764, %v6536, %v6540
  %v6544 = vsel %vm1764, %v6538, %v6542
  %v6545 = vsel %vm1764, %v6532, %v6536
  %v6546 = vsel %vm1764, %v6534, %v6538
  %v6547 = vsel %vm1764, %v6528, %v6532
  %v6548 = vsel %vm1764, %v6530, %v6534
  %v6549 = vsel %vm1764, %v6540, %v6528
  %v6550 = vsel %vm1764, %v6542, %v6530
  %v6551 = vmul.f32 %v6547, %v1785
  %v6552 = vmul.f32 %v6545, %v1786
  %v6553 = vmul.f32 %v6543, %v1787
  %v6554 = vmul.f32 %v6549, %v1788
  %v6555 = vmul.f32 %v6548, %v1785
  %v6556 = vmul.f32 %v6546, %v1786
  %v6557 = vmul.f32 %v6544, %v1787
  %v6558 = vmul.f32 %v6550, %v1788
  %s6559 = scalar_lea.vmem %s8, 24
  %v6560 = vld [vmem:[%s6559] sm:$0x7]
  %v6562 = vsel %vm2404, %v6560, 0
  %6564 = vmatprep.subr.mxu0 0.0
  %6565 = vmatpush1.msra.mxu0 0.0
  %6566 = vmatprep.subr.mxu0 0.0
  %6567 = vmatpush1.msra.mxu0 0.0
  %6568 = vmatprep.subr.mxu0 0.0
  %6569 = vmatpush1.msra.mxu0 0.0
  %6570 = vmatprep.subr.mxu0 0.0
  %6571 = vmatpush1.msra.mxu0 0.0
  %6572 = vmatprep.subr.mxu0 0.0
  %6573 = vmatpush1.msra.mxu0 0.0
  %6574 = vmatprep.subr.mxu0 0.0
  %6575 = vmatpush1.msra.mxu0 0.0
  %6576 = vmatprep.subr.mxu0 0.0
  %6577 = vmatpush1.msra.mxu0 0.0
  %6578 = vmatprep.subr.mxu0 0.0
  %6579 = vmatpush1.msra.mxu0 0.0
  %6580 = vmatprep.subr.mxu0 0.0
  %6581 = vmatpush1.msra.mxu0 0.0
  %6582 = vmatprep.subr.mxu0 0.0
  %6583 = vmatpush1.msra.mxu0 0.0
  %6584 = vmatprep.subr.mxu0 0.0
  %6585 = vmatpush1.msra.mxu0 0.0
  %6586 = vmatprep.subr.mxu0 0.0
  %6587 = vmatpush1.msra.mxu0 0.0
  %6588 = vmatprep.subr.mxu0 0.0
  %6589 = vmatpush1.msra.mxu0 0.0
  %6590 = vmatprep.subr.mxu0 0.0
  %6591 = vmatpush1.msra.mxu0 0.0
  %6592 = vmatprep.subr.mxu0 %v6556
  %6593 = vmatpush1.msra.mxu0 %v6555
  %6594 = vmatprep.subr.mxu0 %v6552
  %6595 = vmatpush1.msra.mxu0 %v6551
  %6596 = vmatprep.subr.mxu0 0.0
  %6597 = vmatpush2.msra.mxu0 0.0
  %6598 = vmatprep.subr.mxu0 0.0
  %6599 = vmatpush2.msra.mxu0 0.0
  %6600 = vmatprep.subr.mxu0 0.0
  %6601 = vmatpush2.msra.mxu0 0.0
  %6602 = vmatprep.subr.mxu0 0.0
  %6603 = vmatpush2.msra.mxu0 0.0
  %6604 = vmatprep.subr.mxu0 0.0
  %6605 = vmatpush2.msra.mxu0 0.0
  %6606 = vmatprep.subr.mxu0 0.0
  %6607 = vmatpush2.msra.mxu0 0.0
  %6608 = vmatprep.subr.mxu0 0.0
  %6609 = vmatpush2.msra.mxu0 0.0
  %6610 = vmatprep.subr.mxu0 0.0
  %6611 = vmatpush2.msra.mxu0 0.0
  %6612 = vmatprep.subr.mxu0 0.0
  %6613 = vmatpush2.msra.mxu0 0.0
  %6614 = vmatprep.subr.mxu0 0.0
  %6615 = vmatpush2.msra.mxu0 0.0
  %6616 = vmatprep.subr.mxu0 0.0
  %6617 = vmatpush2.msra.mxu0 0.0
  %6618 = vmatprep.subr.mxu0 0.0
  %6619 = vmatpush2.msra.mxu0 0.0
  %6620 = vmatprep.subr.mxu0 0.0
  %6621 = vmatpush2.msra.mxu0 0.0
  %6622 = vmatprep.subr.mxu0 0.0
  %6623 = vmatpush2.msra.mxu0 0.0
  %6624 = vmatprep.subr.mxu0 0.0
  %6625 = vmatpush2.msra.mxu0 0.0
  %6626 = vmatprep.subr.mxu0 0.0
  %6627 = vmatpush2.msra.mxu0 0.0
  %6628 = vmatprep.mubr.f32.mxu0 0.0
  %6629 = vmatmul.mubr.f32.gmra.mxu0 %v6562
  %v6630 = vpop.f32.mrf.mxu0
  %v6631 = vadd.f32 0.0, %v6630
  %v6632 = vpop.f32.mrf.mxu0
  %v6633 = vadd.f32 0.0, %v6632
  %6634 = vdwg.mxu0
  %6635 = vmatprep.subr.mxu0 0.0
  %6636 = vmatpush1.msra.mxu0 0.0
  %6637 = vmatprep.subr.mxu0 0.0
  %6638 = vmatpush1.msra.mxu0 0.0
  %6639 = vmatprep.subr.mxu0 0.0
  %6640 = vmatpush1.msra.mxu0 0.0
  %6641 = vmatprep.subr.mxu0 0.0
  %6642 = vmatpush1.msra.mxu0 0.0
  %6643 = vmatprep.subr.mxu0 0.0
  %6644 = vmatpush1.msra.mxu0 0.0
  %6645 = vmatprep.subr.mxu0 0.0
  %6646 = vmatpush1.msra.mxu0 0.0
  %6647 = vmatprep.subr.mxu0 0.0
  %6648 = vmatpush1.msra.mxu0 0.0
  %6649 = vmatprep.subr.mxu0 0.0
  %6650 = vmatpush1.msra.mxu0 0.0
  %6651 = vmatprep.subr.mxu0 0.0
  %6652 = vmatpush1.msra.mxu0 0.0
  %6653 = vmatprep.subr.mxu0 0.0
  %6654 = vmatpush1.msra.mxu0 0.0
  %6655 = vmatprep.subr.mxu0 0.0
  %6656 = vmatpush1.msra.mxu0 0.0
  %6657 = vmatprep.subr.mxu0 0.0
  %6658 = vmatpush1.msra.mxu0 0.0
  %6659 = vmatprep.subr.mxu0 0.0
  %6660 = vmatpush1.msra.mxu0 0.0
  %6661 = vmatprep.subr.mxu0 0.0
  %6662 = vmatpush1.msra.mxu0 0.0
  %6663 = vmatprep.subr.mxu0 %v6558
  %6664 = vmatpush1.msra.mxu0 %v6557
  %6665 = vmatprep.subr.mxu0 %v6554
  %6666 = vmatpush1.msra.mxu0 %v6553
  %6667 = vmatprep.subr.mxu0 0.0
  %6668 = vmatpush2.msra.mxu0 0.0
  %6669 = vmatprep.subr.mxu0 0.0
  %6670 = vmatpush2.msra.mxu0 0.0
  %6671 = vmatprep.subr.mxu0 0.0
  %6672 = vmatpush2.msra.mxu0 0.0
  %6673 = vmatprep.subr.mxu0 0.0
  %6674 = vmatpush2.msra.mxu0 0.0
  %6675 = vmatprep.subr.mxu0 0.0
  %6676 = vmatpush2.msra.mxu0 0.0
  %6677 = vmatprep.subr.mxu0 0.0
  %6678 = vmatpush2.msra.mxu0 0.0
  %6679 = vmatprep.subr.mxu0 0.0
  %6680 = vmatpush2.msra.mxu0 0.0
  %6681 = vmatprep.subr.mxu0 0.0
  %6682 = vmatpush2.msra.mxu0 0.0
  %6683 = vmatprep.subr.mxu0 0.0
  %6684 = vmatpush2.msra.mxu0 0.0
  %6685 = vmatprep.subr.mxu0 0.0
  %6686 = vmatpush2.msra.mxu0 0.0
  %6687 = vmatprep.subr.mxu0 0.0
  %6688 = vmatpush2.msra.mxu0 0.0
  %6689 = vmatprep.subr.mxu0 0.0
  %6690 = vmatpush2.msra.mxu0 0.0
  %6691 = vmatprep.subr.mxu0 0.0
  %6692 = vmatpush2.msra.mxu0 0.0
  %6693 = vmatprep.subr.mxu0 0.0
  %6694 = vmatpush2.msra.mxu0 0.0
  %6695 = vmatprep.subr.mxu0 0.0
  %6696 = vmatpush2.msra.mxu0 0.0
  %6697 = vmatprep.subr.mxu0 0.0
  %6698 = vmatpush2.msra.mxu0 0.0
  %6699 = vmatprep.mubr.f32.mxu0 0.0
  %6700 = vmatmul.mubr.f32.gmra.mxu0 %v6562
  %v6701 = vpop.f32.mrf.mxu0
  %v6702 = vadd.f32 0.0, %v6701
  %v6703 = vpop.f32.mrf.mxu0
  %v6704 = vadd.f32 0.0, %v6703
  %6705 = vdwg.mxu0
  %v6706 = vadd.f32 %v6523, %v6631
  %v6707 = vadd.f32 %v6524, %v6633
  %v6708 = vadd.f32 %v6525, %v6702
  %v6709 = vadd.f32 %v6526, %v6704
  %6710 = vrot.lane.b32.xlu0 %v5453, 112
  %v6711 = vpop.permute.xlu0 %6710
  %6712 = vrot.lane.b32.xlu0 %v5457, 112
  %v6713 = vpop.permute.xlu0 %6712
  %6714 = vrot.lane.b32.xlu0 %v5454, 112
  %v6715 = vpop.permute.xlu0 %6714
  %6716 = vrot.lane.b32.xlu0 %v5458, 112
  %v6717 = vpop.permute.xlu0 %6716
  %6718 = vrot.lane.b32.xlu0 %v5455, 112
  %v6719 = vpop.permute.xlu0 %6718
  %6720 = vrot.lane.b32.xlu0 %v5459, 112
  %v6721 = vpop.permute.xlu0 %6720
  %6722 = vrot.lane.b32.xlu0 %v5456, 112
  %v6723 = vpop.permute.xlu0 %6722
  %6724 = vrot.lane.b32.xlu0 %v5460, 112
  %v6725 = vpop.permute.xlu0 %6724
  %v6726 = vsel %vm1972, %v6719, %v6723
  %v6727 = vsel %vm1972, %v6721, %v6725
  %v6728 = vsel %vm1972, %v6715, %v6719
  %v6729 = vsel %vm1972, %v6717, %v6721
  %v6730 = vsel %vm1972, %v6711, %v6715
  %v6731 = vsel %vm1972, %v6713, %v6717
  %v6732 = vsel %vm1972, %v6723, %v6711
  %v6733 = vsel %vm1972, %v6725, %v6713
  %v6734 = vmul.f32 %v6730, %v1981
  %v6735 = vmul.f32 %v6728, %v1982
  %v6736 = vmul.f32 %v6726, %v1983
  %v6737 = vmul.f32 %v6732, %v1984
  %v6738 = vmul.f32 %v6731, %v1981
  %v6739 = vmul.f32 %v6729, %v1982
  %v6740 = vmul.f32 %v6727, %v1983
  %v6741 = vmul.f32 %v6733, %v1984
  %s6742 = scalar_lea.vmem %s8, 28
  %v6743 = vld [vmem:[%s6742] sm:$0x7]
  %v6745 = vsel %vm2404, %v6743, 0
  %6747 = vmatprep.subr.mxu0 0.0
  %6748 = vmatpush1.msra.mxu0 0.0
  %6749 = vmatprep.subr.mxu0 0.0
  %6750 = vmatpush1.msra.mxu0 0.0
  %6751 = vmatprep.subr.mxu0 0.0
  %6752 = vmatpush1.msra.mxu0 0.0
  %6753 = vmatprep.subr.mxu0 0.0
  %6754 = vmatpush1.msra.mxu0 0.0
  %6755 = vmatprep.subr.mxu0 0.0
  %6756 = vmatpush1.msra.mxu0 0.0
  %6757 = vmatprep.subr.mxu0 0.0
  %6758 = vmatpush1.msra.mxu0 0.0
  %6759 = vmatprep.subr.mxu0 0.0
  %6760 = vmatpush1.msra.mxu0 0.0
  %6761 = vmatprep.subr.mxu0 0.0
  %6762 = vmatpush1.msra.mxu0 0.0
  %6763 = vmatprep.subr.mxu0 0.0
  %6764 = vmatpush1.msra.mxu0 0.0
  %6765 = vmatprep.subr.mxu0 0.0
  %6766 = vmatpush1.msra.mxu0 0.0
  %6767 = vmatprep.subr.mxu0 0.0
  %6768 = vmatpush1.msra.mxu0 0.0
  %6769 = vmatprep.subr.mxu0 0.0
  %6770 = vmatpush1.msra.mxu0 0.0
  %6771 = vmatprep.subr.mxu0 0.0
  %6772 = vmatpush1.msra.mxu0 0.0
  %6773 = vmatprep.subr.mxu0 0.0
  %6774 = vmatpush1.msra.mxu0 0.0
  %6775 = vmatprep.subr.mxu0 %v6739
  %6776 = vmatpush1.msra.mxu0 %v6738
  %6777 = vmatprep.subr.mxu0 %v6735
  %6778 = vmatpush1.msra.mxu0 %v6734
  %6779 = vmatprep.subr.mxu0 0.0
  %6780 = vmatpush2.msra.mxu0 0.0
  %6781 = vmatprep.subr.mxu0 0.0
  %6782 = vmatpush2.msra.mxu0 0.0
  %6783 = vmatprep.subr.mxu0 0.0
  %6784 = vmatpush2.msra.mxu0 0.0
  %6785 = vmatprep.subr.mxu0 0.0
  %6786 = vmatpush2.msra.mxu0 0.0
  %6787 = vmatprep.subr.mxu0 0.0
  %6788 = vmatpush2.msra.mxu0 0.0
  %6789 = vmatprep.subr.mxu0 0.0
  %6790 = vmatpush2.msra.mxu0 0.0
  %6791 = vmatprep.subr.mxu0 0.0
  %6792 = vmatpush2.msra.mxu0 0.0
  %6793 = vmatprep.subr.mxu0 0.0
  %6794 = vmatpush2.msra.mxu0 0.0
  %6795 = vmatprep.subr.mxu0 0.0
  %6796 = vmatpush2.msra.mxu0 0.0
  %6797 = vmatprep.subr.mxu0 0.0
  %6798 = vmatpush2.msra.mxu0 0.0
  %6799 = vmatprep.subr.mxu0 0.0
  %6800 = vmatpush2.msra.mxu0 0.0
  %6801 = vmatprep.subr.mxu0 0.0
  %6802 = vmatpush2.msra.mxu0 0.0
  %6803 = vmatprep.subr.mxu0 0.0
  %6804 = vmatpush2.msra.mxu0 0.0
  %6805 = vmatprep.subr.mxu0 0.0
  %6806 = vmatpush2.msra.mxu0 0.0
  %6807 = vmatprep.subr.mxu0 0.0
  %6808 = vmatpush2.msra.mxu0 0.0
  %6809 = vmatprep.subr.mxu0 0.0
  %6810 = vmatpush2.msra.mxu0 0.0
  %6811 = vmatprep.mubr.f32.mxu0 0.0
  %6812 = vmatmul.mubr.f32.gmra.mxu0 %v6745
  %v6813 = vpop.f32.mrf.mxu0
  %v6814 = vadd.f32 0.0, %v6813
  %v6815 = vpop.f32.mrf.mxu0
  %v6816 = vadd.f32 0.0, %v6815
  %6817 = vdwg.mxu0
  %6818 = vmatprep.subr.mxu0 0.0
  %6819 = vmatpush1.msra.mxu0 0.0
  %6820 = vmatprep.subr.mxu0 0.0
  %6821 = vmatpush1.msra.mxu0 0.0
  %6822 = vmatprep.subr.mxu0 0.0
  %6823 = vmatpush1.msra.mxu0 0.0
  %6824 = vmatprep.subr.mxu0 0.0
  %6825 = vmatpush1.msra.mxu0 0.0
  %6826 = vmatprep.subr.mxu0 0.0
  %6827 = vmatpush1.msra.mxu0 0.0
  %6828 = vmatprep.subr.mxu0 0.0
  %6829 = vmatpush1.msra.mxu0 0.0
  %6830 = vmatprep.subr.mxu0 0.0
  %6831 = vmatpush1.msra.mxu0 0.0
  %6832 = vmatprep.subr.mxu0 0.0
  %6833 = vmatpush1.msra.mxu0 0.0
  %6834 = vmatprep.subr.mxu0 0.0
  %6835 = vmatpush1.msra.mxu0 0.0
  %6836 = vmatprep.subr.mxu0 0.0
  %6837 = vmatpush1.msra.mxu0 0.0
  %6838 = vmatprep.subr.mxu0 0.0
  %6839 = vmatpush1.msra.mxu0 0.0
  %6840 = vmatprep.subr.mxu0 0.0
  %6841 = vmatpush1.msra.mxu0 0.0
  %6842 = vmatprep.subr.mxu0 0.0
  %6843 = vmatpush1.msra.mxu0 0.0
  %6844 = vmatprep.subr.mxu0 0.0
  %6845 = vmatpush1.msra.mxu0 0.0
  %6846 = vmatprep.subr.mxu0 %v6741
  %6847 = vmatpush1.msra.mxu0 %v6740
  %6848 = vmatprep.subr.mxu0 %v6737
  %6849 = vmatpush1.msra.mxu0 %v6736
  %6850 = vmatprep.subr.mxu0 0.0
  %6851 = vmatpush2.msra.mxu0 0.0
  %6852 = vmatprep.subr.mxu0 0.0
  %6853 = vmatpush2.msra.mxu0 0.0
  %6854 = vmatprep.subr.mxu0 0.0
  %6855 = vmatpush2.msra.mxu0 0.0
  %6856 = vmatprep.subr.mxu0 0.0
  %6857 = vmatpush2.msra.mxu0 0.0
  %6858 = vmatprep.subr.mxu0 0.0
  %6859 = vmatpush2.msra.mxu0 0.0
  %6860 = vmatprep.subr.mxu0 0.0
  %6861 = vmatpush2.msra.mxu0 0.0
  %6862 = vmatprep.subr.mxu0 0.0
  %6863 = vmatpush2.msra.mxu0 0.0
  %6864 = vmatprep.subr.mxu0 0.0
  %6865 = vmatpush2.msra.mxu0 0.0
  %6866 = vmatprep.subr.mxu0 0.0
  %6867 = vmatpush2.msra.mxu0 0.0
  %6868 = vmatprep.subr.mxu0 0.0
  %6869 = vmatpush2.msra.mxu0 0.0
  %6870 = vmatprep.subr.mxu0 0.0
  %6871 = vmatpush2.msra.mxu0 0.0
  %6872 = vmatprep.subr.mxu0 0.0
  %6873 = vmatpush2.msra.mxu0 0.0
  %6874 = vmatprep.subr.mxu0 0.0
  %6875 = vmatpush2.msra.mxu0 0.0
  %6876 = vmatprep.subr.mxu0 0.0
  %6877 = vmatpush2.msra.mxu0 0.0
  %6878 = vmatprep.subr.mxu0 0.0
  %6879 = vmatpush2.msra.mxu0 0.0
  %6880 = vmatprep.subr.mxu0 0.0
  %6881 = vmatpush2.msra.mxu0 0.0
  %6882 = vmatprep.mubr.f32.mxu0 0.0
  %6883 = vmatmul.mubr.f32.gmra.mxu0 %v6745
  %v6884 = vpop.f32.mrf.mxu0
  %v6885 = vadd.f32 0.0, %v6884
  %v6886 = vpop.f32.mrf.mxu0
  %v6887 = vadd.f32 0.0, %v6886
  %6888 = vdwg.mxu0
  %v6889 = vadd.f32 %v6706, %v6814
  %v6890 = vadd.f32 %v6707, %v6816
  %v6891 = vadd.f32 %v6708, %v6885
  %v6892 = vadd.f32 %v6709, %v6887
  %6893 = vrot.lane.b32.xlu0 %v5453, 111
  %v6894 = vpop.permute.xlu0 %6893
  %6895 = vrot.lane.b32.xlu0 %v5457, 111
  %v6896 = vpop.permute.xlu0 %6895
  %6897 = vrot.lane.b32.xlu0 %v5454, 111
  %v6898 = vpop.permute.xlu0 %6897
  %6899 = vrot.lane.b32.xlu0 %v5458, 111
  %v6900 = vpop.permute.xlu0 %6899
  %6901 = vrot.lane.b32.xlu0 %v5455, 111
  %v6902 = vpop.permute.xlu0 %6901
  %6903 = vrot.lane.b32.xlu0 %v5459, 111
  %v6904 = vpop.permute.xlu0 %6903
  %6905 = vrot.lane.b32.xlu0 %v5456, 111
  %v6906 = vpop.permute.xlu0 %6905
  %6907 = vrot.lane.b32.xlu0 %v5460, 111
  %v6908 = vpop.permute.xlu0 %6907
  %v6909 = vsel %vm2168, %v6902, %v6906
  %v6910 = vsel %vm2168, %v6904, %v6908
  %v6911 = vsel %vm2168, %v6898, %v6902
  %v6912 = vsel %vm2168, %v6900, %v6904
  %v6913 = vsel %vm2168, %v6894, %v6898
  %v6914 = vsel %vm2168, %v6896, %v6900
  %v6915 = vsel %vm2168, %v6906, %v6894
  %v6916 = vsel %vm2168, %v6908, %v6896
  %v6917 = vmul.f32 %v6913, %v2181
  %v6918 = vmul.f32 %v6911, %v2182
  %v6919 = vmul.f32 %v6909, %v2183
  %v6920 = vmul.f32 %v6915, %v2184
  %v6921 = vmul.f32 %v6914, %v2181
  %v6922 = vmul.f32 %v6912, %v2182
  %v6923 = vmul.f32 %v6910, %v2183
  %v6924 = vmul.f32 %v6916, %v2184
  %s6925 = scalar_lea.vmem %s8, 32
  %v6926 = vld [vmem:[%s6925] sm:$0x7]
  %v6928 = vsel %vm2404, %v6926, 0
  %6930 = vmatprep.subr.mxu0 0.0
  %6931 = vmatpush1.msra.mxu0 0.0
  %6932 = vmatprep.subr.mxu0 0.0
  %6933 = vmatpush1.msra.mxu0 0.0
  %6934 = vmatprep.subr.mxu0 0.0
  %6935 = vmatpush1.msra.mxu0 0.0
  %6936 = vmatprep.subr.mxu0 0.0
  %6937 = vmatpush1.msra.mxu0 0.0
  %6938 = vmatprep.subr.mxu0 0.0
  %6939 = vmatpush1.msra.mxu0 0.0
  %6940 = vmatprep.subr.mxu0 0.0
  %6941 = vmatpush1.msra.mxu0 0.0
  %6942 = vmatprep.subr.mxu0 0.0
  %6943 = vmatpush1.msra.mxu0 0.0
  %6944 = vmatprep.subr.mxu0 0.0
  %6945 = vmatpush1.msra.mxu0 0.0
  %6946 = vmatprep.subr.mxu0 0.0
  %6947 = vmatpush1.msra.mxu0 0.0
  %6948 = vmatprep.subr.mxu0 0.0
  %6949 = vmatpush1.msra.mxu0 0.0
  %6950 = vmatprep.subr.mxu0 0.0
  %6951 = vmatpush1.msra.mxu0 0.0
  %6952 = vmatprep.subr.mxu0 0.0
  %6953 = vmatpush1.msra.mxu0 0.0
  %6954 = vmatprep.subr.mxu0 0.0
  %6955 = vmatpush1.msra.mxu0 0.0
  %6956 = vmatprep.subr.mxu0 0.0
  %6957 = vmatpush1.msra.mxu0 0.0
  %6958 = vmatprep.subr.mxu0 %v6922
  %6959 = vmatpush1.msra.mxu0 %v6921
  %6960 = vmatprep.subr.mxu0 %v6918
  %6961 = vmatpush1.msra.mxu0 %v6917
  %6962 = vmatprep.subr.mxu0 0.0
  %6963 = vmatpush2.msra.mxu0 0.0
  %6964 = vmatprep.subr.mxu0 0.0
  %6965 = vmatpush2.msra.mxu0 0.0
  %6966 = vmatprep.subr.mxu0 0.0
  %6967 = vmatpush2.msra.mxu0 0.0
  %6968 = vmatprep.subr.mxu0 0.0
  %6969 = vmatpush2.msra.mxu0 0.0
  %6970 = vmatprep.subr.mxu0 0.0
  %6971 = vmatpush2.msra.mxu0 0.0
  %6972 = vmatprep.subr.mxu0 0.0
  %6973 = vmatpush2.msra.mxu0 0.0
  %6974 = vmatprep.subr.mxu0 0.0
  %6975 = vmatpush2.msra.mxu0 0.0
  %6976 = vmatprep.subr.mxu0 0.0
  %6977 = vmatpush2.msra.mxu0 0.0
  %6978 = vmatprep.subr.mxu0 0.0
  %6979 = vmatpush2.msra.mxu0 0.0
  %6980 = vmatprep.subr.mxu0 0.0
  %6981 = vmatpush2.msra.mxu0 0.0
  %6982 = vmatprep.subr.mxu0 0.0
  %6983 = vmatpush2.msra.mxu0 0.0
  %6984 = vmatprep.subr.mxu0 0.0
  %6985 = vmatpush2.msra.mxu0 0.0
  %6986 = vmatprep.subr.mxu0 0.0
  %6987 = vmatpush2.msra.mxu0 0.0
  %6988 = vmatprep.subr.mxu0 0.0
  %6989 = vmatpush2.msra.mxu0 0.0
  %6990 = vmatprep.subr.mxu0 0.0
  %6991 = vmatpush2.msra.mxu0 0.0
  %6992 = vmatprep.subr.mxu0 0.0
  %6993 = vmatpush2.msra.mxu0 0.0
  %6994 = vmatprep.mubr.f32.mxu0 0.0
  %6995 = vmatmul.mubr.f32.gmra.mxu0 %v6928
  %v6996 = vpop.f32.mrf.mxu0
  %v6997 = vadd.f32 0.0, %v6996
  %v6998 = vpop.f32.mrf.mxu0
  %v6999 = vadd.f32 0.0, %v6998
  %7000 = vdwg.mxu0
  %7001 = vmatprep.subr.mxu0 0.0
  %7002 = vmatpush1.msra.mxu0 0.0
  %7003 = vmatprep.subr.mxu0 0.0
  %7004 = vmatpush1.msra.mxu0 0.0
  %7005 = vmatprep.subr.mxu0 0.0
  %7006 = vmatpush1.msra.mxu0 0.0
  %7007 = vmatprep.subr.mxu0 0.0
  %7008 = vmatpush1.msra.mxu0 0.0
  %7009 = vmatprep.subr.mxu0 0.0
  %7010 = vmatpush1.msra.mxu0 0.0
  %7011 = vmatprep.subr.mxu0 0.0
  %7012 = vmatpush1.msra.mxu0 0.0
  %7013 = vmatprep.subr.mxu0 0.0
  %7014 = vmatpush1.msra.mxu0 0.0
  %7015 = vmatprep.subr.mxu0 0.0
  %7016 = vmatpush1.msra.mxu0 0.0
  %7017 = vmatprep.subr.mxu0 0.0
  %7018 = vmatpush1.msra.mxu0 0.0
  %7019 = vmatprep.subr.mxu0 0.0
  %7020 = vmatpush1.msra.mxu0 0.0
  %7021 = vmatprep.subr.mxu0 0.0
  %7022 = vmatpush1.msra.mxu0 0.0
  %7023 = vmatprep.subr.mxu0 0.0
  %7024 = vmatpush1.msra.mxu0 0.0
  %7025 = vmatprep.subr.mxu0 0.0
  %7026 = vmatpush1.msra.mxu0 0.0
  %7027 = vmatprep.subr.mxu0 0.0
  %7028 = vmatpush1.msra.mxu0 0.0
  %7029 = vmatprep.subr.mxu0 %v6924
  %7030 = vmatpush1.msra.mxu0 %v6923
  %7031 = vmatprep.subr.mxu0 %v6920
  %7032 = vmatpush1.msra.mxu0 %v6919
  %7033 = vmatprep.subr.mxu0 0.0
  %7034 = vmatpush2.msra.mxu0 0.0
  %7035 = vmatprep.subr.mxu0 0.0
  %7036 = vmatpush2.msra.mxu0 0.0
  %7037 = vmatprep.subr.mxu0 0.0
  %7038 = vmatpush2.msra.mxu0 0.0
  %7039 = vmatprep.subr.mxu0 0.0
  %7040 = vmatpush2.msra.mxu0 0.0
  %7041 = vmatprep.subr.mxu0 0.0
  %7042 = vmatpush2.msra.mxu0 0.0
  %7043 = vmatprep.subr.mxu0 0.0
  %7044 = vmatpush2.msra.mxu0 0.0
  %7045 = vmatprep.subr.mxu0 0.0
  %7046 = vmatpush2.msra.mxu0 0.0
  %7047 = vmatprep.subr.mxu0 0.0
  %7048 = vmatpush2.msra.mxu0 0.0
  %7049 = vmatprep.subr.mxu0 0.0
  %7050 = vmatpush2.msra.mxu0 0.0
  %7051 = vmatprep.subr.mxu0 0.0
  %7052 = vmatpush2.msra.mxu0 0.0
  %7053 = vmatprep.subr.mxu0 0.0
  %7054 = vmatpush2.msra.mxu0 0.0
  %7055 = vmatprep.subr.mxu0 0.0
  %7056 = vmatpush2.msra.mxu0 0.0
  %7057 = vmatprep.subr.mxu0 0.0
  %7058 = vmatpush2.msra.mxu0 0.0
  %7059 = vmatprep.subr.mxu0 0.0
  %7060 = vmatpush2.msra.mxu0 0.0
  %7061 = vmatprep.subr.mxu0 0.0
  %7062 = vmatpush2.msra.mxu0 0.0
  %7063 = vmatprep.subr.mxu0 0.0
  %7064 = vmatpush2.msra.mxu0 0.0
  %7065 = vmatprep.mubr.f32.mxu0 0.0
  %7066 = vmatmul.mubr.f32.gmra.mxu0 %v6928
  %v7067 = vpop.f32.mrf.mxu0
  %v7068 = vadd.f32 0.0, %v7067
  %v7069 = vpop.f32.mrf.mxu0
  %v7070 = vadd.f32 0.0, %v7069
  %7071 = vdwg.mxu0
  %v7072 = vadd.f32 %v6889, %v6997
  %v7073 = vadd.f32 %v6890, %v6999
  %v7074 = vadd.f32 %v6891, %v7068
  %v7075 = vadd.f32 %v6892, %v7070
  %7077 = vset.pattern.permute.xlu0 0
  %7078 = vperm.xlu0 %7077, %v5461
  %v7079 = vpop.permute.xlu0 %7078
  %v7081 = vadd.f32 %v7072, %v7079
  %v7082 = vadd.f32 %v7073, %v7079
  %v7083 = vadd.f32 %v7074, %v7079
  %v7084 = vadd.f32 %v7075, %v7079
  %v7089 = vcombine.low %v7081, %v7082
  %v7090 = vcombine.low %v7083, %v7084
  %7093 = vst [vmem:[%s10] sm:$0x77] %v7089
  %7094 = vst [vmem:[%s10 + $0x8] sm:$0x77] %v7090
  // Predicated region
  $region42: #{conditional_nafnet_forward.1} parent=0 // pred_check
    _
  $region43: #{conditional_nafnet_forward.1} parent=0 // pred_check_branch
    %7096 = sbr.rel (0) target = $region45
  $region44: #{conditional_nafnet_forward.1} parent=0 // pred_region
    _
  $region45: #{conditional_nafnet_forward.1} parent=0 // pred_fallthru
    _
  // Predicated region
  $region46: #{conditional_nafnet_forward.1} parent=0 // pred_check
    _
  $region47: #{conditional_nafnet_forward.1} parent=0 // pred_check_branch
    %7098 = sbr.rel (0) target = $region49
  $region48: #{conditional_nafnet_forward.1} parent=0 // pred_region
    _
  $region49: #{conditional_nafnet_forward.1} parent=0 // pred_fallthru
    _

</llo_original>
